<compile_context>
chip_gen: v6e
topology: v6e:2x2x1
jax: 0.10.0
libtpu: 0.0.40
codegen_flags: <defaults>
</compile_context>

<pallas_src>
import jax
import jax.numpy as jnp
from jax.experimental import pallas as pl
from jax.experimental.pallas import tpu as pltpu

EPS = 1e-5


def _round_up(x, m):
    return (x + m - 1) // m * m


def _double_conv_kernel(x_ref, w1_ref, g1_ref, b1_ref, w2_ref, g2_ref, b2_ref,
                        out_ref, pad_ref):
    """Fused Conv3x3 -> BN(train) -> ReLU -> Conv3x3 -> BN(train) -> ReLU.

    x_ref  : (N, H, W, Cin)        f32 input
    w1_ref : (9*Cin,  Cout)        bf16 conv1 weights (HWIO flattened, packed K)
    g1_ref, b1_ref : (1, Cout)     f32 BN1 gamma / beta
    w2_ref : (9*Cout, Cout)        bf16 conv2 weights
    g2_ref, b2_ref : (1, Cout)     f32 BN2 gamma / beta
    out_ref: (N, H, W, Cout)       f32 output (exactly Cout channels)
    pad_ref: (N, H+2, Wp, Cbuf)    f32 shared halo-padded scratch; holds the
                                   padded input for conv1, then the padded
                                   conv1 activation for conv2 (never both).
    """
    N, H, W, Cin = x_ref.shape
    Cout = out_ref.shape[-1]
    Wp = pad_ref.shape[2]
    Cbuf = pad_ref.shape[-1]
    M = N * H * W

    # ---- zero only the 1-pixel halo frame; interiors are fully overwritten ----
    zrow = jnp.zeros((N, 1, Wp, Cbuf), jnp.float32)
    zcol = jnp.zeros((N, H + 2, 1, Cbuf), jnp.float32)
    pad_ref[:, 0:1, :, :] = zrow
    pad_ref[:, H + 1:H + 2, :, :] = zrow
    pad_ref[:, :, 0:1, :] = zcol
    pad_ref[:, :, W + 1:W + 2, :] = zcol

    def im2col(c):
        # Pack the 9 taps contiguously along lanes (K = 9*c); bf16 operands for
        # the bf16-native MXU, accumulation below is f32.
        taps = []
        for t in range(9):
            dy, dx = divmod(t, 3)
            taps.append(pad_ref[:, dy:dy + H, dx:dx + W, :c].reshape(M, c))
        return jnp.concatenate(taps, axis=-1).astype(jnp.bfloat16)

    def bn_relu(acc, g, b):
        # Training-mode BN (biased variance over N*H*W), single stats pass
        # (mean + mean-of-squares) and a single fused apply + ReLU, all f32.
        mean = jnp.mean(acc, axis=0, keepdims=True)
        var = jnp.maximum(
            jnp.mean(acc * acc, axis=0, keepdims=True) - mean * mean, 0.0)
        scale = g * jax.lax.rsqrt(var + EPS)
        bias = b - mean * scale
        return jnp.maximum(acc * scale + bias, 0.0)

    # ---- block 1: conv1 -> BN1 -> ReLU (intermediate stays in VMEM) ----
    pad_ref[:, 1:H + 1, 1:W + 1, :Cin] = x_ref[...]
    acc1 = jnp.dot(im2col(Cin), w1_ref[...],
                   preferred_element_type=jnp.float32)            # (M, Cout) f32
    h1 = bn_relu(acc1, g1_ref[...], b1_ref[...])

    # ---- block 2: conv2 -> BN2 -> ReLU (reuses the same padded scratch) ----
    pad_ref[:, 1:H + 1, 1:W + 1, :Cout] = h1.reshape(N, H, W, Cout)
    acc2 = jnp.dot(im2col(Cout), w2_ref[...],
                   preferred_element_type=jnp.float32)            # (M, Cout) f32
    y = bn_relu(acc2, g2_ref[...], b2_ref[...])

    out_ref[...] = y.reshape(N, H, W, Cout)


def _tile_padded_bytes(shape, dtype):
    """Approximate VMEM footprint of a buffer (last two dims padded to (8,128))."""
    s = list(shape)
    s[-1] = _round_up(s[-1], 128)
    if len(s) >= 2:
        s[-2] = _round_up(s[-2], 8)
    n = 1
    for d in s:
        n *= int(d)
    return n * jnp.dtype(dtype).itemsize


def _vmem_limit_bytes(working_set_bytes):
    """Size the scoped-VMEM limit from the working set, capped per generation."""
    try:
        cap = int(pltpu.get_tpu_info().vmem_capacity_bytes)
    except Exception:                       # fall back to smallest (v7x: 64 MiB)
        cap = 64 * 1024 * 1024
    want = max(2 * working_set_bytes + (4 << 20), 32 << 20)
    return int(min(want, (cap * 3) // 4))


def double_conv(x_nchw, params):
    """Equivalent of DoubleConv.forward (training-mode BN). x_nchw: (N,Cin,H,W) f32."""
    w1, g1, b1, w2, g2, b2 = params
    N, Cin, H, W = x_nchw.shape
    Cout = w1.shape[-1]
    Cbuf = max(Cin, Cout)                   # shared padded-activation channel width
    Wp = _round_up(W + 2, 8)                # sublane-aligned W pitch

    # NCHW -> NHWC interface glue (module interface is NCHW; internals NHWC).
    x = jnp.transpose(x_nchw, (0, 2, 3, 1)).astype(jnp.float32)

    # Tap-packed HWIO weights (K = 9*C), bf16 for the MXU.  BN params stay f32.
    w1p = w1.reshape(9 * Cin, Cout).astype(jnp.bfloat16)
    w2p = w2.reshape(9 * Cout, Cout).astype(jnp.bfloat16)
    g1r = g1.reshape(1, Cout).astype(jnp.float32)
    b1r = b1.reshape(1, Cout).astype(jnp.float32)
    g2r = g2.reshape(1, Cout).astype(jnp.float32)
    b2r = b2.reshape(1, Cout).astype(jnp.float32)

    # Working-set estimate (inputs, output, scratch, traced im2col/acc temps).
    buffers = (
        ((N, H, W, Cin), jnp.float32),
        ((9 * Cin, Cout), jnp.bfloat16),
        ((9 * Cout, Cout), jnp.bfloat16),
        ((1, Cout), jnp.float32), ((1, Cout), jnp.float32),
        ((1, Cout), jnp.float32), ((1, Cout), jnp.float32),
        ((N, H, W, Cout), jnp.float32),
        ((N, H + 2, Wp, Cbuf), jnp.float32),
        ((N * H * W, 9 * Cbuf), jnp.bfloat16),
        ((N * H * W, Cout), jnp.float32),
    )
    working_set = sum(_tile_padded_bytes(s, d) for s, d in buffers)

    out = pl.pallas_call(
        _double_conv_kernel,
        out_shape=jax.ShapeDtypeStruct((N, H, W, Cout), jnp.float32),
        in_specs=[pl.BlockSpec(memory_space=pltpu.MemorySpace.VMEM)] * 7,
        out_specs=pl.BlockSpec(memory_space=pltpu.MemorySpace.VMEM),
        scratch_shapes=[pltpu.VMEM((N, H + 2, Wp, Cbuf), jnp.float32)],
        compiler_params=pltpu.CompilerParams(
            vmem_limit_bytes=_vmem_limit_bytes(working_set)),
    )(x, w1p, g1r, b1r, w2p, g2r, b2r)

    # NHWC -> NCHW (interface glue; drop if the surrounding model is NHWC).
    return jnp.transpose(out, (0, 3, 1, 2))


def init_params(key, input_channels, output_channels):
    """Deterministic synthetic init (HWIO conv weights, non-trivial BN affine)."""
    k1, k2, k3, k4, k5, k6 = jax.random.split(key, 6)
    w1 = 0.1 * jax.random.normal(k1, (3, 3, input_channels, output_channels), jnp.float32)
    w2 = 0.1 * jax.random.normal(k2, (3, 3, output_channels, output_channels), jnp.float32)
    g1 = 1.0 + 0.1 * jax.random.normal(k3, (output_channels,), jnp.float32)
    b1 = 0.1 * jax.random.normal(k4, (output_channels,), jnp.float32)
    g2 = 1.0 + 0.1 * jax.random.normal(k5, (output_channels,), jnp.float32)
    b2 = 0.1 * jax.random.normal(k6, (output_channels,), jnp.float32)
    return (w1, g1, b1, w2, g2, b2)


def _reference_double_conv(x_nchw, params, matmul_dtype=jnp.float32):
    """Pure-JAX reference (training-mode BN).

    matmul_dtype=bf16 reproduces the kernel's bf16-operand / f32-accumulate MXU
    path; matmul_dtype=f32 is the exact PyTorch-module semantics.
    """
    w1, g1, b1, w2, g2, b2 = params

    def cast(a):
        return a.astype(matmul_dtype).astype(jnp.float32)

    x = jnp.transpose(x_nchw, (0, 2, 3, 1))

    def block(h, w, g, b):
        y = jax.lax.conv_general_dilated(
            cast(h), cast(w), window_strides=(1, 1), padding="SAME",
            dimension_numbers=("NHWC", "HWIO", "NHWC"),
            precision=jax.lax.Precision.HIGHEST,
            preferred_element_type=jnp.float32)
        m = jnp.mean(y, axis=(0, 1, 2))
        v = jnp.mean(jnp.square(y - m), axis=(0, 1, 2))
        y = (y - m) * jax.lax.rsqrt(v + EPS) * g + b
        return jnp.maximum(y, 0.0)

    o = block(block(x, w1, g1, b1), w2, g2, b2)
    return jnp.transpose(o, (0, 3, 1, 2))


if __name__ == "__main__":
    key = jax.random.PRNGKey(0)
    kx, kp = jax.random.split(key)

    N, Cin, Cout, H, W = 2, 4, 8, 16, 16
    x = jax.random.normal(kx, (N, Cin, H, W), jnp.float32)
    params = init_params(kp, Cin, Cout)

    out = jax.block_until_ready(double_conv(x, params))
    assert out.shape == (N, Cout, H, W)

    # Tight check vs a reference that matches the kernel's bf16-operand /
    # f32-accumulate matmul precision.
    ref_bf16 = jax.block_until_ready(
        _reference_double_conv(x, params, matmul_dtype=jnp.bfloat16))
    assert jnp.allclose(out, ref_bf16, atol=5e-3, rtol=5e-3), \
        "mismatch vs precision-matched JAX reference"

    # Loose sanity check vs exact f32 module semantics (bf16 MXU operands add
    # ~1e-2 absolute error after two conv+BN blocks).
    ref_f32 = jax.block_until_ready(_reference_double_conv(x, params))
    assert jnp.allclose(out, ref_f32, atol=5e-2, rtol=5e-2), \
        "mismatch vs f32 JAX reference"

    print("KERNEL_OK")
</pallas_src>

<mosaic_0001>
module attributes {stable_mosaic.version = 11 : i64} {
  func.func @_double_conv_kernel(%arg0: memref<2x16x16x4xf32, #tpu.memory_space<vmem>>, %arg1: memref<36x8xbf16, #tpu.memory_space<vmem>>, %arg2: memref<1x8xf32, #tpu.memory_space<vmem>>, %arg3: memref<1x8xf32, #tpu.memory_space<vmem>>, %arg4: memref<72x8xbf16, #tpu.memory_space<vmem>>, %arg5: memref<1x8xf32, #tpu.memory_space<vmem>>, %arg6: memref<1x8xf32, #tpu.memory_space<vmem>>, %arg7: memref<2x16x16x8xf32, #tpu.memory_space<vmem>>, %arg8: memref<2x18x24x8xf32, #tpu.memory_space<vmem>>) attributes {dimension_semantics = [], scalar_prefetch = 0 : i64, scratch_operands = 1 : i64, tpu.core_type = #tpu.core_type<tc>} {
    %cst = arith.constant 0.000000e+00 : f32
    %0 = vector.broadcast %cst : f32 to vector<2x1x24x8xf32>
    %cst_0 = arith.constant 0.000000e+00 : f32
    %1 = vector.broadcast %cst_0 : f32 to vector<2x18x1x8xf32>
    %c0 = arith.constant 0 : index
    %c0_1 = arith.constant 0 : index
    %c0_2 = arith.constant 0 : index
    %c0_3 = arith.constant 0 : index
    %2 = vector.load %arg8[%c0, %c0_1, %c0_2, %c0_3] : memref<2x18x24x8xf32, #tpu.memory_space<vmem>>, vector<2x1x24x8xf32>
    tpu.vector_store %arg8[%c0, %c0_1, %c0_2, %c0_3], %0 {strides = array<i32>} : memref<2x18x24x8xf32, #tpu.memory_space<vmem>>, vector<2x1x24x8xf32>,
    %c0_4 = arith.constant 0 : index
    %c17 = arith.constant 17 : index
    %c0_5 = arith.constant 0 : index
    %c0_6 = arith.constant 0 : index
    %3 = vector.load %arg8[%c0_4, %c17, %c0_5, %c0_6] : memref<2x18x24x8xf32, #tpu.memory_space<vmem>>, vector<2x1x24x8xf32>
    tpu.vector_store %arg8[%c0_4, %c17, %c0_5, %c0_6], %0 {strides = array<i32>} : memref<2x18x24x8xf32, #tpu.memory_space<vmem>>, vector<2x1x24x8xf32>,
    %c0_7 = arith.constant 0 : index
    %c0_8 = arith.constant 0 : index
    %c0_9 = arith.constant 0 : index
    %c0_10 = arith.constant 0 : index
    %4 = vector.load %arg8[%c0_7, %c0_8, %c0_9, %c0_10] : memref<2x18x24x8xf32, #tpu.memory_space<vmem>>, vector<2x18x1x8xf32>
    tpu.vector_store %arg8[%c0_7, %c0_8, %c0_9, %c0_10], %1 {strides = array<i32>} : memref<2x18x24x8xf32, #tpu.memory_space<vmem>>, vector<2x18x1x8xf32>,
    %c0_11 = arith.constant 0 : index
    %c0_12 = arith.constant 0 : index
    %c17_13 = arith.constant 17 : index
    %c0_14 = arith.constant 0 : index
    %5 = vector.load %arg8[%c0_11, %c0_12, %c17_13, %c0_14] : memref<2x18x24x8xf32, #tpu.memory_space<vmem>>, vector<2x18x1x8xf32>
    tpu.vector_store %arg8[%c0_11, %c0_12, %c17_13, %c0_14], %1 {strides = array<i32>} : memref<2x18x24x8xf32, #tpu.memory_space<vmem>>, vector<2x18x1x8xf32>,
    %c0_15 = arith.constant 0 : index
    %c0_16 = arith.constant 0 : index
    %c0_17 = arith.constant 0 : index
    %c0_18 = arith.constant 0 : index
    %6 = vector.load %arg0[%c0_15, %c0_16, %c0_17, %c0_18] : memref<2x16x16x4xf32, #tpu.memory_space<vmem>>, vector<2x16x16x4xf32>
    %c0_19 = arith.constant 0 : index
    %c1 = arith.constant 1 : index
    %c1_20 = arith.constant 1 : index
    %c0_21 = arith.constant 0 : index
    %7 = vector.load %arg8[%c0_19, %c1, %c1_20, %c0_21] : memref<2x18x24x8xf32, #tpu.memory_space<vmem>>, vector<2x16x16x4xf32>
    tpu.vector_store %arg8[%c0_19, %c1, %c1_20, %c0_21], %6 {strides = array<i32>} : memref<2x18x24x8xf32, #tpu.memory_space<vmem>>, vector<2x16x16x4xf32>,
    %c0_22 = arith.constant 0 : index
    %c0_23 = arith.constant 0 : index
    %c0_24 = arith.constant 0 : index
    %c0_25 = arith.constant 0 : index
    %8 = vector.load %arg8[%c0_22, %c0_23, %c0_24, %c0_25] : memref<2x18x24x8xf32, #tpu.memory_space<vmem>>, vector<2x16x16x4xf32>
    %9 = vector.shape_cast %8 : vector<2x16x16x4xf32> to vector<512x4xf32>
    %c0_26 = arith.constant 0 : index
    %c0_27 = arith.constant 0 : index
    %c1_28 = arith.constant 1 : index
    %c0_29 = arith.constant 0 : index
    %10 = vector.load %arg8[%c0_26, %c0_27, %c1_28, %c0_29] : memref<2x18x24x8xf32, #tpu.memory_space<vmem>>, vector<2x16x16x4xf32>
    %11 = vector.shape_cast %10 : vector<2x16x16x4xf32> to vector<512x4xf32>
    %c0_30 = arith.constant 0 : index
    %c0_31 = arith.constant 0 : index
    %c2 = arith.constant 2 : index
    %c0_32 = arith.constant 0 : index
    %12 = vector.load %arg8[%c0_30, %c0_31, %c2, %c0_32] : memref<2x18x24x8xf32, #tpu.memory_space<vmem>>, vector<2x16x16x4xf32>
    %13 = vector.shape_cast %12 : vector<2x16x16x4xf32> to vector<512x4xf32>
    %c0_33 = arith.constant 0 : index
    %c1_34 = arith.constant 1 : index
    %c0_35 = arith.constant 0 : index
    %c0_36 = arith.constant 0 : index
    %14 = vector.load %arg8[%c0_33, %c1_34, %c0_35, %c0_36] : memref<2x18x24x8xf32, #tpu.memory_space<vmem>>, vector<2x16x16x4xf32>
    %15 = vector.shape_cast %14 : vector<2x16x16x4xf32> to vector<512x4xf32>
    %c0_37 = arith.constant 0 : index
    %c1_38 = arith.constant 1 : index
    %c1_39 = arith.constant 1 : index
    %c0_40 = arith.constant 0 : index
    %16 = vector.load %arg8[%c0_37, %c1_38, %c1_39, %c0_40] : memref<2x18x24x8xf32, #tpu.memory_space<vmem>>, vector<2x16x16x4xf32>
    %17 = vector.shape_cast %16 : vector<2x16x16x4xf32> to vector<512x4xf32>
    %c0_41 = arith.constant 0 : index
    %c1_42 = arith.constant 1 : index
    %c2_43 = arith.constant 2 : index
    %c0_44 = arith.constant 0 : index
    %18 = vector.load %arg8[%c0_41, %c1_42, %c2_43, %c0_44] : memref<2x18x24x8xf32, #tpu.memory_space<vmem>>, vector<2x16x16x4xf32>
    %19 = vector.shape_cast %18 : vector<2x16x16x4xf32> to vector<512x4xf32>
    %c0_45 = arith.constant 0 : index
    %c2_46 = arith.constant 2 : index
    %c0_47 = arith.constant 0 : index
    %c0_48 = arith.constant 0 : index
    %20 = vector.load %arg8[%c0_45, %c2_46, %c0_47, %c0_48] : memref<2x18x24x8xf32, #tpu.memory_space<vmem>>, vector<2x16x16x4xf32>
    %21 = vector.shape_cast %20 : vector<2x16x16x4xf32> to vector<512x4xf32>
    %c0_49 = arith.constant 0 : index
    %c2_50 = arith.constant 2 : index
    %c1_51 = arith.constant 1 : index
    %c0_52 = arith.constant 0 : index
    %22 = vector.load %arg8[%c0_49, %c2_50, %c1_51, %c0_52] : memref<2x18x24x8xf32, #tpu.memory_space<vmem>>, vector<2x16x16x4xf32>
    %23 = vector.shape_cast %22 : vector<2x16x16x4xf32> to vector<512x4xf32>
    %c0_53 = arith.constant 0 : index
    %c2_54 = arith.constant 2 : index
    %c2_55 = arith.constant 2 : index
    %c0_56 = arith.constant 0 : index
    %24 = vector.load %arg8[%c0_53, %c2_54, %c2_55, %c0_56] : memref<2x18x24x8xf32, #tpu.memory_space<vmem>>, vector<2x16x16x4xf32>
    %25 = vector.shape_cast %24 : vector<2x16x16x4xf32> to vector<512x4xf32>
    %26 = tpu.concatenate %9, %11, %13, %15, %17, %19, %21, %23, %25 in 1 : vector<512x4xf32>, vector<512x4xf32>, vector<512x4xf32>, vector<512x4xf32>, vector<512x4xf32>, vector<512x4xf32>, vector<512x4xf32>, vector<512x4xf32>, vector<512x4xf32> -> vector<512x36xf32>
    %27 = arith.truncf %26 : vector<512x36xf32> to vector<512x36xbf16>
    %c0_57 = arith.constant 0 : index
    %c0_58 = arith.constant 0 : index
    %28 = vector.load %arg1[%c0_57, %c0_58] : memref<36x8xbf16, #tpu.memory_space<vmem>>, vector<36x8xbf16>
    %cst_59 = arith.constant dense<0.000000e+00> : vector<512x8xf32>
    %29 = tpu.matmul %27, %28, %cst_59 {dimension_numbers = #tpu.dot_dimension_numbers<[1], [0], [0], [1], [0, 0, 1, 1], [], []>} : vector<512x36xbf16>, vector<36x8xbf16>, vector<512x8xf32> -> vector<512x8xf32>
    %c0_60 = arith.constant 0 : index
    %c0_61 = arith.constant 0 : index
    %30 = vector.load %arg2[%c0_60, %c0_61] : memref<1x8xf32, #tpu.memory_space<vmem>>, vector<1x8xf32>
    %c0_62 = arith.constant 0 : index
    %c0_63 = arith.constant 0 : index
    %31 = vector.load %arg3[%c0_62, %c0_63] : memref<1x8xf32, #tpu.memory_space<vmem>>, vector<1x8xf32>
    %cst_64 = arith.constant dense<0.000000e+00> : vector<8xf32>
    %32 = vector.multi_reduction <add>, %29, %cst_64 [0] : vector<512x8xf32> to vector<8xf32>
    %33 = vector.shape_cast %32 : vector<8xf32> to vector<1x8xf32>
    %cst_65 = arith.constant 5.120000e+02 : f32
    %34 = vector.broadcast %cst_65 : f32 to vector<1x8xf32>
    %35 = arith.divf %33, %34 : vector<1x8xf32>
    %36 = arith.mulf %29, %29 : vector<512x8xf32>
    %cst_66 = arith.constant dense<0.000000e+00> : vector<8xf32>
    %37 = vector.multi_reduction <add>, %36, %cst_66 [0] : vector<512x8xf32> to vector<8xf32>
    %38 = vector.shape_cast %37 : vector<8xf32> to vector<1x8xf32>
    %cst_67 = arith.constant 5.120000e+02 : f32
    %39 = vector.broadcast %cst_67 : f32 to vector<1x8xf32>
    %40 = arith.divf %38, %39 : vector<1x8xf32>
    %41 = arith.mulf %35, %35 : vector<1x8xf32>
    %42 = arith.subf %40, %41 : vector<1x8xf32>
    %cst_68 = arith.constant 0.000000e+00 : f32
    %43 = vector.broadcast %cst_68 : f32 to vector<1x8xf32>
    %44 = arith.maximumf %42, %43 : vector<1x8xf32>
    %cst_69 = arith.constant 9.99999974E-6 : f32
    %45 = vector.broadcast %cst_69 : f32 to vector<1x8xf32>
    %46 = arith.addf %44, %45 : vector<1x8xf32>
    %47 = math.rsqrt %46 : vector<1x8xf32>
    %48 = arith.mulf %30, %47 : vector<1x8xf32>
    %49 = arith.mulf %35, %48 : vector<1x8xf32>
    %50 = arith.subf %31, %49 : vector<1x8xf32>
    %51 = vector.broadcast %48 : vector<1x8xf32> to vector<512x8xf32>
    %52 = arith.mulf %29, %51 : vector<512x8xf32>
    %53 = vector.broadcast %50 : vector<1x8xf32> to vector<512x8xf32>
    %54 = arith.addf %52, %53 : vector<512x8xf32>
    %cst_70 = arith.constant 0.000000e+00 : f32
    %55 = vector.broadcast %cst_70 : f32 to vector<512x8xf32>
    %56 = arith.maximumf %54, %55 : vector<512x8xf32>
    %57 = vector.shape_cast %56 : vector<512x8xf32> to vector<2x16x16x8xf32>
    %c0_71 = arith.constant 0 : index
    %c1_72 = arith.constant 1 : index
    %c1_73 = arith.constant 1 : index
    %c0_74 = arith.constant 0 : index
    %58 = vector.load %arg8[%c0_71, %c1_72, %c1_73, %c0_74] : memref<2x18x24x8xf32, #tpu.memory_space<vmem>>, vector<2x16x16x8xf32>
    tpu.vector_store %arg8[%c0_71, %c1_72, %c1_73, %c0_74], %57 {strides = array<i32>} : memref<2x18x24x8xf32, #tpu.memory_space<vmem>>, vector<2x16x16x8xf32>,
    %c0_75 = arith.constant 0 : index
    %c0_76 = arith.constant 0 : index
    %c0_77 = arith.constant 0 : index
    %c0_78 = arith.constant 0 : index
    %59 = vector.load %arg8[%c0_75, %c0_76, %c0_77, %c0_78] : memref<2x18x24x8xf32, #tpu.memory_space<vmem>>, vector<2x16x16x8xf32>
    %60 = vector.shape_cast %59 : vector<2x16x16x8xf32> to vector<512x8xf32>
    %c0_79 = arith.constant 0 : index
    %c0_80 = arith.constant 0 : index
    %c1_81 = arith.constant 1 : index
    %c0_82 = arith.constant 0 : index
    %61 = vector.load %arg8[%c0_79, %c0_80, %c1_81, %c0_82] : memref<2x18x24x8xf32, #tpu.memory_space<vmem>>, vector<2x16x16x8xf32>
    %62 = vector.shape_cast %61 : vector<2x16x16x8xf32> to vector<512x8xf32>
    %c0_83 = arith.constant 0 : index
    %c0_84 = arith.constant 0 : index
    %c2_85 = arith.constant 2 : index
    %c0_86 = arith.constant 0 : index
    %63 = vector.load %arg8[%c0_83, %c0_84, %c2_85, %c0_86] : memref<2x18x24x8xf32, #tpu.memory_space<vmem>>, vector<2x16x16x8xf32>
    %64 = vector.shape_cast %63 : vector<2x16x16x8xf32> to vector<512x8xf32>
    %c0_87 = arith.constant 0 : index
    %c1_88 = arith.constant 1 : index
    %c0_89 = arith.constant 0 : index
    %c0_90 = arith.constant 0 : index
    %65 = vector.load %arg8[%c0_87, %c1_88, %c0_89, %c0_90] : memref<2x18x24x8xf32, #tpu.memory_space<vmem>>, vector<2x16x16x8xf32>
    %66 = vector.shape_cast %65 : vector<2x16x16x8xf32> to vector<512x8xf32>
    %c0_91 = arith.constant 0 : index
    %c1_92 = arith.constant 1 : index
    %c1_93 = arith.constant 1 : index
    %c0_94 = arith.constant 0 : index
    %67 = vector.load %arg8[%c0_91, %c1_92, %c1_93, %c0_94] : memref<2x18x24x8xf32, #tpu.memory_space<vmem>>, vector<2x16x16x8xf32>
    %68 = vector.shape_cast %67 : vector<2x16x16x8xf32> to vector<512x8xf32>
    %c0_95 = arith.constant 0 : index
    %c1_96 = arith.constant 1 : index
    %c2_97 = arith.constant 2 : index
    %c0_98 = arith.constant 0 : index
    %69 = vector.load %arg8[%c0_95, %c1_96, %c2_97, %c0_98] : memref<2x18x24x8xf32, #tpu.memory_space<vmem>>, vector<2x16x16x8xf32>
    %70 = vector.shape_cast %69 : vector<2x16x16x8xf32> to vector<512x8xf32>
    %c0_99 = arith.constant 0 : index
    %c2_100 = arith.constant 2 : index
    %c0_101 = arith.constant 0 : index
    %c0_102 = arith.constant 0 : index
    %71 = vector.load %arg8[%c0_99, %c2_100, %c0_101, %c0_102] : memref<2x18x24x8xf32, #tpu.memory_space<vmem>>, vector<2x16x16x8xf32>
    %72 = vector.shape_cast %71 : vector<2x16x16x8xf32> to vector<512x8xf32>
    %c0_103 = arith.constant 0 : index
    %c2_104 = arith.constant 2 : index
    %c1_105 = arith.constant 1 : index
    %c0_106 = arith.constant 0 : index
    %73 = vector.load %arg8[%c0_103, %c2_104, %c1_105, %c0_106] : memref<2x18x24x8xf32, #tpu.memory_space<vmem>>, vector<2x16x16x8xf32>
    %74 = vector.shape_cast %73 : vector<2x16x16x8xf32> to vector<512x8xf32>
    %c0_107 = arith.constant 0 : index
    %c2_108 = arith.constant 2 : index
    %c2_109 = arith.constant 2 : index
    %c0_110 = arith.constant 0 : index
    %75 = vector.load %arg8[%c0_107, %c2_108, %c2_109, %c0_110] : memref<2x18x24x8xf32, #tpu.memory_space<vmem>>, vector<2x16x16x8xf32>
    %76 = vector.shape_cast %75 : vector<2x16x16x8xf32> to vector<512x8xf32>
    %77 = tpu.concatenate %60, %62, %64, %66, %68, %70, %72, %74, %76 in 1 : vector<512x8xf32>, vector<512x8xf32>, vector<512x8xf32>, vector<512x8xf32>, vector<512x8xf32>, vector<512x8xf32>, vector<512x8xf32>, vector<512x8xf32>, vector<512x8xf32> -> vector<512x72xf32>
    %78 = arith.truncf %77 : vector<512x72xf32> to vector<512x72xbf16>
    %c0_111 = arith.constant 0 : index
    %c0_112 = arith.constant 0 : index
    %79 = vector.load %arg4[%c0_111, %c0_112] : memref<72x8xbf16, #tpu.memory_space<vmem>>, vector<72x8xbf16>
    %cst_113 = arith.constant dense<0.000000e+00> : vector<512x8xf32>
    %80 = tpu.matmul %78, %79, %cst_113 {dimension_numbers = #tpu.dot_dimension_numbers<[1], [0], [0], [1], [0, 0, 1, 1], [], []>} : vector<512x72xbf16>, vector<72x8xbf16>, vector<512x8xf32> -> vector<512x8xf32>
    %c0_114 = arith.constant 0 : index
    %c0_115 = arith.constant 0 : index
    %81 = vector.load %arg5[%c0_114, %c0_115] : memref<1x8xf32, #tpu.memory_space<vmem>>, vector<1x8xf32>
    %c0_116 = arith.constant 0 : index
    %c0_117 = arith.constant 0 : index
    %82 = vector.load %arg6[%c0_116, %c0_117] : memref<1x8xf32, #tpu.memory_space<vmem>>, vector<1x8xf32>
    %cst_118 = arith.constant dense<0.000000e+00> : vector<8xf32>
    %83 = vector.multi_reduction <add>, %80, %cst_118 [0] : vector<512x8xf32> to vector<8xf32>
    %84 = vector.shape_cast %83 : vector<8xf32> to vector<1x8xf32>
    %cst_119 = arith.constant 5.120000e+02 : f32
    %85 = vector.broadcast %cst_119 : f32 to vector<1x8xf32>
    %86 = arith.divf %84, %85 : vector<1x8xf32>
    %87 = arith.mulf %80, %80 : vector<512x8xf32>
    %cst_120 = arith.constant dense<0.000000e+00> : vector<8xf32>
    %88 = vector.multi_reduction <add>, %87, %cst_120 [0] : vector<512x8xf32> to vector<8xf32>
    %89 = vector.shape_cast %88 : vector<8xf32> to vector<1x8xf32>
    %cst_121 = arith.constant 5.120000e+02 : f32
    %90 = vector.broadcast %cst_121 : f32 to vector<1x8xf32>
    %91 = arith.divf %89, %90 : vector<1x8xf32>
    %92 = arith.mulf %86, %86 : vector<1x8xf32>
    %93 = arith.subf %91, %92 : vector<1x8xf32>
    %cst_122 = arith.constant 0.000000e+00 : f32
    %94 = vector.broadcast %cst_122 : f32 to vector<1x8xf32>
    %95 = arith.maximumf %93, %94 : vector<1x8xf32>
    %cst_123 = arith.constant 9.99999974E-6 : f32
    %96 = vector.broadcast %cst_123 : f32 to vector<1x8xf32>
    %97 = arith.addf %95, %96 : vector<1x8xf32>
    %98 = math.rsqrt %97 : vector<1x8xf32>
    %99 = arith.mulf %81, %98 : vector<1x8xf32>
    %100 = arith.mulf %86, %99 : vector<1x8xf32>
    %101 = arith.subf %82, %100 : vector<1x8xf32>
    %102 = vector.broadcast %99 : vector<1x8xf32> to vector<512x8xf32>
    %103 = arith.mulf %80, %102 : vector<512x8xf32>
    %104 = vector.broadcast %101 : vector<1x8xf32> to vector<512x8xf32>
    %105 = arith.addf %103, %104 : vector<512x8xf32>
    %cst_124 = arith.constant 0.000000e+00 : f32
    %106 = vector.broadcast %cst_124 : f32 to vector<512x8xf32>
    %107 = arith.maximumf %105, %106 : vector<512x8xf32>
    %108 = vector.shape_cast %107 : vector<512x8xf32> to vector<2x16x16x8xf32>
    %c0_125 = arith.constant 0 : index
    %c0_126 = arith.constant 0 : index
    %c0_127 = arith.constant 0 : index
    %c0_128 = arith.constant 0 : index
    %109 = vector.load %arg7[%c0_125, %c0_126, %c0_127, %c0_128] : memref<2x16x16x8xf32, #tpu.memory_space<vmem>>, vector<2x16x16x8xf32>
    tpu.vector_store %arg7[%c0_125, %c0_126, %c0_127, %c0_128], %108 {strides = array<i32>} : memref<2x16x16x8xf32, #tpu.memory_space<vmem>>, vector<2x16x16x8xf32>,
    return
  }
}

</mosaic_0001>

<llo_original>
// kernel: tpu_custom_call.1
$region0: #{tpu_custom_call.1}
  #allocation0 [shape = 'u32[]', space=smem, size = 0x4, offset = 0x4, fixed_abs, tag = 'smem constant byte address 0x4 - core index']
  #allocation1 [shape = 'u32[144,128]{1,0:T(1,128)}', space=vmem, size = 0x12000, scoped, tag = 'internal scratch']
  #allocation2 [shape = 'f32[2,18,24,8]{3,2,1,0:T(8,128)}', space=vmem, size = 0x6c000, scoped, tag = 'scratch operand']
  %s0 = inlined_call_operand.vmem [shape: f32[2,16,16,4], index: 0, kind: input, shape index: {}]
  %s1 = inlined_call_operand.vmem [shape: bf16[36,8], index: 1, kind: input, shape index: {}]
  %s2 = inlined_call_operand.vmem [shape: f32[1,8], index: 2, kind: input, shape index: {}]
  %s3 = inlined_call_operand.vmem [shape: f32[1,8], index: 3, kind: input, shape index: {}]
  %s4 = inlined_call_operand.vmem [shape: bf16[72,8], index: 4, kind: input, shape index: {}]
  %s5 = inlined_call_operand.vmem [shape: f32[1,8], index: 5, kind: input, shape index: {}]
  %s6 = inlined_call_operand.vmem [shape: f32[1,8], index: 6, kind: input, shape index: {}]
  %s7 = inlined_call_operand.vmem [shape: f32[2,16,16,8], index: 7, kind: output, shape index: {}]
  %s8 = sld [smem:[#allocation0]]
  $region38: #{tpu_custom_call.1} parent=0
    _
  %s10 = ssub.s32 1, %s8
  %s11 = scalar_select 0, %s10, %s8
  // Predicated region
  $region2: #{tpu_custom_call.1} parent=0 // pred_check
    _
  $region3: #{tpu_custom_call.1} parent=0 // pred_check_branch
    %13 = sbr.rel (0) target = $region5
  $region4: #{tpu_custom_call.1} parent=0 // pred_region
    _
  $region5: #{tpu_custom_call.1} parent=0 // pred_fallthru
    _
  // Predicated region
  $region6: #{tpu_custom_call.1} parent=0 // pred_check
    _
  $region7: #{tpu_custom_call.1} parent=0 // pred_check_branch
    %15 = sbr.rel (0) target = $region9
  $region8: #{tpu_custom_call.1} parent=0 // pred_region
    _
  $region9: #{tpu_custom_call.1} parent=0 // pred_fallthru
    _
  // Predicated region
  $region10: #{tpu_custom_call.1} parent=0 // pred_check
    _
  $region11: #{tpu_custom_call.1} parent=0 // pred_check_branch
    %17 = sbr.rel (0) target = $region13
  $region12: #{tpu_custom_call.1} parent=0 // pred_region
    _
  $region13: #{tpu_custom_call.1} parent=0 // pred_fallthru
    _
  // Predicated region
  $region14: #{tpu_custom_call.1} parent=0 // pred_check
    _
  $region15: #{tpu_custom_call.1} parent=0 // pred_check_branch
    %19 = sbr.rel (0) target = $region17
  $region16: #{tpu_custom_call.1} parent=0 // pred_region
    _
  $region17: #{tpu_custom_call.1} parent=0 // pred_fallthru
    _
  // Predicated region
  $region18: #{tpu_custom_call.1} parent=0 // pred_check
    _
  $region19: #{tpu_custom_call.1} parent=0 // pred_check_branch
    %21 = sbr.rel (0) target = $region21
  $region20: #{tpu_custom_call.1} parent=0 // pred_region
    _
  $region21: #{tpu_custom_call.1} parent=0 // pred_fallthru
    _
  // Predicated region
  $region22: #{tpu_custom_call.1} parent=0 // pred_check
    _
  $region23: #{tpu_custom_call.1} parent=0 // pred_check_branch
    %23 = sbr.rel (0) target = $region25
  $region24: #{tpu_custom_call.1} parent=0 // pred_region
    _
  $region25: #{tpu_custom_call.1} parent=0 // pred_fallthru
    _
  // Predicated region
  $region26: #{tpu_custom_call.1} parent=0 // pred_check
    _
  $region27: #{tpu_custom_call.1} parent=0 // pred_check_branch
    %25 = sbr.rel (0) target = $region29
  $region28: #{tpu_custom_call.1} parent=0 // pred_region
    _
  $region29: #{tpu_custom_call.1} parent=0 // pred_fallthru
    _
  %vm27 = vcmask 64512
  %28 = vst.msk [vmem:[#allocation2] sm:$0xff] %vm27, 0.0
  %29 = vst.msk [vmem:[#allocation2 + $0x8] sm:$0xff] %vm27, 0.0
  %30 = vst.msk [vmem:[#allocation2 + $0x10] sm:$0xff] %vm27, 0.0
  %31 = vst.msk [vmem:[#allocation2 + $0x1b0] sm:$0xff] %vm27, 0.0
  %32 = vst.msk [vmem:[#allocation2 + $0x1b8] sm:$0xff] %vm27, 0.0
  %33 = vst.msk [vmem:[#allocation2 + $0x1c0] sm:$0xff] %vm27, 0.0
  %s34 = scalar_lea.vmem [#allocation2], 408
  %35 = vst.msk [vmem:[%s34] sm:$0xff] %vm27, 0.0
  %36 = vst.msk [vmem:[%s34 + $0x8] sm:$0xff] %vm27, 0.0
  %37 = vst.msk [vmem:[%s34 + $0x10] sm:$0xff] %vm27, 0.0
  %38 = vst.msk [vmem:[%s34 + $0x1b0] sm:$0xff] %vm27, 0.0
  %39 = vst.msk [vmem:[%s34 + $0x1b8] sm:$0xff] %vm27, 0.0
  %40 = vst.msk [vmem:[%s34 + $0x1c0] sm:$0xff] %vm27, 0.0
  %vm41 = vcmask 57344
  %42 = vst.msk [vmem:[#allocation2] sm:$0x1] %vm41, 0.0
  %43 = vst.msk [vmem:[#allocation2 + $0x18] sm:$0x1] %vm41, 0.0
  %44 = vst.msk [vmem:[#allocation2 + $0x30] sm:$0x1] %vm41, 0.0
  %45 = vst.msk [vmem:[#allocation2 + $0x48] sm:$0x1] %vm41, 0.0
  %46 = vst.msk [vmem:[#allocation2 + $0x60] sm:$0x1] %vm41, 0.0
  %47 = vst.msk [vmem:[#allocation2 + $0x78] sm:$0x1] %vm41, 0.0
  %48 = vst.msk [vmem:[#allocation2 + $0x90] sm:$0x1] %vm41, 0.0
  %49 = vst.msk [vmem:[#allocation2 + $0xa8] sm:$0x1] %vm41, 0.0
  %50 = vst.msk [vmem:[#allocation2 + $0xc0] sm:$0x1] %vm41, 0.0
  %51 = vst.msk [vmem:[#allocation2 + $0xd8] sm:$0x1] %vm41, 0.0
  %52 = vst.msk [vmem:[#allocation2 + $0xf0] sm:$0x1] %vm41, 0.0
  %53 = vst.msk [vmem:[#allocation2 + $0x108] sm:$0x1] %vm41, 0.0
  %54 = vst.msk [vmem:[#allocation2 + $0x120] sm:$0x1] %vm41, 0.0
  %55 = vst.msk [vmem:[#allocation2 + $0x138] sm:$0x1] %vm41, 0.0
  %56 = vst.msk [vmem:[#allocation2 + $0x150] sm:$0x1] %vm41, 0.0
  %57 = vst.msk [vmem:[#allocation2 + $0x168] sm:$0x1] %vm41, 0.0
  %58 = vst.msk [vmem:[#allocation2 + $0x180] sm:$0x1] %vm41, 0.0
  %59 = vst.msk [vmem:[#allocation2 + $0x198] sm:$0x1] %vm41, 0.0
  %60 = vst.msk [vmem:[#allocation2 + $0x1b0] sm:$0x1] %vm41, 0.0
  %61 = vst.msk [vmem:[#allocation2 + $0x1c8] sm:$0x1] %vm41, 0.0
  %62 = vst.msk [vmem:[#allocation2 + $0x1e0] sm:$0x1] %vm41, 0.0
  %63 = vst.msk [vmem:[#allocation2 + $0x1f8] sm:$0x1] %vm41, 0.0
  %64 = vst.msk [vmem:[#allocation2 + $0x210] sm:$0x1] %vm41, 0.0
  %65 = vst.msk [vmem:[#allocation2 + $0x228] sm:$0x1] %vm41, 0.0
  %66 = vst.msk [vmem:[#allocation2 + $0x240] sm:$0x1] %vm41, 0.0
  %67 = vst.msk [vmem:[#allocation2 + $0x258] sm:$0x1] %vm41, 0.0
  %68 = vst.msk [vmem:[#allocation2 + $0x270] sm:$0x1] %vm41, 0.0
  %69 = vst.msk [vmem:[#allocation2 + $0x288] sm:$0x1] %vm41, 0.0
  %70 = vst.msk [vmem:[#allocation2 + $0x2a0] sm:$0x1] %vm41, 0.0
  %71 = vst.msk [vmem:[#allocation2 + $0x2b8] sm:$0x1] %vm41, 0.0
  %72 = vst.msk [vmem:[#allocation2 + $0x2d0] sm:$0x1] %vm41, 0.0
  %73 = vst.msk [vmem:[#allocation2 + $0x2e8] sm:$0x1] %vm41, 0.0
  %74 = vst.msk [vmem:[#allocation2 + $0x300] sm:$0x1] %vm41, 0.0
  %75 = vst.msk [vmem:[#allocation2 + $0x318] sm:$0x1] %vm41, 0.0
  %76 = vst.msk [vmem:[#allocation2 + $0x330] sm:$0x1] %vm41, 0.0
  %77 = vst.msk [vmem:[#allocation2 + $0x348] sm:$0x1] %vm41, 0.0
  %78 = vst.msk [vmem:[#allocation2 + $0x11] sm:$0x1] %vm41, 0.0
  %79 = vst.msk [vmem:[#allocation2 + $0x29] sm:$0x1] %vm41, 0.0
  %80 = vst.msk [vmem:[#allocation2 + $0x41] sm:$0x1] %vm41, 0.0
  %81 = vst.msk [vmem:[#allocation2 + $0x59] sm:$0x1] %vm41, 0.0
  %82 = vst.msk [vmem:[#allocation2 + $0x71] sm:$0x1] %vm41, 0.0
  %83 = vst.msk [vmem:[#allocation2 + $0x89] sm:$0x1] %vm41, 0.0
  %84 = vst.msk [vmem:[#allocation2 + $0xa1] sm:$0x1] %vm41, 0.0
  %85 = vst.msk [vmem:[#allocation2 + $0xb9] sm:$0x1] %vm41, 0.0
  %86 = vst.msk [vmem:[#allocation2 + $0xd1] sm:$0x1] %vm41, 0.0
  %87 = vst.msk [vmem:[#allocation2 + $0xe9] sm:$0x1] %vm41, 0.0
  %88 = vst.msk [vmem:[#allocation2 + $0x101] sm:$0x1] %vm41, 0.0
  %89 = vst.msk [vmem:[#allocation2 + $0x119] sm:$0x1] %vm41, 0.0
  %90 = vst.msk [vmem:[#allocation2 + $0x131] sm:$0x1] %vm41, 0.0
  %91 = vst.msk [vmem:[#allocation2 + $0x149] sm:$0x1] %vm41, 0.0
  %92 = vst.msk [vmem:[#allocation2 + $0x161] sm:$0x1] %vm41, 0.0
  %93 = vst.msk [vmem:[#allocation2 + $0x179] sm:$0x1] %vm41, 0.0
  %94 = vst.msk [vmem:[#allocation2 + $0x191] sm:$0x1] %vm41, 0.0
  %95 = vst.msk [vmem:[#allocation2 + $0x1a9] sm:$0x1] %vm41, 0.0
  %96 = vst.msk [vmem:[#allocation2 + $0x1c1] sm:$0x1] %vm41, 0.0
  %97 = vst.msk [vmem:[#allocation2 + $0x1d9] sm:$0x1] %vm41, 0.0
  %98 = vst.msk [vmem:[#allocation2 + $0x1f1] sm:$0x1] %vm41, 0.0
  %99 = vst.msk [vmem:[#allocation2 + $0x209] sm:$0x1] %vm41, 0.0
  %100 = vst.msk [vmem:[#allocation2 + $0x221] sm:$0x1] %vm41, 0.0
  %101 = vst.msk [vmem:[#allocation2 + $0x239] sm:$0x1] %vm41, 0.0
  %102 = vst.msk [vmem:[#allocation2 + $0x251] sm:$0x1] %vm41, 0.0
  %103 = vst.msk [vmem:[#allocation2 + $0x269] sm:$0x1] %vm41, 0.0
  %104 = vst.msk [vmem:[#allocation2 + $0x281] sm:$0x1] %vm41, 0.0
  %105 = vst.msk [vmem:[#allocation2 + $0x299] sm:$0x1] %vm41, 0.0
  %106 = vst.msk [vmem:[#allocation2 + $0x2b1] sm:$0x1] %vm41, 0.0
  %107 = vst.msk [vmem:[#allocation2 + $0x2c9] sm:$0x1] %vm41, 0.0
  %108 = vst.msk [vmem:[#allocation2 + $0x2e1] sm:$0x1] %vm41, 0.0
  %109 = vst.msk [vmem:[#allocation2 + $0x2f9] sm:$0x1] %vm41, 0.0
  %110 = vst.msk [vmem:[#allocation2 + $0x311] sm:$0x1] %vm41, 0.0
  %111 = vst.msk [vmem:[#allocation2 + $0x329] sm:$0x1] %vm41, 0.0
  %112 = vst.msk [vmem:[#allocation2 + $0x341] sm:$0x1] %vm41, 0.0
  %113 = vst.msk [vmem:[#allocation2 + $0x359] sm:$0x1] %vm41, 0.0
  %v114 = vld [vmem:[%s0] sm:$0xff]
  %v115 = vld [vmem:[%s0 + $0x8] sm:$0xff]
  %v116 = vld [vmem:[%s0 + $0x10] sm:$0xff]
  %v117 = vld [vmem:[%s0 + $0x18] sm:$0xff]
  %v118 = vld [vmem:[%s0 + $0x20] sm:$0xff]
  %v119 = vld [vmem:[%s0 + $0x28] sm:$0xff]
  %v120 = vld [vmem:[%s0 + $0x30] sm:$0xff]
  %v121 = vld [vmem:[%s0 + $0x38] sm:$0xff]
  %v122 = vld [vmem:[%s0 + $0x40] sm:$0xff]
  %v123 = vld [vmem:[%s0 + $0x48] sm:$0xff]
  %v124 = vld [vmem:[%s0 + $0x50] sm:$0xff]
  %v125 = vld [vmem:[%s0 + $0x58] sm:$0xff]
  %v126 = vld [vmem:[%s0 + $0x60] sm:$0xff]
  %v127 = vld [vmem:[%s0 + $0x68] sm:$0xff]
  %v128 = vld [vmem:[%s0 + $0x70] sm:$0xff]
  %v129 = vld [vmem:[%s0 + $0x78] sm:$0xff]
  %v130 = vld [vmem:[%s0 + $0x80] sm:$0xff]
  %v131 = vld [vmem:[%s0 + $0x88] sm:$0xff]
  %v132 = vld [vmem:[%s0 + $0x90] sm:$0xff]
  %v133 = vld [vmem:[%s0 + $0x98] sm:$0xff]
  %v134 = vld [vmem:[%s0 + $0xa0] sm:$0xff]
  %v135 = vld [vmem:[%s0 + $0xa8] sm:$0xff]
  %v136 = vld [vmem:[%s0 + $0xb0] sm:$0xff]
  %v137 = vld [vmem:[%s0 + $0xb8] sm:$0xff]
  %v138 = vld [vmem:[%s0 + $0xc0] sm:$0xff]
  %v139 = vld [vmem:[%s0 + $0xc8] sm:$0xff]
  %v140 = vld [vmem:[%s0 + $0xd0] sm:$0xff]
  %v141 = vld [vmem:[%s0 + $0xd8] sm:$0xff]
  %v142 = vld [vmem:[%s0 + $0xe0] sm:$0xff]
  %v143 = vld [vmem:[%s0 + $0xe8] sm:$0xff]
  %v144 = vld [vmem:[%s0 + $0xf0] sm:$0xff]
  %v145 = vld [vmem:[%s0 + $0xf8] sm:$0xff]
  %v146 = vld [vmem:[%s0 + $0x100] sm:$0xff]
  %v147 = vld [vmem:[%s0 + $0x108] sm:$0xff]
  %v148 = vld [vmem:[%s0 + $0x110] sm:$0xff]
  %v149 = vld [vmem:[%s0 + $0x118] sm:$0xff]
  %v150 = vld [vmem:[%s0 + $0x120] sm:$0xff]
  %v151 = vld [vmem:[%s0 + $0x128] sm:$0xff]
  %v152 = vld [vmem:[%s0 + $0x130] sm:$0xff]
  %v153 = vld [vmem:[%s0 + $0x138] sm:$0xff]
  %v154 = vld [vmem:[%s0 + $0x140] sm:$0xff]
  %v155 = vld [vmem:[%s0 + $0x148] sm:$0xff]
  %v156 = vld [vmem:[%s0 + $0x150] sm:$0xff]
  %v157 = vld [vmem:[%s0 + $0x158] sm:$0xff]
  %v158 = vld [vmem:[%s0 + $0x160] sm:$0xff]
  %v159 = vld [vmem:[%s0 + $0x168] sm:$0xff]
  %v160 = vld [vmem:[%s0 + $0x170] sm:$0xff]
  %v161 = vld [vmem:[%s0 + $0x178] sm:$0xff]
  %v162 = vld [vmem:[%s0 + $0x180] sm:$0xff]
  %v163 = vld [vmem:[%s0 + $0x188] sm:$0xff]
  %v164 = vld [vmem:[%s0 + $0x190] sm:$0xff]
  %v165 = vld [vmem:[%s0 + $0x198] sm:$0xff]
  %v166 = vld [vmem:[%s0 + $0x1a0] sm:$0xff]
  %v167 = vld [vmem:[%s0 + $0x1a8] sm:$0xff]
  %v168 = vld [vmem:[%s0 + $0x1b0] sm:$0xff]
  %v169 = vld [vmem:[%s0 + $0x1b8] sm:$0xff]
  %v170 = vld [vmem:[%s0 + $0x1c0] sm:$0xff]
  %v171 = vld [vmem:[%s0 + $0x1c8] sm:$0xff]
  %v172 = vld [vmem:[%s0 + $0x1d0] sm:$0xff]
  %v173 = vld [vmem:[%s0 + $0x1d8] sm:$0xff]
  %v174 = vld [vmem:[%s0 + $0x1e0] sm:$0xff]
  %v175 = vld [vmem:[%s0 + $0x1e8] sm:$0xff]
  %v176 = vld [vmem:[%s0 + $0x1f0] sm:$0xff]
  %v177 = vld [vmem:[%s0 + $0x1f8] sm:$0xff]
  %s178 = scalar_lea.vmem [#allocation2], 24
  %vm179 = vcmask 31744
  %180 = vst.msk [vmem:[%s178 + $0x1] sm:$0xff] %vm179, %v114
  %181 = vst.msk [vmem:[%s178 + $0x9] sm:$0xff] %vm179, %v115
  %182 = vst.msk [vmem:[%s178 + $0x19] sm:$0xff] %vm179, %v116
  %183 = vst.msk [vmem:[%s178 + $0x21] sm:$0xff] %vm179, %v117
  %184 = vst.msk [vmem:[%s178 + $0x31] sm:$0xff] %vm179, %v118
  %185 = vst.msk [vmem:[%s178 + $0x39] sm:$0xff] %vm179, %v119
  %186 = vst.msk [vmem:[%s178 + $0x49] sm:$0xff] %vm179, %v120
  %187 = vst.msk [vmem:[%s178 + $0x51] sm:$0xff] %vm179, %v121
  %188 = vst.msk [vmem:[%s178 + $0x61] sm:$0xff] %vm179, %v122
  %189 = vst.msk [vmem:[%s178 + $0x69] sm:$0xff] %vm179, %v123
  %190 = vst.msk [vmem:[%s178 + $0x79] sm:$0xff] %vm179, %v124
  %191 = vst.msk [vmem:[%s178 + $0x81] sm:$0xff] %vm179, %v125
  %192 = vst.msk [vmem:[%s178 + $0x91] sm:$0xff] %vm179, %v126
  %193 = vst.msk [vmem:[%s178 + $0x99] sm:$0xff] %vm179, %v127
  %194 = vst.msk [vmem:[%s178 + $0xa9] sm:$0xff] %vm179, %v128
  %195 = vst.msk [vmem:[%s178 + $0xb1] sm:$0xff] %vm179, %v129
  %196 = vst.msk [vmem:[%s178 + $0xc1] sm:$0xff] %vm179, %v130
  %197 = vst.msk [vmem:[%s178 + $0xc9] sm:$0xff] %vm179, %v131
  %198 = vst.msk [vmem:[%s178 + $0xd9] sm:$0xff] %vm179, %v132
  %199 = vst.msk [vmem:[%s178 + $0xe1] sm:$0xff] %vm179, %v133
  %200 = vst.msk [vmem:[%s178 + $0xf1] sm:$0xff] %vm179, %v134
  %201 = vst.msk [vmem:[%s178 + $0xf9] sm:$0xff] %vm179, %v135
  %202 = vst.msk [vmem:[%s178 + $0x109] sm:$0xff] %vm179, %v136
  %203 = vst.msk [vmem:[%s178 + $0x111] sm:$0xff] %vm179, %v137
  %204 = vst.msk [vmem:[%s178 + $0x121] sm:$0xff] %vm179, %v138
  %205 = vst.msk [vmem:[%s178 + $0x129] sm:$0xff] %vm179, %v139
  %206 = vst.msk [vmem:[%s178 + $0x139] sm:$0xff] %vm179, %v140
  %207 = vst.msk [vmem:[%s178 + $0x141] sm:$0xff] %vm179, %v141
  %208 = vst.msk [vmem:[%s178 + $0x151] sm:$0xff] %vm179, %v142
  %209 = vst.msk [vmem:[%s178 + $0x159] sm:$0xff] %vm179, %v143
  %210 = vst.msk [vmem:[%s178 + $0x169] sm:$0xff] %vm179, %v144
  %211 = vst.msk [vmem:[%s178 + $0x171] sm:$0xff] %vm179, %v145
  %212 = vst.msk [vmem:[%s178 + $0x1b1] sm:$0xff] %vm179, %v146
  %213 = vst.msk [vmem:[%s178 + $0x1b9] sm:$0xff] %vm179, %v147
  %214 = vst.msk [vmem:[%s178 + $0x1c9] sm:$0xff] %vm179, %v148
  %215 = vst.msk [vmem:[%s178 + $0x1d1] sm:$0xff] %vm179, %v149
  %216 = vst.msk [vmem:[%s178 + $0x1e1] sm:$0xff] %vm179, %v150
  %217 = vst.msk [vmem:[%s178 + $0x1e9] sm:$0xff] %vm179, %v151
  %218 = vst.msk [vmem:[%s178 + $0x1f9] sm:$0xff] %vm179, %v152
  %219 = vst.msk [vmem:[%s178 + $0x201] sm:$0xff] %vm179, %v153
  %220 = vst.msk [vmem:[%s178 + $0x211] sm:$0xff] %vm179, %v154
  %221 = vst.msk [vmem:[%s178 + $0x219] sm:$0xff] %vm179, %v155
  %222 = vst.msk [vmem:[%s178 + $0x229] sm:$0xff] %vm179, %v156
  %223 = vst.msk [vmem:[%s178 + $0x231] sm:$0xff] %vm179, %v157
  %224 = vst.msk [vmem:[%s178 + $0x241] sm:$0xff] %vm179, %v158
  %225 = vst.msk [vmem:[%s178 + $0x249] sm:$0xff] %vm179, %v159
  %226 = vst.msk [vmem:[%s178 + $0x259] sm:$0xff] %vm179, %v160
  %227 = vst.msk [vmem:[%s178 + $0x261] sm:$0xff] %vm179, %v161
  %228 = vst.msk [vmem:[%s178 + $0x271] sm:$0xff] %vm179, %v162
  %229 = vst.msk [vmem:[%s178 + $0x279] sm:$0xff] %vm179, %v163
  %230 = vst.msk [vmem:[%s178 + $0x289] sm:$0xff] %vm179, %v164
  %231 = vst.msk [vmem:[%s178 + $0x291] sm:$0xff] %vm179, %v165
  %232 = vst.msk [vmem:[%s178 + $0x2a1] sm:$0xff] %vm179, %v166
  %233 = vst.msk [vmem:[%s178 + $0x2a9] sm:$0xff] %vm179, %v167
  %234 = vst.msk [vmem:[%s178 + $0x2b9] sm:$0xff] %vm179, %v168
  %235 = vst.msk [vmem:[%s178 + $0x2c1] sm:$0xff] %vm179, %v169
  %236 = vst.msk [vmem:[%s178 + $0x2d1] sm:$0xff] %vm179, %v170
  %237 = vst.msk [vmem:[%s178 + $0x2d9] sm:$0xff] %vm179, %v171
  %238 = vst.msk [vmem:[%s178 + $0x2e9] sm:$0xff] %vm179, %v172
  %239 = vst.msk [vmem:[%s178 + $0x2f1] sm:$0xff] %vm179, %v173
  %240 = vst.msk [vmem:[%s178 + $0x301] sm:$0xff] %vm179, %v174
  %241 = vst.msk [vmem:[%s178 + $0x309] sm:$0xff] %vm179, %v175
  %242 = vst.msk [vmem:[%s178 + $0x319] sm:$0xff] %vm179, %v176
  %243 = vst.msk [vmem:[%s178 + $0x321] sm:$0xff] %vm179, %v177
  %v244 = vld [vmem:[#allocation2] sm:$0xff]
  %v245 = vld [vmem:[#allocation2 + $0x8] sm:$0xff]
  %v246 = vld [vmem:[#allocation2 + $0x18] sm:$0xff]
  %v247 = vld [vmem:[#allocation2 + $0x20] sm:$0xff]
  %v248 = vld [vmem:[#allocation2 + $0x30] sm:$0xff]
  %v249 = vld [vmem:[#allocation2 + $0x38] sm:$0xff]
  %v250 = vld [vmem:[#allocation2 + $0x48] sm:$0xff]
  %v251 = vld [vmem:[#allocation2 + $0x50] sm:$0xff]
  %v252 = vld [vmem:[#allocation2 + $0x60] sm:$0xff]
  %v253 = vld [vmem:[#allocation2 + $0x68] sm:$0xff]
  %v254 = vld [vmem:[#allocation2 + $0x78] sm:$0xff]
  %v255 = vld [vmem:[#allocation2 + $0x80] sm:$0xff]
  %v256 = vld [vmem:[#allocation2 + $0x90] sm:$0xff]
  %v257 = vld [vmem:[#allocation2 + $0x98] sm:$0xff]
  %v258 = vld [vmem:[#allocation2 + $0xa8] sm:$0xff]
  %v259 = vld [vmem:[#allocation2 + $0xb0] sm:$0xff]
  %v260 = vld [vmem:[#allocation2 + $0xc0] sm:$0xff]
  %v261 = vld [vmem:[#allocation2 + $0xc8] sm:$0xff]
  %v262 = vld [vmem:[#allocation2 + $0xd8] sm:$0xff]
  %v263 = vld [vmem:[#allocation2 + $0xe0] sm:$0xff]
  %v264 = vld [vmem:[#allocation2 + $0xf0] sm:$0xff]
  %v265 = vld [vmem:[#allocation2 + $0xf8] sm:$0xff]
  %v266 = vld [vmem:[#allocation2 + $0x108] sm:$0xff]
  %v267 = vld [vmem:[#allocation2 + $0x110] sm:$0xff]
  %v268 = vld [vmem:[#allocation2 + $0x120] sm:$0xff]
  %v269 = vld [vmem:[#allocation2 + $0x128] sm:$0xff]
  %v270 = vld [vmem:[#allocation2 + $0x138] sm:$0xff]
  %v271 = vld [vmem:[#allocation2 + $0x140] sm:$0xff]
  %v272 = vld [vmem:[#allocation2 + $0x150] sm:$0xff]
  %v273 = vld [vmem:[#allocation2 + $0x158] sm:$0xff]
  %v274 = vld [vmem:[#allocation2 + $0x168] sm:$0xff]
  %v275 = vld [vmem:[#allocation2 + $0x170] sm:$0xff]
  %v276 = vld [vmem:[#allocation2 + $0x1b0] sm:$0xff]
  %v277 = vld [vmem:[#allocation2 + $0x1b8] sm:$0xff]
  %v278 = vld [vmem:[#allocation2 + $0x1c8] sm:$0xff]
  %v279 = vld [vmem:[#allocation2 + $0x1d0] sm:$0xff]
  %v280 = vld [vmem:[#allocation2 + $0x1e0] sm:$0xff]
  %v281 = vld [vmem:[#allocation2 + $0x1e8] sm:$0xff]
  %v282 = vld [vmem:[#allocation2 + $0x1f8] sm:$0xff]
  %v283 = vld [vmem:[#allocation2 + $0x200] sm:$0xff]
  %v284 = vld [vmem:[#allocation2 + $0x210] sm:$0xff]
  %v285 = vld [vmem:[#allocation2 + $0x218] sm:$0xff]
  %v286 = vld [vmem:[#allocation2 + $0x228] sm:$0xff]
  %v287 = vld [vmem:[#allocation2 + $0x230] sm:$0xff]
  %v288 = vld [vmem:[#allocation2 + $0x240] sm:$0xff]
  %v289 = vld [vmem:[#allocation2 + $0x248] sm:$0xff]
  %v290 = vld [vmem:[#allocation2 + $0x258] sm:$0xff]
  %v291 = vld [vmem:[#allocation2 + $0x260] sm:$0xff]
  %v292 = vld [vmem:[#allocation2 + $0x270] sm:$0xff]
  %v293 = vld [vmem:[#allocation2 + $0x278] sm:$0xff]
  %v294 = vld [vmem:[#allocation2 + $0x288] sm:$0xff]
  %v295 = vld [vmem:[#allocation2 + $0x290] sm:$0xff]
  %v296 = vld [vmem:[#allocation2 + $0x2a0] sm:$0xff]
  %v297 = vld [vmem:[#allocation2 + $0x2a8] sm:$0xff]
  %v298 = vld [vmem:[#allocation2 + $0x2b8] sm:$0xff]
  %v299 = vld [vmem:[#allocation2 + $0x2c0] sm:$0xff]
  %v300 = vld [vmem:[#allocation2 + $0x2d0] sm:$0xff]
  %v301 = vld [vmem:[#allocation2 + $0x2d8] sm:$0xff]
  %v302 = vld [vmem:[#allocation2 + $0x2e8] sm:$0xff]
  %v303 = vld [vmem:[#allocation2 + $0x2f0] sm:$0xff]
  %v304 = vld [vmem:[#allocation2 + $0x300] sm:$0xff]
  %v305 = vld [vmem:[#allocation2 + $0x308] sm:$0xff]
  %v306 = vld [vmem:[#allocation2 + $0x318] sm:$0xff]
  %v307 = vld [vmem:[#allocation2 + $0x320] sm:$0xff]
  %v308 = vld [vmem:[#allocation2 + $0x1] sm:$0xff]
  %v309 = vld [vmem:[#allocation2 + $0x9] sm:$0xff]
  %v310 = vld [vmem:[#allocation2 + $0x19] sm:$0xff]
  %v311 = vld [vmem:[#allocation2 + $0x21] sm:$0xff]
  %v312 = vld [vmem:[#allocation2 + $0x31] sm:$0xff]
  %v313 = vld [vmem:[#allocation2 + $0x39] sm:$0xff]
  %v314 = vld [vmem:[#allocation2 + $0x49] sm:$0xff]
  %v315 = vld [vmem:[#allocation2 + $0x51] sm:$0xff]
  %v316 = vld [vmem:[#allocation2 + $0x61] sm:$0xff]
  %v317 = vld [vmem:[#allocation2 + $0x69] sm:$0xff]
  %v318 = vld [vmem:[#allocation2 + $0x79] sm:$0xff]
  %v319 = vld [vmem:[#allocation2 + $0x81] sm:$0xff]
  %v320 = vld [vmem:[#allocation2 + $0x91] sm:$0xff]
  %v321 = vld [vmem:[#allocation2 + $0x99] sm:$0xff]
  %v322 = vld [vmem:[#allocation2 + $0xa9] sm:$0xff]
  %v323 = vld [vmem:[#allocation2 + $0xb1] sm:$0xff]
  %v324 = vld [vmem:[#allocation2 + $0xc1] sm:$0xff]
  %v325 = vld [vmem:[#allocation2 + $0xc9] sm:$0xff]
  %v326 = vld [vmem:[#allocation2 + $0xd9] sm:$0xff]
  %v327 = vld [vmem:[#allocation2 + $0xe1] sm:$0xff]
  %v328 = vld [vmem:[#allocation2 + $0xf1] sm:$0xff]
  %v329 = vld [vmem:[#allocation2 + $0xf9] sm:$0xff]
  %v330 = vld [vmem:[#allocation2 + $0x109] sm:$0xff]
  %v331 = vld [vmem:[#allocation2 + $0x111] sm:$0xff]
  %v332 = vld [vmem:[#allocation2 + $0x121] sm:$0xff]
  %v333 = vld [vmem:[#allocation2 + $0x129] sm:$0xff]
  %v334 = vld [vmem:[#allocation2 + $0x139] sm:$0xff]
  %v335 = vld [vmem:[#allocation2 + $0x141] sm:$0xff]
  %v336 = vld [vmem:[#allocation2 + $0x151] sm:$0xff]
  %v337 = vld [vmem:[#allocation2 + $0x159] sm:$0xff]
  %v338 = vld [vmem:[#allocation2 + $0x169] sm:$0xff]
  %v339 = vld [vmem:[#allocation2 + $0x171] sm:$0xff]
  %v340 = vld [vmem:[#allocation2 + $0x1b1] sm:$0xff]
  %v341 = vld [vmem:[#allocation2 + $0x1b9] sm:$0xff]
  %v342 = vld [vmem:[#allocation2 + $0x1c9] sm:$0xff]
  %v343 = vld [vmem:[#allocation2 + $0x1d1] sm:$0xff]
  %v344 = vld [vmem:[#allocation2 + $0x1e1] sm:$0xff]
  %v345 = vld [vmem:[#allocation2 + $0x1e9] sm:$0xff]
  %v346 = vld [vmem:[#allocation2 + $0x1f9] sm:$0xff]
  %v347 = vld [vmem:[#allocation2 + $0x201] sm:$0xff]
  %v348 = vld [vmem:[#allocation2 + $0x211] sm:$0xff]
  %v349 = vld [vmem:[#allocation2 + $0x219] sm:$0xff]
  %v350 = vld [vmem:[#allocation2 + $0x229] sm:$0xff]
  %v351 = vld [vmem:[#allocation2 + $0x231] sm:$0xff]
  %v352 = vld [vmem:[#allocation2 + $0x241] sm:$0xff]
  %v353 = vld [vmem:[#allocation2 + $0x249] sm:$0xff]
  %v354 = vld [vmem:[#allocation2 + $0x259] sm:$0xff]
  %v355 = vld [vmem:[#allocation2 + $0x261] sm:$0xff]
  %v356 = vld [vmem:[#allocation2 + $0x271] sm:$0xff]
  %v357 = vld [vmem:[#allocation2 + $0x279] sm:$0xff]
  %v358 = vld [vmem:[#allocation2 + $0x289] sm:$0xff]
  %v359 = vld [vmem:[#allocation2 + $0x291] sm:$0xff]
  %v360 = vld [vmem:[#allocation2 + $0x2a1] sm:$0xff]
  %v361 = vld [vmem:[#allocation2 + $0x2a9] sm:$0xff]
  %v362 = vld [vmem:[#allocation2 + $0x2b9] sm:$0xff]
  %v363 = vld [vmem:[#allocation2 + $0x2c1] sm:$0xff]
  %v364 = vld [vmem:[#allocation2 + $0x2d1] sm:$0xff]
  %v365 = vld [vmem:[#allocation2 + $0x2d9] sm:$0xff]
  %v366 = vld [vmem:[#allocation2 + $0x2e9] sm:$0xff]
  %v367 = vld [vmem:[#allocation2 + $0x2f1] sm:$0xff]
  %v368 = vld [vmem:[#allocation2 + $0x301] sm:$0xff]
  %v369 = vld [vmem:[#allocation2 + $0x309] sm:$0xff]
  %v370 = vld [vmem:[#allocation2 + $0x319] sm:$0xff]
  %v371 = vld [vmem:[#allocation2 + $0x321] sm:$0xff]
  %v372 = vld [vmem:[#allocation2 + $0x2] sm:$0xff]
  %v373 = vld [vmem:[#allocation2 + $0xa] sm:$0xff]
  %v374 = vld [vmem:[#allocation2 + $0x1a] sm:$0xff]
  %v375 = vld [vmem:[#allocation2 + $0x22] sm:$0xff]
  %v376 = vld [vmem:[#allocation2 + $0x32] sm:$0xff]
  %v377 = vld [vmem:[#allocation2 + $0x3a] sm:$0xff]
  %v378 = vld [vmem:[#allocation2 + $0x4a] sm:$0xff]
  %v379 = vld [vmem:[#allocation2 + $0x52] sm:$0xff]
  %v380 = vld [vmem:[#allocation2 + $0x62] sm:$0xff]
  %v381 = vld [vmem:[#allocation2 + $0x6a] sm:$0xff]
  %v382 = vld [vmem:[#allocation2 + $0x7a] sm:$0xff]
  %v383 = vld [vmem:[#allocation2 + $0x82] sm:$0xff]
  %v384 = vld [vmem:[#allocation2 + $0x92] sm:$0xff]
  %v385 = vld [vmem:[#allocation2 + $0x9a] sm:$0xff]
  %v386 = vld [vmem:[#allocation2 + $0xaa] sm:$0xff]
  %v387 = vld [vmem:[#allocation2 + $0xb2] sm:$0xff]
  %v388 = vld [vmem:[#allocation2 + $0xc2] sm:$0xff]
  %v389 = vld [vmem:[#allocation2 + $0xca] sm:$0xff]
  %v390 = vld [vmem:[#allocation2 + $0xda] sm:$0xff]
  %v391 = vld [vmem:[#allocation2 + $0xe2] sm:$0xff]
  %v392 = vld [vmem:[#allocation2 + $0xf2] sm:$0xff]
  %v393 = vld [vmem:[#allocation2 + $0xfa] sm:$0xff]
  %v394 = vld [vmem:[#allocation2 + $0x10a] sm:$0xff]
  %v395 = vld [vmem:[#allocation2 + $0x112] sm:$0xff]
  %v396 = vld [vmem:[#allocation2 + $0x122] sm:$0xff]
  %v397 = vld [vmem:[#allocation2 + $0x12a] sm:$0xff]
  %v398 = vld [vmem:[#allocation2 + $0x13a] sm:$0xff]
  %v399 = vld [vmem:[#allocation2 + $0x142] sm:$0xff]
  %v400 = vld [vmem:[#allocation2 + $0x152] sm:$0xff]
  %v401 = vld [vmem:[#allocation2 + $0x15a] sm:$0xff]
  %v402 = vld [vmem:[#allocation2 + $0x16a] sm:$0xff]
  %v403 = vld [vmem:[#allocation2 + $0x172] sm:$0xff]
  %v404 = vld [vmem:[#allocation2 + $0x1b2] sm:$0xff]
  %v405 = vld [vmem:[#allocation2 + $0x1ba] sm:$0xff]
  %v406 = vld [vmem:[#allocation2 + $0x1ca] sm:$0xff]
  %v407 = vld [vmem:[#allocation2 + $0x1d2] sm:$0xff]
  %v408 = vld [vmem:[#allocation2 + $0x1e2] sm:$0xff]
  %v409 = vld [vmem:[#allocation2 + $0x1ea] sm:$0xff]
  %v410 = vld [vmem:[#allocation2 + $0x1fa] sm:$0xff]
  %v411 = vld [vmem:[#allocation2 + $0x202] sm:$0xff]
  %v412 = vld [vmem:[#allocation2 + $0x212] sm:$0xff]
  %v413 = vld [vmem:[#allocation2 + $0x21a] sm:$0xff]
  %v414 = vld [vmem:[#allocation2 + $0x22a] sm:$0xff]
  %v415 = vld [vmem:[#allocation2 + $0x232] sm:$0xff]
  %v416 = vld [vmem:[#allocation2 + $0x242] sm:$0xff]
  %v417 = vld [vmem:[#allocation2 + $0x24a] sm:$0xff]
  %v418 = vld [vmem:[#allocation2 + $0x25a] sm:$0xff]
  %v419 = vld [vmem:[#allocation2 + $0x262] sm:$0xff]
  %v420 = vld [vmem:[#allocation2 + $0x272] sm:$0xff]
  %v421 = vld [vmem:[#allocation2 + $0x27a] sm:$0xff]
  %v422 = vld [vmem:[#allocation2 + $0x28a] sm:$0xff]
  %v423 = vld [vmem:[#allocation2 + $0x292] sm:$0xff]
  %v424 = vld [vmem:[#allocation2 + $0x2a2] sm:$0xff]
  %v425 = vld [vmem:[#allocation2 + $0x2aa] sm:$0xff]
  %v426 = vld [vmem:[#allocation2 + $0x2ba] sm:$0xff]
  %v427 = vld [vmem:[#allocation2 + $0x2c2] sm:$0xff]
  %v428 = vld [vmem:[#allocation2 + $0x2d2] sm:$0xff]
  %v429 = vld [vmem:[#allocation2 + $0x2da] sm:$0xff]
  %v430 = vld [vmem:[#allocation2 + $0x2ea] sm:$0xff]
  %v431 = vld [vmem:[#allocation2 + $0x2f2] sm:$0xff]
  %v432 = vld [vmem:[#allocation2 + $0x302] sm:$0xff]
  %v433 = vld [vmem:[#allocation2 + $0x30a] sm:$0xff]
  %v434 = vld [vmem:[#allocation2 + $0x31a] sm:$0xff]
  %v435 = vld [vmem:[#allocation2 + $0x322] sm:$0xff]
  %v436 = vld [vmem:[%s178] sm:$0xff]
  %v437 = vld [vmem:[%s178 + $0x8] sm:$0xff]
  %v438 = vld [vmem:[%s178 + $0x18] sm:$0xff]
  %v439 = vld [vmem:[%s178 + $0x20] sm:$0xff]
  %v440 = vld [vmem:[%s178 + $0x30] sm:$0xff]
  %v441 = vld [vmem:[%s178 + $0x38] sm:$0xff]
  %v442 = vld [vmem:[%s178 + $0x48] sm:$0xff]
  %v443 = vld [vmem:[%s178 + $0x50] sm:$0xff]
  %v444 = vld [vmem:[%s178 + $0x60] sm:$0xff]
  %v445 = vld [vmem:[%s178 + $0x68] sm:$0xff]
  %v446 = vld [vmem:[%s178 + $0x78] sm:$0xff]
  %v447 = vld [vmem:[%s178 + $0x80] sm:$0xff]
  %v448 = vld [vmem:[%s178 + $0x90] sm:$0xff]
  %v449 = vld [vmem:[%s178 + $0x98] sm:$0xff]
  %v450 = vld [vmem:[%s178 + $0xa8] sm:$0xff]
  %v451 = vld [vmem:[%s178 + $0xb0] sm:$0xff]
  %v452 = vld [vmem:[%s178 + $0xc0] sm:$0xff]
  %v453 = vld [vmem:[%s178 + $0xc8] sm:$0xff]
  %v454 = vld [vmem:[%s178 + $0xd8] sm:$0xff]
  %v455 = vld [vmem:[%s178 + $0xe0] sm:$0xff]
  %v456 = vld [vmem:[%s178 + $0xf0] sm:$0xff]
  %v457 = vld [vmem:[%s178 + $0xf8] sm:$0xff]
  %v458 = vld [vmem:[%s178 + $0x108] sm:$0xff]
  %v459 = vld [vmem:[%s178 + $0x110] sm:$0xff]
  %v460 = vld [vmem:[%s178 + $0x120] sm:$0xff]
  %v461 = vld [vmem:[%s178 + $0x128] sm:$0xff]
  %v462 = vld [vmem:[%s178 + $0x138] sm:$0xff]
  %v463 = vld [vmem:[%s178 + $0x140] sm:$0xff]
  %v464 = vld [vmem:[%s178 + $0x150] sm:$0xff]
  %v465 = vld [vmem:[%s178 + $0x158] sm:$0xff]
  %v466 = vld [vmem:[%s178 + $0x168] sm:$0xff]
  %v467 = vld [vmem:[%s178 + $0x170] sm:$0xff]
  %v468 = vld [vmem:[%s178 + $0x1b0] sm:$0xff]
  %v469 = vld [vmem:[%s178 + $0x1b8] sm:$0xff]
  %v470 = vld [vmem:[%s178 + $0x1c8] sm:$0xff]
  %v471 = vld [vmem:[%s178 + $0x1d0] sm:$0xff]
  %v472 = vld [vmem:[%s178 + $0x1e0] sm:$0xff]
  %v473 = vld [vmem:[%s178 + $0x1e8] sm:$0xff]
  %v474 = vld [vmem:[%s178 + $0x1f8] sm:$0xff]
  %v475 = vld [vmem:[%s178 + $0x200] sm:$0xff]
  %v476 = vld [vmem:[%s178 + $0x210] sm:$0xff]
  %v477 = vld [vmem:[%s178 + $0x218] sm:$0xff]
  %v478 = vld [vmem:[%s178 + $0x228] sm:$0xff]
  %v479 = vld [vmem:[%s178 + $0x230] sm:$0xff]
  %v480 = vld [vmem:[%s178 + $0x240] sm:$0xff]
  %v481 = vld [vmem:[%s178 + $0x248] sm:$0xff]
  %v482 = vld [vmem:[%s178 + $0x258] sm:$0xff]
  %v483 = vld [vmem:[%s178 + $0x260] sm:$0xff]
  %v484 = vld [vmem:[%s178 + $0x270] sm:$0xff]
  %v485 = vld [vmem:[%s178 + $0x278] sm:$0xff]
  %v486 = vld [vmem:[%s178 + $0x288] sm:$0xff]
  %v487 = vld [vmem:[%s178 + $0x290] sm:$0xff]
  %v488 = vld [vmem:[%s178 + $0x2a0] sm:$0xff]
  %v489 = vld [vmem:[%s178 + $0x2a8] sm:$0xff]
  %v490 = vld [vmem:[%s178 + $0x2b8] sm:$0xff]
  %v491 = vld [vmem:[%s178 + $0x2c0] sm:$0xff]
  %v492 = vld [vmem:[%s178 + $0x2d0] sm:$0xff]
  %v493 = vld [vmem:[%s178 + $0x2d8] sm:$0xff]
  %v494 = vld [vmem:[%s178 + $0x2e8] sm:$0xff]
  %v495 = vld [vmem:[%s178 + $0x2f0] sm:$0xff]
  %v496 = vld [vmem:[%s178 + $0x300] sm:$0xff]
  %v497 = vld [vmem:[%s178 + $0x308] sm:$0xff]
  %v498 = vld [vmem:[%s178 + $0x318] sm:$0xff]
  %v499 = vld [vmem:[%s178 + $0x320] sm:$0xff]
  %v500 = vld [vmem:[%s178 + $0x1] sm:$0xff]
  %v501 = vld [vmem:[%s178 + $0x9] sm:$0xff]
  %v502 = vld [vmem:[%s178 + $0x19] sm:$0xff]
  %v503 = vld [vmem:[%s178 + $0x21] sm:$0xff]
  %v504 = vld [vmem:[%s178 + $0x31] sm:$0xff]
  %v505 = vld [vmem:[%s178 + $0x39] sm:$0xff]
  %v506 = vld [vmem:[%s178 + $0x49] sm:$0xff]
  %v507 = vld [vmem:[%s178 + $0x51] sm:$0xff]
  %v508 = vld [vmem:[%s178 + $0x61] sm:$0xff]
  %v509 = vld [vmem:[%s178 + $0x69] sm:$0xff]
  %v510 = vld [vmem:[%s178 + $0x79] sm:$0xff]
  %v511 = vld [vmem:[%s178 + $0x81] sm:$0xff]
  %v512 = vld [vmem:[%s178 + $0x91] sm:$0xff]
  %v513 = vld [vmem:[%s178 + $0x99] sm:$0xff]
  %v514 = vld [vmem:[%s178 + $0xa9] sm:$0xff]
  %v515 = vld [vmem:[%s178 + $0xb1] sm:$0xff]
  %v516 = vld [vmem:[%s178 + $0xc1] sm:$0xff]
  %v517 = vld [vmem:[%s178 + $0xc9] sm:$0xff]
  %v518 = vld [vmem:[%s178 + $0xd9] sm:$0xff]
  %v519 = vld [vmem:[%s178 + $0xe1] sm:$0xff]
  %v520 = vld [vmem:[%s178 + $0xf1] sm:$0xff]
  %v521 = vld [vmem:[%s178 + $0xf9] sm:$0xff]
  %v522 = vld [vmem:[%s178 + $0x109] sm:$0xff]
  %v523 = vld [vmem:[%s178 + $0x111] sm:$0xff]
  %v524 = vld [vmem:[%s178 + $0x121] sm:$0xff]
  %v525 = vld [vmem:[%s178 + $0x129] sm:$0xff]
  %v526 = vld [vmem:[%s178 + $0x139] sm:$0xff]
  %v527 = vld [vmem:[%s178 + $0x141] sm:$0xff]
  %v528 = vld [vmem:[%s178 + $0x151] sm:$0xff]
  %v529 = vld [vmem:[%s178 + $0x159] sm:$0xff]
  %v530 = vld [vmem:[%s178 + $0x169] sm:$0xff]
  %v531 = vld [vmem:[%s178 + $0x171] sm:$0xff]
  %v532 = vld [vmem:[%s178 + $0x1b1] sm:$0xff]
  %v533 = vld [vmem:[%s178 + $0x1b9] sm:$0xff]
  %v534 = vld [vmem:[%s178 + $0x1c9] sm:$0xff]
  %v535 = vld [vmem:[%s178 + $0x1d1] sm:$0xff]
  %v536 = vld [vmem:[%s178 + $0x1e1] sm:$0xff]
  %v537 = vld [vmem:[%s178 + $0x1e9] sm:$0xff]
  %v538 = vld [vmem:[%s178 + $0x1f9] sm:$0xff]
  %v539 = vld [vmem:[%s178 + $0x201] sm:$0xff]
  %v540 = vld [vmem:[%s178 + $0x211] sm:$0xff]
  %v541 = vld [vmem:[%s178 + $0x219] sm:$0xff]
  %v542 = vld [vmem:[%s178 + $0x229] sm:$0xff]
  %v543 = vld [vmem:[%s178 + $0x231] sm:$0xff]
  %v544 = vld [vmem:[%s178 + $0x241] sm:$0xff]
  %v545 = vld [vmem:[%s178 + $0x249] sm:$0xff]
  %v546 = vld [vmem:[%s178 + $0x259] sm:$0xff]
  %v547 = vld [vmem:[%s178 + $0x261] sm:$0xff]
  %v548 = vld [vmem:[%s178 + $0x271] sm:$0xff]
  %v549 = vld [vmem:[%s178 + $0x279] sm:$0xff]
  %v550 = vld [vmem:[%s178 + $0x289] sm:$0xff]
  %v551 = vld [vmem:[%s178 + $0x291] sm:$0xff]
  %v552 = vld [vmem:[%s178 + $0x2a1] sm:$0xff]
  %v553 = vld [vmem:[%s178 + $0x2a9] sm:$0xff]
  %v554 = vld [vmem:[%s178 + $0x2b9] sm:$0xff]
  %v555 = vld [vmem:[%s178 + $0x2c1] sm:$0xff]
  %v556 = vld [vmem:[%s178 + $0x2d1] sm:$0xff]
  %v557 = vld [vmem:[%s178 + $0x2d9] sm:$0xff]
  %v558 = vld [vmem:[%s178 + $0x2e9] sm:$0xff]
  %v559 = vld [vmem:[%s178 + $0x2f1] sm:$0xff]
  %v560 = vld [vmem:[%s178 + $0x301] sm:$0xff]
  %v561 = vld [vmem:[%s178 + $0x309] sm:$0xff]
  %v562 = vld [vmem:[%s178 + $0x319] sm:$0xff]
  %v563 = vld [vmem:[%s178 + $0x321] sm:$0xff]
  %v564 = vld [vmem:[%s178 + $0x2] sm:$0xff]
  %v565 = vld [vmem:[%s178 + $0xa] sm:$0xff]
  %v566 = vld [vmem:[%s178 + $0x1a] sm:$0xff]
  %v567 = vld [vmem:[%s178 + $0x22] sm:$0xff]
  %v568 = vld [vmem:[%s178 + $0x32] sm:$0xff]
  %v569 = vld [vmem:[%s178 + $0x3a] sm:$0xff]
  %v570 = vld [vmem:[%s178 + $0x4a] sm:$0xff]
  %v571 = vld [vmem:[%s178 + $0x52] sm:$0xff]
  %v572 = vld [vmem:[%s178 + $0x62] sm:$0xff]
  %v573 = vld [vmem:[%s178 + $0x6a] sm:$0xff]
  %v574 = vld [vmem:[%s178 + $0x7a] sm:$0xff]
  %v575 = vld [vmem:[%s178 + $0x82] sm:$0xff]
  %v576 = vld [vmem:[%s178 + $0x92] sm:$0xff]
  %v577 = vld [vmem:[%s178 + $0x9a] sm:$0xff]
  %v578 = vld [vmem:[%s178 + $0xaa] sm:$0xff]
  %v579 = vld [vmem:[%s178 + $0xb2] sm:$0xff]
  %v580 = vld [vmem:[%s178 + $0xc2] sm:$0xff]
  %v581 = vld [vmem:[%s178 + $0xca] sm:$0xff]
  %v582 = vld [vmem:[%s178 + $0xda] sm:$0xff]
  %v583 = vld [vmem:[%s178 + $0xe2] sm:$0xff]
  %v584 = vld [vmem:[%s178 + $0xf2] sm:$0xff]
  %v585 = vld [vmem:[%s178 + $0xfa] sm:$0xff]
  %v586 = vld [vmem:[%s178 + $0x10a] sm:$0xff]
  %v587 = vld [vmem:[%s178 + $0x112] sm:$0xff]
  %v588 = vld [vmem:[%s178 + $0x122] sm:$0xff]
  %v589 = vld [vmem:[%s178 + $0x12a] sm:$0xff]
  %v590 = vld [vmem:[%s178 + $0x13a] sm:$0xff]
  %v591 = vld [vmem:[%s178 + $0x142] sm:$0xff]
  %v592 = vld [vmem:[%s178 + $0x152] sm:$0xff]
  %v593 = vld [vmem:[%s178 + $0x15a] sm:$0xff]
  %v594 = vld [vmem:[%s178 + $0x16a] sm:$0xff]
  %v595 = vld [vmem:[%s178 + $0x172] sm:$0xff]
  %v596 = vld [vmem:[%s178 + $0x1b2] sm:$0xff]
  %v597 = vld [vmem:[%s178 + $0x1ba] sm:$0xff]
  %v598 = vld [vmem:[%s178 + $0x1ca] sm:$0xff]
  %v599 = vld [vmem:[%s178 + $0x1d2] sm:$0xff]
  %v600 = vld [vmem:[%s178 + $0x1e2] sm:$0xff]
  %v601 = vld [vmem:[%s178 + $0x1ea] sm:$0xff]
  %v602 = vld [vmem:[%s178 + $0x1fa] sm:$0xff]
  %v603 = vld [vmem:[%s178 + $0x202] sm:$0xff]
  %v604 = vld [vmem:[%s178 + $0x212] sm:$0xff]
  %v605 = vld [vmem:[%s178 + $0x21a] sm:$0xff]
  %v606 = vld [vmem:[%s178 + $0x22a] sm:$0xff]
  %v607 = vld [vmem:[%s178 + $0x232] sm:$0xff]
  %v608 = vld [vmem:[%s178 + $0x242] sm:$0xff]
  %v609 = vld [vmem:[%s178 + $0x24a] sm:$0xff]
  %v610 = vld [vmem:[%s178 + $0x25a] sm:$0xff]
  %v611 = vld [vmem:[%s178 + $0x262] sm:$0xff]
  %v612 = vld [vmem:[%s178 + $0x272] sm:$0xff]
  %v613 = vld [vmem:[%s178 + $0x27a] sm:$0xff]
  %v614 = vld [vmem:[%s178 + $0x28a] sm:$0xff]
  %v615 = vld [vmem:[%s178 + $0x292] sm:$0xff]
  %v616 = vld [vmem:[%s178 + $0x2a2] sm:$0xff]
  %v617 = vld [vmem:[%s178 + $0x2aa] sm:$0xff]
  %v618 = vld [vmem:[%s178 + $0x2ba] sm:$0xff]
  %v619 = vld [vmem:[%s178 + $0x2c2] sm:$0xff]
  %v620 = vld [vmem:[%s178 + $0x2d2] sm:$0xff]
  %v621 = vld [vmem:[%s178 + $0x2da] sm:$0xff]
  %v622 = vld [vmem:[%s178 + $0x2ea] sm:$0xff]
  %v623 = vld [vmem:[%s178 + $0x2f2] sm:$0xff]
  %v624 = vld [vmem:[%s178 + $0x302] sm:$0xff]
  %v625 = vld [vmem:[%s178 + $0x30a] sm:$0xff]
  %v626 = vld [vmem:[%s178 + $0x31a] sm:$0xff]
  %v627 = vld [vmem:[%s178 + $0x322] sm:$0xff]
  %s628 = scalar_lea.vmem [#allocation2], 48
  %v629 = vld [vmem:[%s628] sm:$0xff]
  %v630 = vld [vmem:[%s628 + $0x8] sm:$0xff]
  %v631 = vld [vmem:[%s628 + $0x18] sm:$0xff]
  %v632 = vld [vmem:[%s628 + $0x20] sm:$0xff]
  %v633 = vld [vmem:[%s628 + $0x30] sm:$0xff]
  %v634 = vld [vmem:[%s628 + $0x38] sm:$0xff]
  %v635 = vld [vmem:[%s628 + $0x48] sm:$0xff]
  %v636 = vld [vmem:[%s628 + $0x50] sm:$0xff]
  %v637 = vld [vmem:[%s628 + $0x60] sm:$0xff]
  %v638 = vld [vmem:[%s628 + $0x68] sm:$0xff]
  %v639 = vld [vmem:[%s628 + $0x78] sm:$0xff]
  %v640 = vld [vmem:[%s628 + $0x80] sm:$0xff]
  %v641 = vld [vmem:[%s628 + $0x90] sm:$0xff]
  %v642 = vld [vmem:[%s628 + $0x98] sm:$0xff]
  %v643 = vld [vmem:[%s628 + $0xa8] sm:$0xff]
  %v644 = vld [vmem:[%s628 + $0xb0] sm:$0xff]
  %v645 = vld [vmem:[%s628 + $0xc0] sm:$0xff]
  %v646 = vld [vmem:[%s628 + $0xc8] sm:$0xff]
  %v647 = vld [vmem:[%s628 + $0xd8] sm:$0xff]
  %v648 = vld [vmem:[%s628 + $0xe0] sm:$0xff]
  %v649 = vld [vmem:[%s628 + $0xf0] sm:$0xff]
  %v650 = vld [vmem:[%s628 + $0xf8] sm:$0xff]
  %v651 = vld [vmem:[%s628 + $0x108] sm:$0xff]
  %v652 = vld [vmem:[%s628 + $0x110] sm:$0xff]
  %v653 = vld [vmem:[%s628 + $0x120] sm:$0xff]
  %v654 = vld [vmem:[%s628 + $0x128] sm:$0xff]
  %v655 = vld [vmem:[%s628 + $0x138] sm:$0xff]
  %v656 = vld [vmem:[%s628 + $0x140] sm:$0xff]
  %v657 = vld [vmem:[%s628 + $0x150] sm:$0xff]
  %v658 = vld [vmem:[%s628 + $0x158] sm:$0xff]
  %v659 = vld [vmem:[%s628 + $0x168] sm:$0xff]
  %v660 = vld [vmem:[%s628 + $0x170] sm:$0xff]
  %v661 = vld [vmem:[%s628 + $0x1b0] sm:$0xff]
  %v662 = vld [vmem:[%s628 + $0x1b8] sm:$0xff]
  %v663 = vld [vmem:[%s628 + $0x1c8] sm:$0xff]
  %v664 = vld [vmem:[%s628 + $0x1d0] sm:$0xff]
  %v665 = vld [vmem:[%s628 + $0x1e0] sm:$0xff]
  %v666 = vld [vmem:[%s628 + $0x1e8] sm:$0xff]
  %v667 = vld [vmem:[%s628 + $0x1f8] sm:$0xff]
  %v668 = vld [vmem:[%s628 + $0x200] sm:$0xff]
  %v669 = vld [vmem:[%s628 + $0x210] sm:$0xff]
  %v670 = vld [vmem:[%s628 + $0x218] sm:$0xff]
  %v671 = vld [vmem:[%s628 + $0x228] sm:$0xff]
  %v672 = vld [vmem:[%s628 + $0x230] sm:$0xff]
  %v673 = vld [vmem:[%s628 + $0x240] sm:$0xff]
  %v674 = vld [vmem:[%s628 + $0x248] sm:$0xff]
  %v675 = vld [vmem:[%s628 + $0x258] sm:$0xff]
  %v676 = vld [vmem:[%s628 + $0x260] sm:$0xff]
  %v677 = vld [vmem:[%s628 + $0x270] sm:$0xff]
  %v678 = vld [vmem:[%s628 + $0x278] sm:$0xff]
  %v679 = vld [vmem:[%s628 + $0x288] sm:$0xff]
  %v680 = vld [vmem:[%s628 + $0x290] sm:$0xff]
  %v681 = vld [vmem:[%s628 + $0x2a0] sm:$0xff]
  %v682 = vld [vmem:[%s628 + $0x2a8] sm:$0xff]
  %v683 = vld [vmem:[%s628 + $0x2b8] sm:$0xff]
  %v684 = vld [vmem:[%s628 + $0x2c0] sm:$0xff]
  %v685 = vld [vmem:[%s628 + $0x2d0] sm:$0xff]
  %v686 = vld [vmem:[%s628 + $0x2d8] sm:$0xff]
  %v687 = vld [vmem:[%s628 + $0x2e8] sm:$0xff]
  %v688 = vld [vmem:[%s628 + $0x2f0] sm:$0xff]
  %v689 = vld [vmem:[%s628 + $0x300] sm:$0xff]
  %v690 = vld [vmem:[%s628 + $0x308] sm:$0xff]
  %v691 = vld [vmem:[%s628 + $0x318] sm:$0xff]
  %v692 = vld [vmem:[%s628 + $0x320] sm:$0xff]
  %v693 = vld [vmem:[%s628 + $0x1] sm:$0xff]
  %v694 = vld [vmem:[%s628 + $0x9] sm:$0xff]
  %v695 = vld [vmem:[%s628 + $0x19] sm:$0xff]
  %v696 = vld [vmem:[%s628 + $0x21] sm:$0xff]
  %v697 = vld [vmem:[%s628 + $0x31] sm:$0xff]
  %v698 = vld [vmem:[%s628 + $0x39] sm:$0xff]
  %v699 = vld [vmem:[%s628 + $0x49] sm:$0xff]
  %v700 = vld [vmem:[%s628 + $0x51] sm:$0xff]
  %v701 = vld [vmem:[%s628 + $0x61] sm:$0xff]
  %v702 = vld [vmem:[%s628 + $0x69] sm:$0xff]
  %v703 = vld [vmem:[%s628 + $0x79] sm:$0xff]
  %v704 = vld [vmem:[%s628 + $0x81] sm:$0xff]
  %v705 = vld [vmem:[%s628 + $0x91] sm:$0xff]
  %v706 = vld [vmem:[%s628 + $0x99] sm:$0xff]
  %v707 = vld [vmem:[%s628 + $0xa9] sm:$0xff]
  %v708 = vld [vmem:[%s628 + $0xb1] sm:$0xff]
  %v709 = vld [vmem:[%s628 + $0xc1] sm:$0xff]
  %v710 = vld [vmem:[%s628 + $0xc9] sm:$0xff]
  %v711 = vld [vmem:[%s628 + $0xd9] sm:$0xff]
  %v712 = vld [vmem:[%s628 + $0xe1] sm:$0xff]
  %v713 = vld [vmem:[%s628 + $0xf1] sm:$0xff]
  %v714 = vld [vmem:[%s628 + $0xf9] sm:$0xff]
  %v715 = vld [vmem:[%s628 + $0x109] sm:$0xff]
  %v716 = vld [vmem:[%s628 + $0x111] sm:$0xff]
  %v717 = vld [vmem:[%s628 + $0x121] sm:$0xff]
  %v718 = vld [vmem:[%s628 + $0x129] sm:$0xff]
  %v719 = vld [vmem:[%s628 + $0x139] sm:$0xff]
  %v720 = vld [vmem:[%s628 + $0x141] sm:$0xff]
  %v721 = vld [vmem:[%s628 + $0x151] sm:$0xff]
  %v722 = vld [vmem:[%s628 + $0x159] sm:$0xff]
  %v723 = vld [vmem:[%s628 + $0x169] sm:$0xff]
  %v724 = vld [vmem:[%s628 + $0x171] sm:$0xff]
  %v725 = vld [vmem:[%s628 + $0x1b1] sm:$0xff]
  %v726 = vld [vmem:[%s628 + $0x1b9] sm:$0xff]
  %v727 = vld [vmem:[%s628 + $0x1c9] sm:$0xff]
  %v728 = vld [vmem:[%s628 + $0x1d1] sm:$0xff]
  %v729 = vld [vmem:[%s628 + $0x1e1] sm:$0xff]
  %v730 = vld [vmem:[%s628 + $0x1e9] sm:$0xff]
  %v731 = vld [vmem:[%s628 + $0x1f9] sm:$0xff]
  %v732 = vld [vmem:[%s628 + $0x201] sm:$0xff]
  %v733 = vld [vmem:[%s628 + $0x211] sm:$0xff]
  %v734 = vld [vmem:[%s628 + $0x219] sm:$0xff]
  %v735 = vld [vmem:[%s628 + $0x229] sm:$0xff]
  %v736 = vld [vmem:[%s628 + $0x231] sm:$0xff]
  %v737 = vld [vmem:[%s628 + $0x241] sm:$0xff]
  %v738 = vld [vmem:[%s628 + $0x249] sm:$0xff]
  %v739 = vld [vmem:[%s628 + $0x259] sm:$0xff]
  %v740 = vld [vmem:[%s628 + $0x261] sm:$0xff]
  %v741 = vld [vmem:[%s628 + $0x271] sm:$0xff]
  %v742 = vld [vmem:[%s628 + $0x279] sm:$0xff]
  %v743 = vld [vmem:[%s628 + $0x289] sm:$0xff]
  %v744 = vld [vmem:[%s628 + $0x291] sm:$0xff]
  %v745 = vld [vmem:[%s628 + $0x2a1] sm:$0xff]
  %v746 = vld [vmem:[%s628 + $0x2a9] sm:$0xff]
  %v747 = vld [vmem:[%s628 + $0x2b9] sm:$0xff]
  %v748 = vld [vmem:[%s628 + $0x2c1] sm:$0xff]
  %v749 = vld [vmem:[%s628 + $0x2d1] sm:$0xff]
  %v750 = vld [vmem:[%s628 + $0x2d9] sm:$0xff]
  %v751 = vld [vmem:[%s628 + $0x2e9] sm:$0xff]
  %v752 = vld [vmem:[%s628 + $0x2f1] sm:$0xff]
  %v753 = vld [vmem:[%s628 + $0x301] sm:$0xff]
  %v754 = vld [vmem:[%s628 + $0x309] sm:$0xff]
  %v755 = vld [vmem:[%s628 + $0x319] sm:$0xff]
  %v756 = vld [vmem:[%s628 + $0x321] sm:$0xff]
  %v757 = vld [vmem:[%s628 + $0x2] sm:$0xff]
  %v758 = vld [vmem:[%s628 + $0xa] sm:$0xff]
  %v759 = vld [vmem:[%s628 + $0x1a] sm:$0xff]
  %v760 = vld [vmem:[%s628 + $0x22] sm:$0xff]
  %v761 = vld [vmem:[%s628 + $0x32] sm:$0xff]
  %v762 = vld [vmem:[%s628 + $0x3a] sm:$0xff]
  %v763 = vld [vmem:[%s628 + $0x4a] sm:$0xff]
  %v764 = vld [vmem:[%s628 + $0x52] sm:$0xff]
  %v765 = vld [vmem:[%s628 + $0x62] sm:$0xff]
  %v766 = vld [vmem:[%s628 + $0x6a] sm:$0xff]
  %v767 = vld [vmem:[%s628 + $0x7a] sm:$0xff]
  %v768 = vld [vmem:[%s628 + $0x82] sm:$0xff]
  %v769 = vld [vmem:[%s628 + $0x92] sm:$0xff]
  %v770 = vld [vmem:[%s628 + $0x9a] sm:$0xff]
  %v771 = vld [vmem:[%s628 + $0xaa] sm:$0xff]
  %v772 = vld [vmem:[%s628 + $0xb2] sm:$0xff]
  %v773 = vld [vmem:[%s628 + $0xc2] sm:$0xff]
  %v774 = vld [vmem:[%s628 + $0xca] sm:$0xff]
  %v775 = vld [vmem:[%s628 + $0xda] sm:$0xff]
  %v776 = vld [vmem:[%s628 + $0xe2] sm:$0xff]
  %v777 = vld [vmem:[%s628 + $0xf2] sm:$0xff]
  %v778 = vld [vmem:[%s628 + $0xfa] sm:$0xff]
  %v779 = vld [vmem:[%s628 + $0x10a] sm:$0xff]
  %v780 = vld [vmem:[%s628 + $0x112] sm:$0xff]
  %v781 = vld [vmem:[%s628 + $0x122] sm:$0xff]
  %v782 = vld [vmem:[%s628 + $0x12a] sm:$0xff]
  %v783 = vld [vmem:[%s628 + $0x13a] sm:$0xff]
  %v784 = vld [vmem:[%s628 + $0x142] sm:$0xff]
  %v785 = vld [vmem:[%s628 + $0x152] sm:$0xff]
  %v786 = vld [vmem:[%s628 + $0x15a] sm:$0xff]
  %v787 = vld [vmem:[%s628 + $0x16a] sm:$0xff]
  %v788 = vld [vmem:[%s628 + $0x172] sm:$0xff]
  %v789 = vld [vmem:[%s628 + $0x1b2] sm:$0xff]
  %v790 = vld [vmem:[%s628 + $0x1ba] sm:$0xff]
  %v791 = vld [vmem:[%s628 + $0x1ca] sm:$0xff]
  %v792 = vld [vmem:[%s628 + $0x1d2] sm:$0xff]
  %v793 = vld [vmem:[%s628 + $0x1e2] sm:$0xff]
  %v794 = vld [vmem:[%s628 + $0x1ea] sm:$0xff]
  %v795 = vld [vmem:[%s628 + $0x1fa] sm:$0xff]
  %v796 = vld [vmem:[%s628 + $0x202] sm:$0xff]
  %v797 = vld [vmem:[%s628 + $0x212] sm:$0xff]
  %v798 = vld [vmem:[%s628 + $0x21a] sm:$0xff]
  %v799 = vld [vmem:[%s628 + $0x22a] sm:$0xff]
  %v800 = vld [vmem:[%s628 + $0x232] sm:$0xff]
  %v801 = vld [vmem:[%s628 + $0x242] sm:$0xff]
  %v802 = vld [vmem:[%s628 + $0x24a] sm:$0xff]
  %v803 = vld [vmem:[%s628 + $0x25a] sm:$0xff]
  %v804 = vld [vmem:[%s628 + $0x262] sm:$0xff]
  %v805 = vld [vmem:[%s628 + $0x272] sm:$0xff]
  %v806 = vld [vmem:[%s628 + $0x27a] sm:$0xff]
  %v807 = vld [vmem:[%s628 + $0x28a] sm:$0xff]
  %v808 = vld [vmem:[%s628 + $0x292] sm:$0xff]
  %v809 = vld [vmem:[%s628 + $0x2a2] sm:$0xff]
  %v810 = vld [vmem:[%s628 + $0x2aa] sm:$0xff]
  %v811 = vld [vmem:[%s628 + $0x2ba] sm:$0xff]
  %v812 = vld [vmem:[%s628 + $0x2c2] sm:$0xff]
  %v813 = vld [vmem:[%s628 + $0x2d2] sm:$0xff]
  %v814 = vld [vmem:[%s628 + $0x2da] sm:$0xff]
  %v815 = vld [vmem:[%s628 + $0x2ea] sm:$0xff]
  %v816 = vld [vmem:[%s628 + $0x2f2] sm:$0xff]
  %v817 = vld [vmem:[%s628 + $0x302] sm:$0xff]
  %v818 = vld [vmem:[%s628 + $0x30a] sm:$0xff]
  %v819 = vld [vmem:[%s628 + $0x31a] sm:$0xff]
  %v820 = vld [vmem:[%s628 + $0x322] sm:$0xff]
  %885 = vrot.lane.b32.xlu0 %v308, 4
  %v886 = vpop.permute.xlu0 %885
  %887 = vrot.lane.b32.xlu0 %v309, 4
  %v888 = vpop.permute.xlu0 %887
  %889 = vrot.lane.b32.xlu0 %v310, 4
  %v890 = vpop.permute.xlu0 %889
  %891 = vrot.lane.b32.xlu0 %v311, 4
  %v892 = vpop.permute.xlu0 %891
  %893 = vrot.lane.b32.xlu0 %v312, 4
  %v894 = vpop.permute.xlu0 %893
  %895 = vrot.lane.b32.xlu0 %v313, 4
  %v896 = vpop.permute.xlu0 %895
  %897 = vrot.lane.b32.xlu0 %v314, 4
  %v898 = vpop.permute.xlu0 %897
  %899 = vrot.lane.b32.xlu0 %v315, 4
  %v900 = vpop.permute.xlu0 %899
  %901 = vrot.lane.b32.xlu0 %v316, 4
  %v902 = vpop.permute.xlu0 %901
  %903 = vrot.lane.b32.xlu0 %v317, 4
  %v904 = vpop.permute.xlu0 %903
  %905 = vrot.lane.b32.xlu0 %v318, 4
  %v906 = vpop.permute.xlu0 %905
  %907 = vrot.lane.b32.xlu0 %v319, 4
  %v908 = vpop.permute.xlu0 %907
  %909 = vrot.lane.b32.xlu0 %v320, 4
  %v910 = vpop.permute.xlu0 %909
  %911 = vrot.lane.b32.xlu0 %v321, 4
  %v912 = vpop.permute.xlu0 %911
  %913 = vrot.lane.b32.xlu0 %v322, 4
  %v914 = vpop.permute.xlu0 %913
  %915 = vrot.lane.b32.xlu0 %v323, 4
  %v916 = vpop.permute.xlu0 %915
  %917 = vrot.lane.b32.xlu0 %v324, 4
  %v918 = vpop.permute.xlu0 %917
  %919 = vrot.lane.b32.xlu0 %v325, 4
  %v920 = vpop.permute.xlu0 %919
  %921 = vrot.lane.b32.xlu0 %v326, 4
  %v922 = vpop.permute.xlu0 %921
  %923 = vrot.lane.b32.xlu0 %v327, 4
  %v924 = vpop.permute.xlu0 %923
  %925 = vrot.lane.b32.xlu0 %v328, 4
  %v926 = vpop.permute.xlu0 %925
  %927 = vrot.lane.b32.xlu0 %v329, 4
  %v928 = vpop.permute.xlu0 %927
  %929 = vrot.lane.b32.xlu0 %v330, 4
  %v930 = vpop.permute.xlu0 %929
  %931 = vrot.lane.b32.xlu0 %v331, 4
  %v932 = vpop.permute.xlu0 %931
  %933 = vrot.lane.b32.xlu0 %v332, 4
  %v934 = vpop.permute.xlu0 %933
  %935 = vrot.lane.b32.xlu0 %v333, 4
  %v936 = vpop.permute.xlu0 %935
  %937 = vrot.lane.b32.xlu0 %v334, 4
  %v938 = vpop.permute.xlu0 %937
  %939 = vrot.lane.b32.xlu0 %v335, 4
  %v940 = vpop.permute.xlu0 %939
  %941 = vrot.lane.b32.xlu0 %v336, 4
  %v942 = vpop.permute.xlu0 %941
  %943 = vrot.lane.b32.xlu0 %v337, 4
  %v944 = vpop.permute.xlu0 %943
  %945 = vrot.lane.b32.xlu0 %v338, 4
  %v946 = vpop.permute.xlu0 %945
  %947 = vrot.lane.b32.xlu0 %v339, 4
  %v948 = vpop.permute.xlu0 %947
  %949 = vrot.lane.b32.xlu0 %v340, 4
  %v950 = vpop.permute.xlu0 %949
  %951 = vrot.lane.b32.xlu0 %v341, 4
  %v952 = vpop.permute.xlu0 %951
  %953 = vrot.lane.b32.xlu0 %v342, 4
  %v954 = vpop.permute.xlu0 %953
  %955 = vrot.lane.b32.xlu0 %v343, 4
  %v956 = vpop.permute.xlu0 %955
  %957 = vrot.lane.b32.xlu0 %v344, 4
  %v958 = vpop.permute.xlu0 %957
  %959 = vrot.lane.b32.xlu0 %v345, 4
  %v960 = vpop.permute.xlu0 %959
  %961 = vrot.lane.b32.xlu0 %v346, 4
  %v962 = vpop.permute.xlu0 %961
  %963 = vrot.lane.b32.xlu0 %v347, 4
  %v964 = vpop.permute.xlu0 %963
  %965 = vrot.lane.b32.xlu0 %v348, 4
  %v966 = vpop.permute.xlu0 %965
  %967 = vrot.lane.b32.xlu0 %v349, 4
  %v968 = vpop.permute.xlu0 %967
  %969 = vrot.lane.b32.xlu0 %v350, 4
  %v970 = vpop.permute.xlu0 %969
  %971 = vrot.lane.b32.xlu0 %v351, 4
  %v972 = vpop.permute.xlu0 %971
  %973 = vrot.lane.b32.xlu0 %v352, 4
  %v974 = vpop.permute.xlu0 %973
  %975 = vrot.lane.b32.xlu0 %v353, 4
  %v976 = vpop.permute.xlu0 %975
  %977 = vrot.lane.b32.xlu0 %v354, 4
  %v978 = vpop.permute.xlu0 %977
  %979 = vrot.lane.b32.xlu0 %v355, 4
  %v980 = vpop.permute.xlu0 %979
  %981 = vrot.lane.b32.xlu0 %v356, 4
  %v982 = vpop.permute.xlu0 %981
  %983 = vrot.lane.b32.xlu0 %v357, 4
  %v984 = vpop.permute.xlu0 %983
  %985 = vrot.lane.b32.xlu0 %v358, 4
  %v986 = vpop.permute.xlu0 %985
  %987 = vrot.lane.b32.xlu0 %v359, 4
  %v988 = vpop.permute.xlu0 %987
  %989 = vrot.lane.b32.xlu0 %v360, 4
  %v990 = vpop.permute.xlu0 %989
  %991 = vrot.lane.b32.xlu0 %v361, 4
  %v992 = vpop.permute.xlu0 %991
  %993 = vrot.lane.b32.xlu0 %v362, 4
  %v994 = vpop.permute.xlu0 %993
  %995 = vrot.lane.b32.xlu0 %v363, 4
  %v996 = vpop.permute.xlu0 %995
  %997 = vrot.lane.b32.xlu0 %v364, 4
  %v998 = vpop.permute.xlu0 %997
  %999 = vrot.lane.b32.xlu0 %v365, 4
  %v1000 = vpop.permute.xlu0 %999
  %1001 = vrot.lane.b32.xlu0 %v366, 4
  %v1002 = vpop.permute.xlu0 %1001
  %1003 = vrot.lane.b32.xlu0 %v367, 4
  %v1004 = vpop.permute.xlu0 %1003
  %1005 = vrot.lane.b32.xlu0 %v368, 4
  %v1006 = vpop.permute.xlu0 %1005
  %1007 = vrot.lane.b32.xlu0 %v369, 4
  %v1008 = vpop.permute.xlu0 %1007
  %1009 = vrot.lane.b32.xlu0 %v370, 4
  %v1010 = vpop.permute.xlu0 %1009
  %1011 = vrot.lane.b32.xlu0 %v371, 4
  %v1012 = vpop.permute.xlu0 %1011
  %1141 = vrot.lane.b32.xlu0 %v372, 8
  %v1142 = vpop.permute.xlu0 %1141
  %1143 = vrot.lane.b32.xlu0 %v373, 8
  %v1144 = vpop.permute.xlu0 %1143
  %1145 = vrot.lane.b32.xlu0 %v374, 8
  %v1146 = vpop.permute.xlu0 %1145
  %1147 = vrot.lane.b32.xlu0 %v375, 8
  %v1148 = vpop.permute.xlu0 %1147
  %1149 = vrot.lane.b32.xlu0 %v376, 8
  %v1150 = vpop.permute.xlu0 %1149
  %1151 = vrot.lane.b32.xlu0 %v377, 8
  %v1152 = vpop.permute.xlu0 %1151
  %1153 = vrot.lane.b32.xlu0 %v378, 8
  %v1154 = vpop.permute.xlu0 %1153
  %1155 = vrot.lane.b32.xlu0 %v379, 8
  %v1156 = vpop.permute.xlu0 %1155
  %1157 = vrot.lane.b32.xlu0 %v380, 8
  %v1158 = vpop.permute.xlu0 %1157
  %1159 = vrot.lane.b32.xlu0 %v381, 8
  %v1160 = vpop.permute.xlu0 %1159
  %1161 = vrot.lane.b32.xlu0 %v382, 8
  %v1162 = vpop.permute.xlu0 %1161
  %1163 = vrot.lane.b32.xlu0 %v383, 8
  %v1164 = vpop.permute.xlu0 %1163
  %1165 = vrot.lane.b32.xlu0 %v384, 8
  %v1166 = vpop.permute.xlu0 %1165
  %1167 = vrot.lane.b32.xlu0 %v385, 8
  %v1168 = vpop.permute.xlu0 %1167
  %1169 = vrot.lane.b32.xlu0 %v386, 8
  %v1170 = vpop.permute.xlu0 %1169
  %1171 = vrot.lane.b32.xlu0 %v387, 8
  %v1172 = vpop.permute.xlu0 %1171
  %1173 = vrot.lane.b32.xlu0 %v388, 8
  %v1174 = vpop.permute.xlu0 %1173
  %1175 = vrot.lane.b32.xlu0 %v389, 8
  %v1176 = vpop.permute.xlu0 %1175
  %1177 = vrot.lane.b32.xlu0 %v390, 8
  %v1178 = vpop.permute.xlu0 %1177
  %1179 = vrot.lane.b32.xlu0 %v391, 8
  %v1180 = vpop.permute.xlu0 %1179
  %1181 = vrot.lane.b32.xlu0 %v392, 8
  %v1182 = vpop.permute.xlu0 %1181
  %1183 = vrot.lane.b32.xlu0 %v393, 8
  %v1184 = vpop.permute.xlu0 %1183
  %1185 = vrot.lane.b32.xlu0 %v394, 8
  %v1186 = vpop.permute.xlu0 %1185
  %1187 = vrot.lane.b32.xlu0 %v395, 8
  %v1188 = vpop.permute.xlu0 %1187
  %1189 = vrot.lane.b32.xlu0 %v396, 8
  %v1190 = vpop.permute.xlu0 %1189
  %1191 = vrot.lane.b32.xlu0 %v397, 8
  %v1192 = vpop.permute.xlu0 %1191
  %1193 = vrot.lane.b32.xlu0 %v398, 8
  %v1194 = vpop.permute.xlu0 %1193
  %1195 = vrot.lane.b32.xlu0 %v399, 8
  %v1196 = vpop.permute.xlu0 %1195
  %1197 = vrot.lane.b32.xlu0 %v400, 8
  %v1198 = vpop.permute.xlu0 %1197
  %1199 = vrot.lane.b32.xlu0 %v401, 8
  %v1200 = vpop.permute.xlu0 %1199
  %1201 = vrot.lane.b32.xlu0 %v402, 8
  %v1202 = vpop.permute.xlu0 %1201
  %1203 = vrot.lane.b32.xlu0 %v403, 8
  %v1204 = vpop.permute.xlu0 %1203
  %1205 = vrot.lane.b32.xlu0 %v404, 8
  %v1206 = vpop.permute.xlu0 %1205
  %1207 = vrot.lane.b32.xlu0 %v405, 8
  %v1208 = vpop.permute.xlu0 %1207
  %1209 = vrot.lane.b32.xlu0 %v406, 8
  %v1210 = vpop.permute.xlu0 %1209
  %1211 = vrot.lane.b32.xlu0 %v407, 8
  %v1212 = vpop.permute.xlu0 %1211
  %1213 = vrot.lane.b32.xlu0 %v408, 8
  %v1214 = vpop.permute.xlu0 %1213
  %1215 = vrot.lane.b32.xlu0 %v409, 8
  %v1216 = vpop.permute.xlu0 %1215
  %1217 = vrot.lane.b32.xlu0 %v410, 8
  %v1218 = vpop.permute.xlu0 %1217
  %1219 = vrot.lane.b32.xlu0 %v411, 8
  %v1220 = vpop.permute.xlu0 %1219
  %1221 = vrot.lane.b32.xlu0 %v412, 8
  %v1222 = vpop.permute.xlu0 %1221
  %1223 = vrot.lane.b32.xlu0 %v413, 8
  %v1224 = vpop.permute.xlu0 %1223
  %1225 = vrot.lane.b32.xlu0 %v414, 8
  %v1226 = vpop.permute.xlu0 %1225
  %1227 = vrot.lane.b32.xlu0 %v415, 8
  %v1228 = vpop.permute.xlu0 %1227
  %1229 = vrot.lane.b32.xlu0 %v416, 8
  %v1230 = vpop.permute.xlu0 %1229
  %1231 = vrot.lane.b32.xlu0 %v417, 8
  %v1232 = vpop.permute.xlu0 %1231
  %1233 = vrot.lane.b32.xlu0 %v418, 8
  %v1234 = vpop.permute.xlu0 %1233
  %1235 = vrot.lane.b32.xlu0 %v419, 8
  %v1236 = vpop.permute.xlu0 %1235
  %1237 = vrot.lane.b32.xlu0 %v420, 8
  %v1238 = vpop.permute.xlu0 %1237
  %1239 = vrot.lane.b32.xlu0 %v421, 8
  %v1240 = vpop.permute.xlu0 %1239
  %1241 = vrot.lane.b32.xlu0 %v422, 8
  %v1242 = vpop.permute.xlu0 %1241
  %1243 = vrot.lane.b32.xlu0 %v423, 8
  %v1244 = vpop.permute.xlu0 %1243
  %1245 = vrot.lane.b32.xlu0 %v424, 8
  %v1246 = vpop.permute.xlu0 %1245
  %1247 = vrot.lane.b32.xlu0 %v425, 8
  %v1248 = vpop.permute.xlu0 %1247
  %1249 = vrot.lane.b32.xlu0 %v426, 8
  %v1250 = vpop.permute.xlu0 %1249
  %1251 = vrot.lane.b32.xlu0 %v427, 8
  %v1252 = vpop.permute.xlu0 %1251
  %1253 = vrot.lane.b32.xlu0 %v428, 8
  %v1254 = vpop.permute.xlu0 %1253
  %1255 = vrot.lane.b32.xlu0 %v429, 8
  %v1256 = vpop.permute.xlu0 %1255
  %1257 = vrot.lane.b32.xlu0 %v430, 8
  %v1258 = vpop.permute.xlu0 %1257
  %1259 = vrot.lane.b32.xlu0 %v431, 8
  %v1260 = vpop.permute.xlu0 %1259
  %1261 = vrot.lane.b32.xlu0 %v432, 8
  %v1262 = vpop.permute.xlu0 %1261
  %1263 = vrot.lane.b32.xlu0 %v433, 8
  %v1264 = vpop.permute.xlu0 %1263
  %1265 = vrot.lane.b32.xlu0 %v434, 8
  %v1266 = vpop.permute.xlu0 %1265
  %1267 = vrot.lane.b32.xlu0 %v435, 8
  %v1268 = vpop.permute.xlu0 %1267
  %1397 = vrot.lane.b32.xlu0 %v436, 12
  %v1398 = vpop.permute.xlu0 %1397
  %1399 = vrot.lane.b32.xlu0 %v437, 12
  %v1400 = vpop.permute.xlu0 %1399
  %1401 = vrot.lane.b32.xlu0 %v438, 12
  %v1402 = vpop.permute.xlu0 %1401
  %1403 = vrot.lane.b32.xlu0 %v439, 12
  %v1404 = vpop.permute.xlu0 %1403
  %1405 = vrot.lane.b32.xlu0 %v440, 12
  %v1406 = vpop.permute.xlu0 %1405
  %1407 = vrot.lane.b32.xlu0 %v441, 12
  %v1408 = vpop.permute.xlu0 %1407
  %1409 = vrot.lane.b32.xlu0 %v442, 12
  %v1410 = vpop.permute.xlu0 %1409
  %1411 = vrot.lane.b32.xlu0 %v443, 12
  %v1412 = vpop.permute.xlu0 %1411
  %1413 = vrot.lane.b32.xlu0 %v444, 12
  %v1414 = vpop.permute.xlu0 %1413
  %1415 = vrot.lane.b32.xlu0 %v445, 12
  %v1416 = vpop.permute.xlu0 %1415
  %1417 = vrot.lane.b32.xlu0 %v446, 12
  %v1418 = vpop.permute.xlu0 %1417
  %1419 = vrot.lane.b32.xlu0 %v447, 12
  %v1420 = vpop.permute.xlu0 %1419
  %1421 = vrot.lane.b32.xlu0 %v448, 12
  %v1422 = vpop.permute.xlu0 %1421
  %1423 = vrot.lane.b32.xlu0 %v449, 12
  %v1424 = vpop.permute.xlu0 %1423
  %1425 = vrot.lane.b32.xlu0 %v450, 12
  %v1426 = vpop.permute.xlu0 %1425
  %1427 = vrot.lane.b32.xlu0 %v451, 12
  %v1428 = vpop.permute.xlu0 %1427
  %1429 = vrot.lane.b32.xlu0 %v452, 12
  %v1430 = vpop.permute.xlu0 %1429
  %1431 = vrot.lane.b32.xlu0 %v453, 12
  %v1432 = vpop.permute.xlu0 %1431
  %1433 = vrot.lane.b32.xlu0 %v454, 12
  %v1434 = vpop.permute.xlu0 %1433
  %1435 = vrot.lane.b32.xlu0 %v455, 12
  %v1436 = vpop.permute.xlu0 %1435
  %1437 = vrot.lane.b32.xlu0 %v456, 12
  %v1438 = vpop.permute.xlu0 %1437
  %1439 = vrot.lane.b32.xlu0 %v457, 12
  %v1440 = vpop.permute.xlu0 %1439
  %1441 = vrot.lane.b32.xlu0 %v458, 12
  %v1442 = vpop.permute.xlu0 %1441
  %1443 = vrot.lane.b32.xlu0 %v459, 12
  %v1444 = vpop.permute.xlu0 %1443
  %1445 = vrot.lane.b32.xlu0 %v460, 12
  %v1446 = vpop.permute.xlu0 %1445
  %1447 = vrot.lane.b32.xlu0 %v461, 12
  %v1448 = vpop.permute.xlu0 %1447
  %1449 = vrot.lane.b32.xlu0 %v462, 12
  %v1450 = vpop.permute.xlu0 %1449
  %1451 = vrot.lane.b32.xlu0 %v463, 12
  %v1452 = vpop.permute.xlu0 %1451
  %1453 = vrot.lane.b32.xlu0 %v464, 12
  %v1454 = vpop.permute.xlu0 %1453
  %1455 = vrot.lane.b32.xlu0 %v465, 12
  %v1456 = vpop.permute.xlu0 %1455
  %1457 = vrot.lane.b32.xlu0 %v466, 12
  %v1458 = vpop.permute.xlu0 %1457
  %1459 = vrot.lane.b32.xlu0 %v467, 12
  %v1460 = vpop.permute.xlu0 %1459
  %1461 = vrot.lane.b32.xlu0 %v468, 12
  %v1462 = vpop.permute.xlu0 %1461
  %1463 = vrot.lane.b32.xlu0 %v469, 12
  %v1464 = vpop.permute.xlu0 %1463
  %1465 = vrot.lane.b32.xlu0 %v470, 12
  %v1466 = vpop.permute.xlu0 %1465
  %1467 = vrot.lane.b32.xlu0 %v471, 12
  %v1468 = vpop.permute.xlu0 %1467
  %1469 = vrot.lane.b32.xlu0 %v472, 12
  %v1470 = vpop.permute.xlu0 %1469
  %1471 = vrot.lane.b32.xlu0 %v473, 12
  %v1472 = vpop.permute.xlu0 %1471
  %1473 = vrot.lane.b32.xlu0 %v474, 12
  %v1474 = vpop.permute.xlu0 %1473
  %1475 = vrot.lane.b32.xlu0 %v475, 12
  %v1476 = vpop.permute.xlu0 %1475
  %1477 = vrot.lane.b32.xlu0 %v476, 12
  %v1478 = vpop.permute.xlu0 %1477
  %1479 = vrot.lane.b32.xlu0 %v477, 12
  %v1480 = vpop.permute.xlu0 %1479
  %1481 = vrot.lane.b32.xlu0 %v478, 12
  %v1482 = vpop.permute.xlu0 %1481
  %1483 = vrot.lane.b32.xlu0 %v479, 12
  %v1484 = vpop.permute.xlu0 %1483
  %1485 = vrot.lane.b32.xlu0 %v480, 12
  %v1486 = vpop.permute.xlu0 %1485
  %1487 = vrot.lane.b32.xlu0 %v481, 12
  %v1488 = vpop.permute.xlu0 %1487
  %1489 = vrot.lane.b32.xlu0 %v482, 12
  %v1490 = vpop.permute.xlu0 %1489
  %1491 = vrot.lane.b32.xlu0 %v483, 12
  %v1492 = vpop.permute.xlu0 %1491
  %1493 = vrot.lane.b32.xlu0 %v484, 12
  %v1494 = vpop.permute.xlu0 %1493
  %1495 = vrot.lane.b32.xlu0 %v485, 12
  %v1496 = vpop.permute.xlu0 %1495
  %1497 = vrot.lane.b32.xlu0 %v486, 12
  %v1498 = vpop.permute.xlu0 %1497
  %1499 = vrot.lane.b32.xlu0 %v487, 12
  %v1500 = vpop.permute.xlu0 %1499
  %1501 = vrot.lane.b32.xlu0 %v488, 12
  %v1502 = vpop.permute.xlu0 %1501
  %1503 = vrot.lane.b32.xlu0 %v489, 12
  %v1504 = vpop.permute.xlu0 %1503
  %1505 = vrot.lane.b32.xlu0 %v490, 12
  %v1506 = vpop.permute.xlu0 %1505
  %1507 = vrot.lane.b32.xlu0 %v491, 12
  %v1508 = vpop.permute.xlu0 %1507
  %1509 = vrot.lane.b32.xlu0 %v492, 12
  %v1510 = vpop.permute.xlu0 %1509
  %1511 = vrot.lane.b32.xlu0 %v493, 12
  %v1512 = vpop.permute.xlu0 %1511
  %1513 = vrot.lane.b32.xlu0 %v494, 12
  %v1514 = vpop.permute.xlu0 %1513
  %1515 = vrot.lane.b32.xlu0 %v495, 12
  %v1516 = vpop.permute.xlu0 %1515
  %1517 = vrot.lane.b32.xlu0 %v496, 12
  %v1518 = vpop.permute.xlu0 %1517
  %1519 = vrot.lane.b32.xlu0 %v497, 12
  %v1520 = vpop.permute.xlu0 %1519
  %1521 = vrot.lane.b32.xlu0 %v498, 12
  %v1522 = vpop.permute.xlu0 %1521
  %1523 = vrot.lane.b32.xlu0 %v499, 12
  %v1524 = vpop.permute.xlu0 %1523
  %1653 = vrot.lane.b32.xlu0 %v500, 16
  %v1654 = vpop.permute.xlu0 %1653
  %1655 = vrot.lane.b32.xlu0 %v501, 16
  %v1656 = vpop.permute.xlu0 %1655
  %1657 = vrot.lane.b32.xlu0 %v502, 16
  %v1658 = vpop.permute.xlu0 %1657
  %1659 = vrot.lane.b32.xlu0 %v503, 16
  %v1660 = vpop.permute.xlu0 %1659
  %1661 = vrot.lane.b32.xlu0 %v504, 16
  %v1662 = vpop.permute.xlu0 %1661
  %1663 = vrot.lane.b32.xlu0 %v505, 16
  %v1664 = vpop.permute.xlu0 %1663
  %1665 = vrot.lane.b32.xlu0 %v506, 16
  %v1666 = vpop.permute.xlu0 %1665
  %1667 = vrot.lane.b32.xlu0 %v507, 16
  %v1668 = vpop.permute.xlu0 %1667
  %1669 = vrot.lane.b32.xlu0 %v508, 16
  %v1670 = vpop.permute.xlu0 %1669
  %1671 = vrot.lane.b32.xlu0 %v509, 16
  %v1672 = vpop.permute.xlu0 %1671
  %1673 = vrot.lane.b32.xlu0 %v510, 16
  %v1674 = vpop.permute.xlu0 %1673
  %1675 = vrot.lane.b32.xlu0 %v511, 16
  %v1676 = vpop.permute.xlu0 %1675
  %1677 = vrot.lane.b32.xlu0 %v512, 16
  %v1678 = vpop.permute.xlu0 %1677
  %1679 = vrot.lane.b32.xlu0 %v513, 16
  %v1680 = vpop.permute.xlu0 %1679
  %1681 = vrot.lane.b32.xlu0 %v514, 16
  %v1682 = vpop.permute.xlu0 %1681
  %1683 = vrot.lane.b32.xlu0 %v515, 16
  %v1684 = vpop.permute.xlu0 %1683
  %1685 = vrot.lane.b32.xlu0 %v516, 16
  %v1686 = vpop.permute.xlu0 %1685
  %1687 = vrot.lane.b32.xlu0 %v517, 16
  %v1688 = vpop.permute.xlu0 %1687
  %1689 = vrot.lane.b32.xlu0 %v518, 16
  %v1690 = vpop.permute.xlu0 %1689
  %1691 = vrot.lane.b32.xlu0 %v519, 16
  %v1692 = vpop.permute.xlu0 %1691
  %1693 = vrot.lane.b32.xlu0 %v520, 16
  %v1694 = vpop.permute.xlu0 %1693
  %1695 = vrot.lane.b32.xlu0 %v521, 16
  %v1696 = vpop.permute.xlu0 %1695
  %1697 = vrot.lane.b32.xlu0 %v522, 16
  %v1698 = vpop.permute.xlu0 %1697
  %1699 = vrot.lane.b32.xlu0 %v523, 16
  %v1700 = vpop.permute.xlu0 %1699
  %1701 = vrot.lane.b32.xlu0 %v524, 16
  %v1702 = vpop.permute.xlu0 %1701
  %1703 = vrot.lane.b32.xlu0 %v525, 16
  %v1704 = vpop.permute.xlu0 %1703
  %1705 = vrot.lane.b32.xlu0 %v526, 16
  %v1706 = vpop.permute.xlu0 %1705
  %1707 = vrot.lane.b32.xlu0 %v527, 16
  %v1708 = vpop.permute.xlu0 %1707
  %1709 = vrot.lane.b32.xlu0 %v528, 16
  %v1710 = vpop.permute.xlu0 %1709
  %1711 = vrot.lane.b32.xlu0 %v529, 16
  %v1712 = vpop.permute.xlu0 %1711
  %1713 = vrot.lane.b32.xlu0 %v530, 16
  %v1714 = vpop.permute.xlu0 %1713
  %1715 = vrot.lane.b32.xlu0 %v531, 16
  %v1716 = vpop.permute.xlu0 %1715
  %1717 = vrot.lane.b32.xlu0 %v532, 16
  %v1718 = vpop.permute.xlu0 %1717
  %1719 = vrot.lane.b32.xlu0 %v533, 16
  %v1720 = vpop.permute.xlu0 %1719
  %1721 = vrot.lane.b32.xlu0 %v534, 16
  %v1722 = vpop.permute.xlu0 %1721
  %1723 = vrot.lane.b32.xlu0 %v535, 16
  %v1724 = vpop.permute.xlu0 %1723
  %1725 = vrot.lane.b32.xlu0 %v536, 16
  %v1726 = vpop.permute.xlu0 %1725
  %1727 = vrot.lane.b32.xlu0 %v537, 16
  %v1728 = vpop.permute.xlu0 %1727
  %1729 = vrot.lane.b32.xlu0 %v538, 16
  %v1730 = vpop.permute.xlu0 %1729
  %1731 = vrot.lane.b32.xlu0 %v539, 16
  %v1732 = vpop.permute.xlu0 %1731
  %1733 = vrot.lane.b32.xlu0 %v540, 16
  %v1734 = vpop.permute.xlu0 %1733
  %1735 = vrot.lane.b32.xlu0 %v541, 16
  %v1736 = vpop.permute.xlu0 %1735
  %1737 = vrot.lane.b32.xlu0 %v542, 16
  %v1738 = vpop.permute.xlu0 %1737
  %1739 = vrot.lane.b32.xlu0 %v543, 16
  %v1740 = vpop.permute.xlu0 %1739
  %1741 = vrot.lane.b32.xlu0 %v544, 16
  %v1742 = vpop.permute.xlu0 %1741
  %1743 = vrot.lane.b32.xlu0 %v545, 16
  %v1744 = vpop.permute.xlu0 %1743
  %1745 = vrot.lane.b32.xlu0 %v546, 16
  %v1746 = vpop.permute.xlu0 %1745
  %1747 = vrot.lane.b32.xlu0 %v547, 16
  %v1748 = vpop.permute.xlu0 %1747
  %1749 = vrot.lane.b32.xlu0 %v548, 16
  %v1750 = vpop.permute.xlu0 %1749
  %1751 = vrot.lane.b32.xlu0 %v549, 16
  %v1752 = vpop.permute.xlu0 %1751
  %1753 = vrot.lane.b32.xlu0 %v550, 16
  %v1754 = vpop.permute.xlu0 %1753
  %1755 = vrot.lane.b32.xlu0 %v551, 16
  %v1756 = vpop.permute.xlu0 %1755
  %1757 = vrot.lane.b32.xlu0 %v552, 16
  %v1758 = vpop.permute.xlu0 %1757
  %1759 = vrot.lane.b32.xlu0 %v553, 16
  %v1760 = vpop.permute.xlu0 %1759
  %1761 = vrot.lane.b32.xlu0 %v554, 16
  %v1762 = vpop.permute.xlu0 %1761
  %1763 = vrot.lane.b32.xlu0 %v555, 16
  %v1764 = vpop.permute.xlu0 %1763
  %1765 = vrot.lane.b32.xlu0 %v556, 16
  %v1766 = vpop.permute.xlu0 %1765
  %1767 = vrot.lane.b32.xlu0 %v557, 16
  %v1768 = vpop.permute.xlu0 %1767
  %1769 = vrot.lane.b32.xlu0 %v558, 16
  %v1770 = vpop.permute.xlu0 %1769
  %1771 = vrot.lane.b32.xlu0 %v559, 16
  %v1772 = vpop.permute.xlu0 %1771
  %1773 = vrot.lane.b32.xlu0 %v560, 16
  %v1774 = vpop.permute.xlu0 %1773
  %1775 = vrot.lane.b32.xlu0 %v561, 16
  %v1776 = vpop.permute.xlu0 %1775
  %1777 = vrot.lane.b32.xlu0 %v562, 16
  %v1778 = vpop.permute.xlu0 %1777
  %1779 = vrot.lane.b32.xlu0 %v563, 16
  %v1780 = vpop.permute.xlu0 %1779
  %1909 = vrot.lane.b32.xlu0 %v564, 20
  %v1910 = vpop.permute.xlu0 %1909
  %1911 = vrot.lane.b32.xlu0 %v565, 20
  %v1912 = vpop.permute.xlu0 %1911
  %1913 = vrot.lane.b32.xlu0 %v566, 20
  %v1914 = vpop.permute.xlu0 %1913
  %1915 = vrot.lane.b32.xlu0 %v567, 20
  %v1916 = vpop.permute.xlu0 %1915
  %1917 = vrot.lane.b32.xlu0 %v568, 20
  %v1918 = vpop.permute.xlu0 %1917
  %1919 = vrot.lane.b32.xlu0 %v569, 20
  %v1920 = vpop.permute.xlu0 %1919
  %1921 = vrot.lane.b32.xlu0 %v570, 20
  %v1922 = vpop.permute.xlu0 %1921
  %1923 = vrot.lane.b32.xlu0 %v571, 20
  %v1924 = vpop.permute.xlu0 %1923
  %1925 = vrot.lane.b32.xlu0 %v572, 20
  %v1926 = vpop.permute.xlu0 %1925
  %1927 = vrot.lane.b32.xlu0 %v573, 20
  %v1928 = vpop.permute.xlu0 %1927
  %1929 = vrot.lane.b32.xlu0 %v574, 20
  %v1930 = vpop.permute.xlu0 %1929
  %1931 = vrot.lane.b32.xlu0 %v575, 20
  %v1932 = vpop.permute.xlu0 %1931
  %1933 = vrot.lane.b32.xlu0 %v576, 20
  %v1934 = vpop.permute.xlu0 %1933
  %1935 = vrot.lane.b32.xlu0 %v577, 20
  %v1936 = vpop.permute.xlu0 %1935
  %1937 = vrot.lane.b32.xlu0 %v578, 20
  %v1938 = vpop.permute.xlu0 %1937
  %1939 = vrot.lane.b32.xlu0 %v579, 20
  %v1940 = vpop.permute.xlu0 %1939
  %1941 = vrot.lane.b32.xlu0 %v580, 20
  %v1942 = vpop.permute.xlu0 %1941
  %1943 = vrot.lane.b32.xlu0 %v581, 20
  %v1944 = vpop.permute.xlu0 %1943
  %1945 = vrot.lane.b32.xlu0 %v582, 20
  %v1946 = vpop.permute.xlu0 %1945
  %1947 = vrot.lane.b32.xlu0 %v583, 20
  %v1948 = vpop.permute.xlu0 %1947
  %1949 = vrot.lane.b32.xlu0 %v584, 20
  %v1950 = vpop.permute.xlu0 %1949
  %1951 = vrot.lane.b32.xlu0 %v585, 20
  %v1952 = vpop.permute.xlu0 %1951
  %1953 = vrot.lane.b32.xlu0 %v586, 20
  %v1954 = vpop.permute.xlu0 %1953
  %1955 = vrot.lane.b32.xlu0 %v587, 20
  %v1956 = vpop.permute.xlu0 %1955
  %1957 = vrot.lane.b32.xlu0 %v588, 20
  %v1958 = vpop.permute.xlu0 %1957
  %1959 = vrot.lane.b32.xlu0 %v589, 20
  %v1960 = vpop.permute.xlu0 %1959
  %1961 = vrot.lane.b32.xlu0 %v590, 20
  %v1962 = vpop.permute.xlu0 %1961
  %1963 = vrot.lane.b32.xlu0 %v591, 20
  %v1964 = vpop.permute.xlu0 %1963
  %1965 = vrot.lane.b32.xlu0 %v592, 20
  %v1966 = vpop.permute.xlu0 %1965
  %1967 = vrot.lane.b32.xlu0 %v593, 20
  %v1968 = vpop.permute.xlu0 %1967
  %1969 = vrot.lane.b32.xlu0 %v594, 20
  %v1970 = vpop.permute.xlu0 %1969
  %1971 = vrot.lane.b32.xlu0 %v595, 20
  %v1972 = vpop.permute.xlu0 %1971
  %1973 = vrot.lane.b32.xlu0 %v596, 20
  %v1974 = vpop.permute.xlu0 %1973
  %1975 = vrot.lane.b32.xlu0 %v597, 20
  %v1976 = vpop.permute.xlu0 %1975
  %1977 = vrot.lane.b32.xlu0 %v598, 20
  %v1978 = vpop.permute.xlu0 %1977
  %1979 = vrot.lane.b32.xlu0 %v599, 20
  %v1980 = vpop.permute.xlu0 %1979
  %1981 = vrot.lane.b32.xlu0 %v600, 20
  %v1982 = vpop.permute.xlu0 %1981
  %1983 = vrot.lane.b32.xlu0 %v601, 20
  %v1984 = vpop.permute.xlu0 %1983
  %1985 = vrot.lane.b32.xlu0 %v602, 20
  %v1986 = vpop.permute.xlu0 %1985
  %1987 = vrot.lane.b32.xlu0 %v603, 20
  %v1988 = vpop.permute.xlu0 %1987
  %1989 = vrot.lane.b32.xlu0 %v604, 20
  %v1990 = vpop.permute.xlu0 %1989
  %1991 = vrot.lane.b32.xlu0 %v605, 20
  %v1992 = vpop.permute.xlu0 %1991
  %1993 = vrot.lane.b32.xlu0 %v606, 20
  %v1994 = vpop.permute.xlu0 %1993
  %1995 = vrot.lane.b32.xlu0 %v607, 20
  %v1996 = vpop.permute.xlu0 %1995
  %1997 = vrot.lane.b32.xlu0 %v608, 20
  %v1998 = vpop.permute.xlu0 %1997
  %1999 = vrot.lane.b32.xlu0 %v609, 20
  %v2000 = vpop.permute.xlu0 %1999
  %2001 = vrot.lane.b32.xlu0 %v610, 20
  %v2002 = vpop.permute.xlu0 %2001
  %2003 = vrot.lane.b32.xlu0 %v611, 20
  %v2004 = vpop.permute.xlu0 %2003
  %2005 = vrot.lane.b32.xlu0 %v612, 20
  %v2006 = vpop.permute.xlu0 %2005
  %2007 = vrot.lane.b32.xlu0 %v613, 20
  %v2008 = vpop.permute.xlu0 %2007
  %2009 = vrot.lane.b32.xlu0 %v614, 20
  %v2010 = vpop.permute.xlu0 %2009
  %2011 = vrot.lane.b32.xlu0 %v615, 20
  %v2012 = vpop.permute.xlu0 %2011
  %2013 = vrot.lane.b32.xlu0 %v616, 20
  %v2014 = vpop.permute.xlu0 %2013
  %2015 = vrot.lane.b32.xlu0 %v617, 20
  %v2016 = vpop.permute.xlu0 %2015
  %2017 = vrot.lane.b32.xlu0 %v618, 20
  %v2018 = vpop.permute.xlu0 %2017
  %2019 = vrot.lane.b32.xlu0 %v619, 20
  %v2020 = vpop.permute.xlu0 %2019
  %2021 = vrot.lane.b32.xlu0 %v620, 20
  %v2022 = vpop.permute.xlu0 %2021
  %2023 = vrot.lane.b32.xlu0 %v621, 20
  %v2024 = vpop.permute.xlu0 %2023
  %2025 = vrot.lane.b32.xlu0 %v622, 20
  %v2026 = vpop.permute.xlu0 %2025
  %2027 = vrot.lane.b32.xlu0 %v623, 20
  %v2028 = vpop.permute.xlu0 %2027
  %2029 = vrot.lane.b32.xlu0 %v624, 20
  %v2030 = vpop.permute.xlu0 %2029
  %2031 = vrot.lane.b32.xlu0 %v625, 20
  %v2032 = vpop.permute.xlu0 %2031
  %2033 = vrot.lane.b32.xlu0 %v626, 20
  %v2034 = vpop.permute.xlu0 %2033
  %2035 = vrot.lane.b32.xlu0 %v627, 20
  %v2036 = vpop.permute.xlu0 %2035
  %2165 = vrot.lane.b32.xlu0 %v629, 24
  %v2166 = vpop.permute.xlu0 %2165
  %2167 = vrot.lane.b32.xlu0 %v630, 24
  %v2168 = vpop.permute.xlu0 %2167
  %2169 = vrot.lane.b32.xlu0 %v631, 24
  %v2170 = vpop.permute.xlu0 %2169
  %2171 = vrot.lane.b32.xlu0 %v632, 24
  %v2172 = vpop.permute.xlu0 %2171
  %2173 = vrot.lane.b32.xlu0 %v633, 24
  %v2174 = vpop.permute.xlu0 %2173
  %2175 = vrot.lane.b32.xlu0 %v634, 24
  %v2176 = vpop.permute.xlu0 %2175
  %2177 = vrot.lane.b32.xlu0 %v635, 24
  %v2178 = vpop.permute.xlu0 %2177
  %2179 = vrot.lane.b32.xlu0 %v636, 24
  %v2180 = vpop.permute.xlu0 %2179
  %2181 = vrot.lane.b32.xlu0 %v637, 24
  %v2182 = vpop.permute.xlu0 %2181
  %2183 = vrot.lane.b32.xlu0 %v638, 24
  %v2184 = vpop.permute.xlu0 %2183
  %2185 = vrot.lane.b32.xlu0 %v639, 24
  %v2186 = vpop.permute.xlu0 %2185
  %2187 = vrot.lane.b32.xlu0 %v640, 24
  %v2188 = vpop.permute.xlu0 %2187
  %2189 = vrot.lane.b32.xlu0 %v641, 24
  %v2190 = vpop.permute.xlu0 %2189
  %2191 = vrot.lane.b32.xlu0 %v642, 24
  %v2192 = vpop.permute.xlu0 %2191
  %2193 = vrot.lane.b32.xlu0 %v643, 24
  %v2194 = vpop.permute.xlu0 %2193
  %2195 = vrot.lane.b32.xlu0 %v644, 24
  %v2196 = vpop.permute.xlu0 %2195
  %2197 = vrot.lane.b32.xlu0 %v645, 24
  %v2198 = vpop.permute.xlu0 %2197
  %2199 = vrot.lane.b32.xlu0 %v646, 24
  %v2200 = vpop.permute.xlu0 %2199
  %2201 = vrot.lane.b32.xlu0 %v647, 24
  %v2202 = vpop.permute.xlu0 %2201
  %2203 = vrot.lane.b32.xlu0 %v648, 24
  %v2204 = vpop.permute.xlu0 %2203
  %2205 = vrot.lane.b32.xlu0 %v649, 24
  %v2206 = vpop.permute.xlu0 %2205
  %2207 = vrot.lane.b32.xlu0 %v650, 24
  %v2208 = vpop.permute.xlu0 %2207
  %2209 = vrot.lane.b32.xlu0 %v651, 24
  %v2210 = vpop.permute.xlu0 %2209
  %2211 = vrot.lane.b32.xlu0 %v652, 24
  %v2212 = vpop.permute.xlu0 %2211
  %2213 = vrot.lane.b32.xlu0 %v653, 24
  %v2214 = vpop.permute.xlu0 %2213
  %2215 = vrot.lane.b32.xlu0 %v654, 24
  %v2216 = vpop.permute.xlu0 %2215
  %2217 = vrot.lane.b32.xlu0 %v655, 24
  %v2218 = vpop.permute.xlu0 %2217
  %2219 = vrot.lane.b32.xlu0 %v656, 24
  %v2220 = vpop.permute.xlu0 %2219
  %2221 = vrot.lane.b32.xlu0 %v657, 24
  %v2222 = vpop.permute.xlu0 %2221
  %2223 = vrot.lane.b32.xlu0 %v658, 24
  %v2224 = vpop.permute.xlu0 %2223
  %2225 = vrot.lane.b32.xlu0 %v659, 24
  %v2226 = vpop.permute.xlu0 %2225
  %2227 = vrot.lane.b32.xlu0 %v660, 24
  %v2228 = vpop.permute.xlu0 %2227
  %2229 = vrot.lane.b32.xlu0 %v661, 24
  %v2230 = vpop.permute.xlu0 %2229
  %2231 = vrot.lane.b32.xlu0 %v662, 24
  %v2232 = vpop.permute.xlu0 %2231
  %2233 = vrot.lane.b32.xlu0 %v663, 24
  %v2234 = vpop.permute.xlu0 %2233
  %2235 = vrot.lane.b32.xlu0 %v664, 24
  %v2236 = vpop.permute.xlu0 %2235
  %2237 = vrot.lane.b32.xlu0 %v665, 24
  %v2238 = vpop.permute.xlu0 %2237
  %2239 = vrot.lane.b32.xlu0 %v666, 24
  %v2240 = vpop.permute.xlu0 %2239
  %2241 = vrot.lane.b32.xlu0 %v667, 24
  %v2242 = vpop.permute.xlu0 %2241
  %2243 = vrot.lane.b32.xlu0 %v668, 24
  %v2244 = vpop.permute.xlu0 %2243
  %2245 = vrot.lane.b32.xlu0 %v669, 24
  %v2246 = vpop.permute.xlu0 %2245
  %2247 = vrot.lane.b32.xlu0 %v670, 24
  %v2248 = vpop.permute.xlu0 %2247
  %2249 = vrot.lane.b32.xlu0 %v671, 24
  %v2250 = vpop.permute.xlu0 %2249
  %2251 = vrot.lane.b32.xlu0 %v672, 24
  %v2252 = vpop.permute.xlu0 %2251
  %2253 = vrot.lane.b32.xlu0 %v673, 24
  %v2254 = vpop.permute.xlu0 %2253
  %2255 = vrot.lane.b32.xlu0 %v674, 24
  %v2256 = vpop.permute.xlu0 %2255
  %2257 = vrot.lane.b32.xlu0 %v675, 24
  %v2258 = vpop.permute.xlu0 %2257
  %2259 = vrot.lane.b32.xlu0 %v676, 24
  %v2260 = vpop.permute.xlu0 %2259
  %2261 = vrot.lane.b32.xlu0 %v677, 24
  %v2262 = vpop.permute.xlu0 %2261
  %2263 = vrot.lane.b32.xlu0 %v678, 24
  %v2264 = vpop.permute.xlu0 %2263
  %2265 = vrot.lane.b32.xlu0 %v679, 24
  %v2266 = vpop.permute.xlu0 %2265
  %2267 = vrot.lane.b32.xlu0 %v680, 24
  %v2268 = vpop.permute.xlu0 %2267
  %2269 = vrot.lane.b32.xlu0 %v681, 24
  %v2270 = vpop.permute.xlu0 %2269
  %2271 = vrot.lane.b32.xlu0 %v682, 24
  %v2272 = vpop.permute.xlu0 %2271
  %2273 = vrot.lane.b32.xlu0 %v683, 24
  %v2274 = vpop.permute.xlu0 %2273
  %2275 = vrot.lane.b32.xlu0 %v684, 24
  %v2276 = vpop.permute.xlu0 %2275
  %2277 = vrot.lane.b32.xlu0 %v685, 24
  %v2278 = vpop.permute.xlu0 %2277
  %2279 = vrot.lane.b32.xlu0 %v686, 24
  %v2280 = vpop.permute.xlu0 %2279
  %2281 = vrot.lane.b32.xlu0 %v687, 24
  %v2282 = vpop.permute.xlu0 %2281
  %2283 = vrot.lane.b32.xlu0 %v688, 24
  %v2284 = vpop.permute.xlu0 %2283
  %2285 = vrot.lane.b32.xlu0 %v689, 24
  %v2286 = vpop.permute.xlu0 %2285
  %2287 = vrot.lane.b32.xlu0 %v690, 24
  %v2288 = vpop.permute.xlu0 %2287
  %2289 = vrot.lane.b32.xlu0 %v691, 24
  %v2290 = vpop.permute.xlu0 %2289
  %2291 = vrot.lane.b32.xlu0 %v692, 24
  %v2292 = vpop.permute.xlu0 %2291
  %2421 = vrot.lane.b32.xlu0 %v693, 28
  %v2422 = vpop.permute.xlu0 %2421
  %2423 = vrot.lane.b32.xlu0 %v694, 28
  %v2424 = vpop.permute.xlu0 %2423
  %2425 = vrot.lane.b32.xlu0 %v695, 28
  %v2426 = vpop.permute.xlu0 %2425
  %2427 = vrot.lane.b32.xlu0 %v696, 28
  %v2428 = vpop.permute.xlu0 %2427
  %2429 = vrot.lane.b32.xlu0 %v697, 28
  %v2430 = vpop.permute.xlu0 %2429
  %2431 = vrot.lane.b32.xlu0 %v698, 28
  %v2432 = vpop.permute.xlu0 %2431
  %2433 = vrot.lane.b32.xlu0 %v699, 28
  %v2434 = vpop.permute.xlu0 %2433
  %2435 = vrot.lane.b32.xlu0 %v700, 28
  %v2436 = vpop.permute.xlu0 %2435
  %2437 = vrot.lane.b32.xlu0 %v701, 28
  %v2438 = vpop.permute.xlu0 %2437
  %2439 = vrot.lane.b32.xlu0 %v702, 28
  %v2440 = vpop.permute.xlu0 %2439
  %2441 = vrot.lane.b32.xlu0 %v703, 28
  %v2442 = vpop.permute.xlu0 %2441
  %2443 = vrot.lane.b32.xlu0 %v704, 28
  %v2444 = vpop.permute.xlu0 %2443
  %2445 = vrot.lane.b32.xlu0 %v705, 28
  %v2446 = vpop.permute.xlu0 %2445
  %2447 = vrot.lane.b32.xlu0 %v706, 28
  %v2448 = vpop.permute.xlu0 %2447
  %2449 = vrot.lane.b32.xlu0 %v707, 28
  %v2450 = vpop.permute.xlu0 %2449
  %2451 = vrot.lane.b32.xlu0 %v708, 28
  %v2452 = vpop.permute.xlu0 %2451
  %2453 = vrot.lane.b32.xlu0 %v709, 28
  %v2454 = vpop.permute.xlu0 %2453
  %2455 = vrot.lane.b32.xlu0 %v710, 28
  %v2456 = vpop.permute.xlu0 %2455
  %2457 = vrot.lane.b32.xlu0 %v711, 28
  %v2458 = vpop.permute.xlu0 %2457
  %2459 = vrot.lane.b32.xlu0 %v712, 28
  %v2460 = vpop.permute.xlu0 %2459
  %2461 = vrot.lane.b32.xlu0 %v713, 28
  %v2462 = vpop.permute.xlu0 %2461
  %2463 = vrot.lane.b32.xlu0 %v714, 28
  %v2464 = vpop.permute.xlu0 %2463
  %2465 = vrot.lane.b32.xlu0 %v715, 28
  %v2466 = vpop.permute.xlu0 %2465
  %2467 = vrot.lane.b32.xlu0 %v716, 28
  %v2468 = vpop.permute.xlu0 %2467
  %2469 = vrot.lane.b32.xlu0 %v717, 28
  %v2470 = vpop.permute.xlu0 %2469
  %2471 = vrot.lane.b32.xlu0 %v718, 28
  %v2472 = vpop.permute.xlu0 %2471
  %2473 = vrot.lane.b32.xlu0 %v719, 28
  %v2474 = vpop.permute.xlu0 %2473
  %2475 = vrot.lane.b32.xlu0 %v720, 28
  %v2476 = vpop.permute.xlu0 %2475
  %2477 = vrot.lane.b32.xlu0 %v721, 28
  %v2478 = vpop.permute.xlu0 %2477
  %2479 = vrot.lane.b32.xlu0 %v722, 28
  %v2480 = vpop.permute.xlu0 %2479
  %2481 = vrot.lane.b32.xlu0 %v723, 28
  %v2482 = vpop.permute.xlu0 %2481
  %2483 = vrot.lane.b32.xlu0 %v724, 28
  %v2484 = vpop.permute.xlu0 %2483
  %2485 = vrot.lane.b32.xlu0 %v725, 28
  %v2486 = vpop.permute.xlu0 %2485
  %2487 = vrot.lane.b32.xlu0 %v726, 28
  %v2488 = vpop.permute.xlu0 %2487
  %2489 = vrot.lane.b32.xlu0 %v727, 28
  %v2490 = vpop.permute.xlu0 %2489
  %2491 = vrot.lane.b32.xlu0 %v728, 28
  %v2492 = vpop.permute.xlu0 %2491
  %2493 = vrot.lane.b32.xlu0 %v729, 28
  %v2494 = vpop.permute.xlu0 %2493
  %2495 = vrot.lane.b32.xlu0 %v730, 28
  %v2496 = vpop.permute.xlu0 %2495
  %2497 = vrot.lane.b32.xlu0 %v731, 28
  %v2498 = vpop.permute.xlu0 %2497
  %2499 = vrot.lane.b32.xlu0 %v732, 28
  %v2500 = vpop.permute.xlu0 %2499
  %2501 = vrot.lane.b32.xlu0 %v733, 28
  %v2502 = vpop.permute.xlu0 %2501
  %2503 = vrot.lane.b32.xlu0 %v734, 28
  %v2504 = vpop.permute.xlu0 %2503
  %2505 = vrot.lane.b32.xlu0 %v735, 28
  %v2506 = vpop.permute.xlu0 %2505
  %2507 = vrot.lane.b32.xlu0 %v736, 28
  %v2508 = vpop.permute.xlu0 %2507
  %2509 = vrot.lane.b32.xlu0 %v737, 28
  %v2510 = vpop.permute.xlu0 %2509
  %2511 = vrot.lane.b32.xlu0 %v738, 28
  %v2512 = vpop.permute.xlu0 %2511
  %2513 = vrot.lane.b32.xlu0 %v739, 28
  %v2514 = vpop.permute.xlu0 %2513
  %2515 = vrot.lane.b32.xlu0 %v740, 28
  %v2516 = vpop.permute.xlu0 %2515
  %2517 = vrot.lane.b32.xlu0 %v741, 28
  %v2518 = vpop.permute.xlu0 %2517
  %2519 = vrot.lane.b32.xlu0 %v742, 28
  %v2520 = vpop.permute.xlu0 %2519
  %2521 = vrot.lane.b32.xlu0 %v743, 28
  %v2522 = vpop.permute.xlu0 %2521
  %2523 = vrot.lane.b32.xlu0 %v744, 28
  %v2524 = vpop.permute.xlu0 %2523
  %2525 = vrot.lane.b32.xlu0 %v745, 28
  %v2526 = vpop.permute.xlu0 %2525
  %2527 = vrot.lane.b32.xlu0 %v746, 28
  %v2528 = vpop.permute.xlu0 %2527
  %2529 = vrot.lane.b32.xlu0 %v747, 28
  %v2530 = vpop.permute.xlu0 %2529
  %2531 = vrot.lane.b32.xlu0 %v748, 28
  %v2532 = vpop.permute.xlu0 %2531
  %2533 = vrot.lane.b32.xlu0 %v749, 28
  %v2534 = vpop.permute.xlu0 %2533
  %2535 = vrot.lane.b32.xlu0 %v750, 28
  %v2536 = vpop.permute.xlu0 %2535
  %2537 = vrot.lane.b32.xlu0 %v751, 28
  %v2538 = vpop.permute.xlu0 %2537
  %2539 = vrot.lane.b32.xlu0 %v752, 28
  %v2540 = vpop.permute.xlu0 %2539
  %2541 = vrot.lane.b32.xlu0 %v753, 28
  %v2542 = vpop.permute.xlu0 %2541
  %2543 = vrot.lane.b32.xlu0 %v754, 28
  %v2544 = vpop.permute.xlu0 %2543
  %2545 = vrot.lane.b32.xlu0 %v755, 28
  %v2546 = vpop.permute.xlu0 %2545
  %2547 = vrot.lane.b32.xlu0 %v756, 28
  %v2548 = vpop.permute.xlu0 %2547
  %2677 = vrot.lane.b32.xlu0 %v757, 32
  %v2678 = vpop.permute.xlu0 %2677
  %2679 = vrot.lane.b32.xlu0 %v758, 32
  %v2680 = vpop.permute.xlu0 %2679
  %2681 = vrot.lane.b32.xlu0 %v759, 32
  %v2682 = vpop.permute.xlu0 %2681
  %2683 = vrot.lane.b32.xlu0 %v760, 32
  %v2684 = vpop.permute.xlu0 %2683
  %2685 = vrot.lane.b32.xlu0 %v761, 32
  %v2686 = vpop.permute.xlu0 %2685
  %2687 = vrot.lane.b32.xlu0 %v762, 32
  %v2688 = vpop.permute.xlu0 %2687
  %2689 = vrot.lane.b32.xlu0 %v763, 32
  %v2690 = vpop.permute.xlu0 %2689
  %2691 = vrot.lane.b32.xlu0 %v764, 32
  %v2692 = vpop.permute.xlu0 %2691
  %2693 = vrot.lane.b32.xlu0 %v765, 32
  %v2694 = vpop.permute.xlu0 %2693
  %2695 = vrot.lane.b32.xlu0 %v766, 32
  %v2696 = vpop.permute.xlu0 %2695
  %2697 = vrot.lane.b32.xlu0 %v767, 32
  %v2698 = vpop.permute.xlu0 %2697
  %2699 = vrot.lane.b32.xlu0 %v768, 32
  %v2700 = vpop.permute.xlu0 %2699
  %2701 = vrot.lane.b32.xlu0 %v769, 32
  %v2702 = vpop.permute.xlu0 %2701
  %2703 = vrot.lane.b32.xlu0 %v770, 32
  %v2704 = vpop.permute.xlu0 %2703
  %2705 = vrot.lane.b32.xlu0 %v771, 32
  %v2706 = vpop.permute.xlu0 %2705
  %2707 = vrot.lane.b32.xlu0 %v772, 32
  %v2708 = vpop.permute.xlu0 %2707
  %2709 = vrot.lane.b32.xlu0 %v773, 32
  %v2710 = vpop.permute.xlu0 %2709
  %2711 = vrot.lane.b32.xlu0 %v774, 32
  %v2712 = vpop.permute.xlu0 %2711
  %2713 = vrot.lane.b32.xlu0 %v775, 32
  %v2714 = vpop.permute.xlu0 %2713
  %2715 = vrot.lane.b32.xlu0 %v776, 32
  %v2716 = vpop.permute.xlu0 %2715
  %2717 = vrot.lane.b32.xlu0 %v777, 32
  %v2718 = vpop.permute.xlu0 %2717
  %2719 = vrot.lane.b32.xlu0 %v778, 32
  %v2720 = vpop.permute.xlu0 %2719
  %2721 = vrot.lane.b32.xlu0 %v779, 32
  %v2722 = vpop.permute.xlu0 %2721
  %2723 = vrot.lane.b32.xlu0 %v780, 32
  %v2724 = vpop.permute.xlu0 %2723
  %2725 = vrot.lane.b32.xlu0 %v781, 32
  %v2726 = vpop.permute.xlu0 %2725
  %2727 = vrot.lane.b32.xlu0 %v782, 32
  %v2728 = vpop.permute.xlu0 %2727
  %2729 = vrot.lane.b32.xlu0 %v783, 32
  %v2730 = vpop.permute.xlu0 %2729
  %2731 = vrot.lane.b32.xlu0 %v784, 32
  %v2732 = vpop.permute.xlu0 %2731
  %2733 = vrot.lane.b32.xlu0 %v785, 32
  %v2734 = vpop.permute.xlu0 %2733
  %2735 = vrot.lane.b32.xlu0 %v786, 32
  %v2736 = vpop.permute.xlu0 %2735
  %2737 = vrot.lane.b32.xlu0 %v787, 32
  %v2738 = vpop.permute.xlu0 %2737
  %2739 = vrot.lane.b32.xlu0 %v788, 32
  %v2740 = vpop.permute.xlu0 %2739
  %2741 = vrot.lane.b32.xlu0 %v789, 32
  %v2742 = vpop.permute.xlu0 %2741
  %2743 = vrot.lane.b32.xlu0 %v790, 32
  %v2744 = vpop.permute.xlu0 %2743
  %2745 = vrot.lane.b32.xlu0 %v791, 32
  %v2746 = vpop.permute.xlu0 %2745
  %2747 = vrot.lane.b32.xlu0 %v792, 32
  %v2748 = vpop.permute.xlu0 %2747
  %2749 = vrot.lane.b32.xlu0 %v793, 32
  %v2750 = vpop.permute.xlu0 %2749
  %2751 = vrot.lane.b32.xlu0 %v794, 32
  %v2752 = vpop.permute.xlu0 %2751
  %2753 = vrot.lane.b32.xlu0 %v795, 32
  %v2754 = vpop.permute.xlu0 %2753
  %2755 = vrot.lane.b32.xlu0 %v796, 32
  %v2756 = vpop.permute.xlu0 %2755
  %2757 = vrot.lane.b32.xlu0 %v797, 32
  %v2758 = vpop.permute.xlu0 %2757
  %2759 = vrot.lane.b32.xlu0 %v798, 32
  %v2760 = vpop.permute.xlu0 %2759
  %2761 = vrot.lane.b32.xlu0 %v799, 32
  %v2762 = vpop.permute.xlu0 %2761
  %2763 = vrot.lane.b32.xlu0 %v800, 32
  %v2764 = vpop.permute.xlu0 %2763
  %2765 = vrot.lane.b32.xlu0 %v801, 32
  %v2766 = vpop.permute.xlu0 %2765
  %2767 = vrot.lane.b32.xlu0 %v802, 32
  %v2768 = vpop.permute.xlu0 %2767
  %2769 = vrot.lane.b32.xlu0 %v803, 32
  %v2770 = vpop.permute.xlu0 %2769
  %2771 = vrot.lane.b32.xlu0 %v804, 32
  %v2772 = vpop.permute.xlu0 %2771
  %2773 = vrot.lane.b32.xlu0 %v805, 32
  %v2774 = vpop.permute.xlu0 %2773
  %2775 = vrot.lane.b32.xlu0 %v806, 32
  %v2776 = vpop.permute.xlu0 %2775
  %2777 = vrot.lane.b32.xlu0 %v807, 32
  %v2778 = vpop.permute.xlu0 %2777
  %2779 = vrot.lane.b32.xlu0 %v808, 32
  %v2780 = vpop.permute.xlu0 %2779
  %2781 = vrot.lane.b32.xlu0 %v809, 32
  %v2782 = vpop.permute.xlu0 %2781
  %2783 = vrot.lane.b32.xlu0 %v810, 32
  %v2784 = vpop.permute.xlu0 %2783
  %2785 = vrot.lane.b32.xlu0 %v811, 32
  %v2786 = vpop.permute.xlu0 %2785
  %2787 = vrot.lane.b32.xlu0 %v812, 32
  %v2788 = vpop.permute.xlu0 %2787
  %2789 = vrot.lane.b32.xlu0 %v813, 32
  %v2790 = vpop.permute.xlu0 %2789
  %2791 = vrot.lane.b32.xlu0 %v814, 32
  %v2792 = vpop.permute.xlu0 %2791
  %2793 = vrot.lane.b32.xlu0 %v815, 32
  %v2794 = vpop.permute.xlu0 %2793
  %2795 = vrot.lane.b32.xlu0 %v816, 32
  %v2796 = vpop.permute.xlu0 %2795
  %2797 = vrot.lane.b32.xlu0 %v817, 32
  %v2798 = vpop.permute.xlu0 %2797
  %2799 = vrot.lane.b32.xlu0 %v818, 32
  %v2800 = vpop.permute.xlu0 %2799
  %2801 = vrot.lane.b32.xlu0 %v819, 32
  %v2802 = vpop.permute.xlu0 %2801
  %2803 = vrot.lane.b32.xlu0 %v820, 32
  %v2804 = vpop.permute.xlu0 %2803
  %v2869 = vsel %vm179, %v244, %v886
  %v2870 = vsel %vm179, %v245, %v888
  %v2871 = vsel %vm179, %v246, %v890
  %v2872 = vsel %vm179, %v247, %v892
  %v2873 = vsel %vm179, %v248, %v894
  %v2874 = vsel %vm179, %v249, %v896
  %v2875 = vsel %vm179, %v250, %v898
  %v2876 = vsel %vm179, %v251, %v900
  %v2877 = vsel %vm179, %v252, %v902
  %v2878 = vsel %vm179, %v253, %v904
  %v2879 = vsel %vm179, %v254, %v906
  %v2880 = vsel %vm179, %v255, %v908
  %v2881 = vsel %vm179, %v256, %v910
  %v2882 = vsel %vm179, %v257, %v912
  %v2883 = vsel %vm179, %v258, %v914
  %v2884 = vsel %vm179, %v259, %v916
  %v2885 = vsel %vm179, %v260, %v918
  %v2886 = vsel %vm179, %v261, %v920
  %v2887 = vsel %vm179, %v262, %v922
  %v2888 = vsel %vm179, %v263, %v924
  %v2889 = vsel %vm179, %v264, %v926
  %v2890 = vsel %vm179, %v265, %v928
  %v2891 = vsel %vm179, %v266, %v930
  %v2892 = vsel %vm179, %v267, %v932
  %v2893 = vsel %vm179, %v268, %v934
  %v2894 = vsel %vm179, %v269, %v936
  %v2895 = vsel %vm179, %v270, %v938
  %v2896 = vsel %vm179, %v271, %v940
  %v2897 = vsel %vm179, %v272, %v942
  %v2898 = vsel %vm179, %v273, %v944
  %v2899 = vsel %vm179, %v274, %v946
  %v2900 = vsel %vm179, %v275, %v948
  %v2901 = vsel %vm179, %v276, %v950
  %v2902 = vsel %vm179, %v277, %v952
  %v2903 = vsel %vm179, %v278, %v954
  %v2904 = vsel %vm179, %v279, %v956
  %v2905 = vsel %vm179, %v280, %v958
  %v2906 = vsel %vm179, %v281, %v960
  %v2907 = vsel %vm179, %v282, %v962
  %v2908 = vsel %vm179, %v283, %v964
  %v2909 = vsel %vm179, %v284, %v966
  %v2910 = vsel %vm179, %v285, %v968
  %v2911 = vsel %vm179, %v286, %v970
  %v2912 = vsel %vm179, %v287, %v972
  %v2913 = vsel %vm179, %v288, %v974
  %v2914 = vsel %vm179, %v289, %v976
  %v2915 = vsel %vm179, %v290, %v978
  %v2916 = vsel %vm179, %v291, %v980
  %v2917 = vsel %vm179, %v292, %v982
  %v2918 = vsel %vm179, %v293, %v984
  %v2919 = vsel %vm179, %v294, %v986
  %v2920 = vsel %vm179, %v295, %v988
  %v2921 = vsel %vm179, %v296, %v990
  %v2922 = vsel %vm179, %v297, %v992
  %v2923 = vsel %vm179, %v298, %v994
  %v2924 = vsel %vm179, %v299, %v996
  %v2925 = vsel %vm179, %v300, %v998
  %v2926 = vsel %vm179, %v301, %v1000
  %v2927 = vsel %vm179, %v302, %v1002
  %v2928 = vsel %vm179, %v303, %v1004
  %v2929 = vsel %vm179, %v304, %v1006
  %v2930 = vsel %vm179, %v305, %v1008
  %v2931 = vsel %vm179, %v306, %v1010
  %v2932 = vsel %vm179, %v307, %v1012
  %v2933 = vsel %vm27, %v2869, %v1142
  %v2934 = vsel %vm27, %v2870, %v1144
  %v2935 = vsel %vm27, %v2871, %v1146
  %v2936 = vsel %vm27, %v2872, %v1148
  %v2937 = vsel %vm27, %v2873, %v1150
  %v2938 = vsel %vm27, %v2874, %v1152
  %v2939 = vsel %vm27, %v2875, %v1154
  %v2940 = vsel %vm27, %v2876, %v1156
  %v2941 = vsel %vm27, %v2877, %v1158
  %v2942 = vsel %vm27, %v2878, %v1160
  %v2943 = vsel %vm27, %v2879, %v1162
  %v2944 = vsel %vm27, %v2880, %v1164
  %v2945 = vsel %vm27, %v2881, %v1166
  %v2946 = vsel %vm27, %v2882, %v1168
  %v2947 = vsel %vm27, %v2883, %v1170
  %v2948 = vsel %vm27, %v2884, %v1172
  %v2949 = vsel %vm27, %v2885, %v1174
  %v2950 = vsel %vm27, %v2886, %v1176
  %v2951 = vsel %vm27, %v2887, %v1178
  %v2952 = vsel %vm27, %v2888, %v1180
  %v2953 = vsel %vm27, %v2889, %v1182
  %v2954 = vsel %vm27, %v2890, %v1184
  %v2955 = vsel %vm27, %v2891, %v1186
  %v2956 = vsel %vm27, %v2892, %v1188
  %v2957 = vsel %vm27, %v2893, %v1190
  %v2958 = vsel %vm27, %v2894, %v1192
  %v2959 = vsel %vm27, %v2895, %v1194
  %v2960 = vsel %vm27, %v2896, %v1196
  %v2961 = vsel %vm27, %v2897, %v1198
  %v2962 = vsel %vm27, %v2898, %v1200
  %v2963 = vsel %vm27, %v2899, %v1202
  %v2964 = vsel %vm27, %v2900, %v1204
  %v2965 = vsel %vm27, %v2901, %v1206
  %v2966 = vsel %vm27, %v2902, %v1208
  %v2967 = vsel %vm27, %v2903, %v1210
  %v2968 = vsel %vm27, %v2904, %v1212
  %v2969 = vsel %vm27, %v2905, %v1214
  %v2970 = vsel %vm27, %v2906, %v1216
  %v2971 = vsel %vm27, %v2907, %v1218
  %v2972 = vsel %vm27, %v2908, %v1220
  %v2973 = vsel %vm27, %v2909, %v1222
  %v2974 = vsel %vm27, %v2910, %v1224
  %v2975 = vsel %vm27, %v2911, %v1226
  %v2976 = vsel %vm27, %v2912, %v1228
  %v2977 = vsel %vm27, %v2913, %v1230
  %v2978 = vsel %vm27, %v2914, %v1232
  %v2979 = vsel %vm27, %v2915, %v1234
  %v2980 = vsel %vm27, %v2916, %v1236
  %v2981 = vsel %vm27, %v2917, %v1238
  %v2982 = vsel %vm27, %v2918, %v1240
  %v2983 = vsel %vm27, %v2919, %v1242
  %v2984 = vsel %vm27, %v2920, %v1244
  %v2985 = vsel %vm27, %v2921, %v1246
  %v2986 = vsel %vm27, %v2922, %v1248
  %v2987 = vsel %vm27, %v2923, %v1250
  %v2988 = vsel %vm27, %v2924, %v1252
  %v2989 = vsel %vm27, %v2925, %v1254
  %v2990 = vsel %vm27, %v2926, %v1256
  %v2991 = vsel %vm27, %v2927, %v1258
  %v2992 = vsel %vm27, %v2928, %v1260
  %v2993 = vsel %vm27, %v2929, %v1262
  %v2994 = vsel %vm27, %v2930, %v1264
  %v2995 = vsel %vm27, %v2931, %v1266
  %v2996 = vsel %vm27, %v2932, %v1268
  %vm2997 = vcmask 97280
  %v2998 = vsel %vm2997, %v2933, %v1398
  %v2999 = vsel %vm2997, %v2934, %v1400
  %v3000 = vsel %vm2997, %v2935, %v1402
  %v3001 = vsel %vm2997, %v2936, %v1404
  %v3002 = vsel %vm2997, %v2937, %v1406
  %v3003 = vsel %vm2997, %v2938, %v1408
  %v3004 = vsel %vm2997, %v2939, %v1410
  %v3005 = vsel %vm2997, %v2940, %v1412
  %v3006 = vsel %vm2997, %v2941, %v1414
  %v3007 = vsel %vm2997, %v2942, %v1416
  %v3008 = vsel %vm2997, %v2943, %v1418
  %v3009 = vsel %vm2997, %v2944, %v1420
  %v3010 = vsel %vm2997, %v2945, %v1422
  %v3011 = vsel %vm2997, %v2946, %v1424
  %v3012 = vsel %vm2997, %v2947, %v1426
  %v3013 = vsel %vm2997, %v2948, %v1428
  %v3014 = vsel %vm2997, %v2949, %v1430
  %v3015 = vsel %vm2997, %v2950, %v1432
  %v3016 = vsel %vm2997, %v2951, %v1434
  %v3017 = vsel %vm2997, %v2952, %v1436
  %v3018 = vsel %vm2997, %v2953, %v1438
  %v3019 = vsel %vm2997, %v2954, %v1440
  %v3020 = vsel %vm2997, %v2955, %v1442
  %v3021 = vsel %vm2997, %v2956, %v1444
  %v3022 = vsel %vm2997, %v2957, %v1446
  %v3023 = vsel %vm2997, %v2958, %v1448
  %v3024 = vsel %vm2997, %v2959, %v1450
  %v3025 = vsel %vm2997, %v2960, %v1452
  %v3026 = vsel %vm2997, %v2961, %v1454
  %v3027 = vsel %vm2997, %v2962, %v1456
  %v3028 = vsel %vm2997, %v2963, %v1458
  %v3029 = vsel %vm2997, %v2964, %v1460
  %v3030 = vsel %vm2997, %v2965, %v1462
  %v3031 = vsel %vm2997, %v2966, %v1464
  %v3032 = vsel %vm2997, %v2967, %v1466
  %v3033 = vsel %vm2997, %v2968, %v1468
  %v3034 = vsel %vm2997, %v2969, %v1470
  %v3035 = vsel %vm2997, %v2970, %v1472
  %v3036 = vsel %vm2997, %v2971, %v1474
  %v3037 = vsel %vm2997, %v2972, %v1476
  %v3038 = vsel %vm2997, %v2973, %v1478
  %v3039 = vsel %vm2997, %v2974, %v1480
  %v3040 = vsel %vm2997, %v2975, %v1482
  %v3041 = vsel %vm2997, %v2976, %v1484
  %v3042 = vsel %vm2997, %v2977, %v1486
  %v3043 = vsel %vm2997, %v2978, %v1488
  %v3044 = vsel %vm2997, %v2979, %v1490
  %v3045 = vsel %vm2997, %v2980, %v1492
  %v3046 = vsel %vm2997, %v2981, %v1494
  %v3047 = vsel %vm2997, %v2982, %v1496
  %v3048 = vsel %vm2997, %v2983, %v1498
  %v3049 = vsel %vm2997, %v2984, %v1500
  %v3050 = vsel %vm2997, %v2985, %v1502
  %v3051 = vsel %vm2997, %v2986, %v1504
  %v3052 = vsel %vm2997, %v2987, %v1506
  %v3053 = vsel %vm2997, %v2988, %v1508
  %v3054 = vsel %vm2997, %v2989, %v1510
  %v3055 = vsel %vm2997, %v2990, %v1512
  %v3056 = vsel %vm2997, %v2991, %v1514
  %v3057 = vsel %vm2997, %v2992, %v1516
  %v3058 = vsel %vm2997, %v2993, %v1518
  %v3059 = vsel %vm2997, %v2994, %v1520
  %v3060 = vsel %vm2997, %v2995, %v1522
  %v3061 = vsel %vm2997, %v2996, %v1524
  %vm3062 = vcmask 130048
  %v3063 = vsel %vm3062, %v2998, %v1654
  %v3064 = vsel %vm3062, %v2999, %v1656
  %v3065 = vsel %vm3062, %v3000, %v1658
  %v3066 = vsel %vm3062, %v3001, %v1660
  %v3067 = vsel %vm3062, %v3002, %v1662
  %v3068 = vsel %vm3062, %v3003, %v1664
  %v3069 = vsel %vm3062, %v3004, %v1666
  %v3070 = vsel %vm3062, %v3005, %v1668
  %v3071 = vsel %vm3062, %v3006, %v1670
  %v3072 = vsel %vm3062, %v3007, %v1672
  %v3073 = vsel %vm3062, %v3008, %v1674
  %v3074 = vsel %vm3062, %v3009, %v1676
  %v3075 = vsel %vm3062, %v3010, %v1678
  %v3076 = vsel %vm3062, %v3011, %v1680
  %v3077 = vsel %vm3062, %v3012, %v1682
  %v3078 = vsel %vm3062, %v3013, %v1684
  %v3079 = vsel %vm3062, %v3014, %v1686
  %v3080 = vsel %vm3062, %v3015, %v1688
  %v3081 = vsel %vm3062, %v3016, %v1690
  %v3082 = vsel %vm3062, %v3017, %v1692
  %v3083 = vsel %vm3062, %v3018, %v1694
  %v3084 = vsel %vm3062, %v3019, %v1696
  %v3085 = vsel %vm3062, %v3020, %v1698
  %v3086 = vsel %vm3062, %v3021, %v1700
  %v3087 = vsel %vm3062, %v3022, %v1702
  %v3088 = vsel %vm3062, %v3023, %v1704
  %v3089 = vsel %vm3062, %v3024, %v1706
  %v3090 = vsel %vm3062, %v3025, %v1708
  %v3091 = vsel %vm3062, %v3026, %v1710
  %v3092 = vsel %vm3062, %v3027, %v1712
  %v3093 = vsel %vm3062, %v3028, %v1714
  %v3094 = vsel %vm3062, %v3029, %v1716
  %v3095 = vsel %vm3062, %v3030, %v1718
  %v3096 = vsel %vm3062, %v3031, %v1720
  %v3097 = vsel %vm3062, %v3032, %v1722
  %v3098 = vsel %vm3062, %v3033, %v1724
  %v3099 = vsel %vm3062, %v3034, %v1726
  %v3100 = vsel %vm3062, %v3035, %v1728
  %v3101 = vsel %vm3062, %v3036, %v1730
  %v3102 = vsel %vm3062, %v3037, %v1732
  %v3103 = vsel %vm3062, %v3038, %v1734
  %v3104 = vsel %vm3062, %v3039, %v1736
  %v3105 = vsel %vm3062, %v3040, %v1738
  %v3106 = vsel %vm3062, %v3041, %v1740
  %v3107 = vsel %vm3062, %v3042, %v1742
  %v3108 = vsel %vm3062, %v3043, %v1744
  %v3109 = vsel %vm3062, %v3044, %v1746
  %v3110 = vsel %vm3062, %v3045, %v1748
  %v3111 = vsel %vm3062, %v3046, %v1750
  %v3112 = vsel %vm3062, %v3047, %v1752
  %v3113 = vsel %vm3062, %v3048, %v1754
  %v3114 = vsel %vm3062, %v3049, %v1756
  %v3115 = vsel %vm3062, %v3050, %v1758
  %v3116 = vsel %vm3062, %v3051, %v1760
  %v3117 = vsel %vm3062, %v3052, %v1762
  %v3118 = vsel %vm3062, %v3053, %v1764
  %v3119 = vsel %vm3062, %v3054, %v1766
  %v3120 = vsel %vm3062, %v3055, %v1768
  %v3121 = vsel %vm3062, %v3056, %v1770
  %v3122 = vsel %vm3062, %v3057, %v1772
  %v3123 = vsel %vm3062, %v3058, %v1774
  %v3124 = vsel %vm3062, %v3059, %v1776
  %v3125 = vsel %vm3062, %v3060, %v1778
  %v3126 = vsel %vm3062, %v3061, %v1780
  %vm3127 = vcmask 162816
  %v3128 = vsel %vm3127, %v3063, %v1910
  %v3129 = vsel %vm3127, %v3064, %v1912
  %v3130 = vsel %vm3127, %v3065, %v1914
  %v3131 = vsel %vm3127, %v3066, %v1916
  %v3132 = vsel %vm3127, %v3067, %v1918
  %v3133 = vsel %vm3127, %v3068, %v1920
  %v3134 = vsel %vm3127, %v3069, %v1922
  %v3135 = vsel %vm3127, %v3070, %v1924
  %v3136 = vsel %vm3127, %v3071, %v1926
  %v3137 = vsel %vm3127, %v3072, %v1928
  %v3138 = vsel %vm3127, %v3073, %v1930
  %v3139 = vsel %vm3127, %v3074, %v1932
  %v3140 = vsel %vm3127, %v3075, %v1934
  %v3141 = vsel %vm3127, %v3076, %v1936
  %v3142 = vsel %vm3127, %v3077, %v1938
  %v3143 = vsel %vm3127, %v3078, %v1940
  %v3144 = vsel %vm3127, %v3079, %v1942
  %v3145 = vsel %vm3127, %v3080, %v1944
  %v3146 = vsel %vm3127, %v3081, %v1946
  %v3147 = vsel %vm3127, %v3082, %v1948
  %v3148 = vsel %vm3127, %v3083, %v1950
  %v3149 = vsel %vm3127, %v3084, %v1952
  %v3150 = vsel %vm3127, %v3085, %v1954
  %v3151 = vsel %vm3127, %v3086, %v1956
  %v3152 = vsel %vm3127, %v3087, %v1958
  %v3153 = vsel %vm3127, %v3088, %v1960
  %v3154 = vsel %vm3127, %v3089, %v1962
  %v3155 = vsel %vm3127, %v3090, %v1964
  %v3156 = vsel %vm3127, %v3091, %v1966
  %v3157 = vsel %vm3127, %v3092, %v1968
  %v3158 = vsel %vm3127, %v3093, %v1970
  %v3159 = vsel %vm3127, %v3094, %v1972
  %v3160 = vsel %vm3127, %v3095, %v1974
  %v3161 = vsel %vm3127, %v3096, %v1976
  %v3162 = vsel %vm3127, %v3097, %v1978
  %v3163 = vsel %vm3127, %v3098, %v1980
  %v3164 = vsel %vm3127, %v3099, %v1982
  %v3165 = vsel %vm3127, %v3100, %v1984
  %v3166 = vsel %vm3127, %v3101, %v1986
  %v3167 = vsel %vm3127, %v3102, %v1988
  %v3168 = vsel %vm3127, %v3103, %v1990
  %v3169 = vsel %vm3127, %v3104, %v1992
  %v3170 = vsel %vm3127, %v3105, %v1994
  %v3171 = vsel %vm3127, %v3106, %v1996
  %v3172 = vsel %vm3127, %v3107, %v1998
  %v3173 = vsel %vm3127, %v3108, %v2000
  %v3174 = vsel %vm3127, %v3109, %v2002
  %v3175 = vsel %vm3127, %v3110, %v2004
  %v3176 = vsel %vm3127, %v3111, %v2006
  %v3177 = vsel %vm3127, %v3112, %v2008
  %v3178 = vsel %vm3127, %v3113, %v2010
  %v3179 = vsel %vm3127, %v3114, %v2012
  %v3180 = vsel %vm3127, %v3115, %v2014
  %v3181 = vsel %vm3127, %v3116, %v2016
  %v3182 = vsel %vm3127, %v3117, %v2018
  %v3183 = vsel %vm3127, %v3118, %v2020
  %v3184 = vsel %vm3127, %v3119, %v2022
  %v3185 = vsel %vm3127, %v3120, %v2024
  %v3186 = vsel %vm3127, %v3121, %v2026
  %v3187 = vsel %vm3127, %v3122, %v2028
  %v3188 = vsel %vm3127, %v3123, %v2030
  %v3189 = vsel %vm3127, %v3124, %v2032
  %v3190 = vsel %vm3127, %v3125, %v2034
  %v3191 = vsel %vm3127, %v3126, %v2036
  %vm3192 = vcmask 195584
  %v3193 = vsel %vm3192, %v3128, %v2166
  %v3194 = vsel %vm3192, %v3129, %v2168
  %v3195 = vsel %vm3192, %v3130, %v2170
  %v3196 = vsel %vm3192, %v3131, %v2172
  %v3197 = vsel %vm3192, %v3132, %v2174
  %v3198 = vsel %vm3192, %v3133, %v2176
  %v3199 = vsel %vm3192, %v3134, %v2178
  %v3200 = vsel %vm3192, %v3135, %v2180
  %v3201 = vsel %vm3192, %v3136, %v2182
  %v3202 = vsel %vm3192, %v3137, %v2184
  %v3203 = vsel %vm3192, %v3138, %v2186
  %v3204 = vsel %vm3192, %v3139, %v2188
  %v3205 = vsel %vm3192, %v3140, %v2190
  %v3206 = vsel %vm3192, %v3141, %v2192
  %v3207 = vsel %vm3192, %v3142, %v2194
  %v3208 = vsel %vm3192, %v3143, %v2196
  %v3209 = vsel %vm3192, %v3144, %v2198
  %v3210 = vsel %vm3192, %v3145, %v2200
  %v3211 = vsel %vm3192, %v3146, %v2202
  %v3212 = vsel %vm3192, %v3147, %v2204
  %v3213 = vsel %vm3192, %v3148, %v2206
  %v3214 = vsel %vm3192, %v3149, %v2208
  %v3215 = vsel %vm3192, %v3150, %v2210
  %v3216 = vsel %vm3192, %v3151, %v2212
  %v3217 = vsel %vm3192, %v3152, %v2214
  %v3218 = vsel %vm3192, %v3153, %v2216
  %v3219 = vsel %vm3192, %v3154, %v2218
  %v3220 = vsel %vm3192, %v3155, %v2220
  %v3221 = vsel %vm3192, %v3156, %v2222
  %v3222 = vsel %vm3192, %v3157, %v2224
  %v3223 = vsel %vm3192, %v3158, %v2226
  %v3224 = vsel %vm3192, %v3159, %v2228
  %v3225 = vsel %vm3192, %v3160, %v2230
  %v3226 = vsel %vm3192, %v3161, %v2232
  %v3227 = vsel %vm3192, %v3162, %v2234
  %v3228 = vsel %vm3192, %v3163, %v2236
  %v3229 = vsel %vm3192, %v3164, %v2238
  %v3230 = vsel %vm3192, %v3165, %v2240
  %v3231 = vsel %vm3192, %v3166, %v2242
  %v3232 = vsel %vm3192, %v3167, %v2244
  %v3233 = vsel %vm3192, %v3168, %v2246
  %v3234 = vsel %vm3192, %v3169, %v2248
  %v3235 = vsel %vm3192, %v3170, %v2250
  %v3236 = vsel %vm3192, %v3171, %v2252
  %v3237 = vsel %vm3192, %v3172, %v2254
  %v3238 = vsel %vm3192, %v3173, %v2256
  %v3239 = vsel %vm3192, %v3174, %v2258
  %v3240 = vsel %vm3192, %v3175, %v2260
  %v3241 = vsel %vm3192, %v3176, %v2262
  %v3242 = vsel %vm3192, %v3177, %v2264
  %v3243 = vsel %vm3192, %v3178, %v2266
  %v3244 = vsel %vm3192, %v3179, %v2268
  %v3245 = vsel %vm3192, %v3180, %v2270
  %v3246 = vsel %vm3192, %v3181, %v2272
  %v3247 = vsel %vm3192, %v3182, %v2274
  %v3248 = vsel %vm3192, %v3183, %v2276
  %v3249 = vsel %vm3192, %v3184, %v2278
  %v3250 = vsel %vm3192, %v3185, %v2280
  %v3251 = vsel %vm3192, %v3186, %v2282
  %v3252 = vsel %vm3192, %v3187, %v2284
  %v3253 = vsel %vm3192, %v3188, %v2286
  %v3254 = vsel %vm3192, %v3189, %v2288
  %v3255 = vsel %vm3192, %v3190, %v2290
  %v3256 = vsel %vm3192, %v3191, %v2292
  %vm3257 = vcmask 228352
  %v3258 = vsel %vm3257, %v3193, %v2422
  %v3259 = vsel %vm3257, %v3194, %v2424
  %v3260 = vsel %vm3257, %v3195, %v2426
  %v3261 = vsel %vm3257, %v3196, %v2428
  %v3262 = vsel %vm3257, %v3197, %v2430
  %v3263 = vsel %vm3257, %v3198, %v2432
  %v3264 = vsel %vm3257, %v3199, %v2434
  %v3265 = vsel %vm3257, %v3200, %v2436
  %v3266 = vsel %vm3257, %v3201, %v2438
  %v3267 = vsel %vm3257, %v3202, %v2440
  %v3268 = vsel %vm3257, %v3203, %v2442
  %v3269 = vsel %vm3257, %v3204, %v2444
  %v3270 = vsel %vm3257, %v3205, %v2446
  %v3271 = vsel %vm3257, %v3206, %v2448
  %v3272 = vsel %vm3257, %v3207, %v2450
  %v3273 = vsel %vm3257, %v3208, %v2452
  %v3274 = vsel %vm3257, %v3209, %v2454
  %v3275 = vsel %vm3257, %v3210, %v2456
  %v3276 = vsel %vm3257, %v3211, %v2458
  %v3277 = vsel %vm3257, %v3212, %v2460
  %v3278 = vsel %vm3257, %v3213, %v2462
  %v3279 = vsel %vm3257, %v3214, %v2464
  %v3280 = vsel %vm3257, %v3215, %v2466
  %v3281 = vsel %vm3257, %v3216, %v2468
  %v3282 = vsel %vm3257, %v3217, %v2470
  %v3283 = vsel %vm3257, %v3218, %v2472
  %v3284 = vsel %vm3257, %v3219, %v2474
  %v3285 = vsel %vm3257, %v3220, %v2476
  %v3286 = vsel %vm3257, %v3221, %v2478
  %v3287 = vsel %vm3257, %v3222, %v2480
  %v3288 = vsel %vm3257, %v3223, %v2482
  %v3289 = vsel %vm3257, %v3224, %v2484
  %v3290 = vsel %vm3257, %v3225, %v2486
  %v3291 = vsel %vm3257, %v3226, %v2488
  %v3292 = vsel %vm3257, %v3227, %v2490
  %v3293 = vsel %vm3257, %v3228, %v2492
  %v3294 = vsel %vm3257, %v3229, %v2494
  %v3295 = vsel %vm3257, %v3230, %v2496
  %v3296 = vsel %vm3257, %v3231, %v2498
  %v3297 = vsel %vm3257, %v3232, %v2500
  %v3298 = vsel %vm3257, %v3233, %v2502
  %v3299 = vsel %vm3257, %v3234, %v2504
  %v3300 = vsel %vm3257, %v3235, %v2506
  %v3301 = vsel %vm3257, %v3236, %v2508
  %v3302 = vsel %vm3257, %v3237, %v2510
  %v3303 = vsel %vm3257, %v3238, %v2512
  %v3304 = vsel %vm3257, %v3239, %v2514
  %v3305 = vsel %vm3257, %v3240, %v2516
  %v3306 = vsel %vm3257, %v3241, %v2518
  %v3307 = vsel %vm3257, %v3242, %v2520
  %v3308 = vsel %vm3257, %v3243, %v2522
  %v3309 = vsel %vm3257, %v3244, %v2524
  %v3310 = vsel %vm3257, %v3245, %v2526
  %v3311 = vsel %vm3257, %v3246, %v2528
  %v3312 = vsel %vm3257, %v3247, %v2530
  %v3313 = vsel %vm3257, %v3248, %v2532
  %v3314 = vsel %vm3257, %v3249, %v2534
  %v3315 = vsel %vm3257, %v3250, %v2536
  %v3316 = vsel %vm3257, %v3251, %v2538
  %v3317 = vsel %vm3257, %v3252, %v2540
  %v3318 = vsel %vm3257, %v3253, %v2542
  %v3319 = vsel %vm3257, %v3254, %v2544
  %v3320 = vsel %vm3257, %v3255, %v2546
  %v3321 = vsel %vm3257, %v3256, %v2548
  %vm3322 = vcmask 261120
  %v3323 = vsel %vm3322, %v3258, %v2678
  %v3324 = vsel %vm3322, %v3259, %v2680
  %v3325 = vsel %vm3322, %v3260, %v2682
  %v3326 = vsel %vm3322, %v3261, %v2684
  %v3327 = vsel %vm3322, %v3262, %v2686
  %v3328 = vsel %vm3322, %v3263, %v2688
  %v3329 = vsel %vm3322, %v3264, %v2690
  %v3330 = vsel %vm3322, %v3265, %v2692
  %v3331 = vsel %vm3322, %v3266, %v2694
  %v3332 = vsel %vm3322, %v3267, %v2696
  %v3333 = vsel %vm3322, %v3268, %v2698
  %v3334 = vsel %vm3322, %v3269, %v2700
  %v3335 = vsel %vm3322, %v3270, %v2702
  %v3336 = vsel %vm3322, %v3271, %v2704
  %v3337 = vsel %vm3322, %v3272, %v2706
  %v3338 = vsel %vm3322, %v3273, %v2708
  %v3339 = vsel %vm3322, %v3274, %v2710
  %v3340 = vsel %vm3322, %v3275, %v2712
  %v3341 = vsel %vm3322, %v3276, %v2714
  %v3342 = vsel %vm3322, %v3277, %v2716
  %v3343 = vsel %vm3322, %v3278, %v2718
  %v3344 = vsel %vm3322, %v3279, %v2720
  %v3345 = vsel %vm3322, %v3280, %v2722
  %v3346 = vsel %vm3322, %v3281, %v2724
  %v3347 = vsel %vm3322, %v3282, %v2726
  %v3348 = vsel %vm3322, %v3283, %v2728
  %v3349 = vsel %vm3322, %v3284, %v2730
  %v3350 = vsel %vm3322, %v3285, %v2732
  %v3351 = vsel %vm3322, %v3286, %v2734
  %v3352 = vsel %vm3322, %v3287, %v2736
  %v3353 = vsel %vm3322, %v3288, %v2738
  %v3354 = vsel %vm3322, %v3289, %v2740
  %v3355 = vsel %vm3322, %v3290, %v2742
  %v3356 = vsel %vm3322, %v3291, %v2744
  %v3357 = vsel %vm3322, %v3292, %v2746
  %v3358 = vsel %vm3322, %v3293, %v2748
  %v3359 = vsel %vm3322, %v3294, %v2750
  %v3360 = vsel %vm3322, %v3295, %v2752
  %v3361 = vsel %vm3322, %v3296, %v2754
  %v3362 = vsel %vm3322, %v3297, %v2756
  %v3363 = vsel %vm3322, %v3298, %v2758
  %v3364 = vsel %vm3322, %v3299, %v2760
  %v3365 = vsel %vm3322, %v3300, %v2762
  %v3366 = vsel %vm3322, %v3301, %v2764
  %v3367 = vsel %vm3322, %v3302, %v2766
  %v3368 = vsel %vm3322, %v3303, %v2768
  %v3369 = vsel %vm3322, %v3304, %v2770
  %v3370 = vsel %vm3322, %v3305, %v2772
  %v3371 = vsel %vm3322, %v3306, %v2774
  %v3372 = vsel %vm3322, %v3307, %v2776
  %v3373 = vsel %vm3322, %v3308, %v2778
  %v3374 = vsel %vm3322, %v3309, %v2780
  %v3375 = vsel %vm3322, %v3310, %v2782
  %v3376 = vsel %vm3322, %v3311, %v2784
  %v3377 = vsel %vm3322, %v3312, %v2786
  %v3378 = vsel %vm3322, %v3313, %v2788
  %v3379 = vsel %vm3322, %v3314, %v2790
  %v3380 = vsel %vm3322, %v3315, %v2792
  %v3381 = vsel %vm3322, %v3316, %v2794
  %v3382 = vsel %vm3322, %v3317, %v2796
  %v3383 = vsel %vm3322, %v3318, %v2798
  %v3384 = vsel %vm3322, %v3319, %v2800
  %v3385 = vsel %vm3322, %v3320, %v2802
  %v3386 = vsel %vm3322, %v3321, %v2804
  %v3387 = vpack.c.bf16 %v3324, %v3323
  %v3388 = vpack.c.bf16 %v3326, %v3325
  %v3389 = vpack.c.bf16 %v3328, %v3327
  %v3390 = vpack.c.bf16 %v3330, %v3329
  %v3391 = vpack.c.bf16 %v3332, %v3331
  %v3392 = vpack.c.bf16 %v3334, %v3333
  %v3393 = vpack.c.bf16 %v3336, %v3335
  %v3394 = vpack.c.bf16 %v3338, %v3337
  %v3395 = vpack.c.bf16 %v3340, %v3339
  %v3396 = vpack.c.bf16 %v3342, %v3341
  %v3397 = vpack.c.bf16 %v3344, %v3343
  %v3398 = vpack.c.bf16 %v3346, %v3345
  %v3399 = vpack.c.bf16 %v3348, %v3347
  %v3400 = vpack.c.bf16 %v3350, %v3349
  %v3401 = vpack.c.bf16 %v3352, %v3351
  %v3402 = vpack.c.bf16 %v3354, %v3353
  %v3403 = vpack.c.bf16 %v3356, %v3355
  %v3404 = vpack.c.bf16 %v3358, %v3357
  %v3405 = vpack.c.bf16 %v3360, %v3359
  %v3406 = vpack.c.bf16 %v3362, %v3361
  %v3407 = vpack.c.bf16 %v3364, %v3363
  %v3408 = vpack.c.bf16 %v3366, %v3365
  %v3409 = vpack.c.bf16 %v3368, %v3367
  %v3410 = vpack.c.bf16 %v3370, %v3369
  %v3411 = vpack.c.bf16 %v3372, %v3371
  %v3412 = vpack.c.bf16 %v3374, %v3373
  %v3413 = vpack.c.bf16 %v3376, %v3375
  %v3414 = vpack.c.bf16 %v3378, %v3377
  %v3415 = vpack.c.bf16 %v3380, %v3379
  %v3416 = vpack.c.bf16 %v3382, %v3381
  %v3417 = vpack.c.bf16 %v3384, %v3383
  %v3418 = vpack.c.bf16 %v3386, %v3385
  %v3419 = vld [vmem:[%s1] sm:$0xf]
  %v3420 = vld [vmem:[%s1 + $0x4] sm:$0xf]
  %v3421 = vld [vmem:[%s1 + $0x8] sm:$0xf]
  %v3422 = vld [vmem:[%s1 + $0xc] sm:$0xf]
  %v3423 = vld [vmem:[%s1 + $0x10] sm:$0x3]
  %v3429 = vunpack.c.l.b16 %v3419
  %v3430 = vunpack.c.l.b16 %v3420
  %v3431 = vunpack.c.l.b16 %v3421
  %v3432 = vunpack.c.l.b16 %v3422
  %v3433 = vunpack.c.l.b16 %v3423
  %v3434 = vpack.c.b16 %v3430, %v3429
  %v3435 = vpack.c.b16 %v3432, %v3431
  %v3436 = vpack.c.b16 %v3433, %v3433
  %vm3439 = vcmask 293888
  %v3441 = vsel %vm3439, %v3387, 0
  %v3444 = vsel %vm3439, %v3388, 0
  %v3447 = vsel %vm3439, %v3389, 0
  %v3450 = vsel %vm3439, %v3390, 0
  %v3453 = vsel %vm3439, %v3391, 0
  %v3456 = vsel %vm3439, %v3392, 0
  %v3459 = vsel %vm3439, %v3393, 0
  %v3462 = vsel %vm3439, %v3394, 0
  %v3465 = vsel %vm3439, %v3395, 0
  %v3468 = vsel %vm3439, %v3396, 0
  %v3471 = vsel %vm3439, %v3397, 0
  %v3474 = vsel %vm3439, %v3398, 0
  %v3477 = vsel %vm3439, %v3399, 0
  %v3480 = vsel %vm3439, %v3400, 0
  %v3483 = vsel %vm3439, %v3401, 0
  %v3486 = vsel %vm3439, %v3402, 0
  %v3489 = vsel %vm3439, %v3403, 0
  %v3492 = vsel %vm3439, %v3404, 0
  %v3495 = vsel %vm3439, %v3405, 0
  %v3498 = vsel %vm3439, %v3406, 0
  %v3501 = vsel %vm3439, %v3407, 0
  %v3504 = vsel %vm3439, %v3408, 0
  %v3507 = vsel %vm3439, %v3409, 0
  %v3510 = vsel %vm3439, %v3410, 0
  %v3513 = vsel %vm3439, %v3411, 0
  %v3516 = vsel %vm3439, %v3412, 0
  %v3519 = vsel %vm3439, %v3413, 0
  %v3522 = vsel %vm3439, %v3414, 0
  %v3525 = vsel %vm3439, %v3415, 0
  %v3528 = vsel %vm3439, %v3416, 0
  %v3531 = vsel %vm3439, %v3417, 0
  %v3534 = vsel %vm3439, %v3418, 0
  %vm3536 = vcmask 1041408
  %v3538 = vsel %vm3536, %v3436, 0
  %3540 = vmatprep.subr.bf16.mxu0 0
  %3541 = vmatpush1.bf16.msra.mxu0 0
  %3542 = vmatprep.subr.bf16.mxu0 0
  %3543 = vmatpush1.bf16.msra.mxu0 0
  %3544 = vmatprep.subr.bf16.mxu0 0
  %3545 = vmatpush1.bf16.msra.mxu0 0
  %3546 = vmatprep.subr.bf16.mxu0 0
  %3547 = vmatpush1.bf16.msra.mxu0 0
  %3548 = vmatprep.subr.bf16.mxu0 0
  %3549 = vmatpush1.bf16.msra.mxu0 0
  %3550 = vmatprep.subr.bf16.mxu0 0
  %3551 = vmatpush1.bf16.msra.mxu0 %v3538
  %3552 = vmatprep.subr.bf16.mxu0 0
  %3553 = vmatpush1.bf16.msra.mxu0 %v3435
  %3554 = vmatprep.subr.bf16.mxu0 0
  %3555 = vmatpush1.bf16.msra.mxu0 %v3434
  %3556 = vmatprep.subr.bf16.mxu0 0
  %3557 = vmatpush2.bf16.msra.mxu0 0
  %3558 = vmatprep.subr.bf16.mxu0 0
  %3559 = vmatpush2.bf16.msra.mxu0 0
  %3560 = vmatprep.subr.bf16.mxu0 0
  %3561 = vmatpush2.bf16.msra.mxu0 0
  %3562 = vmatprep.subr.bf16.mxu0 0
  %3563 = vmatpush2.bf16.msra.mxu0 0
  %3564 = vmatprep.subr.bf16.mxu0 0
  %3565 = vmatpush2.bf16.msra.mxu0 0
  %3566 = vmatprep.subr.bf16.mxu0 0
  %3567 = vmatpush2.bf16.msra.mxu0 0
  %3568 = vmatprep.subr.bf16.mxu0 0
  %3569 = vmatpush2.bf16.msra.mxu0 0
  %3570 = vmatprep.subr.bf16.mxu0 0
  %3571 = vmatpush2.bf16.msra.mxu0 0
  %3572 = vmatprep.mubr.bf16.mxu0 0
  %3573 = vmatmul.mubr.bf16.gmra.mxu0 %v3441
  %v3574 = vpop.f32.mrf.mxu0
  %v3575 = vadd.f32 0.0, %v3574
  %v3576 = vpop.f32.mrf.mxu0
  %v3577 = vpop.f32.mrf.mxu0
  %v3578 = vadd.f32 0.0, %v3577
  %v3579 = vpop.f32.mrf.mxu0
  %3580 = vmatprep.mubr.bf16.mxu0 0
  %3581 = vmatmul.mubr.bf16.gmra.mxu0 %v3444
  %v3582 = vpop.f32.mrf.mxu0
  %v3583 = vadd.f32 0.0, %v3582
  %v3584 = vpop.f32.mrf.mxu0
  %v3585 = vpop.f32.mrf.mxu0
  %v3586 = vadd.f32 0.0, %v3585
  %v3587 = vpop.f32.mrf.mxu0
  %3588 = vmatprep.mubr.bf16.mxu0 0
  %3589 = vmatmul.mubr.bf16.gmra.mxu0 %v3447
  %v3590 = vpop.f32.mrf.mxu0
  %v3591 = vadd.f32 0.0, %v3590
  %v3592 = vpop.f32.mrf.mxu0
  %v3593 = vpop.f32.mrf.mxu0
  %v3594 = vadd.f32 0.0, %v3593
  %v3595 = vpop.f32.mrf.mxu0
  %3596 = vmatprep.mubr.bf16.mxu0 0
  %3597 = vmatmul.mubr.bf16.gmra.mxu0 %v3450
  %v3598 = vpop.f32.mrf.mxu0
  %v3599 = vadd.f32 0.0, %v3598
  %v3600 = vpop.f32.mrf.mxu0
  %v3601 = vpop.f32.mrf.mxu0
  %v3602 = vadd.f32 0.0, %v3601
  %v3603 = vpop.f32.mrf.mxu0
  %3604 = vmatprep.mubr.bf16.mxu0 0
  %3605 = vmatmul.mubr.bf16.gmra.mxu0 %v3453
  %v3606 = vpop.f32.mrf.mxu0
  %v3607 = vadd.f32 0.0, %v3606
  %v3608 = vpop.f32.mrf.mxu0
  %v3609 = vpop.f32.mrf.mxu0
  %v3610 = vadd.f32 0.0, %v3609
  %v3611 = vpop.f32.mrf.mxu0
  %3612 = vmatprep.mubr.bf16.mxu0 0
  %3613 = vmatmul.mubr.bf16.gmra.mxu0 %v3456
  %v3614 = vpop.f32.mrf.mxu0
  %v3615 = vadd.f32 0.0, %v3614
  %v3616 = vpop.f32.mrf.mxu0
  %v3617 = vpop.f32.mrf.mxu0
  %v3618 = vadd.f32 0.0, %v3617
  %v3619 = vpop.f32.mrf.mxu0
  %3620 = vmatprep.mubr.bf16.mxu0 0
  %3621 = vmatmul.mubr.bf16.gmra.mxu0 %v3459
  %v3622 = vpop.f32.mrf.mxu0
  %v3623 = vadd.f32 0.0, %v3622
  %v3624 = vpop.f32.mrf.mxu0
  %v3625 = vpop.f32.mrf.mxu0
  %v3626 = vadd.f32 0.0, %v3625
  %v3627 = vpop.f32.mrf.mxu0
  %3628 = vmatprep.mubr.bf16.mxu0 0
  %3629 = vmatmul.mubr.bf16.gmra.mxu0 %v3462
  %v3630 = vpop.f32.mrf.mxu0
  %v3631 = vadd.f32 0.0, %v3630
  %v3632 = vpop.f32.mrf.mxu0
  %v3633 = vpop.f32.mrf.mxu0
  %v3634 = vadd.f32 0.0, %v3633
  %v3635 = vpop.f32.mrf.mxu0
  %3636 = vmatprep.mubr.bf16.mxu0 0
  %3637 = vmatmul.mubr.bf16.gmra.mxu0 %v3465
  %v3638 = vpop.f32.mrf.mxu0
  %v3639 = vadd.f32 0.0, %v3638
  %v3640 = vpop.f32.mrf.mxu0
  %v3641 = vpop.f32.mrf.mxu0
  %v3642 = vadd.f32 0.0, %v3641
  %v3643 = vpop.f32.mrf.mxu0
  %3644 = vmatprep.mubr.bf16.mxu0 0
  %3645 = vmatmul.mubr.bf16.gmra.mxu0 %v3468
  %v3646 = vpop.f32.mrf.mxu0
  %v3647 = vadd.f32 0.0, %v3646
  %v3648 = vpop.f32.mrf.mxu0
  %v3649 = vpop.f32.mrf.mxu0
  %v3650 = vadd.f32 0.0, %v3649
  %v3651 = vpop.f32.mrf.mxu0
  %3652 = vmatprep.mubr.bf16.mxu0 0
  %3653 = vmatmul.mubr.bf16.gmra.mxu0 %v3471
  %v3654 = vpop.f32.mrf.mxu0
  %v3655 = vadd.f32 0.0, %v3654
  %v3656 = vpop.f32.mrf.mxu0
  %v3657 = vpop.f32.mrf.mxu0
  %v3658 = vadd.f32 0.0, %v3657
  %v3659 = vpop.f32.mrf.mxu0
  %3660 = vmatprep.mubr.bf16.mxu0 0
  %3661 = vmatmul.mubr.bf16.gmra.mxu0 %v3474
  %v3662 = vpop.f32.mrf.mxu0
  %v3663 = vadd.f32 0.0, %v3662
  %v3664 = vpop.f32.mrf.mxu0
  %v3665 = vpop.f32.mrf.mxu0
  %v3666 = vadd.f32 0.0, %v3665
  %v3667 = vpop.f32.mrf.mxu0
  %3668 = vmatprep.mubr.bf16.mxu0 0
  %3669 = vmatmul.mubr.bf16.gmra.mxu0 %v3477
  %v3670 = vpop.f32.mrf.mxu0
  %v3671 = vadd.f32 0.0, %v3670
  %v3672 = vpop.f32.mrf.mxu0
  %v3673 = vpop.f32.mrf.mxu0
  %v3674 = vadd.f32 0.0, %v3673
  %v3675 = vpop.f32.mrf.mxu0
  %3676 = vmatprep.mubr.bf16.mxu0 0
  %3677 = vmatmul.mubr.bf16.gmra.mxu0 %v3480
  %v3678 = vpop.f32.mrf.mxu0
  %v3679 = vadd.f32 0.0, %v3678
  %v3680 = vpop.f32.mrf.mxu0
  %v3681 = vpop.f32.mrf.mxu0
  %v3682 = vadd.f32 0.0, %v3681
  %v3683 = vpop.f32.mrf.mxu0
  %3684 = vmatprep.mubr.bf16.mxu0 0
  %3685 = vmatmul.mubr.bf16.gmra.mxu0 %v3483
  %v3686 = vpop.f32.mrf.mxu0
  %v3687 = vadd.f32 0.0, %v3686
  %v3688 = vpop.f32.mrf.mxu0
  %v3689 = vpop.f32.mrf.mxu0
  %v3690 = vadd.f32 0.0, %v3689
  %v3691 = vpop.f32.mrf.mxu0
  %3692 = vmatprep.mubr.bf16.mxu0 0
  %3693 = vmatmul.mubr.bf16.gmra.mxu0 %v3486
  %v3694 = vpop.f32.mrf.mxu0
  %v3695 = vadd.f32 0.0, %v3694
  %v3696 = vpop.f32.mrf.mxu0
  %v3697 = vpop.f32.mrf.mxu0
  %v3698 = vadd.f32 0.0, %v3697
  %v3699 = vpop.f32.mrf.mxu0
  %3700 = vmatprep.mubr.bf16.mxu0 0
  %3701 = vmatmul.mubr.bf16.gmra.mxu0 %v3489
  %v3702 = vpop.f32.mrf.mxu0
  %v3703 = vadd.f32 0.0, %v3702
  %v3704 = vpop.f32.mrf.mxu0
  %v3705 = vpop.f32.mrf.mxu0
  %v3706 = vadd.f32 0.0, %v3705
  %v3707 = vpop.f32.mrf.mxu0
  %3708 = vmatprep.mubr.bf16.mxu0 0
  %3709 = vmatmul.mubr.bf16.gmra.mxu0 %v3492
  %v3710 = vpop.f32.mrf.mxu0
  %v3711 = vadd.f32 0.0, %v3710
  %v3712 = vpop.f32.mrf.mxu0
  %v3713 = vpop.f32.mrf.mxu0
  %v3714 = vadd.f32 0.0, %v3713
  %v3715 = vpop.f32.mrf.mxu0
  %3716 = vmatprep.mubr.bf16.mxu0 0
  %3717 = vmatmul.mubr.bf16.gmra.mxu0 %v3495
  %v3718 = vpop.f32.mrf.mxu0
  %v3719 = vadd.f32 0.0, %v3718
  %v3720 = vpop.f32.mrf.mxu0
  %v3721 = vpop.f32.mrf.mxu0
  %v3722 = vadd.f32 0.0, %v3721
  %v3723 = vpop.f32.mrf.mxu0
  %3724 = vmatprep.mubr.bf16.mxu0 0
  %3725 = vmatmul.mubr.bf16.gmra.mxu0 %v3498
  %v3726 = vpop.f32.mrf.mxu0
  %v3727 = vadd.f32 0.0, %v3726
  %v3728 = vpop.f32.mrf.mxu0
  %v3729 = vpop.f32.mrf.mxu0
  %v3730 = vadd.f32 0.0, %v3729
  %v3731 = vpop.f32.mrf.mxu0
  %3732 = vmatprep.mubr.bf16.mxu0 0
  %3733 = vmatmul.mubr.bf16.gmra.mxu0 %v3501
  %v3734 = vpop.f32.mrf.mxu0
  %v3735 = vadd.f32 0.0, %v3734
  %v3736 = vpop.f32.mrf.mxu0
  %v3737 = vpop.f32.mrf.mxu0
  %v3738 = vadd.f32 0.0, %v3737
  %v3739 = vpop.f32.mrf.mxu0
  %3740 = vmatprep.mubr.bf16.mxu0 0
  %3741 = vmatmul.mubr.bf16.gmra.mxu0 %v3504
  %v3742 = vpop.f32.mrf.mxu0
  %v3743 = vadd.f32 0.0, %v3742
  %v3744 = vpop.f32.mrf.mxu0
  %v3745 = vpop.f32.mrf.mxu0
  %v3746 = vadd.f32 0.0, %v3745
  %v3747 = vpop.f32.mrf.mxu0
  %3748 = vmatprep.mubr.bf16.mxu0 0
  %3749 = vmatmul.mubr.bf16.gmra.mxu0 %v3507
  %v3750 = vpop.f32.mrf.mxu0
  %v3751 = vadd.f32 0.0, %v3750
  %v3752 = vpop.f32.mrf.mxu0
  %v3753 = vpop.f32.mrf.mxu0
  %v3754 = vadd.f32 0.0, %v3753
  %v3755 = vpop.f32.mrf.mxu0
  %3756 = vmatprep.mubr.bf16.mxu0 0
  %3757 = vmatmul.mubr.bf16.gmra.mxu0 %v3510
  %v3758 = vpop.f32.mrf.mxu0
  %v3759 = vadd.f32 0.0, %v3758
  %v3760 = vpop.f32.mrf.mxu0
  %v3761 = vpop.f32.mrf.mxu0
  %v3762 = vadd.f32 0.0, %v3761
  %v3763 = vpop.f32.mrf.mxu0
  %3764 = vmatprep.mubr.bf16.mxu0 0
  %3765 = vmatmul.mubr.bf16.gmra.mxu0 %v3513
  %v3766 = vpop.f32.mrf.mxu0
  %v3767 = vadd.f32 0.0, %v3766
  %v3768 = vpop.f32.mrf.mxu0
  %v3769 = vpop.f32.mrf.mxu0
  %v3770 = vadd.f32 0.0, %v3769
  %v3771 = vpop.f32.mrf.mxu0
  %3772 = vmatprep.mubr.bf16.mxu0 0
  %3773 = vmatmul.mubr.bf16.gmra.mxu0 %v3516
  %v3774 = vpop.f32.mrf.mxu0
  %v3775 = vadd.f32 0.0, %v3774
  %v3776 = vpop.f32.mrf.mxu0
  %v3777 = vpop.f32.mrf.mxu0
  %v3778 = vadd.f32 0.0, %v3777
  %v3779 = vpop.f32.mrf.mxu0
  %3780 = vmatprep.mubr.bf16.mxu0 0
  %3781 = vmatmul.mubr.bf16.gmra.mxu0 %v3519
  %v3782 = vpop.f32.mrf.mxu0
  %v3783 = vadd.f32 0.0, %v3782
  %v3784 = vpop.f32.mrf.mxu0
  %v3785 = vpop.f32.mrf.mxu0
  %v3786 = vadd.f32 0.0, %v3785
  %v3787 = vpop.f32.mrf.mxu0
  %3788 = vmatprep.mubr.bf16.mxu0 0
  %3789 = vmatmul.mubr.bf16.gmra.mxu0 %v3522
  %v3790 = vpop.f32.mrf.mxu0
  %v3791 = vadd.f32 0.0, %v3790
  %v3792 = vpop.f32.mrf.mxu0
  %v3793 = vpop.f32.mrf.mxu0
  %v3794 = vadd.f32 0.0, %v3793
  %v3795 = vpop.f32.mrf.mxu0
  %3796 = vmatprep.mubr.bf16.mxu0 0
  %3797 = vmatmul.mubr.bf16.gmra.mxu0 %v3525
  %v3798 = vpop.f32.mrf.mxu0
  %v3799 = vadd.f32 0.0, %v3798
  %v3800 = vpop.f32.mrf.mxu0
  %v3801 = vpop.f32.mrf.mxu0
  %v3802 = vadd.f32 0.0, %v3801
  %v3803 = vpop.f32.mrf.mxu0
  %3804 = vmatprep.mubr.bf16.mxu0 0
  %3805 = vmatmul.mubr.bf16.gmra.mxu0 %v3528
  %v3806 = vpop.f32.mrf.mxu0
  %v3807 = vadd.f32 0.0, %v3806
  %v3808 = vpop.f32.mrf.mxu0
  %v3809 = vpop.f32.mrf.mxu0
  %v3810 = vadd.f32 0.0, %v3809
  %v3811 = vpop.f32.mrf.mxu0
  %3812 = vmatprep.mubr.bf16.mxu0 0
  %3813 = vmatmul.mubr.bf16.gmra.mxu0 %v3531
  %v3814 = vpop.f32.mrf.mxu0
  %v3815 = vadd.f32 0.0, %v3814
  %v3816 = vpop.f32.mrf.mxu0
  %v3817 = vpop.f32.mrf.mxu0
  %v3818 = vadd.f32 0.0, %v3817
  %v3819 = vpop.f32.mrf.mxu0
  %3820 = vmatprep.mubr.bf16.mxu0 0
  %3821 = vmatmul.mubr.bf16.gmra.mxu0 %v3534
  %v3822 = vpop.f32.mrf.mxu0
  %v3823 = vadd.f32 0.0, %v3822
  %v3824 = vpop.f32.mrf.mxu0
  %v3825 = vpop.f32.mrf.mxu0
  %v3826 = vadd.f32 0.0, %v3825
  %v3827 = vpop.f32.mrf.mxu0
  %3828 = vdwg.mxu0
  %v3829 = vld [vmem:[%s2] sm:$0x1]
  %v3830 = vld [vmem:[%s3] sm:$0x1]
  %v3831 = vsel %vm27, %v3575, 0.0
  %v3832 = vsel %vm27, %v3578, 0.0
  %v3833 = vadd.f32 %v3831, %v3832
  %v3834 = vsel %vm27, %v3583, 0.0
  %v3835 = vadd.f32 %v3833, %v3834
  %v3836 = vsel %vm27, %v3586, 0.0
  %v3837 = vadd.f32 %v3835, %v3836
  %v3838 = vsel %vm27, %v3591, 0.0
  %v3839 = vadd.f32 %v3837, %v3838
  %v3840 = vsel %vm27, %v3594, 0.0
  %v3841 = vadd.f32 %v3839, %v3840
  %v3842 = vsel %vm27, %v3599, 0.0
  %v3843 = vadd.f32 %v3841, %v3842
  %v3844 = vsel %vm27, %v3602, 0.0
  %v3845 = vadd.f32 %v3843, %v3844
  %v3846 = vsel %vm27, %v3607, 0.0
  %v3847 = vadd.f32 %v3845, %v3846
  %v3848 = vsel %vm27, %v3610, 0.0
  %v3849 = vadd.f32 %v3847, %v3848
  %v3850 = vsel %vm27, %v3615, 0.0
  %v3851 = vadd.f32 %v3849, %v3850
  %v3852 = vsel %vm27, %v3618, 0.0
  %v3853 = vadd.f32 %v3851, %v3852
  %v3854 = vsel %vm27, %v3623, 0.0
  %v3855 = vadd.f32 %v3853, %v3854
  %v3856 = vsel %vm27, %v3626, 0.0
  %v3857 = vadd.f32 %v3855, %v3856
  %v3858 = vsel %vm27, %v3631, 0.0
  %v3859 = vadd.f32 %v3857, %v3858
  %v3860 = vsel %vm27, %v3634, 0.0
  %v3861 = vadd.f32 %v3859, %v3860
  %v3862 = vsel %vm27, %v3639, 0.0
  %v3863 = vadd.f32 %v3861, %v3862
  %v3864 = vsel %vm27, %v3642, 0.0
  %v3865 = vadd.f32 %v3863, %v3864
  %v3866 = vsel %vm27, %v3647, 0.0
  %v3867 = vadd.f32 %v3865, %v3866
  %v3868 = vsel %vm27, %v3650, 0.0
  %v3869 = vadd.f32 %v3867, %v3868
  %v3870 = vsel %vm27, %v3655, 0.0
  %v3871 = vadd.f32 %v3869, %v3870
  %v3872 = vsel %vm27, %v3658, 0.0
  %v3873 = vadd.f32 %v3871, %v3872
  %v3874 = vsel %vm27, %v3663, 0.0
  %v3875 = vadd.f32 %v3873, %v3874
  %v3876 = vsel %vm27, %v3666, 0.0
  %v3877 = vadd.f32 %v3875, %v3876
  %v3878 = vsel %vm27, %v3671, 0.0
  %v3879 = vadd.f32 %v3877, %v3878
  %v3880 = vsel %vm27, %v3674, 0.0
  %v3881 = vadd.f32 %v3879, %v3880
  %v3882 = vsel %vm27, %v3679, 0.0
  %v3883 = vadd.f32 %v3881, %v3882
  %v3884 = vsel %vm27, %v3682, 0.0
  %v3885 = vadd.f32 %v3883, %v3884
  %v3886 = vsel %vm27, %v3687, 0.0
  %v3887 = vadd.f32 %v3885, %v3886
  %v3888 = vsel %vm27, %v3690, 0.0
  %v3889 = vadd.f32 %v3887, %v3888
  %v3890 = vsel %vm27, %v3695, 0.0
  %v3891 = vadd.f32 %v3889, %v3890
  %v3892 = vsel %vm27, %v3698, 0.0
  %v3893 = vadd.f32 %v3891, %v3892
  %v3894 = vsel %vm27, %v3703, 0.0
  %v3895 = vadd.f32 %v3893, %v3894
  %v3896 = vsel %vm27, %v3706, 0.0
  %v3897 = vadd.f32 %v3895, %v3896
  %v3898 = vsel %vm27, %v3711, 0.0
  %v3899 = vadd.f32 %v3897, %v3898
  %v3900 = vsel %vm27, %v3714, 0.0
  %v3901 = vadd.f32 %v3899, %v3900
  %v3902 = vsel %vm27, %v3719, 0.0
  %v3903 = vadd.f32 %v3901, %v3902
  %v3904 = vsel %vm27, %v3722, 0.0
  %v3905 = vadd.f32 %v3903, %v3904
  %v3906 = vsel %vm27, %v3727, 0.0
  %v3907 = vadd.f32 %v3905, %v3906
  %v3908 = vsel %vm27, %v3730, 0.0
  %v3909 = vadd.f32 %v3907, %v3908
  %v3910 = vsel %vm27, %v3735, 0.0
  %v3911 = vadd.f32 %v3909, %v3910
  %v3912 = vsel %vm27, %v3738, 0.0
  %v3913 = vadd.f32 %v3911, %v3912
  %v3914 = vsel %vm27, %v3743, 0.0
  %v3915 = vadd.f32 %v3913, %v3914
  %v3916 = vsel %vm27, %v3746, 0.0
  %v3917 = vadd.f32 %v3915, %v3916
  %v3918 = vsel %vm27, %v3751, 0.0
  %v3919 = vadd.f32 %v3917, %v3918
  %v3920 = vsel %vm27, %v3754, 0.0
  %v3921 = vadd.f32 %v3919, %v3920
  %v3922 = vsel %vm27, %v3759, 0.0
  %v3923 = vadd.f32 %v3921, %v3922
  %v3924 = vsel %vm27, %v3762, 0.0
  %v3925 = vadd.f32 %v3923, %v3924
  %v3926 = vsel %vm27, %v3767, 0.0
  %v3927 = vadd.f32 %v3925, %v3926
  %v3928 = vsel %vm27, %v3770, 0.0
  %v3929 = vadd.f32 %v3927, %v3928
  %v3930 = vsel %vm27, %v3775, 0.0
  %v3931 = vadd.f32 %v3929, %v3930
  %v3932 = vsel %vm27, %v3778, 0.0
  %v3933 = vadd.f32 %v3931, %v3932
  %v3934 = vsel %vm27, %v3783, 0.0
  %v3935 = vadd.f32 %v3933, %v3934
  %v3936 = vsel %vm27, %v3786, 0.0
  %v3937 = vadd.f32 %v3935, %v3936
  %v3938 = vsel %vm27, %v3791, 0.0
  %v3939 = vadd.f32 %v3937, %v3938
  %v3940 = vsel %vm27, %v3794, 0.0
  %v3941 = vadd.f32 %v3939, %v3940
  %v3942 = vsel %vm27, %v3799, 0.0
  %v3943 = vadd.f32 %v3941, %v3942
  %v3944 = vsel %vm27, %v3802, 0.0
  %v3945 = vadd.f32 %v3943, %v3944
  %v3946 = vsel %vm27, %v3807, 0.0
  %v3947 = vadd.f32 %v3945, %v3946
  %v3948 = vsel %vm27, %v3810, 0.0
  %v3949 = vadd.f32 %v3947, %v3948
  %v3950 = vsel %vm27, %v3815, 0.0
  %v3951 = vadd.f32 %v3949, %v3950
  %v3952 = vsel %vm27, %v3818, 0.0
  %v3953 = vadd.f32 %v3951, %v3952
  %v3954 = vsel %vm27, %v3823, 0.0
  %v3955 = vadd.f32 %v3953, %v3954
  %v3956 = vsel %vm27, %v3826, 0.0
  %v3957 = vadd.f32 %v3955, %v3956
  %v3958 = vrot.slane %v3957, 4
  %v3959 = vadd.f32 %v3957, %v3958
  %v3960 = vrot.slane %v3959, 2
  %v3961 = vadd.f32 %v3959, %v3960
  %v3962 = vrot.slane %v3961, 1
  %v3963 = vadd.f32 %v3961, %v3962
  %v3964 = vrcp.pop 512.0
  %v3965 = vmul.f32 %v3963, %v3964
  %v3966 = vmul.f32 %v3575, %v3575
  %v3967 = vmul.f32 %v3578, %v3578
  %v3968 = vmul.f32 %v3583, %v3583
  %v3969 = vmul.f32 %v3586, %v3586
  %v3970 = vmul.f32 %v3591, %v3591
  %v3971 = vmul.f32 %v3594, %v3594
  %v3972 = vmul.f32 %v3599, %v3599
  %v3973 = vmul.f32 %v3602, %v3602
  %v3974 = vmul.f32 %v3607, %v3607
  %v3975 = vmul.f32 %v3610, %v3610
  %v3976 = vmul.f32 %v3615, %v3615
  %v3977 = vmul.f32 %v3618, %v3618
  %v3978 = vmul.f32 %v3623, %v3623
  %v3979 = vmul.f32 %v3626, %v3626
  %v3980 = vmul.f32 %v3631, %v3631
  %v3981 = vmul.f32 %v3634, %v3634
  %v3982 = vmul.f32 %v3639, %v3639
  %v3983 = vmul.f32 %v3642, %v3642
  %v3984 = vmul.f32 %v3647, %v3647
  %v3985 = vmul.f32 %v3650, %v3650
  %v3986 = vmul.f32 %v3655, %v3655
  %v3987 = vmul.f32 %v3658, %v3658
  %v3988 = vmul.f32 %v3663, %v3663
  %v3989 = vmul.f32 %v3666, %v3666
  %v3990 = vmul.f32 %v3671, %v3671
  %v3991 = vmul.f32 %v3674, %v3674
  %v3992 = vmul.f32 %v3679, %v3679
  %v3993 = vmul.f32 %v3682, %v3682
  %v3994 = vmul.f32 %v3687, %v3687
  %v3995 = vmul.f32 %v3690, %v3690
  %v3996 = vmul.f32 %v3695, %v3695
  %v3997 = vmul.f32 %v3698, %v3698
  %v3998 = vmul.f32 %v3703, %v3703
  %v3999 = vmul.f32 %v3706, %v3706
  %v4000 = vmul.f32 %v3711, %v3711
  %v4001 = vmul.f32 %v3714, %v3714
  %v4002 = vmul.f32 %v3719, %v3719
  %v4003 = vmul.f32 %v3722, %v3722
  %v4004 = vmul.f32 %v3727, %v3727
  %v4005 = vmul.f32 %v3730, %v3730
  %v4006 = vmul.f32 %v3735, %v3735
  %v4007 = vmul.f32 %v3738, %v3738
  %v4008 = vmul.f32 %v3743, %v3743
  %v4009 = vmul.f32 %v3746, %v3746
  %v4010 = vmul.f32 %v3751, %v3751
  %v4011 = vmul.f32 %v3754, %v3754
  %v4012 = vmul.f32 %v3759, %v3759
  %v4013 = vmul.f32 %v3762, %v3762
  %v4014 = vmul.f32 %v3767, %v3767
  %v4015 = vmul.f32 %v3770, %v3770
  %v4016 = vmul.f32 %v3775, %v3775
  %v4017 = vmul.f32 %v3778, %v3778
  %v4018 = vmul.f32 %v3783, %v3783
  %v4019 = vmul.f32 %v3786, %v3786
  %v4020 = vmul.f32 %v3791, %v3791
  %v4021 = vmul.f32 %v3794, %v3794
  %v4022 = vmul.f32 %v3799, %v3799
  %v4023 = vmul.f32 %v3802, %v3802
  %v4024 = vmul.f32 %v3807, %v3807
  %v4025 = vmul.f32 %v3810, %v3810
  %v4026 = vmul.f32 %v3815, %v3815
  %v4027 = vmul.f32 %v3818, %v3818
  %v4028 = vmul.f32 %v3823, %v3823
  %v4029 = vmul.f32 %v3826, %v3826
  %v4030 = vsel %vm27, %v3966, 0.0
  %v4031 = vsel %vm27, %v3967, 0.0
  %v4032 = vadd.f32 %v4030, %v4031
  %v4033 = vsel %vm27, %v3968, 0.0
  %v4034 = vadd.f32 %v4032, %v4033
  %v4035 = vsel %vm27, %v3969, 0.0
  %v4036 = vadd.f32 %v4034, %v4035
  %v4037 = vsel %vm27, %v3970, 0.0
  %v4038 = vadd.f32 %v4036, %v4037
  %v4039 = vsel %vm27, %v3971, 0.0
  %v4040 = vadd.f32 %v4038, %v4039
  %v4041 = vsel %vm27, %v3972, 0.0
  %v4042 = vadd.f32 %v4040, %v4041
  %v4043 = vsel %vm27, %v3973, 0.0
  %v4044 = vadd.f32 %v4042, %v4043
  %v4045 = vsel %vm27, %v3974, 0.0
  %v4046 = vadd.f32 %v4044, %v4045
  %v4047 = vsel %vm27, %v3975, 0.0
  %v4048 = vadd.f32 %v4046, %v4047
  %v4049 = vsel %vm27, %v3976, 0.0
  %v4050 = vadd.f32 %v4048, %v4049
  %v4051 = vsel %vm27, %v3977, 0.0
  %v4052 = vadd.f32 %v4050, %v4051
  %v4053 = vsel %vm27, %v3978, 0.0
  %v4054 = vadd.f32 %v4052, %v4053
  %v4055 = vsel %vm27, %v3979, 0.0
  %v4056 = vadd.f32 %v4054, %v4055
  %v4057 = vsel %vm27, %v3980, 0.0
  %v4058 = vadd.f32 %v4056, %v4057
  %v4059 = vsel %vm27, %v3981, 0.0
  %v4060 = vadd.f32 %v4058, %v4059
  %v4061 = vsel %vm27, %v3982, 0.0
  %v4062 = vadd.f32 %v4060, %v4061
  %v4063 = vsel %vm27, %v3983, 0.0
  %v4064 = vadd.f32 %v4062, %v4063
  %v4065 = vsel %vm27, %v3984, 0.0
  %v4066 = vadd.f32 %v4064, %v4065
  %v4067 = vsel %vm27, %v3985, 0.0
  %v4068 = vadd.f32 %v4066, %v4067
  %v4069 = vsel %vm27, %v3986, 0.0
  %v4070 = vadd.f32 %v4068, %v4069
  %v4071 = vsel %vm27, %v3987, 0.0
  %v4072 = vadd.f32 %v4070, %v4071
  %v4073 = vsel %vm27, %v3988, 0.0
  %v4074 = vadd.f32 %v4072, %v4073
  %v4075 = vsel %vm27, %v3989, 0.0
  %v4076 = vadd.f32 %v4074, %v4075
  %v4077 = vsel %vm27, %v3990, 0.0
  %v4078 = vadd.f32 %v4076, %v4077
  %v4079 = vsel %vm27, %v3991, 0.0
  %v4080 = vadd.f32 %v4078, %v4079
  %v4081 = vsel %vm27, %v3992, 0.0
  %v4082 = vadd.f32 %v4080, %v4081
  %v4083 = vsel %vm27, %v3993, 0.0
  %v4084 = vadd.f32 %v4082, %v4083
  %v4085 = vsel %vm27, %v3994, 0.0
  %v4086 = vadd.f32 %v4084, %v4085
  %v4087 = vsel %vm27, %v3995, 0.0
  %v4088 = vadd.f32 %v4086, %v4087
  %v4089 = vsel %vm27, %v3996, 0.0
  %v4090 = vadd.f32 %v4088, %v4089
  %v4091 = vsel %vm27, %v3997, 0.0
  %v4092 = vadd.f32 %v4090, %v4091
  %v4093 = vsel %vm27, %v3998, 0.0
  %v4094 = vadd.f32 %v4092, %v4093
  %v4095 = vsel %vm27, %v3999, 0.0
  %v4096 = vadd.f32 %v4094, %v4095
  %v4097 = vsel %vm27, %v4000, 0.0
  %v4098 = vadd.f32 %v4096, %v4097
  %v4099 = vsel %vm27, %v4001, 0.0
  %v4100 = vadd.f32 %v4098, %v4099
  %v4101 = vsel %vm27, %v4002, 0.0
  %v4102 = vadd.f32 %v4100, %v4101
  %v4103 = vsel %vm27, %v4003, 0.0
  %v4104 = vadd.f32 %v4102, %v4103
  %v4105 = vsel %vm27, %v4004, 0.0
  %v4106 = vadd.f32 %v4104, %v4105
  %v4107 = vsel %vm27, %v4005, 0.0
  %v4108 = vadd.f32 %v4106, %v4107
  %v4109 = vsel %vm27, %v4006, 0.0
  %v4110 = vadd.f32 %v4108, %v4109
  %v4111 = vsel %vm27, %v4007, 0.0
  %v4112 = vadd.f32 %v4110, %v4111
  %v4113 = vsel %vm27, %v4008, 0.0
  %v4114 = vadd.f32 %v4112, %v4113
  %v4115 = vsel %vm27, %v4009, 0.0
  %v4116 = vadd.f32 %v4114, %v4115
  %v4117 = vsel %vm27, %v4010, 0.0
  %v4118 = vadd.f32 %v4116, %v4117
  %v4119 = vsel %vm27, %v4011, 0.0
  %v4120 = vadd.f32 %v4118, %v4119
  %v4121 = vsel %vm27, %v4012, 0.0
  %v4122 = vadd.f32 %v4120, %v4121
  %v4123 = vsel %vm27, %v4013, 0.0
  %v4124 = vadd.f32 %v4122, %v4123
  %v4125 = vsel %vm27, %v4014, 0.0
  %v4126 = vadd.f32 %v4124, %v4125
  %v4127 = vsel %vm27, %v4015, 0.0
  %v4128 = vadd.f32 %v4126, %v4127
  %v4129 = vsel %vm27, %v4016, 0.0
  %v4130 = vadd.f32 %v4128, %v4129
  %v4131 = vsel %vm27, %v4017, 0.0
  %v4132 = vadd.f32 %v4130, %v4131
  %v4133 = vsel %vm27, %v4018, 0.0
  %v4134 = vadd.f32 %v4132, %v4133
  %v4135 = vsel %vm27, %v4019, 0.0
  %v4136 = vadd.f32 %v4134, %v4135
  %v4137 = vsel %vm27, %v4020, 0.0
  %v4138 = vadd.f32 %v4136, %v4137
  %v4139 = vsel %vm27, %v4021, 0.0
  %v4140 = vadd.f32 %v4138, %v4139
  %v4141 = vsel %vm27, %v4022, 0.0
  %v4142 = vadd.f32 %v4140, %v4141
  %v4143 = vsel %vm27, %v4023, 0.0
  %v4144 = vadd.f32 %v4142, %v4143
  %v4145 = vsel %vm27, %v4024, 0.0
  %v4146 = vadd.f32 %v4144, %v4145
  %v4147 = vsel %vm27, %v4025, 0.0
  %v4148 = vadd.f32 %v4146, %v4147
  %v4149 = vsel %vm27, %v4026, 0.0
  %v4150 = vadd.f32 %v4148, %v4149
  %v4151 = vsel %vm27, %v4027, 0.0
  %v4152 = vadd.f32 %v4150, %v4151
  %v4153 = vsel %vm27, %v4028, 0.0
  %v4154 = vadd.f32 %v4152, %v4153
  %v4155 = vsel %vm27, %v4029, 0.0
  %v4156 = vadd.f32 %v4154, %v4155
  %v4157 = vrot.slane %v4156, 4
  %v4158 = vadd.f32 %v4156, %v4157
  %v4159 = vrot.slane %v4158, 2
  %v4160 = vadd.f32 %v4158, %v4159
  %v4161 = vrot.slane %v4160, 1
  %v4162 = vadd.f32 %v4160, %v4161
  %v4163 = vmul.f32 %v4162, %v3964
  %v4164 = vmul.f32 %v3965, %v3965
  %v4165 = vsub.f32 %v4163, %v4164
  %v4166 = vmax.f32 %v4165, 0.0
  %v4167 = vadd.f32 %v4166, 1e-05
  %v4168 = vrsqrt.pop %v4167
  %v4169 = vmul.f32 %v3829, %v4168
  %v4170 = vmul.f32 %v3965, %v4169
  %v4171 = vsub.f32 %v3830, %v4170
  %v4173 = vlaneseq
  %v4174 = vshrl.u32 %v4173, 7
  %v4175 = vsub.s32 0, %v4174
  %v4176 = vrot.slane %v4169, %v4175
  %v4178 = vmul.f32 %v3575, %v4176
  %v4179 = vmul.f32 %v3578, %v4176
  %v4180 = vmul.f32 %v3583, %v4176
  %v4181 = vmul.f32 %v3586, %v4176
  %v4182 = vmul.f32 %v3591, %v4176
  %v4183 = vmul.f32 %v3594, %v4176
  %v4184 = vmul.f32 %v3599, %v4176
  %v4185 = vmul.f32 %v3602, %v4176
  %v4186 = vmul.f32 %v3607, %v4176
  %v4187 = vmul.f32 %v3610, %v4176
  %v4188 = vmul.f32 %v3615, %v4176
  %v4189 = vmul.f32 %v3618, %v4176
  %v4190 = vmul.f32 %v3623, %v4176
  %v4191 = vmul.f32 %v3626, %v4176
  %v4192 = vmul.f32 %v3631, %v4176
  %v4193 = vmul.f32 %v3634, %v4176
  %v4194 = vmul.f32 %v3639, %v4176
  %v4195 = vmul.f32 %v3642, %v4176
  %v4196 = vmul.f32 %v3647, %v4176
  %v4197 = vmul.f32 %v3650, %v4176
  %v4198 = vmul.f32 %v3655, %v4176
  %v4199 = vmul.f32 %v3658, %v4176
  %v4200 = vmul.f32 %v3663, %v4176
  %v4201 = vmul.f32 %v3666, %v4176
  %v4202 = vmul.f32 %v3671, %v4176
  %v4203 = vmul.f32 %v3674, %v4176
  %v4204 = vmul.f32 %v3679, %v4176
  %v4205 = vmul.f32 %v3682, %v4176
  %v4206 = vmul.f32 %v3687, %v4176
  %v4207 = vmul.f32 %v3690, %v4176
  %v4208 = vmul.f32 %v3695, %v4176
  %v4209 = vmul.f32 %v3698, %v4176
  %v4210 = vmul.f32 %v3703, %v4176
  %v4211 = vmul.f32 %v3706, %v4176
  %v4212 = vmul.f32 %v3711, %v4176
  %v4213 = vmul.f32 %v3714, %v4176
  %v4214 = vmul.f32 %v3719, %v4176
  %v4215 = vmul.f32 %v3722, %v4176
  %v4216 = vmul.f32 %v3727, %v4176
  %v4217 = vmul.f32 %v3730, %v4176
  %v4218 = vmul.f32 %v3735, %v4176
  %v4219 = vmul.f32 %v3738, %v4176
  %v4220 = vmul.f32 %v3743, %v4176
  %v4221 = vmul.f32 %v3746, %v4176
  %v4222 = vmul.f32 %v3751, %v4176
  %v4223 = vmul.f32 %v3754, %v4176
  %v4224 = vmul.f32 %v3759, %v4176
  %v4225 = vmul.f32 %v3762, %v4176
  %v4226 = vmul.f32 %v3767, %v4176
  %v4227 = vmul.f32 %v3770, %v4176
  %v4228 = vmul.f32 %v3775, %v4176
  %v4229 = vmul.f32 %v3778, %v4176
  %v4230 = vmul.f32 %v3783, %v4176
  %v4231 = vmul.f32 %v3786, %v4176
  %v4232 = vmul.f32 %v3791, %v4176
  %v4233 = vmul.f32 %v3794, %v4176
  %v4234 = vmul.f32 %v3799, %v4176
  %v4235 = vmul.f32 %v3802, %v4176
  %v4236 = vmul.f32 %v3807, %v4176
  %v4237 = vmul.f32 %v3810, %v4176
  %v4238 = vmul.f32 %v3815, %v4176
  %v4239 = vmul.f32 %v3818, %v4176
  %v4240 = vmul.f32 %v3823, %v4176
  %v4241 = vmul.f32 %v3826, %v4176
  %v4243 = vlaneseq
  %v4244 = vshrl.u32 %v4243, 7
  %v4245 = vsub.s32 0, %v4244
  %v4246 = vrot.slane %v4171, %v4245
  %v4248 = vadd.f32 %v4178, %v4246
  %v4249 = vadd.f32 %v4179, %v4246
  %v4250 = vadd.f32 %v4180, %v4246
  %v4251 = vadd.f32 %v4181, %v4246
  %v4252 = vadd.f32 %v4182, %v4246
  %v4253 = vadd.f32 %v4183, %v4246
  %v4254 = vadd.f32 %v4184, %v4246
  %v4255 = vadd.f32 %v4185, %v4246
  %v4256 = vadd.f32 %v4186, %v4246
  %v4257 = vadd.f32 %v4187, %v4246
  %v4258 = vadd.f32 %v4188, %v4246
  %v4259 = vadd.f32 %v4189, %v4246
  %v4260 = vadd.f32 %v4190, %v4246
  %v4261 = vadd.f32 %v4191, %v4246
  %v4262 = vadd.f32 %v4192, %v4246
  %v4263 = vadd.f32 %v4193, %v4246
  %v4264 = vadd.f32 %v4194, %v4246
  %v4265 = vadd.f32 %v4195, %v4246
  %v4266 = vadd.f32 %v4196, %v4246
  %v4267 = vadd.f32 %v4197, %v4246
  %v4268 = vadd.f32 %v4198, %v4246
  %v4269 = vadd.f32 %v4199, %v4246
  %v4270 = vadd.f32 %v4200, %v4246
  %v4271 = vadd.f32 %v4201, %v4246
  %v4272 = vadd.f32 %v4202, %v4246
  %v4273 = vadd.f32 %v4203, %v4246
  %v4274 = vadd.f32 %v4204, %v4246
  %v4275 = vadd.f32 %v4205, %v4246
  %v4276 = vadd.f32 %v4206, %v4246
  %v4277 = vadd.f32 %v4207, %v4246
  %v4278 = vadd.f32 %v4208, %v4246
  %v4279 = vadd.f32 %v4209, %v4246
  %v4280 = vadd.f32 %v4210, %v4246
  %v4281 = vadd.f32 %v4211, %v4246
  %v4282 = vadd.f32 %v4212, %v4246
  %v4283 = vadd.f32 %v4213, %v4246
  %v4284 = vadd.f32 %v4214, %v4246
  %v4285 = vadd.f32 %v4215, %v4246
  %v4286 = vadd.f32 %v4216, %v4246
  %v4287 = vadd.f32 %v4217, %v4246
  %v4288 = vadd.f32 %v4218, %v4246
  %v4289 = vadd.f32 %v4219, %v4246
  %v4290 = vadd.f32 %v4220, %v4246
  %v4291 = vadd.f32 %v4221, %v4246
  %v4292 = vadd.f32 %v4222, %v4246
  %v4293 = vadd.f32 %v4223, %v4246
  %v4294 = vadd.f32 %v4224, %v4246
  %v4295 = vadd.f32 %v4225, %v4246
  %v4296 = vadd.f32 %v4226, %v4246
  %v4297 = vadd.f32 %v4227, %v4246
  %v4298 = vadd.f32 %v4228, %v4246
  %v4299 = vadd.f32 %v4229, %v4246
  %v4300 = vadd.f32 %v4230, %v4246
  %v4301 = vadd.f32 %v4231, %v4246
  %v4302 = vadd.f32 %v4232, %v4246
  %v4303 = vadd.f32 %v4233, %v4246
  %v4304 = vadd.f32 %v4234, %v4246
  %v4305 = vadd.f32 %v4235, %v4246
  %v4306 = vadd.f32 %v4236, %v4246
  %v4307 = vadd.f32 %v4237, %v4246
  %v4308 = vadd.f32 %v4238, %v4246
  %v4309 = vadd.f32 %v4239, %v4246
  %v4310 = vadd.f32 %v4240, %v4246
  %v4311 = vadd.f32 %v4241, %v4246
  %v4312 = vmax.f32 %v4248, 0.0
  %v4313 = vmax.f32 %v4249, 0.0
  %v4314 = vmax.f32 %v4250, 0.0
  %v4315 = vmax.f32 %v4251, 0.0
  %v4316 = vmax.f32 %v4252, 0.0
  %v4317 = vmax.f32 %v4253, 0.0
  %v4318 = vmax.f32 %v4254, 0.0
  %v4319 = vmax.f32 %v4255, 0.0
  %v4320 = vmax.f32 %v4256, 0.0
  %v4321 = vmax.f32 %v4257, 0.0
  %v4322 = vmax.f32 %v4258, 0.0
  %v4323 = vmax.f32 %v4259, 0.0
  %v4324 = vmax.f32 %v4260, 0.0
  %v4325 = vmax.f32 %v4261, 0.0
  %v4326 = vmax.f32 %v4262, 0.0
  %v4327 = vmax.f32 %v4263, 0.0
  %v4328 = vmax.f32 %v4264, 0.0
  %v4329 = vmax.f32 %v4265, 0.0
  %v4330 = vmax.f32 %v4266, 0.0
  %v4331 = vmax.f32 %v4267, 0.0
  %v4332 = vmax.f32 %v4268, 0.0
  %v4333 = vmax.f32 %v4269, 0.0
  %v4334 = vmax.f32 %v4270, 0.0
  %v4335 = vmax.f32 %v4271, 0.0
  %v4336 = vmax.f32 %v4272, 0.0
  %v4337 = vmax.f32 %v4273, 0.0
  %v4338 = vmax.f32 %v4274, 0.0
  %v4339 = vmax.f32 %v4275, 0.0
  %v4340 = vmax.f32 %v4276, 0.0
  %v4341 = vmax.f32 %v4277, 0.0
  %v4342 = vmax.f32 %v4278, 0.0
  %v4343 = vmax.f32 %v4279, 0.0
  %v4344 = vmax.f32 %v4280, 0.0
  %v4345 = vmax.f32 %v4281, 0.0
  %v4346 = vmax.f32 %v4282, 0.0
  %v4347 = vmax.f32 %v4283, 0.0
  %v4348 = vmax.f32 %v4284, 0.0
  %v4349 = vmax.f32 %v4285, 0.0
  %v4350 = vmax.f32 %v4286, 0.0
  %v4351 = vmax.f32 %v4287, 0.0
  %v4352 = vmax.f32 %v4288, 0.0
  %v4353 = vmax.f32 %v4289, 0.0
  %v4354 = vmax.f32 %v4290, 0.0
  %v4355 = vmax.f32 %v4291, 0.0
  %v4356 = vmax.f32 %v4292, 0.0
  %v4357 = vmax.f32 %v4293, 0.0
  %v4358 = vmax.f32 %v4294, 0.0
  %v4359 = vmax.f32 %v4295, 0.0
  %v4360 = vmax.f32 %v4296, 0.0
  %v4361 = vmax.f32 %v4297, 0.0
  %v4362 = vmax.f32 %v4298, 0.0
  %v4363 = vmax.f32 %v4299, 0.0
  %v4364 = vmax.f32 %v4300, 0.0
  %v4365 = vmax.f32 %v4301, 0.0
  %v4366 = vmax.f32 %v4302, 0.0
  %v4367 = vmax.f32 %v4303, 0.0
  %v4368 = vmax.f32 %v4304, 0.0
  %v4369 = vmax.f32 %v4305, 0.0
  %v4370 = vmax.f32 %v4306, 0.0
  %v4371 = vmax.f32 %v4307, 0.0
  %v4372 = vmax.f32 %v4308, 0.0
  %v4373 = vmax.f32 %v4309, 0.0
  %v4374 = vmax.f32 %v4310, 0.0
  %v4375 = vmax.f32 %v4311, 0.0
  %4376 = vst.msk [vmem:[%s178 + $0x1] sm:$0xff] %vm27, %v4312
  %4377 = vst.msk [vmem:[%s178 + $0x9] sm:$0xff] %vm27, %v4313
  %4378 = vst.msk [vmem:[%s178 + $0x19] sm:$0xff] %vm27, %v4314
  %4379 = vst.msk [vmem:[%s178 + $0x21] sm:$0xff] %vm27, %v4315
  %4380 = vst.msk [vmem:[%s178 + $0x31] sm:$0xff] %vm27, %v4316
  %4381 = vst.msk [vmem:[%s178 + $0x39] sm:$0xff] %vm27, %v4317
  %4382 = vst.msk [vmem:[%s178 + $0x49] sm:$0xff] %vm27, %v4318
  %4383 = vst.msk [vmem:[%s178 + $0x51] sm:$0xff] %vm27, %v4319
  %4384 = vst.msk [vmem:[%s178 + $0x61] sm:$0xff] %vm27, %v4320
  %4385 = vst.msk [vmem:[%s178 + $0x69] sm:$0xff] %vm27, %v4321
  %4386 = vst.msk [vmem:[%s178 + $0x79] sm:$0xff] %vm27, %v4322
  %4387 = vst.msk [vmem:[%s178 + $0x81] sm:$0xff] %vm27, %v4323
  %4388 = vst.msk [vmem:[%s178 + $0x91] sm:$0xff] %vm27, %v4324
  %4389 = vst.msk [vmem:[%s178 + $0x99] sm:$0xff] %vm27, %v4325
  %4390 = vst.msk [vmem:[%s178 + $0xa9] sm:$0xff] %vm27, %v4326
  %4391 = vst.msk [vmem:[%s178 + $0xb1] sm:$0xff] %vm27, %v4327
  %4392 = vst.msk [vmem:[%s178 + $0xc1] sm:$0xff] %vm27, %v4328
  %4393 = vst.msk [vmem:[%s178 + $0xc9] sm:$0xff] %vm27, %v4329
  %4394 = vst.msk [vmem:[%s178 + $0xd9] sm:$0xff] %vm27, %v4330
  %4395 = vst.msk [vmem:[%s178 + $0xe1] sm:$0xff] %vm27, %v4331
  %4396 = vst.msk [vmem:[%s178 + $0xf1] sm:$0xff] %vm27, %v4332
  %4397 = vst.msk [vmem:[%s178 + $0xf9] sm:$0xff] %vm27, %v4333
  %4398 = vst.msk [vmem:[%s178 + $0x109] sm:$0xff] %vm27, %v4334
  %4399 = vst.msk [vmem:[%s178 + $0x111] sm:$0xff] %vm27, %v4335
  %4400 = vst.msk [vmem:[%s178 + $0x121] sm:$0xff] %vm27, %v4336
  %4401 = vst.msk [vmem:[%s178 + $0x129] sm:$0xff] %vm27, %v4337
  %4402 = vst.msk [vmem:[%s178 + $0x139] sm:$0xff] %vm27, %v4338
  %4403 = vst.msk [vmem:[%s178 + $0x141] sm:$0xff] %vm27, %v4339
  %4404 = vst.msk [vmem:[%s178 + $0x151] sm:$0xff] %vm27, %v4340
  %4405 = vst.msk [vmem:[%s178 + $0x159] sm:$0xff] %vm27, %v4341
  %4406 = vst.msk [vmem:[%s178 + $0x169] sm:$0xff] %vm27, %v4342
  %4407 = vst.msk [vmem:[%s178 + $0x171] sm:$0xff] %vm27, %v4343
  %4408 = vst.msk [vmem:[%s178 + $0x1b1] sm:$0xff] %vm27, %v4344
  %4409 = vst.msk [vmem:[%s178 + $0x1b9] sm:$0xff] %vm27, %v4345
  %4410 = vst.msk [vmem:[%s178 + $0x1c9] sm:$0xff] %vm27, %v4346
  %4411 = vst.msk [vmem:[%s178 + $0x1d1] sm:$0xff] %vm27, %v4347
  %4412 = vst.msk [vmem:[%s178 + $0x1e1] sm:$0xff] %vm27, %v4348
  %4413 = vst.msk [vmem:[%s178 + $0x1e9] sm:$0xff] %vm27, %v4349
  %4414 = vst.msk [vmem:[%s178 + $0x1f9] sm:$0xff] %vm27, %v4350
  %4415 = vst.msk [vmem:[%s178 + $0x201] sm:$0xff] %vm27, %v4351
  %4416 = vst.msk [vmem:[%s178 + $0x211] sm:$0xff] %vm27, %v4352
  %4417 = vst.msk [vmem:[%s178 + $0x219] sm:$0xff] %vm27, %v4353
  %4418 = vst.msk [vmem:[%s178 + $0x229] sm:$0xff] %vm27, %v4354
  %4419 = vst.msk [vmem:[%s178 + $0x231] sm:$0xff] %vm27, %v4355
  %4420 = vst.msk [vmem:[%s178 + $0x241] sm:$0xff] %vm27, %v4356
  %4421 = vst.msk [vmem:[%s178 + $0x249] sm:$0xff] %vm27, %v4357
  %4422 = vst.msk [vmem:[%s178 + $0x259] sm:$0xff] %vm27, %v4358
  %4423 = vst.msk [vmem:[%s178 + $0x261] sm:$0xff] %vm27, %v4359
  %4424 = vst.msk [vmem:[%s178 + $0x271] sm:$0xff] %vm27, %v4360
  %4425 = vst.msk [vmem:[%s178 + $0x279] sm:$0xff] %vm27, %v4361
  %4426 = vst.msk [vmem:[%s178 + $0x289] sm:$0xff] %vm27, %v4362
  %4427 = vst.msk [vmem:[%s178 + $0x291] sm:$0xff] %vm27, %v4363
  %4428 = vst.msk [vmem:[%s178 + $0x2a1] sm:$0xff] %vm27, %v4364
  %4429 = vst.msk [vmem:[%s178 + $0x2a9] sm:$0xff] %vm27, %v4365
  %4430 = vst.msk [vmem:[%s178 + $0x2b9] sm:$0xff] %vm27, %v4366
  %4431 = vst.msk [vmem:[%s178 + $0x2c1] sm:$0xff] %vm27, %v4367
  %4432 = vst.msk [vmem:[%s178 + $0x2d1] sm:$0xff] %vm27, %v4368
  %4433 = vst.msk [vmem:[%s178 + $0x2d9] sm:$0xff] %vm27, %v4369
  %4434 = vst.msk [vmem:[%s178 + $0x2e9] sm:$0xff] %vm27, %v4370
  %4435 = vst.msk [vmem:[%s178 + $0x2f1] sm:$0xff] %vm27, %v4371
  %4436 = vst.msk [vmem:[%s178 + $0x301] sm:$0xff] %vm27, %v4372
  %4437 = vst.msk [vmem:[%s178 + $0x309] sm:$0xff] %vm27, %v4373
  %4438 = vst.msk [vmem:[%s178 + $0x319] sm:$0xff] %vm27, %v4374
  %4439 = vst.msk [vmem:[%s178 + $0x321] sm:$0xff] %vm27, %v4375
  %v4440 = vld [vmem:[#allocation2] sm:$0xff]
  %v4441 = vld [vmem:[#allocation2 + $0x8] sm:$0xff]
  %v4442 = vld [vmem:[#allocation2 + $0x18] sm:$0xff]
  %v4443 = vld [vmem:[#allocation2 + $0x20] sm:$0xff]
  %v4444 = vld [vmem:[#allocation2 + $0x30] sm:$0xff]
  %v4445 = vld [vmem:[#allocation2 + $0x38] sm:$0xff]
  %v4446 = vld [vmem:[#allocation2 + $0x48] sm:$0xff]
  %v4447 = vld [vmem:[#allocation2 + $0x50] sm:$0xff]
  %v4448 = vld [vmem:[#allocation2 + $0x60] sm:$0xff]
  %v4449 = vld [vmem:[#allocation2 + $0x68] sm:$0xff]
  %v4450 = vld [vmem:[#allocation2 + $0x78] sm:$0xff]
  %v4451 = vld [vmem:[#allocation2 + $0x80] sm:$0xff]
  %v4452 = vld [vmem:[#allocation2 + $0x90] sm:$0xff]
  %v4453 = vld [vmem:[#allocation2 + $0x98] sm:$0xff]
  %v4454 = vld [vmem:[#allocation2 + $0xa8] sm:$0xff]
  %v4455 = vld [vmem:[#allocation2 + $0xb0] sm:$0xff]
  %v4456 = vld [vmem:[#allocation2 + $0xc0] sm:$0xff]
  %v4457 = vld [vmem:[#allocation2 + $0xc8] sm:$0xff]
  %v4458 = vld [vmem:[#allocation2 + $0xd8] sm:$0xff]
  %v4459 = vld [vmem:[#allocation2 + $0xe0] sm:$0xff]
  %v4460 = vld [vmem:[#allocation2 + $0xf0] sm:$0xff]
  %v4461 = vld [vmem:[#allocation2 + $0xf8] sm:$0xff]
  %v4462 = vld [vmem:[#allocation2 + $0x108] sm:$0xff]
  %v4463 = vld [vmem:[#allocation2 + $0x110] sm:$0xff]
  %v4464 = vld [vmem:[#allocation2 + $0x120] sm:$0xff]
  %v4465 = vld [vmem:[#allocation2 + $0x128] sm:$0xff]
  %v4466 = vld [vmem:[#allocation2 + $0x138] sm:$0xff]
  %v4467 = vld [vmem:[#allocation2 + $0x140] sm:$0xff]
  %v4468 = vld [vmem:[#allocation2 + $0x150] sm:$0xff]
  %v4469 = vld [vmem:[#allocation2 + $0x158] sm:$0xff]
  %v4470 = vld [vmem:[#allocation2 + $0x168] sm:$0xff]
  %v4471 = vld [vmem:[#allocation2 + $0x170] sm:$0xff]
  %v4472 = vld [vmem:[#allocation2 + $0x1b0] sm:$0xff]
  %v4473 = vld [vmem:[#allocation2 + $0x1b8] sm:$0xff]
  %v4474 = vld [vmem:[#allocation2 + $0x1c8] sm:$0xff]
  %v4475 = vld [vmem:[#allocation2 + $0x1d0] sm:$0xff]
  %v4476 = vld [vmem:[#allocation2 + $0x1e0] sm:$0xff]
  %v4477 = vld [vmem:[#allocation2 + $0x1e8] sm:$0xff]
  %v4478 = vld [vmem:[#allocation2 + $0x1f8] sm:$0xff]
  %v4479 = vld [vmem:[#allocation2 + $0x200] sm:$0xff]
  %v4480 = vld [vmem:[#allocation2 + $0x210] sm:$0xff]
  %v4481 = vld [vmem:[#allocation2 + $0x218] sm:$0xff]
  %v4482 = vld [vmem:[#allocation2 + $0x228] sm:$0xff]
  %v4483 = vld [vmem:[#allocation2 + $0x230] sm:$0xff]
  %v4484 = vld [vmem:[#allocation2 + $0x240] sm:$0xff]
  %v4485 = vld [vmem:[#allocation2 + $0x248] sm:$0xff]
  %v4486 = vld [vmem:[#allocation2 + $0x258] sm:$0xff]
  %v4487 = vld [vmem:[#allocation2 + $0x260] sm:$0xff]
  %v4488 = vld [vmem:[#allocation2 + $0x270] sm:$0xff]
  %v4489 = vld [vmem:[#allocation2 + $0x278] sm:$0xff]
  %v4490 = vld [vmem:[#allocation2 + $0x288] sm:$0xff]
  %v4491 = vld [vmem:[#allocation2 + $0x290] sm:$0xff]
  %v4492 = vld [vmem:[#allocation2 + $0x2a0] sm:$0xff]
  %v4493 = vld [vmem:[#allocation2 + $0x2a8] sm:$0xff]
  %v4494 = vld [vmem:[#allocation2 + $0x2b8] sm:$0xff]
  %v4495 = vld [vmem:[#allocation2 + $0x2c0] sm:$0xff]
  %v4496 = vld [vmem:[#allocation2 + $0x2d0] sm:$0xff]
  %v4497 = vld [vmem:[#allocation2 + $0x2d8] sm:$0xff]
  %v4498 = vld [vmem:[#allocation2 + $0x2e8] sm:$0xff]
  %v4499 = vld [vmem:[#allocation2 + $0x2f0] sm:$0xff]
  %v4500 = vld [vmem:[#allocation2 + $0x300] sm:$0xff]
  %v4501 = vld [vmem:[#allocation2 + $0x308] sm:$0xff]
  %v4502 = vld [vmem:[#allocation2 + $0x318] sm:$0xff]
  %v4503 = vld [vmem:[#allocation2 + $0x320] sm:$0xff]
  %v4504 = vld [vmem:[#allocation2 + $0x1] sm:$0xff]
  %v4505 = vld [vmem:[#allocation2 + $0x9] sm:$0xff]
  %v4506 = vld [vmem:[#allocation2 + $0x19] sm:$0xff]
  %v4507 = vld [vmem:[#allocation2 + $0x21] sm:$0xff]
  %v4508 = vld [vmem:[#allocation2 + $0x31] sm:$0xff]
  %v4509 = vld [vmem:[#allocation2 + $0x39] sm:$0xff]
  %v4510 = vld [vmem:[#allocation2 + $0x49] sm:$0xff]
  %v4511 = vld [vmem:[#allocation2 + $0x51] sm:$0xff]
  %v4512 = vld [vmem:[#allocation2 + $0x61] sm:$0xff]
  %v4513 = vld [vmem:[#allocation2 + $0x69] sm:$0xff]
  %v4514 = vld [vmem:[#allocation2 + $0x79] sm:$0xff]
  %v4515 = vld [vmem:[#allocation2 + $0x81] sm:$0xff]
  %v4516 = vld [vmem:[#allocation2 + $0x91] sm:$0xff]
  %v4517 = vld [vmem:[#allocation2 + $0x99] sm:$0xff]
  %v4518 = vld [vmem:[#allocation2 + $0xa9] sm:$0xff]
  %v4519 = vld [vmem:[#allocation2 + $0xb1] sm:$0xff]
  %v4520 = vld [vmem:[#allocation2 + $0xc1] sm:$0xff]
  %v4521 = vld [vmem:[#allocation2 + $0xc9] sm:$0xff]
  %v4522 = vld [vmem:[#allocation2 + $0xd9] sm:$0xff]
  %v4523 = vld [vmem:[#allocation2 + $0xe1] sm:$0xff]
  %v4524 = vld [vmem:[#allocation2 + $0xf1] sm:$0xff]
  %v4525 = vld [vmem:[#allocation2 + $0xf9] sm:$0xff]
  %v4526 = vld [vmem:[#allocation2 + $0x109] sm:$0xff]
  %v4527 = vld [vmem:[#allocation2 + $0x111] sm:$0xff]
  %v4528 = vld [vmem:[#allocation2 + $0x121] sm:$0xff]
  %v4529 = vld [vmem:[#allocation2 + $0x129] sm:$0xff]
  %v4530 = vld [vmem:[#allocation2 + $0x139] sm:$0xff]
  %v4531 = vld [vmem:[#allocation2 + $0x141] sm:$0xff]
  %v4532 = vld [vmem:[#allocation2 + $0x151] sm:$0xff]
  %v4533 = vld [vmem:[#allocation2 + $0x159] sm:$0xff]
  %v4534 = vld [vmem:[#allocation2 + $0x169] sm:$0xff]
  %v4535 = vld [vmem:[#allocation2 + $0x171] sm:$0xff]
  %v4536 = vld [vmem:[#allocation2 + $0x1b1] sm:$0xff]
  %v4537 = vld [vmem:[#allocation2 + $0x1b9] sm:$0xff]
  %v4538 = vld [vmem:[#allocation2 + $0x1c9] sm:$0xff]
  %v4539 = vld [vmem:[#allocation2 + $0x1d1] sm:$0xff]
  %v4540 = vld [vmem:[#allocation2 + $0x1e1] sm:$0xff]
  %v4541 = vld [vmem:[#allocation2 + $0x1e9] sm:$0xff]
  %v4542 = vld [vmem:[#allocation2 + $0x1f9] sm:$0xff]
  %v4543 = vld [vmem:[#allocation2 + $0x201] sm:$0xff]
  %v4544 = vld [vmem:[#allocation2 + $0x211] sm:$0xff]
  %v4545 = vld [vmem:[#allocation2 + $0x219] sm:$0xff]
  %v4546 = vld [vmem:[#allocation2 + $0x229] sm:$0xff]
  %v4547 = vld [vmem:[#allocation2 + $0x231] sm:$0xff]
  %v4548 = vld [vmem:[#allocation2 + $0x241] sm:$0xff]
  %v4549 = vld [vmem:[#allocation2 + $0x249] sm:$0xff]
  %v4550 = vld [vmem:[#allocation2 + $0x259] sm:$0xff]
  %v4551 = vld [vmem:[#allocation2 + $0x261] sm:$0xff]
  %v4552 = vld [vmem:[#allocation2 + $0x271] sm:$0xff]
  %v4553 = vld [vmem:[#allocation2 + $0x279] sm:$0xff]
  %v4554 = vld [vmem:[#allocation2 + $0x289] sm:$0xff]
  %v4555 = vld [vmem:[#allocation2 + $0x291] sm:$0xff]
  %v4556 = vld [vmem:[#allocation2 + $0x2a1] sm:$0xff]
  %v4557 = vld [vmem:[#allocation2 + $0x2a9] sm:$0xff]
  %v4558 = vld [vmem:[#allocation2 + $0x2b9] sm:$0xff]
  %v4559 = vld [vmem:[#allocation2 + $0x2c1] sm:$0xff]
  %v4560 = vld [vmem:[#allocation2 + $0x2d1] sm:$0xff]
  %v4561 = vld [vmem:[#allocation2 + $0x2d9] sm:$0xff]
  %v4562 = vld [vmem:[#allocation2 + $0x2e9] sm:$0xff]
  %v4563 = vld [vmem:[#allocation2 + $0x2f1] sm:$0xff]
  %v4564 = vld [vmem:[#allocation2 + $0x301] sm:$0xff]
  %v4565 = vld [vmem:[#allocation2 + $0x309] sm:$0xff]
  %v4566 = vld [vmem:[#allocation2 + $0x319] sm:$0xff]
  %v4567 = vld [vmem:[#allocation2 + $0x321] sm:$0xff]
  %v4568 = vld [vmem:[#allocation2 + $0x2] sm:$0xff]
  %v4569 = vld [vmem:[#allocation2 + $0xa] sm:$0xff]
  %v4570 = vld [vmem:[#allocation2 + $0x1a] sm:$0xff]
  %v4571 = vld [vmem:[#allocation2 + $0x22] sm:$0xff]
  %v4572 = vld [vmem:[#allocation2 + $0x32] sm:$0xff]
  %v4573 = vld [vmem:[#allocation2 + $0x3a] sm:$0xff]
  %v4574 = vld [vmem:[#allocation2 + $0x4a] sm:$0xff]
  %v4575 = vld [vmem:[#allocation2 + $0x52] sm:$0xff]
  %v4576 = vld [vmem:[#allocation2 + $0x62] sm:$0xff]
  %v4577 = vld [vmem:[#allocation2 + $0x6a] sm:$0xff]
  %v4578 = vld [vmem:[#allocation2 + $0x7a] sm:$0xff]
  %v4579 = vld [vmem:[#allocation2 + $0x82] sm:$0xff]
  %v4580 = vld [vmem:[#allocation2 + $0x92] sm:$0xff]
  %v4581 = vld [vmem:[#allocation2 + $0x9a] sm:$0xff]
  %v4582 = vld [vmem:[#allocation2 + $0xaa] sm:$0xff]
  %v4583 = vld [vmem:[#allocation2 + $0xb2] sm:$0xff]
  %v4584 = vld [vmem:[#allocation2 + $0xc2] sm:$0xff]
  %v4585 = vld [vmem:[#allocation2 + $0xca] sm:$0xff]
  %v4586 = vld [vmem:[#allocation2 + $0xda] sm:$0xff]
  %v4587 = vld [vmem:[#allocation2 + $0xe2] sm:$0xff]
  %v4588 = vld [vmem:[#allocation2 + $0xf2] sm:$0xff]
  %v4589 = vld [vmem:[#allocation2 + $0xfa] sm:$0xff]
  %v4590 = vld [vmem:[#allocation2 + $0x10a] sm:$0xff]
  %v4591 = vld [vmem:[#allocation2 + $0x112] sm:$0xff]
  %v4592 = vld [vmem:[#allocation2 + $0x122] sm:$0xff]
  %v4593 = vld [vmem:[#allocation2 + $0x12a] sm:$0xff]
  %v4594 = vld [vmem:[#allocation2 + $0x13a] sm:$0xff]
  %v4595 = vld [vmem:[#allocation2 + $0x142] sm:$0xff]
  %v4596 = vld [vmem:[#allocation2 + $0x152] sm:$0xff]
  %v4597 = vld [vmem:[#allocation2 + $0x15a] sm:$0xff]
  %v4598 = vld [vmem:[#allocation2 + $0x16a] sm:$0xff]
  %v4599 = vld [vmem:[#allocation2 + $0x172] sm:$0xff]
  %v4600 = vld [vmem:[#allocation2 + $0x1b2] sm:$0xff]
  %v4601 = vld [vmem:[#allocation2 + $0x1ba] sm:$0xff]
  %v4602 = vld [vmem:[#allocation2 + $0x1ca] sm:$0xff]
  %v4603 = vld [vmem:[#allocation2 + $0x1d2] sm:$0xff]
  %v4604 = vld [vmem:[#allocation2 + $0x1e2] sm:$0xff]
  %v4605 = vld [vmem:[#allocation2 + $0x1ea] sm:$0xff]
  %v4606 = vld [vmem:[#allocation2 + $0x1fa] sm:$0xff]
  %v4607 = vld [vmem:[#allocation2 + $0x202] sm:$0xff]
  %v4608 = vld [vmem:[#allocation2 + $0x212] sm:$0xff]
  %v4609 = vld [vmem:[#allocation2 + $0x21a] sm:$0xff]
  %v4610 = vld [vmem:[#allocation2 + $0x22a] sm:$0xff]
  %v4611 = vld [vmem:[#allocation2 + $0x232] sm:$0xff]
  %v4612 = vld [vmem:[#allocation2 + $0x242] sm:$0xff]
  %v4613 = vld [vmem:[#allocation2 + $0x24a] sm:$0xff]
  %v4614 = vld [vmem:[#allocation2 + $0x25a] sm:$0xff]
  %v4615 = vld [vmem:[#allocation2 + $0x262] sm:$0xff]
  %v4616 = vld [vmem:[#allocation2 + $0x272] sm:$0xff]
  %v4617 = vld [vmem:[#allocation2 + $0x27a] sm:$0xff]
  %v4618 = vld [vmem:[#allocation2 + $0x28a] sm:$0xff]
  %v4619 = vld [vmem:[#allocation2 + $0x292] sm:$0xff]
  %v4620 = vld [vmem:[#allocation2 + $0x2a2] sm:$0xff]
  %v4621 = vld [vmem:[#allocation2 + $0x2aa] sm:$0xff]
  %v4622 = vld [vmem:[#allocation2 + $0x2ba] sm:$0xff]
  %v4623 = vld [vmem:[#allocation2 + $0x2c2] sm:$0xff]
  %v4624 = vld [vmem:[#allocation2 + $0x2d2] sm:$0xff]
  %v4625 = vld [vmem:[#allocation2 + $0x2da] sm:$0xff]
  %v4626 = vld [vmem:[#allocation2 + $0x2ea] sm:$0xff]
  %v4627 = vld [vmem:[#allocation2 + $0x2f2] sm:$0xff]
  %v4628 = vld [vmem:[#allocation2 + $0x302] sm:$0xff]
  %v4629 = vld [vmem:[#allocation2 + $0x30a] sm:$0xff]
  %v4630 = vld [vmem:[#allocation2 + $0x31a] sm:$0xff]
  %v4631 = vld [vmem:[#allocation2 + $0x322] sm:$0xff]
  %v4632 = vld [vmem:[%s178] sm:$0xff]
  %v4633 = vld [vmem:[%s178 + $0x8] sm:$0xff]
  %v4634 = vld [vmem:[%s178 + $0x18] sm:$0xff]
  %v4635 = vld [vmem:[%s178 + $0x20] sm:$0xff]
  %v4636 = vld [vmem:[%s178 + $0x30] sm:$0xff]
  %v4637 = vld [vmem:[%s178 + $0x38] sm:$0xff]
  %v4638 = vld [vmem:[%s178 + $0x48] sm:$0xff]
  %v4639 = vld [vmem:[%s178 + $0x50] sm:$0xff]
  %v4640 = vld [vmem:[%s178 + $0x60] sm:$0xff]
  %v4641 = vld [vmem:[%s178 + $0x68] sm:$0xff]
  %v4642 = vld [vmem:[%s178 + $0x78] sm:$0xff]
  %v4643 = vld [vmem:[%s178 + $0x80] sm:$0xff]
  %v4644 = vld [vmem:[%s178 + $0x90] sm:$0xff]
  %v4645 = vld [vmem:[%s178 + $0x98] sm:$0xff]
  %v4646 = vld [vmem:[%s178 + $0xa8] sm:$0xff]
  %v4647 = vld [vmem:[%s178 + $0xb0] sm:$0xff]
  %v4648 = vld [vmem:[%s178 + $0xc0] sm:$0xff]
  %v4649 = vld [vmem:[%s178 + $0xc8] sm:$0xff]
  %v4650 = vld [vmem:[%s178 + $0xd8] sm:$0xff]
  %v4651 = vld [vmem:[%s178 + $0xe0] sm:$0xff]
  %v4652 = vld [vmem:[%s178 + $0xf0] sm:$0xff]
  %v4653 = vld [vmem:[%s178 + $0xf8] sm:$0xff]
  %v4654 = vld [vmem:[%s178 + $0x108] sm:$0xff]
  %v4655 = vld [vmem:[%s178 + $0x110] sm:$0xff]
  %v4656 = vld [vmem:[%s178 + $0x120] sm:$0xff]
  %v4657 = vld [vmem:[%s178 + $0x128] sm:$0xff]
  %v4658 = vld [vmem:[%s178 + $0x138] sm:$0xff]
  %v4659 = vld [vmem:[%s178 + $0x140] sm:$0xff]
  %v4660 = vld [vmem:[%s178 + $0x150] sm:$0xff]
  %v4661 = vld [vmem:[%s178 + $0x158] sm:$0xff]
  %v4662 = vld [vmem:[%s178 + $0x168] sm:$0xff]
  %v4663 = vld [vmem:[%s178 + $0x170] sm:$0xff]
  %v4664 = vld [vmem:[%s178 + $0x1b0] sm:$0xff]
  %v4665 = vld [vmem:[%s178 + $0x1b8] sm:$0xff]
  %v4666 = vld [vmem:[%s178 + $0x1c8] sm:$0xff]
  %v4667 = vld [vmem:[%s178 + $0x1d0] sm:$0xff]
  %v4668 = vld [vmem:[%s178 + $0x1e0] sm:$0xff]
  %v4669 = vld [vmem:[%s178 + $0x1e8] sm:$0xff]
  %v4670 = vld [vmem:[%s178 + $0x1f8] sm:$0xff]
  %v4671 = vld [vmem:[%s178 + $0x200] sm:$0xff]
  %v4672 = vld [vmem:[%s178 + $0x210] sm:$0xff]
  %v4673 = vld [vmem:[%s178 + $0x218] sm:$0xff]
  %v4674 = vld [vmem:[%s178 + $0x228] sm:$0xff]
  %v4675 = vld [vmem:[%s178 + $0x230] sm:$0xff]
  %v4676 = vld [vmem:[%s178 + $0x240] sm:$0xff]
  %v4677 = vld [vmem:[%s178 + $0x248] sm:$0xff]
  %v4678 = vld [vmem:[%s178 + $0x258] sm:$0xff]
  %v4679 = vld [vmem:[%s178 + $0x260] sm:$0xff]
  %v4680 = vld [vmem:[%s178 + $0x270] sm:$0xff]
  %v4681 = vld [vmem:[%s178 + $0x278] sm:$0xff]
  %v4682 = vld [vmem:[%s178 + $0x288] sm:$0xff]
  %v4683 = vld [vmem:[%s178 + $0x290] sm:$0xff]
  %v4684 = vld [vmem:[%s178 + $0x2a0] sm:$0xff]
  %v4685 = vld [vmem:[%s178 + $0x2a8] sm:$0xff]
  %v4686 = vld [vmem:[%s178 + $0x2b8] sm:$0xff]
  %v4687 = vld [vmem:[%s178 + $0x2c0] sm:$0xff]
  %v4688 = vld [vmem:[%s178 + $0x2d0] sm:$0xff]
  %v4689 = vld [vmem:[%s178 + $0x2d8] sm:$0xff]
  %v4690 = vld [vmem:[%s178 + $0x2e8] sm:$0xff]
  %v4691 = vld [vmem:[%s178 + $0x2f0] sm:$0xff]
  %v4692 = vld [vmem:[%s178 + $0x300] sm:$0xff]
  %v4693 = vld [vmem:[%s178 + $0x308] sm:$0xff]
  %v4694 = vld [vmem:[%s178 + $0x318] sm:$0xff]
  %v4695 = vld [vmem:[%s178 + $0x320] sm:$0xff]
  %v4696 = vld [vmem:[%s178 + $0x1] sm:$0xff]
  %v4697 = vld [vmem:[%s178 + $0x9] sm:$0xff]
  %v4698 = vld [vmem:[%s178 + $0x19] sm:$0xff]
  %v4699 = vld [vmem:[%s178 + $0x21] sm:$0xff]
  %v4700 = vld [vmem:[%s178 + $0x31] sm:$0xff]
  %v4701 = vld [vmem:[%s178 + $0x39] sm:$0xff]
  %v4702 = vld [vmem:[%s178 + $0x49] sm:$0xff]
  %v4703 = vld [vmem:[%s178 + $0x51] sm:$0xff]
  %v4704 = vld [vmem:[%s178 + $0x61] sm:$0xff]
  %v4705 = vld [vmem:[%s178 + $0x69] sm:$0xff]
  %v4706 = vld [vmem:[%s178 + $0x79] sm:$0xff]
  %v4707 = vld [vmem:[%s178 + $0x81] sm:$0xff]
  %v4708 = vld [vmem:[%s178 + $0x91] sm:$0xff]
  %v4709 = vld [vmem:[%s178 + $0x99] sm:$0xff]
  %v4710 = vld [vmem:[%s178 + $0xa9] sm:$0xff]
  %v4711 = vld [vmem:[%s178 + $0xb1] sm:$0xff]
  %v4712 = vld [vmem:[%s178 + $0xc1] sm:$0xff]
  %v4713 = vld [vmem:[%s178 + $0xc9] sm:$0xff]
  %v4714 = vld [vmem:[%s178 + $0xd9] sm:$0xff]
  %v4715 = vld [vmem:[%s178 + $0xe1] sm:$0xff]
  %v4716 = vld [vmem:[%s178 + $0xf1] sm:$0xff]
  %v4717 = vld [vmem:[%s178 + $0xf9] sm:$0xff]
  %v4718 = vld [vmem:[%s178 + $0x109] sm:$0xff]
  %v4719 = vld [vmem:[%s178 + $0x111] sm:$0xff]
  %v4720 = vld [vmem:[%s178 + $0x121] sm:$0xff]
  %v4721 = vld [vmem:[%s178 + $0x129] sm:$0xff]
  %v4722 = vld [vmem:[%s178 + $0x139] sm:$0xff]
  %v4723 = vld [vmem:[%s178 + $0x141] sm:$0xff]
  %v4724 = vld [vmem:[%s178 + $0x151] sm:$0xff]
  %v4725 = vld [vmem:[%s178 + $0x159] sm:$0xff]
  %v4726 = vld [vmem:[%s178 + $0x169] sm:$0xff]
  %v4727 = vld [vmem:[%s178 + $0x171] sm:$0xff]
  %v4728 = vld [vmem:[%s178 + $0x1b1] sm:$0xff]
  %v4729 = vld [vmem:[%s178 + $0x1b9] sm:$0xff]
  %v4730 = vld [vmem:[%s178 + $0x1c9] sm:$0xff]
  %v4731 = vld [vmem:[%s178 + $0x1d1] sm:$0xff]
  %v4732 = vld [vmem:[%s178 + $0x1e1] sm:$0xff]
  %v4733 = vld [vmem:[%s178 + $0x1e9] sm:$0xff]
  %v4734 = vld [vmem:[%s178 + $0x1f9] sm:$0xff]
  %v4735 = vld [vmem:[%s178 + $0x201] sm:$0xff]
  %v4736 = vld [vmem:[%s178 + $0x211] sm:$0xff]
  %v4737 = vld [vmem:[%s178 + $0x219] sm:$0xff]
  %v4738 = vld [vmem:[%s178 + $0x229] sm:$0xff]
  %v4739 = vld [vmem:[%s178 + $0x231] sm:$0xff]
  %v4740 = vld [vmem:[%s178 + $0x241] sm:$0xff]
  %v4741 = vld [vmem:[%s178 + $0x249] sm:$0xff]
  %v4742 = vld [vmem:[%s178 + $0x259] sm:$0xff]
  %v4743 = vld [vmem:[%s178 + $0x261] sm:$0xff]
  %v4744 = vld [vmem:[%s178 + $0x271] sm:$0xff]
  %v4745 = vld [vmem:[%s178 + $0x279] sm:$0xff]
  %v4746 = vld [vmem:[%s178 + $0x289] sm:$0xff]
  %v4747 = vld [vmem:[%s178 + $0x291] sm:$0xff]
  %v4748 = vld [vmem:[%s178 + $0x2a1] sm:$0xff]
  %v4749 = vld [vmem:[%s178 + $0x2a9] sm:$0xff]
  %v4750 = vld [vmem:[%s178 + $0x2b9] sm:$0xff]
  %v4751 = vld [vmem:[%s178 + $0x2c1] sm:$0xff]
  %v4752 = vld [vmem:[%s178 + $0x2d1] sm:$0xff]
  %v4753 = vld [vmem:[%s178 + $0x2d9] sm:$0xff]
  %v4754 = vld [vmem:[%s178 + $0x2e9] sm:$0xff]
  %v4755 = vld [vmem:[%s178 + $0x2f1] sm:$0xff]
  %v4756 = vld [vmem:[%s178 + $0x301] sm:$0xff]
  %v4757 = vld [vmem:[%s178 + $0x309] sm:$0xff]
  %v4758 = vld [vmem:[%s178 + $0x319] sm:$0xff]
  %v4759 = vld [vmem:[%s178 + $0x321] sm:$0xff]
  %v4760 = vld [vmem:[%s178 + $0x2] sm:$0xff]
  %v4761 = vld [vmem:[%s178 + $0xa] sm:$0xff]
  %v4762 = vld [vmem:[%s178 + $0x1a] sm:$0xff]
  %v4763 = vld [vmem:[%s178 + $0x22] sm:$0xff]
  %v4764 = vld [vmem:[%s178 + $0x32] sm:$0xff]
  %v4765 = vld [vmem:[%s178 + $0x3a] sm:$0xff]
  %v4766 = vld [vmem:[%s178 + $0x4a] sm:$0xff]
  %v4767 = vld [vmem:[%s178 + $0x52] sm:$0xff]
  %v4768 = vld [vmem:[%s178 + $0x62] sm:$0xff]
  %v4769 = vld [vmem:[%s178 + $0x6a] sm:$0xff]
  %v4770 = vld [vmem:[%s178 + $0x7a] sm:$0xff]
  %v4771 = vld [vmem:[%s178 + $0x82] sm:$0xff]
  %v4772 = vld [vmem:[%s178 + $0x92] sm:$0xff]
  %v4773 = vld [vmem:[%s178 + $0x9a] sm:$0xff]
  %v4774 = vld [vmem:[%s178 + $0xaa] sm:$0xff]
  %v4775 = vld [vmem:[%s178 + $0xb2] sm:$0xff]
  %v4776 = vld [vmem:[%s178 + $0xc2] sm:$0xff]
  %v4777 = vld [vmem:[%s178 + $0xca] sm:$0xff]
  %v4778 = vld [vmem:[%s178 + $0xda] sm:$0xff]
  %v4779 = vld [vmem:[%s178 + $0xe2] sm:$0xff]
  %v4780 = vld [vmem:[%s178 + $0xf2] sm:$0xff]
  %v4781 = vld [vmem:[%s178 + $0xfa] sm:$0xff]
  %v4782 = vld [vmem:[%s178 + $0x10a] sm:$0xff]
  %v4783 = vld [vmem:[%s178 + $0x112] sm:$0xff]
  %v4784 = vld [vmem:[%s178 + $0x122] sm:$0xff]
  %v4785 = vld [vmem:[%s178 + $0x12a] sm:$0xff]
  %v4786 = vld [vmem:[%s178 + $0x13a] sm:$0xff]
  %v4787 = vld [vmem:[%s178 + $0x142] sm:$0xff]
  %v4788 = vld [vmem:[%s178 + $0x152] sm:$0xff]
  %v4789 = vld [vmem:[%s178 + $0x15a] sm:$0xff]
  %v4790 = vld [vmem:[%s178 + $0x16a] sm:$0xff]
  %v4791 = vld [vmem:[%s178 + $0x172] sm:$0xff]
  %v4792 = vld [vmem:[%s178 + $0x1b2] sm:$0xff]
  %v4793 = vld [vmem:[%s178 + $0x1ba] sm:$0xff]
  %v4794 = vld [vmem:[%s178 + $0x1ca] sm:$0xff]
  %v4795 = vld [vmem:[%s178 + $0x1d2] sm:$0xff]
  %v4796 = vld [vmem:[%s178 + $0x1e2] sm:$0xff]
  %v4797 = vld [vmem:[%s178 + $0x1ea] sm:$0xff]
  %v4798 = vld [vmem:[%s178 + $0x1fa] sm:$0xff]
  %v4799 = vld [vmem:[%s178 + $0x202] sm:$0xff]
  %v4800 = vld [vmem:[%s178 + $0x212] sm:$0xff]
  %v4801 = vld [vmem:[%s178 + $0x21a] sm:$0xff]
  %v4802 = vld [vmem:[%s178 + $0x22a] sm:$0xff]
  %v4803 = vld [vmem:[%s178 + $0x232] sm:$0xff]
  %v4804 = vld [vmem:[%s178 + $0x242] sm:$0xff]
  %v4805 = vld [vmem:[%s178 + $0x24a] sm:$0xff]
  %v4806 = vld [vmem:[%s178 + $0x25a] sm:$0xff]
  %v4807 = vld [vmem:[%s178 + $0x262] sm:$0xff]
  %v4808 = vld [vmem:[%s178 + $0x272] sm:$0xff]
  %v4809 = vld [vmem:[%s178 + $0x27a] sm:$0xff]
  %v4810 = vld [vmem:[%s178 + $0x28a] sm:$0xff]
  %v4811 = vld [vmem:[%s178 + $0x292] sm:$0xff]
  %v4812 = vld [vmem:[%s178 + $0x2a2] sm:$0xff]
  %v4813 = vld [vmem:[%s178 + $0x2aa] sm:$0xff]
  %v4814 = vld [vmem:[%s178 + $0x2ba] sm:$0xff]
  %v4815 = vld [vmem:[%s178 + $0x2c2] sm:$0xff]
  %v4816 = vld [vmem:[%s178 + $0x2d2] sm:$0xff]
  %v4817 = vld [vmem:[%s178 + $0x2da] sm:$0xff]
  %v4818 = vld [vmem:[%s178 + $0x2ea] sm:$0xff]
  %v4819 = vld [vmem:[%s178 + $0x2f2] sm:$0xff]
  %v4820 = vld [vmem:[%s178 + $0x302] sm:$0xff]
  %v4821 = vld [vmem:[%s178 + $0x30a] sm:$0xff]
  %v4822 = vld [vmem:[%s178 + $0x31a] sm:$0xff]
  %v4823 = vld [vmem:[%s178 + $0x322] sm:$0xff]
  %v4824 = vld [vmem:[%s628] sm:$0xff]
  %v4825 = vld [vmem:[%s628 + $0x8] sm:$0xff]
  %v4826 = vld [vmem:[%s628 + $0x18] sm:$0xff]
  %v4827 = vld [vmem:[%s628 + $0x20] sm:$0xff]
  %v4828 = vld [vmem:[%s628 + $0x30] sm:$0xff]
  %v4829 = vld [vmem:[%s628 + $0x38] sm:$0xff]
  %v4830 = vld [vmem:[%s628 + $0x48] sm:$0xff]
  %v4831 = vld [vmem:[%s628 + $0x50] sm:$0xff]
  %v4832 = vld [vmem:[%s628 + $0x60] sm:$0xff]
  %v4833 = vld [vmem:[%s628 + $0x68] sm:$0xff]
  %v4834 = vld [vmem:[%s628 + $0x78] sm:$0xff]
  %v4835 = vld [vmem:[%s628 + $0x80] sm:$0xff]
  %v4836 = vld [vmem:[%s628 + $0x90] sm:$0xff]
  %v4837 = vld [vmem:[%s628 + $0x98] sm:$0xff]
  %v4838 = vld [vmem:[%s628 + $0xa8] sm:$0xff]
  %v4839 = vld [vmem:[%s628 + $0xb0] sm:$0xff]
  %v4840 = vld [vmem:[%s628 + $0xc0] sm:$0xff]
  %v4841 = vld [vmem:[%s628 + $0xc8] sm:$0xff]
  %v4842 = vld [vmem:[%s628 + $0xd8] sm:$0xff]
  %v4843 = vld [vmem:[%s628 + $0xe0] sm:$0xff]
  %v4844 = vld [vmem:[%s628 + $0xf0] sm:$0xff]
  %v4845 = vld [vmem:[%s628 + $0xf8] sm:$0xff]
  %v4846 = vld [vmem:[%s628 + $0x108] sm:$0xff]
  %v4847 = vld [vmem:[%s628 + $0x110] sm:$0xff]
  %v4848 = vld [vmem:[%s628 + $0x120] sm:$0xff]
  %v4849 = vld [vmem:[%s628 + $0x128] sm:$0xff]
  %v4850 = vld [vmem:[%s628 + $0x138] sm:$0xff]
  %v4851 = vld [vmem:[%s628 + $0x140] sm:$0xff]
  %v4852 = vld [vmem:[%s628 + $0x150] sm:$0xff]
  %v4853 = vld [vmem:[%s628 + $0x158] sm:$0xff]
  %v4854 = vld [vmem:[%s628 + $0x168] sm:$0xff]
  %v4855 = vld [vmem:[%s628 + $0x170] sm:$0xff]
  %v4856 = vld [vmem:[%s628 + $0x1b0] sm:$0xff]
  %v4857 = vld [vmem:[%s628 + $0x1b8] sm:$0xff]
  %v4858 = vld [vmem:[%s628 + $0x1c8] sm:$0xff]
  %v4859 = vld [vmem:[%s628 + $0x1d0] sm:$0xff]
  %v4860 = vld [vmem:[%s628 + $0x1e0] sm:$0xff]
  %v4861 = vld [vmem:[%s628 + $0x1e8] sm:$0xff]
  %v4862 = vld [vmem:[%s628 + $0x1f8] sm:$0xff]
  %v4863 = vld [vmem:[%s628 + $0x200] sm:$0xff]
  %v4864 = vld [vmem:[%s628 + $0x210] sm:$0xff]
  %v4865 = vld [vmem:[%s628 + $0x218] sm:$0xff]
  %v4866 = vld [vmem:[%s628 + $0x228] sm:$0xff]
  %v4867 = vld [vmem:[%s628 + $0x230] sm:$0xff]
  %v4868 = vld [vmem:[%s628 + $0x240] sm:$0xff]
  %v4869 = vld [vmem:[%s628 + $0x248] sm:$0xff]
  %v4870 = vld [vmem:[%s628 + $0x258] sm:$0xff]
  %v4871 = vld [vmem:[%s628 + $0x260] sm:$0xff]
  %v4872 = vld [vmem:[%s628 + $0x270] sm:$0xff]
  %v4873 = vld [vmem:[%s628 + $0x278] sm:$0xff]
  %v4874 = vld [vmem:[%s628 + $0x288] sm:$0xff]
  %v4875 = vld [vmem:[%s628 + $0x290] sm:$0xff]
  %v4876 = vld [vmem:[%s628 + $0x2a0] sm:$0xff]
  %v4877 = vld [vmem:[%s628 + $0x2a8] sm:$0xff]
  %v4878 = vld [vmem:[%s628 + $0x2b8] sm:$0xff]
  %v4879 = vld [vmem:[%s628 + $0x2c0] sm:$0xff]
  %v4880 = vld [vmem:[%s628 + $0x2d0] sm:$0xff]
  %v4881 = vld [vmem:[%s628 + $0x2d8] sm:$0xff]
  %v4882 = vld [vmem:[%s628 + $0x2e8] sm:$0xff]
  %v4883 = vld [vmem:[%s628 + $0x2f0] sm:$0xff]
  %v4884 = vld [vmem:[%s628 + $0x300] sm:$0xff]
  %v4885 = vld [vmem:[%s628 + $0x308] sm:$0xff]
  %v4886 = vld [vmem:[%s628 + $0x318] sm:$0xff]
  %v4887 = vld [vmem:[%s628 + $0x320] sm:$0xff]
  %v4888 = vld [vmem:[%s628 + $0x1] sm:$0xff]
  %v4889 = vld [vmem:[%s628 + $0x9] sm:$0xff]
  %v4890 = vld [vmem:[%s628 + $0x19] sm:$0xff]
  %v4891 = vld [vmem:[%s628 + $0x21] sm:$0xff]
  %v4892 = vld [vmem:[%s628 + $0x31] sm:$0xff]
  %v4893 = vld [vmem:[%s628 + $0x39] sm:$0xff]
  %v4894 = vld [vmem:[%s628 + $0x49] sm:$0xff]
  %v4895 = vld [vmem:[%s628 + $0x51] sm:$0xff]
  %v4896 = vld [vmem:[%s628 + $0x61] sm:$0xff]
  %v4897 = vld [vmem:[%s628 + $0x69] sm:$0xff]
  %v4898 = vld [vmem:[%s628 + $0x79] sm:$0xff]
  %v4899 = vld [vmem:[%s628 + $0x81] sm:$0xff]
  %v4900 = vld [vmem:[%s628 + $0x91] sm:$0xff]
  %v4901 = vld [vmem:[%s628 + $0x99] sm:$0xff]
  %v4902 = vld [vmem:[%s628 + $0xa9] sm:$0xff]
  %v4903 = vld [vmem:[%s628 + $0xb1] sm:$0xff]
  %v4904 = vld [vmem:[%s628 + $0xc1] sm:$0xff]
  %v4905 = vld [vmem:[%s628 + $0xc9] sm:$0xff]
  %v4906 = vld [vmem:[%s628 + $0xd9] sm:$0xff]
  %v4907 = vld [vmem:[%s628 + $0xe1] sm:$0xff]
  %v4908 = vld [vmem:[%s628 + $0xf1] sm:$0xff]
  %v4909 = vld [vmem:[%s628 + $0xf9] sm:$0xff]
  %v4910 = vld [vmem:[%s628 + $0x109] sm:$0xff]
  %v4911 = vld [vmem:[%s628 + $0x111] sm:$0xff]
  %v4912 = vld [vmem:[%s628 + $0x121] sm:$0xff]
  %v4913 = vld [vmem:[%s628 + $0x129] sm:$0xff]
  %v4914 = vld [vmem:[%s628 + $0x139] sm:$0xff]
  %v4915 = vld [vmem:[%s628 + $0x141] sm:$0xff]
  %v4916 = vld [vmem:[%s628 + $0x151] sm:$0xff]
  %v4917 = vld [vmem:[%s628 + $0x159] sm:$0xff]
  %v4918 = vld [vmem:[%s628 + $0x169] sm:$0xff]
  %v4919 = vld [vmem:[%s628 + $0x171] sm:$0xff]
  %v4920 = vld [vmem:[%s628 + $0x1b1] sm:$0xff]
  %v4921 = vld [vmem:[%s628 + $0x1b9] sm:$0xff]
  %v4922 = vld [vmem:[%s628 + $0x1c9] sm:$0xff]
  %v4923 = vld [vmem:[%s628 + $0x1d1] sm:$0xff]
  %v4924 = vld [vmem:[%s628 + $0x1e1] sm:$0xff]
  %v4925 = vld [vmem:[%s628 + $0x1e9] sm:$0xff]
  %v4926 = vld [vmem:[%s628 + $0x1f9] sm:$0xff]
  %v4927 = vld [vmem:[%s628 + $0x201] sm:$0xff]
  %v4928 = vld [vmem:[%s628 + $0x211] sm:$0xff]
  %v4929 = vld [vmem:[%s628 + $0x219] sm:$0xff]
  %v4930 = vld [vmem:[%s628 + $0x229] sm:$0xff]
  %v4931 = vld [vmem:[%s628 + $0x231] sm:$0xff]
  %v4932 = vld [vmem:[%s628 + $0x241] sm:$0xff]
  %v4933 = vld [vmem:[%s628 + $0x249] sm:$0xff]
  %v4934 = vld [vmem:[%s628 + $0x259] sm:$0xff]
  %v4935 = vld [vmem:[%s628 + $0x261] sm:$0xff]
  %v4936 = vld [vmem:[%s628 + $0x271] sm:$0xff]
  %v4937 = vld [vmem:[%s628 + $0x279] sm:$0xff]
  %v4938 = vld [vmem:[%s628 + $0x289] sm:$0xff]
  %v4939 = vld [vmem:[%s628 + $0x291] sm:$0xff]
  %v4940 = vld [vmem:[%s628 + $0x2a1] sm:$0xff]
  %v4941 = vld [vmem:[%s628 + $0x2a9] sm:$0xff]
  %v4942 = vld [vmem:[%s628 + $0x2b9] sm:$0xff]
  %v4943 = vld [vmem:[%s628 + $0x2c1] sm:$0xff]
  %v4944 = vld [vmem:[%s628 + $0x2d1] sm:$0xff]
  %v4945 = vld [vmem:[%s628 + $0x2d9] sm:$0xff]
  %v4946 = vld [vmem:[%s628 + $0x2e9] sm:$0xff]
  %v4947 = vld [vmem:[%s628 + $0x2f1] sm:$0xff]
  %v4948 = vld [vmem:[%s628 + $0x301] sm:$0xff]
  %v4949 = vld [vmem:[%s628 + $0x309] sm:$0xff]
  %v4950 = vld [vmem:[%s628 + $0x319] sm:$0xff]
  %v4951 = vld [vmem:[%s628 + $0x321] sm:$0xff]
  %v4952 = vld [vmem:[%s628 + $0x2] sm:$0xff]
  %v4953 = vld [vmem:[%s628 + $0xa] sm:$0xff]
  %v4954 = vld [vmem:[%s628 + $0x1a] sm:$0xff]
  %v4955 = vld [vmem:[%s628 + $0x22] sm:$0xff]
  %v4956 = vld [vmem:[%s628 + $0x32] sm:$0xff]
  %v4957 = vld [vmem:[%s628 + $0x3a] sm:$0xff]
  %v4958 = vld [vmem:[%s628 + $0x4a] sm:$0xff]
  %v4959 = vld [vmem:[%s628 + $0x52] sm:$0xff]
  %v4960 = vld [vmem:[%s628 + $0x62] sm:$0xff]
  %v4961 = vld [vmem:[%s628 + $0x6a] sm:$0xff]
  %v4962 = vld [vmem:[%s628 + $0x7a] sm:$0xff]
  %v4963 = vld [vmem:[%s628 + $0x82] sm:$0xff]
  %v4964 = vld [vmem:[%s628 + $0x92] sm:$0xff]
  %v4965 = vld [vmem:[%s628 + $0x9a] sm:$0xff]
  %v4966 = vld [vmem:[%s628 + $0xaa] sm:$0xff]
  %v4967 = vld [vmem:[%s628 + $0xb2] sm:$0xff]
  %v4968 = vld [vmem:[%s628 + $0xc2] sm:$0xff]
  %v4969 = vld [vmem:[%s628 + $0xca] sm:$0xff]
  %v4970 = vld [vmem:[%s628 + $0xda] sm:$0xff]
  %v4971 = vld [vmem:[%s628 + $0xe2] sm:$0xff]
  %v4972 = vld [vmem:[%s628 + $0xf2] sm:$0xff]
  %v4973 = vld [vmem:[%s628 + $0xfa] sm:$0xff]
  %v4974 = vld [vmem:[%s628 + $0x10a] sm:$0xff]
  %v4975 = vld [vmem:[%s628 + $0x112] sm:$0xff]
  %v4976 = vld [vmem:[%s628 + $0x122] sm:$0xff]
  %v4977 = vld [vmem:[%s628 + $0x12a] sm:$0xff]
  %v4978 = vld [vmem:[%s628 + $0x13a] sm:$0xff]
  %v4979 = vld [vmem:[%s628 + $0x142] sm:$0xff]
  %v4980 = vld [vmem:[%s628 + $0x152] sm:$0xff]
  %v4981 = vld [vmem:[%s628 + $0x15a] sm:$0xff]
  %v4982 = vld [vmem:[%s628 + $0x16a] sm:$0xff]
  %v4983 = vld [vmem:[%s628 + $0x172] sm:$0xff]
  %v4984 = vld [vmem:[%s628 + $0x1b2] sm:$0xff]
  %v4985 = vld [vmem:[%s628 + $0x1ba] sm:$0xff]
  %v4986 = vld [vmem:[%s628 + $0x1ca] sm:$0xff]
  %v4987 = vld [vmem:[%s628 + $0x1d2] sm:$0xff]
  %v4988 = vld [vmem:[%s628 + $0x1e2] sm:$0xff]
  %v4989 = vld [vmem:[%s628 + $0x1ea] sm:$0xff]
  %v4990 = vld [vmem:[%s628 + $0x1fa] sm:$0xff]
  %v4991 = vld [vmem:[%s628 + $0x202] sm:$0xff]
  %v4992 = vld [vmem:[%s628 + $0x212] sm:$0xff]
  %v4993 = vld [vmem:[%s628 + $0x21a] sm:$0xff]
  %v4994 = vld [vmem:[%s628 + $0x22a] sm:$0xff]
  %v4995 = vld [vmem:[%s628 + $0x232] sm:$0xff]
  %v4996 = vld [vmem:[%s628 + $0x242] sm:$0xff]
  %v4997 = vld [vmem:[%s628 + $0x24a] sm:$0xff]
  %v4998 = vld [vmem:[%s628 + $0x25a] sm:$0xff]
  %v4999 = vld [vmem:[%s628 + $0x262] sm:$0xff]
  %v5000 = vld [vmem:[%s628 + $0x272] sm:$0xff]
  %v5001 = vld [vmem:[%s628 + $0x27a] sm:$0xff]
  %v5002 = vld [vmem:[%s628 + $0x28a] sm:$0xff]
  %v5003 = vld [vmem:[%s628 + $0x292] sm:$0xff]
  %v5004 = vld [vmem:[%s628 + $0x2a2] sm:$0xff]
  %v5005 = vld [vmem:[%s628 + $0x2aa] sm:$0xff]
  %v5006 = vld [vmem:[%s628 + $0x2ba] sm:$0xff]
  %v5007 = vld [vmem:[%s628 + $0x2c2] sm:$0xff]
  %v5008 = vld [vmem:[%s628 + $0x2d2] sm:$0xff]
  %v5009 = vld [vmem:[%s628 + $0x2da] sm:$0xff]
  %v5010 = vld [vmem:[%s628 + $0x2ea] sm:$0xff]
  %v5011 = vld [vmem:[%s628 + $0x2f2] sm:$0xff]
  %v5012 = vld [vmem:[%s628 + $0x302] sm:$0xff]
  %v5013 = vld [vmem:[%s628 + $0x30a] sm:$0xff]
  %v5014 = vld [vmem:[%s628 + $0x31a] sm:$0xff]
  %v5015 = vld [vmem:[%s628 + $0x322] sm:$0xff]
  %5080 = vrot.lane.b32.xlu0 %v4504, 8
  %v5081 = vpop.permute.xlu0 %5080
  %5082 = vrot.lane.b32.xlu0 %v4505, 8
  %v5083 = vpop.permute.xlu0 %5082
  %5084 = vrot.lane.b32.xlu0 %v4506, 8
  %v5085 = vpop.permute.xlu0 %5084
  %5086 = vrot.lane.b32.xlu0 %v4507, 8
  %v5087 = vpop.permute.xlu0 %5086
  %5088 = vrot.lane.b32.xlu0 %v4508, 8
  %v5089 = vpop.permute.xlu0 %5088
  %5090 = vrot.lane.b32.xlu0 %v4509, 8
  %v5091 = vpop.permute.xlu0 %5090
  %5092 = vrot.lane.b32.xlu0 %v4510, 8
  %v5093 = vpop.permute.xlu0 %5092
  %5094 = vrot.lane.b32.xlu0 %v4511, 8
  %v5095 = vpop.permute.xlu0 %5094
  %5096 = vrot.lane.b32.xlu0 %v4512, 8
  %v5097 = vpop.permute.xlu0 %5096
  %5098 = vrot.lane.b32.xlu0 %v4513, 8
  %v5099 = vpop.permute.xlu0 %5098
  %5100 = vrot.lane.b32.xlu0 %v4514, 8
  %v5101 = vpop.permute.xlu0 %5100
  %5102 = vrot.lane.b32.xlu0 %v4515, 8
  %v5103 = vpop.permute.xlu0 %5102
  %5104 = vrot.lane.b32.xlu0 %v4516, 8
  %v5105 = vpop.permute.xlu0 %5104
  %5106 = vrot.lane.b32.xlu0 %v4517, 8
  %v5107 = vpop.permute.xlu0 %5106
  %5108 = vrot.lane.b32.xlu0 %v4518, 8
  %v5109 = vpop.permute.xlu0 %5108
  %5110 = vrot.lane.b32.xlu0 %v4519, 8
  %v5111 = vpop.permute.xlu0 %5110
  %5112 = vrot.lane.b32.xlu0 %v4520, 8
  %v5113 = vpop.permute.xlu0 %5112
  %5114 = vrot.lane.b32.xlu0 %v4521, 8
  %v5115 = vpop.permute.xlu0 %5114
  %5116 = vrot.lane.b32.xlu0 %v4522, 8
  %v5117 = vpop.permute.xlu0 %5116
  %5118 = vrot.lane.b32.xlu0 %v4523, 8
  %v5119 = vpop.permute.xlu0 %5118
  %5120 = vrot.lane.b32.xlu0 %v4524, 8
  %v5121 = vpop.permute.xlu0 %5120
  %5122 = vrot.lane.b32.xlu0 %v4525, 8
  %v5123 = vpop.permute.xlu0 %5122
  %5124 = vrot.lane.b32.xlu0 %v4526, 8
  %v5125 = vpop.permute.xlu0 %5124
  %5126 = vrot.lane.b32.xlu0 %v4527, 8
  %v5127 = vpop.permute.xlu0 %5126
  %5128 = vrot.lane.b32.xlu0 %v4528, 8
  %v5129 = vpop.permute.xlu0 %5128
  %5130 = vrot.lane.b32.xlu0 %v4529, 8
  %v5131 = vpop.permute.xlu0 %5130
  %5132 = vrot.lane.b32.xlu0 %v4530, 8
  %v5133 = vpop.permute.xlu0 %5132
  %5134 = vrot.lane.b32.xlu0 %v4531, 8
  %v5135 = vpop.permute.xlu0 %5134
  %5136 = vrot.lane.b32.xlu0 %v4532, 8
  %v5137 = vpop.permute.xlu0 %5136
  %5138 = vrot.lane.b32.xlu0 %v4533, 8
  %v5139 = vpop.permute.xlu0 %5138
  %5140 = vrot.lane.b32.xlu0 %v4534, 8
  %v5141 = vpop.permute.xlu0 %5140
  %5142 = vrot.lane.b32.xlu0 %v4535, 8
  %v5143 = vpop.permute.xlu0 %5142
  %5144 = vrot.lane.b32.xlu0 %v4536, 8
  %v5145 = vpop.permute.xlu0 %5144
  %5146 = vrot.lane.b32.xlu0 %v4537, 8
  %v5147 = vpop.permute.xlu0 %5146
  %5148 = vrot.lane.b32.xlu0 %v4538, 8
  %v5149 = vpop.permute.xlu0 %5148
  %5150 = vrot.lane.b32.xlu0 %v4539, 8
  %v5151 = vpop.permute.xlu0 %5150
  %5152 = vrot.lane.b32.xlu0 %v4540, 8
  %v5153 = vpop.permute.xlu0 %5152
  %5154 = vrot.lane.b32.xlu0 %v4541, 8
  %v5155 = vpop.permute.xlu0 %5154
  %5156 = vrot.lane.b32.xlu0 %v4542, 8
  %v5157 = vpop.permute.xlu0 %5156
  %5158 = vrot.lane.b32.xlu0 %v4543, 8
  %v5159 = vpop.permute.xlu0 %5158
  %5160 = vrot.lane.b32.xlu0 %v4544, 8
  %v5161 = vpop.permute.xlu0 %5160
  %5162 = vrot.lane.b32.xlu0 %v4545, 8
  %v5163 = vpop.permute.xlu0 %5162
  %5164 = vrot.lane.b32.xlu0 %v4546, 8
  %v5165 = vpop.permute.xlu0 %5164
  %5166 = vrot.lane.b32.xlu0 %v4547, 8
  %v5167 = vpop.permute.xlu0 %5166
  %5168 = vrot.lane.b32.xlu0 %v4548, 8
  %v5169 = vpop.permute.xlu0 %5168
  %5170 = vrot.lane.b32.xlu0 %v4549, 8
  %v5171 = vpop.permute.xlu0 %5170
  %5172 = vrot.lane.b32.xlu0 %v4550, 8
  %v5173 = vpop.permute.xlu0 %5172
  %5174 = vrot.lane.b32.xlu0 %v4551, 8
  %v5175 = vpop.permute.xlu0 %5174
  %5176 = vrot.lane.b32.xlu0 %v4552, 8
  %v5177 = vpop.permute.xlu0 %5176
  %5178 = vrot.lane.b32.xlu0 %v4553, 8
  %v5179 = vpop.permute.xlu0 %5178
  %5180 = vrot.lane.b32.xlu0 %v4554, 8
  %v5181 = vpop.permute.xlu0 %5180
  %5182 = vrot.lane.b32.xlu0 %v4555, 8
  %v5183 = vpop.permute.xlu0 %5182
  %5184 = vrot.lane.b32.xlu0 %v4556, 8
  %v5185 = vpop.permute.xlu0 %5184
  %5186 = vrot.lane.b32.xlu0 %v4557, 8
  %v5187 = vpop.permute.xlu0 %5186
  %5188 = vrot.lane.b32.xlu0 %v4558, 8
  %v5189 = vpop.permute.xlu0 %5188
  %5190 = vrot.lane.b32.xlu0 %v4559, 8
  %v5191 = vpop.permute.xlu0 %5190
  %5192 = vrot.lane.b32.xlu0 %v4560, 8
  %v5193 = vpop.permute.xlu0 %5192
  %5194 = vrot.lane.b32.xlu0 %v4561, 8
  %v5195 = vpop.permute.xlu0 %5194
  %5196 = vrot.lane.b32.xlu0 %v4562, 8
  %v5197 = vpop.permute.xlu0 %5196
  %5198 = vrot.lane.b32.xlu0 %v4563, 8
  %v5199 = vpop.permute.xlu0 %5198
  %5200 = vrot.lane.b32.xlu0 %v4564, 8
  %v5201 = vpop.permute.xlu0 %5200
  %5202 = vrot.lane.b32.xlu0 %v4565, 8
  %v5203 = vpop.permute.xlu0 %5202
  %5204 = vrot.lane.b32.xlu0 %v4566, 8
  %v5205 = vpop.permute.xlu0 %5204
  %5206 = vrot.lane.b32.xlu0 %v4567, 8
  %v5207 = vpop.permute.xlu0 %5206
  %5336 = vrot.lane.b32.xlu0 %v4568, 16
  %v5337 = vpop.permute.xlu0 %5336
  %5338 = vrot.lane.b32.xlu0 %v4569, 16
  %v5339 = vpop.permute.xlu0 %5338
  %5340 = vrot.lane.b32.xlu0 %v4570, 16
  %v5341 = vpop.permute.xlu0 %5340
  %5342 = vrot.lane.b32.xlu0 %v4571, 16
  %v5343 = vpop.permute.xlu0 %5342
  %5344 = vrot.lane.b32.xlu0 %v4572, 16
  %v5345 = vpop.permute.xlu0 %5344
  %5346 = vrot.lane.b32.xlu0 %v4573, 16
  %v5347 = vpop.permute.xlu0 %5346
  %5348 = vrot.lane.b32.xlu0 %v4574, 16
  %v5349 = vpop.permute.xlu0 %5348
  %5350 = vrot.lane.b32.xlu0 %v4575, 16
  %v5351 = vpop.permute.xlu0 %5350
  %5352 = vrot.lane.b32.xlu0 %v4576, 16
  %v5353 = vpop.permute.xlu0 %5352
  %5354 = vrot.lane.b32.xlu0 %v4577, 16
  %v5355 = vpop.permute.xlu0 %5354
  %5356 = vrot.lane.b32.xlu0 %v4578, 16
  %v5357 = vpop.permute.xlu0 %5356
  %5358 = vrot.lane.b32.xlu0 %v4579, 16
  %v5359 = vpop.permute.xlu0 %5358
  %5360 = vrot.lane.b32.xlu0 %v4580, 16
  %v5361 = vpop.permute.xlu0 %5360
  %5362 = vrot.lane.b32.xlu0 %v4581, 16
  %v5363 = vpop.permute.xlu0 %5362
  %5364 = vrot.lane.b32.xlu0 %v4582, 16
  %v5365 = vpop.permute.xlu0 %5364
  %5366 = vrot.lane.b32.xlu0 %v4583, 16
  %v5367 = vpop.permute.xlu0 %5366
  %5368 = vrot.lane.b32.xlu0 %v4584, 16
  %v5369 = vpop.permute.xlu0 %5368
  %5370 = vrot.lane.b32.xlu0 %v4585, 16
  %v5371 = vpop.permute.xlu0 %5370
  %5372 = vrot.lane.b32.xlu0 %v4586, 16
  %v5373 = vpop.permute.xlu0 %5372
  %5374 = vrot.lane.b32.xlu0 %v4587, 16
  %v5375 = vpop.permute.xlu0 %5374
  %5376 = vrot.lane.b32.xlu0 %v4588, 16
  %v5377 = vpop.permute.xlu0 %5376
  %5378 = vrot.lane.b32.xlu0 %v4589, 16
  %v5379 = vpop.permute.xlu0 %5378
  %5380 = vrot.lane.b32.xlu0 %v4590, 16
  %v5381 = vpop.permute.xlu0 %5380
  %5382 = vrot.lane.b32.xlu0 %v4591, 16
  %v5383 = vpop.permute.xlu0 %5382
  %5384 = vrot.lane.b32.xlu0 %v4592, 16
  %v5385 = vpop.permute.xlu0 %5384
  %5386 = vrot.lane.b32.xlu0 %v4593, 16
  %v5387 = vpop.permute.xlu0 %5386
  %5388 = vrot.lane.b32.xlu0 %v4594, 16
  %v5389 = vpop.permute.xlu0 %5388
  %5390 = vrot.lane.b32.xlu0 %v4595, 16
  %v5391 = vpop.permute.xlu0 %5390
  %5392 = vrot.lane.b32.xlu0 %v4596, 16
  %v5393 = vpop.permute.xlu0 %5392
  %5394 = vrot.lane.b32.xlu0 %v4597, 16
  %v5395 = vpop.permute.xlu0 %5394
  %5396 = vrot.lane.b32.xlu0 %v4598, 16
  %v5397 = vpop.permute.xlu0 %5396
  %5398 = vrot.lane.b32.xlu0 %v4599, 16
  %v5399 = vpop.permute.xlu0 %5398
  %5400 = vrot.lane.b32.xlu0 %v4600, 16
  %v5401 = vpop.permute.xlu0 %5400
  %5402 = vrot.lane.b32.xlu0 %v4601, 16
  %v5403 = vpop.permute.xlu0 %5402
  %5404 = vrot.lane.b32.xlu0 %v4602, 16
  %v5405 = vpop.permute.xlu0 %5404
  %5406 = vrot.lane.b32.xlu0 %v4603, 16
  %v5407 = vpop.permute.xlu0 %5406
  %5408 = vrot.lane.b32.xlu0 %v4604, 16
  %v5409 = vpop.permute.xlu0 %5408
  %5410 = vrot.lane.b32.xlu0 %v4605, 16
  %v5411 = vpop.permute.xlu0 %5410
  %5412 = vrot.lane.b32.xlu0 %v4606, 16
  %v5413 = vpop.permute.xlu0 %5412
  %5414 = vrot.lane.b32.xlu0 %v4607, 16
  %v5415 = vpop.permute.xlu0 %5414
  %5416 = vrot.lane.b32.xlu0 %v4608, 16
  %v5417 = vpop.permute.xlu0 %5416
  %5418 = vrot.lane.b32.xlu0 %v4609, 16
  %v5419 = vpop.permute.xlu0 %5418
  %5420 = vrot.lane.b32.xlu0 %v4610, 16
  %v5421 = vpop.permute.xlu0 %5420
  %5422 = vrot.lane.b32.xlu0 %v4611, 16
  %v5423 = vpop.permute.xlu0 %5422
  %5424 = vrot.lane.b32.xlu0 %v4612, 16
  %v5425 = vpop.permute.xlu0 %5424
  %5426 = vrot.lane.b32.xlu0 %v4613, 16
  %v5427 = vpop.permute.xlu0 %5426
  %5428 = vrot.lane.b32.xlu0 %v4614, 16
  %v5429 = vpop.permute.xlu0 %5428
  %5430 = vrot.lane.b32.xlu0 %v4615, 16
  %v5431 = vpop.permute.xlu0 %5430
  %5432 = vrot.lane.b32.xlu0 %v4616, 16
  %v5433 = vpop.permute.xlu0 %5432
  %5434 = vrot.lane.b32.xlu0 %v4617, 16
  %v5435 = vpop.permute.xlu0 %5434
  %5436 = vrot.lane.b32.xlu0 %v4618, 16
  %v5437 = vpop.permute.xlu0 %5436
  %5438 = vrot.lane.b32.xlu0 %v4619, 16
  %v5439 = vpop.permute.xlu0 %5438
  %5440 = vrot.lane.b32.xlu0 %v4620, 16
  %v5441 = vpop.permute.xlu0 %5440
  %5442 = vrot.lane.b32.xlu0 %v4621, 16
  %v5443 = vpop.permute.xlu0 %5442
  %5444 = vrot.lane.b32.xlu0 %v4622, 16
  %v5445 = vpop.permute.xlu0 %5444
  %5446 = vrot.lane.b32.xlu0 %v4623, 16
  %v5447 = vpop.permute.xlu0 %5446
  %5448 = vrot.lane.b32.xlu0 %v4624, 16
  %v5449 = vpop.permute.xlu0 %5448
  %5450 = vrot.lane.b32.xlu0 %v4625, 16
  %v5451 = vpop.permute.xlu0 %5450
  %5452 = vrot.lane.b32.xlu0 %v4626, 16
  %v5453 = vpop.permute.xlu0 %5452
  %5454 = vrot.lane.b32.xlu0 %v4627, 16
  %v5455 = vpop.permute.xlu0 %5454
  %5456 = vrot.lane.b32.xlu0 %v4628, 16
  %v5457 = vpop.permute.xlu0 %5456
  %5458 = vrot.lane.b32.xlu0 %v4629, 16
  %v5459 = vpop.permute.xlu0 %5458
  %5460 = vrot.lane.b32.xlu0 %v4630, 16
  %v5461 = vpop.permute.xlu0 %5460
  %5462 = vrot.lane.b32.xlu0 %v4631, 16
  %v5463 = vpop.permute.xlu0 %5462
  %5592 = vrot.lane.b32.xlu0 %v4632, 24
  %v5593 = vpop.permute.xlu0 %5592
  %5594 = vrot.lane.b32.xlu0 %v4633, 24
  %v5595 = vpop.permute.xlu0 %5594
  %5596 = vrot.lane.b32.xlu0 %v4634, 24
  %v5597 = vpop.permute.xlu0 %5596
  %5598 = vrot.lane.b32.xlu0 %v4635, 24
  %v5599 = vpop.permute.xlu0 %5598
  %5600 = vrot.lane.b32.xlu0 %v4636, 24
  %v5601 = vpop.permute.xlu0 %5600
  %5602 = vrot.lane.b32.xlu0 %v4637, 24
  %v5603 = vpop.permute.xlu0 %5602
  %5604 = vrot.lane.b32.xlu0 %v4638, 24
  %v5605 = vpop.permute.xlu0 %5604
  %5606 = vrot.lane.b32.xlu0 %v4639, 24
  %v5607 = vpop.permute.xlu0 %5606
  %5608 = vrot.lane.b32.xlu0 %v4640, 24
  %v5609 = vpop.permute.xlu0 %5608
  %5610 = vrot.lane.b32.xlu0 %v4641, 24
  %v5611 = vpop.permute.xlu0 %5610
  %5612 = vrot.lane.b32.xlu0 %v4642, 24
  %v5613 = vpop.permute.xlu0 %5612
  %5614 = vrot.lane.b32.xlu0 %v4643, 24
  %v5615 = vpop.permute.xlu0 %5614
  %5616 = vrot.lane.b32.xlu0 %v4644, 24
  %v5617 = vpop.permute.xlu0 %5616
  %5618 = vrot.lane.b32.xlu0 %v4645, 24
  %v5619 = vpop.permute.xlu0 %5618
  %5620 = vrot.lane.b32.xlu0 %v4646, 24
  %v5621 = vpop.permute.xlu0 %5620
  %5622 = vrot.lane.b32.xlu0 %v4647, 24
  %v5623 = vpop.permute.xlu0 %5622
  %5624 = vrot.lane.b32.xlu0 %v4648, 24
  %v5625 = vpop.permute.xlu0 %5624
  %5626 = vrot.lane.b32.xlu0 %v4649, 24
  %v5627 = vpop.permute.xlu0 %5626
  %5628 = vrot.lane.b32.xlu0 %v4650, 24
  %v5629 = vpop.permute.xlu0 %5628
  %5630 = vrot.lane.b32.xlu0 %v4651, 24
  %v5631 = vpop.permute.xlu0 %5630
  %5632 = vrot.lane.b32.xlu0 %v4652, 24
  %v5633 = vpop.permute.xlu0 %5632
  %5634 = vrot.lane.b32.xlu0 %v4653, 24
  %v5635 = vpop.permute.xlu0 %5634
  %5636 = vrot.lane.b32.xlu0 %v4654, 24
  %v5637 = vpop.permute.xlu0 %5636
  %5638 = vrot.lane.b32.xlu0 %v4655, 24
  %v5639 = vpop.permute.xlu0 %5638
  %5640 = vrot.lane.b32.xlu0 %v4656, 24
  %v5641 = vpop.permute.xlu0 %5640
  %5642 = vrot.lane.b32.xlu0 %v4657, 24
  %v5643 = vpop.permute.xlu0 %5642
  %5644 = vrot.lane.b32.xlu0 %v4658, 24
  %v5645 = vpop.permute.xlu0 %5644
  %5646 = vrot.lane.b32.xlu0 %v4659, 24
  %v5647 = vpop.permute.xlu0 %5646
  %5648 = vrot.lane.b32.xlu0 %v4660, 24
  %v5649 = vpop.permute.xlu0 %5648
  %5650 = vrot.lane.b32.xlu0 %v4661, 24
  %v5651 = vpop.permute.xlu0 %5650
  %5652 = vrot.lane.b32.xlu0 %v4662, 24
  %v5653 = vpop.permute.xlu0 %5652
  %5654 = vrot.lane.b32.xlu0 %v4663, 24
  %v5655 = vpop.permute.xlu0 %5654
  %5656 = vrot.lane.b32.xlu0 %v4664, 24
  %v5657 = vpop.permute.xlu0 %5656
  %5658 = vrot.lane.b32.xlu0 %v4665, 24
  %v5659 = vpop.permute.xlu0 %5658
  %5660 = vrot.lane.b32.xlu0 %v4666, 24
  %v5661 = vpop.permute.xlu0 %5660
  %5662 = vrot.lane.b32.xlu0 %v4667, 24
  %v5663 = vpop.permute.xlu0 %5662
  %5664 = vrot.lane.b32.xlu0 %v4668, 24
  %v5665 = vpop.permute.xlu0 %5664
  %5666 = vrot.lane.b32.xlu0 %v4669, 24
  %v5667 = vpop.permute.xlu0 %5666
  %5668 = vrot.lane.b32.xlu0 %v4670, 24
  %v5669 = vpop.permute.xlu0 %5668
  %5670 = vrot.lane.b32.xlu0 %v4671, 24
  %v5671 = vpop.permute.xlu0 %5670
  %5672 = vrot.lane.b32.xlu0 %v4672, 24
  %v5673 = vpop.permute.xlu0 %5672
  %5674 = vrot.lane.b32.xlu0 %v4673, 24
  %v5675 = vpop.permute.xlu0 %5674
  %5676 = vrot.lane.b32.xlu0 %v4674, 24
  %v5677 = vpop.permute.xlu0 %5676
  %5678 = vrot.lane.b32.xlu0 %v4675, 24
  %v5679 = vpop.permute.xlu0 %5678
  %5680 = vrot.lane.b32.xlu0 %v4676, 24
  %v5681 = vpop.permute.xlu0 %5680
  %5682 = vrot.lane.b32.xlu0 %v4677, 24
  %v5683 = vpop.permute.xlu0 %5682
  %5684 = vrot.lane.b32.xlu0 %v4678, 24
  %v5685 = vpop.permute.xlu0 %5684
  %5686 = vrot.lane.b32.xlu0 %v4679, 24
  %v5687 = vpop.permute.xlu0 %5686
  %5688 = vrot.lane.b32.xlu0 %v4680, 24
  %v5689 = vpop.permute.xlu0 %5688
  %5690 = vrot.lane.b32.xlu0 %v4681, 24
  %v5691 = vpop.permute.xlu0 %5690
  %5692 = vrot.lane.b32.xlu0 %v4682, 24
  %v5693 = vpop.permute.xlu0 %5692
  %5694 = vrot.lane.b32.xlu0 %v4683, 24
  %v5695 = vpop.permute.xlu0 %5694
  %5696 = vrot.lane.b32.xlu0 %v4684, 24
  %v5697 = vpop.permute.xlu0 %5696
  %5698 = vrot.lane.b32.xlu0 %v4685, 24
  %v5699 = vpop.permute.xlu0 %5698
  %5700 = vrot.lane.b32.xlu0 %v4686, 24
  %v5701 = vpop.permute.xlu0 %5700
  %5702 = vrot.lane.b32.xlu0 %v4687, 24
  %v5703 = vpop.permute.xlu0 %5702
  %5704 = vrot.lane.b32.xlu0 %v4688, 24
  %v5705 = vpop.permute.xlu0 %5704
  %5706 = vrot.lane.b32.xlu0 %v4689, 24
  %v5707 = vpop.permute.xlu0 %5706
  %5708 = vrot.lane.b32.xlu0 %v4690, 24
  %v5709 = vpop.permute.xlu0 %5708
  %5710 = vrot.lane.b32.xlu0 %v4691, 24
  %v5711 = vpop.permute.xlu0 %5710
  %5712 = vrot.lane.b32.xlu0 %v4692, 24
  %v5713 = vpop.permute.xlu0 %5712
  %5714 = vrot.lane.b32.xlu0 %v4693, 24
  %v5715 = vpop.permute.xlu0 %5714
  %5716 = vrot.lane.b32.xlu0 %v4694, 24
  %v5717 = vpop.permute.xlu0 %5716
  %5718 = vrot.lane.b32.xlu0 %v4695, 24
  %v5719 = vpop.permute.xlu0 %5718
  %5848 = vrot.lane.b32.xlu0 %v4696, 32
  %v5849 = vpop.permute.xlu0 %5848
  %5850 = vrot.lane.b32.xlu0 %v4697, 32
  %v5851 = vpop.permute.xlu0 %5850
  %5852 = vrot.lane.b32.xlu0 %v4698, 32
  %v5853 = vpop.permute.xlu0 %5852
  %5854 = vrot.lane.b32.xlu0 %v4699, 32
  %v5855 = vpop.permute.xlu0 %5854
  %5856 = vrot.lane.b32.xlu0 %v4700, 32
  %v5857 = vpop.permute.xlu0 %5856
  %5858 = vrot.lane.b32.xlu0 %v4701, 32
  %v5859 = vpop.permute.xlu0 %5858
  %5860 = vrot.lane.b32.xlu0 %v4702, 32
  %v5861 = vpop.permute.xlu0 %5860
  %5862 = vrot.lane.b32.xlu0 %v4703, 32
  %v5863 = vpop.permute.xlu0 %5862
  %5864 = vrot.lane.b32.xlu0 %v4704, 32
  %v5865 = vpop.permute.xlu0 %5864
  %5866 = vrot.lane.b32.xlu0 %v4705, 32
  %v5867 = vpop.permute.xlu0 %5866
  %5868 = vrot.lane.b32.xlu0 %v4706, 32
  %v5869 = vpop.permute.xlu0 %5868
  %5870 = vrot.lane.b32.xlu0 %v4707, 32
  %v5871 = vpop.permute.xlu0 %5870
  %5872 = vrot.lane.b32.xlu0 %v4708, 32
  %v5873 = vpop.permute.xlu0 %5872
  %5874 = vrot.lane.b32.xlu0 %v4709, 32
  %v5875 = vpop.permute.xlu0 %5874
  %5876 = vrot.lane.b32.xlu0 %v4710, 32
  %v5877 = vpop.permute.xlu0 %5876
  %5878 = vrot.lane.b32.xlu0 %v4711, 32
  %v5879 = vpop.permute.xlu0 %5878
  %5880 = vrot.lane.b32.xlu0 %v4712, 32
  %v5881 = vpop.permute.xlu0 %5880
  %5882 = vrot.lane.b32.xlu0 %v4713, 32
  %v5883 = vpop.permute.xlu0 %5882
  %5884 = vrot.lane.b32.xlu0 %v4714, 32
  %v5885 = vpop.permute.xlu0 %5884
  %5886 = vrot.lane.b32.xlu0 %v4715, 32
  %v5887 = vpop.permute.xlu0 %5886
  %5888 = vrot.lane.b32.xlu0 %v4716, 32
  %v5889 = vpop.permute.xlu0 %5888
  %5890 = vrot.lane.b32.xlu0 %v4717, 32
  %v5891 = vpop.permute.xlu0 %5890
  %5892 = vrot.lane.b32.xlu0 %v4718, 32
  %v5893 = vpop.permute.xlu0 %5892
  %5894 = vrot.lane.b32.xlu0 %v4719, 32
  %v5895 = vpop.permute.xlu0 %5894
  %5896 = vrot.lane.b32.xlu0 %v4720, 32
  %v5897 = vpop.permute.xlu0 %5896
  %5898 = vrot.lane.b32.xlu0 %v4721, 32
  %v5899 = vpop.permute.xlu0 %5898
  %5900 = vrot.lane.b32.xlu0 %v4722, 32
  %v5901 = vpop.permute.xlu0 %5900
  %5902 = vrot.lane.b32.xlu0 %v4723, 32
  %v5903 = vpop.permute.xlu0 %5902
  %5904 = vrot.lane.b32.xlu0 %v4724, 32
  %v5905 = vpop.permute.xlu0 %5904
  %5906 = vrot.lane.b32.xlu0 %v4725, 32
  %v5907 = vpop.permute.xlu0 %5906
  %5908 = vrot.lane.b32.xlu0 %v4726, 32
  %v5909 = vpop.permute.xlu0 %5908
  %5910 = vrot.lane.b32.xlu0 %v4727, 32
  %v5911 = vpop.permute.xlu0 %5910
  %5912 = vrot.lane.b32.xlu0 %v4728, 32
  %v5913 = vpop.permute.xlu0 %5912
  %5914 = vrot.lane.b32.xlu0 %v4729, 32
  %v5915 = vpop.permute.xlu0 %5914
  %5916 = vrot.lane.b32.xlu0 %v4730, 32
  %v5917 = vpop.permute.xlu0 %5916
  %5918 = vrot.lane.b32.xlu0 %v4731, 32
  %v5919 = vpop.permute.xlu0 %5918
  %5920 = vrot.lane.b32.xlu0 %v4732, 32
  %v5921 = vpop.permute.xlu0 %5920
  %5922 = vrot.lane.b32.xlu0 %v4733, 32
  %v5923 = vpop.permute.xlu0 %5922
  %5924 = vrot.lane.b32.xlu0 %v4734, 32
  %v5925 = vpop.permute.xlu0 %5924
  %5926 = vrot.lane.b32.xlu0 %v4735, 32
  %v5927 = vpop.permute.xlu0 %5926
  %5928 = vrot.lane.b32.xlu0 %v4736, 32
  %v5929 = vpop.permute.xlu0 %5928
  %5930 = vrot.lane.b32.xlu0 %v4737, 32
  %v5931 = vpop.permute.xlu0 %5930
  %5932 = vrot.lane.b32.xlu0 %v4738, 32
  %v5933 = vpop.permute.xlu0 %5932
  %5934 = vrot.lane.b32.xlu0 %v4739, 32
  %v5935 = vpop.permute.xlu0 %5934
  %5936 = vrot.lane.b32.xlu0 %v4740, 32
  %v5937 = vpop.permute.xlu0 %5936
  %5938 = vrot.lane.b32.xlu0 %v4741, 32
  %v5939 = vpop.permute.xlu0 %5938
  %5940 = vrot.lane.b32.xlu0 %v4742, 32
  %v5941 = vpop.permute.xlu0 %5940
  %5942 = vrot.lane.b32.xlu0 %v4743, 32
  %v5943 = vpop.permute.xlu0 %5942
  %5944 = vrot.lane.b32.xlu0 %v4744, 32
  %v5945 = vpop.permute.xlu0 %5944
  %5946 = vrot.lane.b32.xlu0 %v4745, 32
  %v5947 = vpop.permute.xlu0 %5946
  %5948 = vrot.lane.b32.xlu0 %v4746, 32
  %v5949 = vpop.permute.xlu0 %5948
  %5950 = vrot.lane.b32.xlu0 %v4747, 32
  %v5951 = vpop.permute.xlu0 %5950
  %5952 = vrot.lane.b32.xlu0 %v4748, 32
  %v5953 = vpop.permute.xlu0 %5952
  %5954 = vrot.lane.b32.xlu0 %v4749, 32
  %v5955 = vpop.permute.xlu0 %5954
  %5956 = vrot.lane.b32.xlu0 %v4750, 32
  %v5957 = vpop.permute.xlu0 %5956
  %5958 = vrot.lane.b32.xlu0 %v4751, 32
  %v5959 = vpop.permute.xlu0 %5958
  %5960 = vrot.lane.b32.xlu0 %v4752, 32
  %v5961 = vpop.permute.xlu0 %5960
  %5962 = vrot.lane.b32.xlu0 %v4753, 32
  %v5963 = vpop.permute.xlu0 %5962
  %5964 = vrot.lane.b32.xlu0 %v4754, 32
  %v5965 = vpop.permute.xlu0 %5964
  %5966 = vrot.lane.b32.xlu0 %v4755, 32
  %v5967 = vpop.permute.xlu0 %5966
  %5968 = vrot.lane.b32.xlu0 %v4756, 32
  %v5969 = vpop.permute.xlu0 %5968
  %5970 = vrot.lane.b32.xlu0 %v4757, 32
  %v5971 = vpop.permute.xlu0 %5970
  %5972 = vrot.lane.b32.xlu0 %v4758, 32
  %v5973 = vpop.permute.xlu0 %5972
  %5974 = vrot.lane.b32.xlu0 %v4759, 32
  %v5975 = vpop.permute.xlu0 %5974
  %6104 = vrot.lane.b32.xlu0 %v4760, 40
  %v6105 = vpop.permute.xlu0 %6104
  %6106 = vrot.lane.b32.xlu0 %v4761, 40
  %v6107 = vpop.permute.xlu0 %6106
  %6108 = vrot.lane.b32.xlu0 %v4762, 40
  %v6109 = vpop.permute.xlu0 %6108
  %6110 = vrot.lane.b32.xlu0 %v4763, 40
  %v6111 = vpop.permute.xlu0 %6110
  %6112 = vrot.lane.b32.xlu0 %v4764, 40
  %v6113 = vpop.permute.xlu0 %6112
  %6114 = vrot.lane.b32.xlu0 %v4765, 40
  %v6115 = vpop.permute.xlu0 %6114
  %6116 = vrot.lane.b32.xlu0 %v4766, 40
  %v6117 = vpop.permute.xlu0 %6116
  %6118 = vrot.lane.b32.xlu0 %v4767, 40
  %v6119 = vpop.permute.xlu0 %6118
  %6120 = vrot.lane.b32.xlu0 %v4768, 40
  %v6121 = vpop.permute.xlu0 %6120
  %6122 = vrot.lane.b32.xlu0 %v4769, 40
  %v6123 = vpop.permute.xlu0 %6122
  %6124 = vrot.lane.b32.xlu0 %v4770, 40
  %v6125 = vpop.permute.xlu0 %6124
  %6126 = vrot.lane.b32.xlu0 %v4771, 40
  %v6127 = vpop.permute.xlu0 %6126
  %6128 = vrot.lane.b32.xlu0 %v4772, 40
  %v6129 = vpop.permute.xlu0 %6128
  %6130 = vrot.lane.b32.xlu0 %v4773, 40
  %v6131 = vpop.permute.xlu0 %6130
  %6132 = vrot.lane.b32.xlu0 %v4774, 40
  %v6133 = vpop.permute.xlu0 %6132
  %6134 = vrot.lane.b32.xlu0 %v4775, 40
  %v6135 = vpop.permute.xlu0 %6134
  %6136 = vrot.lane.b32.xlu0 %v4776, 40
  %v6137 = vpop.permute.xlu0 %6136
  %6138 = vrot.lane.b32.xlu0 %v4777, 40
  %v6139 = vpop.permute.xlu0 %6138
  %6140 = vrot.lane.b32.xlu0 %v4778, 40
  %v6141 = vpop.permute.xlu0 %6140
  %6142 = vrot.lane.b32.xlu0 %v4779, 40
  %v6143 = vpop.permute.xlu0 %6142
  %6144 = vrot.lane.b32.xlu0 %v4780, 40
  %v6145 = vpop.permute.xlu0 %6144
  %6146 = vrot.lane.b32.xlu0 %v4781, 40
  %v6147 = vpop.permute.xlu0 %6146
  %6148 = vrot.lane.b32.xlu0 %v4782, 40
  %v6149 = vpop.permute.xlu0 %6148
  %6150 = vrot.lane.b32.xlu0 %v4783, 40
  %v6151 = vpop.permute.xlu0 %6150
  %6152 = vrot.lane.b32.xlu0 %v4784, 40
  %v6153 = vpop.permute.xlu0 %6152
  %6154 = vrot.lane.b32.xlu0 %v4785, 40
  %v6155 = vpop.permute.xlu0 %6154
  %6156 = vrot.lane.b32.xlu0 %v4786, 40
  %v6157 = vpop.permute.xlu0 %6156
  %6158 = vrot.lane.b32.xlu0 %v4787, 40
  %v6159 = vpop.permute.xlu0 %6158
  %6160 = vrot.lane.b32.xlu0 %v4788, 40
  %v6161 = vpop.permute.xlu0 %6160
  %6162 = vrot.lane.b32.xlu0 %v4789, 40
  %v6163 = vpop.permute.xlu0 %6162
  %6164 = vrot.lane.b32.xlu0 %v4790, 40
  %v6165 = vpop.permute.xlu0 %6164
  %6166 = vrot.lane.b32.xlu0 %v4791, 40
  %v6167 = vpop.permute.xlu0 %6166
  %6168 = vrot.lane.b32.xlu0 %v4792, 40
  %v6169 = vpop.permute.xlu0 %6168
  %6170 = vrot.lane.b32.xlu0 %v4793, 40
  %v6171 = vpop.permute.xlu0 %6170
  %6172 = vrot.lane.b32.xlu0 %v4794, 40
  %v6173 = vpop.permute.xlu0 %6172
  %6174 = vrot.lane.b32.xlu0 %v4795, 40
  %v6175 = vpop.permute.xlu0 %6174
  %6176 = vrot.lane.b32.xlu0 %v4796, 40
  %v6177 = vpop.permute.xlu0 %6176
  %6178 = vrot.lane.b32.xlu0 %v4797, 40
  %v6179 = vpop.permute.xlu0 %6178
  %6180 = vrot.lane.b32.xlu0 %v4798, 40
  %v6181 = vpop.permute.xlu0 %6180
  %6182 = vrot.lane.b32.xlu0 %v4799, 40
  %v6183 = vpop.permute.xlu0 %6182
  %6184 = vrot.lane.b32.xlu0 %v4800, 40
  %v6185 = vpop.permute.xlu0 %6184
  %6186 = vrot.lane.b32.xlu0 %v4801, 40
  %v6187 = vpop.permute.xlu0 %6186
  %6188 = vrot.lane.b32.xlu0 %v4802, 40
  %v6189 = vpop.permute.xlu0 %6188
  %6190 = vrot.lane.b32.xlu0 %v4803, 40
  %v6191 = vpop.permute.xlu0 %6190
  %6192 = vrot.lane.b32.xlu0 %v4804, 40
  %v6193 = vpop.permute.xlu0 %6192
  %6194 = vrot.lane.b32.xlu0 %v4805, 40
  %v6195 = vpop.permute.xlu0 %6194
  %6196 = vrot.lane.b32.xlu0 %v4806, 40
  %v6197 = vpop.permute.xlu0 %6196
  %6198 = vrot.lane.b32.xlu0 %v4807, 40
  %v6199 = vpop.permute.xlu0 %6198
  %6200 = vrot.lane.b32.xlu0 %v4808, 40
  %v6201 = vpop.permute.xlu0 %6200
  %6202 = vrot.lane.b32.xlu0 %v4809, 40
  %v6203 = vpop.permute.xlu0 %6202
  %6204 = vrot.lane.b32.xlu0 %v4810, 40
  %v6205 = vpop.permute.xlu0 %6204
  %6206 = vrot.lane.b32.xlu0 %v4811, 40
  %v6207 = vpop.permute.xlu0 %6206
  %6208 = vrot.lane.b32.xlu0 %v4812, 40
  %v6209 = vpop.permute.xlu0 %6208
  %6210 = vrot.lane.b32.xlu0 %v4813, 40
  %v6211 = vpop.permute.xlu0 %6210
  %6212 = vrot.lane.b32.xlu0 %v4814, 40
  %v6213 = vpop.permute.xlu0 %6212
  %6214 = vrot.lane.b32.xlu0 %v4815, 40
  %v6215 = vpop.permute.xlu0 %6214
  %6216 = vrot.lane.b32.xlu0 %v4816, 40
  %v6217 = vpop.permute.xlu0 %6216
  %6218 = vrot.lane.b32.xlu0 %v4817, 40
  %v6219 = vpop.permute.xlu0 %6218
  %6220 = vrot.lane.b32.xlu0 %v4818, 40
  %v6221 = vpop.permute.xlu0 %6220
  %6222 = vrot.lane.b32.xlu0 %v4819, 40
  %v6223 = vpop.permute.xlu0 %6222
  %6224 = vrot.lane.b32.xlu0 %v4820, 40
  %v6225 = vpop.permute.xlu0 %6224
  %6226 = vrot.lane.b32.xlu0 %v4821, 40
  %v6227 = vpop.permute.xlu0 %6226
  %6228 = vrot.lane.b32.xlu0 %v4822, 40
  %v6229 = vpop.permute.xlu0 %6228
  %6230 = vrot.lane.b32.xlu0 %v4823, 40
  %v6231 = vpop.permute.xlu0 %6230
  %6360 = vrot.lane.b32.xlu0 %v4824, 48
  %v6361 = vpop.permute.xlu0 %6360
  %6362 = vrot.lane.b32.xlu0 %v4825, 48
  %v6363 = vpop.permute.xlu0 %6362
  %6364 = vrot.lane.b32.xlu0 %v4826, 48
  %v6365 = vpop.permute.xlu0 %6364
  %6366 = vrot.lane.b32.xlu0 %v4827, 48
  %v6367 = vpop.permute.xlu0 %6366
  %6368 = vrot.lane.b32.xlu0 %v4828, 48
  %v6369 = vpop.permute.xlu0 %6368
  %6370 = vrot.lane.b32.xlu0 %v4829, 48
  %v6371 = vpop.permute.xlu0 %6370
  %6372 = vrot.lane.b32.xlu0 %v4830, 48
  %v6373 = vpop.permute.xlu0 %6372
  %6374 = vrot.lane.b32.xlu0 %v4831, 48
  %v6375 = vpop.permute.xlu0 %6374
  %6376 = vrot.lane.b32.xlu0 %v4832, 48
  %v6377 = vpop.permute.xlu0 %6376
  %6378 = vrot.lane.b32.xlu0 %v4833, 48
  %v6379 = vpop.permute.xlu0 %6378
  %6380 = vrot.lane.b32.xlu0 %v4834, 48
  %v6381 = vpop.permute.xlu0 %6380
  %6382 = vrot.lane.b32.xlu0 %v4835, 48
  %v6383 = vpop.permute.xlu0 %6382
  %6384 = vrot.lane.b32.xlu0 %v4836, 48
  %v6385 = vpop.permute.xlu0 %6384
  %6386 = vrot.lane.b32.xlu0 %v4837, 48
  %v6387 = vpop.permute.xlu0 %6386
  %6388 = vrot.lane.b32.xlu0 %v4838, 48
  %v6389 = vpop.permute.xlu0 %6388
  %6390 = vrot.lane.b32.xlu0 %v4839, 48
  %v6391 = vpop.permute.xlu0 %6390
  %6392 = vrot.lane.b32.xlu0 %v4840, 48
  %v6393 = vpop.permute.xlu0 %6392
  %6394 = vrot.lane.b32.xlu0 %v4841, 48
  %v6395 = vpop.permute.xlu0 %6394
  %6396 = vrot.lane.b32.xlu0 %v4842, 48
  %v6397 = vpop.permute.xlu0 %6396
  %6398 = vrot.lane.b32.xlu0 %v4843, 48
  %v6399 = vpop.permute.xlu0 %6398
  %6400 = vrot.lane.b32.xlu0 %v4844, 48
  %v6401 = vpop.permute.xlu0 %6400
  %6402 = vrot.lane.b32.xlu0 %v4845, 48
  %v6403 = vpop.permute.xlu0 %6402
  %6404 = vrot.lane.b32.xlu0 %v4846, 48
  %v6405 = vpop.permute.xlu0 %6404
  %6406 = vrot.lane.b32.xlu0 %v4847, 48
  %v6407 = vpop.permute.xlu0 %6406
  %6408 = vrot.lane.b32.xlu0 %v4848, 48
  %v6409 = vpop.permute.xlu0 %6408
  %6410 = vrot.lane.b32.xlu0 %v4849, 48
  %v6411 = vpop.permute.xlu0 %6410
  %6412 = vrot.lane.b32.xlu0 %v4850, 48
  %v6413 = vpop.permute.xlu0 %6412
  %6414 = vrot.lane.b32.xlu0 %v4851, 48
  %v6415 = vpop.permute.xlu0 %6414
  %6416 = vrot.lane.b32.xlu0 %v4852, 48
  %v6417 = vpop.permute.xlu0 %6416
  %6418 = vrot.lane.b32.xlu0 %v4853, 48
  %v6419 = vpop.permute.xlu0 %6418
  %6420 = vrot.lane.b32.xlu0 %v4854, 48
  %v6421 = vpop.permute.xlu0 %6420
  %6422 = vrot.lane.b32.xlu0 %v4855, 48
  %v6423 = vpop.permute.xlu0 %6422
  %6424 = vrot.lane.b32.xlu0 %v4856, 48
  %v6425 = vpop.permute.xlu0 %6424
  %6426 = vrot.lane.b32.xlu0 %v4857, 48
  %v6427 = vpop.permute.xlu0 %6426
  %6428 = vrot.lane.b32.xlu0 %v4858, 48
  %v6429 = vpop.permute.xlu0 %6428
  %6430 = vrot.lane.b32.xlu0 %v4859, 48
  %v6431 = vpop.permute.xlu0 %6430
  %6432 = vrot.lane.b32.xlu0 %v4860, 48
  %v6433 = vpop.permute.xlu0 %6432
  %6434 = vrot.lane.b32.xlu0 %v4861, 48
  %v6435 = vpop.permute.xlu0 %6434
  %6436 = vrot.lane.b32.xlu0 %v4862, 48
  %v6437 = vpop.permute.xlu0 %6436
  %6438 = vrot.lane.b32.xlu0 %v4863, 48
  %v6439 = vpop.permute.xlu0 %6438
  %6440 = vrot.lane.b32.xlu0 %v4864, 48
  %v6441 = vpop.permute.xlu0 %6440
  %6442 = vrot.lane.b32.xlu0 %v4865, 48
  %v6443 = vpop.permute.xlu0 %6442
  %6444 = vrot.lane.b32.xlu0 %v4866, 48
  %v6445 = vpop.permute.xlu0 %6444
  %6446 = vrot.lane.b32.xlu0 %v4867, 48
  %v6447 = vpop.permute.xlu0 %6446
  %6448 = vrot.lane.b32.xlu0 %v4868, 48
  %v6449 = vpop.permute.xlu0 %6448
  %6450 = vrot.lane.b32.xlu0 %v4869, 48
  %v6451 = vpop.permute.xlu0 %6450
  %6452 = vrot.lane.b32.xlu0 %v4870, 48
  %v6453 = vpop.permute.xlu0 %6452
  %6454 = vrot.lane.b32.xlu0 %v4871, 48
  %v6455 = vpop.permute.xlu0 %6454
  %6456 = vrot.lane.b32.xlu0 %v4872, 48
  %v6457 = vpop.permute.xlu0 %6456
  %6458 = vrot.lane.b32.xlu0 %v4873, 48
  %v6459 = vpop.permute.xlu0 %6458
  %6460 = vrot.lane.b32.xlu0 %v4874, 48
  %v6461 = vpop.permute.xlu0 %6460
  %6462 = vrot.lane.b32.xlu0 %v4875, 48
  %v6463 = vpop.permute.xlu0 %6462
  %6464 = vrot.lane.b32.xlu0 %v4876, 48
  %v6465 = vpop.permute.xlu0 %6464
  %6466 = vrot.lane.b32.xlu0 %v4877, 48
  %v6467 = vpop.permute.xlu0 %6466
  %6468 = vrot.lane.b32.xlu0 %v4878, 48
  %v6469 = vpop.permute.xlu0 %6468
  %6470 = vrot.lane.b32.xlu0 %v4879, 48
  %v6471 = vpop.permute.xlu0 %6470
  %6472 = vrot.lane.b32.xlu0 %v4880, 48
  %v6473 = vpop.permute.xlu0 %6472
  %6474 = vrot.lane.b32.xlu0 %v4881, 48
  %v6475 = vpop.permute.xlu0 %6474
  %6476 = vrot.lane.b32.xlu0 %v4882, 48
  %v6477 = vpop.permute.xlu0 %6476
  %6478 = vrot.lane.b32.xlu0 %v4883, 48
  %v6479 = vpop.permute.xlu0 %6478
  %6480 = vrot.lane.b32.xlu0 %v4884, 48
  %v6481 = vpop.permute.xlu0 %6480
  %6482 = vrot.lane.b32.xlu0 %v4885, 48
  %v6483 = vpop.permute.xlu0 %6482
  %6484 = vrot.lane.b32.xlu0 %v4886, 48
  %v6485 = vpop.permute.xlu0 %6484
  %6486 = vrot.lane.b32.xlu0 %v4887, 48
  %v6487 = vpop.permute.xlu0 %6486
  %6616 = vrot.lane.b32.xlu0 %v4888, 56
  %v6617 = vpop.permute.xlu0 %6616
  %6618 = vrot.lane.b32.xlu0 %v4889, 56
  %v6619 = vpop.permute.xlu0 %6618
  %6620 = vrot.lane.b32.xlu0 %v4890, 56
  %v6621 = vpop.permute.xlu0 %6620
  %6622 = vrot.lane.b32.xlu0 %v4891, 56
  %v6623 = vpop.permute.xlu0 %6622
  %6624 = vrot.lane.b32.xlu0 %v4892, 56
  %v6625 = vpop.permute.xlu0 %6624
  %6626 = vrot.lane.b32.xlu0 %v4893, 56
  %v6627 = vpop.permute.xlu0 %6626
  %6628 = vrot.lane.b32.xlu0 %v4894, 56
  %v6629 = vpop.permute.xlu0 %6628
  %6630 = vrot.lane.b32.xlu0 %v4895, 56
  %v6631 = vpop.permute.xlu0 %6630
  %6632 = vrot.lane.b32.xlu0 %v4896, 56
  %v6633 = vpop.permute.xlu0 %6632
  %6634 = vrot.lane.b32.xlu0 %v4897, 56
  %v6635 = vpop.permute.xlu0 %6634
  %6636 = vrot.lane.b32.xlu0 %v4898, 56
  %v6637 = vpop.permute.xlu0 %6636
  %6638 = vrot.lane.b32.xlu0 %v4899, 56
  %v6639 = vpop.permute.xlu0 %6638
  %6640 = vrot.lane.b32.xlu0 %v4900, 56
  %v6641 = vpop.permute.xlu0 %6640
  %6642 = vrot.lane.b32.xlu0 %v4901, 56
  %v6643 = vpop.permute.xlu0 %6642
  %6644 = vrot.lane.b32.xlu0 %v4902, 56
  %v6645 = vpop.permute.xlu0 %6644
  %6646 = vrot.lane.b32.xlu0 %v4903, 56
  %v6647 = vpop.permute.xlu0 %6646
  %6648 = vrot.lane.b32.xlu0 %v4904, 56
  %v6649 = vpop.permute.xlu0 %6648
  %6650 = vrot.lane.b32.xlu0 %v4905, 56
  %v6651 = vpop.permute.xlu0 %6650
  %6652 = vrot.lane.b32.xlu0 %v4906, 56
  %v6653 = vpop.permute.xlu0 %6652
  %6654 = vrot.lane.b32.xlu0 %v4907, 56
  %v6655 = vpop.permute.xlu0 %6654
  %6656 = vrot.lane.b32.xlu0 %v4908, 56
  %v6657 = vpop.permute.xlu0 %6656
  %6658 = vrot.lane.b32.xlu0 %v4909, 56
  %v6659 = vpop.permute.xlu0 %6658
  %6660 = vrot.lane.b32.xlu0 %v4910, 56
  %v6661 = vpop.permute.xlu0 %6660
  %6662 = vrot.lane.b32.xlu0 %v4911, 56
  %v6663 = vpop.permute.xlu0 %6662
  %6664 = vrot.lane.b32.xlu0 %v4912, 56
  %v6665 = vpop.permute.xlu0 %6664
  %6666 = vrot.lane.b32.xlu0 %v4913, 56
  %v6667 = vpop.permute.xlu0 %6666
  %6668 = vrot.lane.b32.xlu0 %v4914, 56
  %v6669 = vpop.permute.xlu0 %6668
  %6670 = vrot.lane.b32.xlu0 %v4915, 56
  %v6671 = vpop.permute.xlu0 %6670
  %6672 = vrot.lane.b32.xlu0 %v4916, 56
  %v6673 = vpop.permute.xlu0 %6672
  %6674 = vrot.lane.b32.xlu0 %v4917, 56
  %v6675 = vpop.permute.xlu0 %6674
  %6676 = vrot.lane.b32.xlu0 %v4918, 56
  %v6677 = vpop.permute.xlu0 %6676
  %6678 = vrot.lane.b32.xlu0 %v4919, 56
  %v6679 = vpop.permute.xlu0 %6678
  %6680 = vrot.lane.b32.xlu0 %v4920, 56
  %v6681 = vpop.permute.xlu0 %6680
  %6682 = vrot.lane.b32.xlu0 %v4921, 56
  %v6683 = vpop.permute.xlu0 %6682
  %6684 = vrot.lane.b32.xlu0 %v4922, 56
  %v6685 = vpop.permute.xlu0 %6684
  %6686 = vrot.lane.b32.xlu0 %v4923, 56
  %v6687 = vpop.permute.xlu0 %6686
  %6688 = vrot.lane.b32.xlu0 %v4924, 56
  %v6689 = vpop.permute.xlu0 %6688
  %6690 = vrot.lane.b32.xlu0 %v4925, 56
  %v6691 = vpop.permute.xlu0 %6690
  %6692 = vrot.lane.b32.xlu0 %v4926, 56
  %v6693 = vpop.permute.xlu0 %6692
  %6694 = vrot.lane.b32.xlu0 %v4927, 56
  %v6695 = vpop.permute.xlu0 %6694
  %6696 = vrot.lane.b32.xlu0 %v4928, 56
  %v6697 = vpop.permute.xlu0 %6696
  %6698 = vrot.lane.b32.xlu0 %v4929, 56
  %v6699 = vpop.permute.xlu0 %6698
  %6700 = vrot.lane.b32.xlu0 %v4930, 56
  %v6701 = vpop.permute.xlu0 %6700
  %6702 = vrot.lane.b32.xlu0 %v4931, 56
  %v6703 = vpop.permute.xlu0 %6702
  %6704 = vrot.lane.b32.xlu0 %v4932, 56
  %v6705 = vpop.permute.xlu0 %6704
  %6706 = vrot.lane.b32.xlu0 %v4933, 56
  %v6707 = vpop.permute.xlu0 %6706
  %6708 = vrot.lane.b32.xlu0 %v4934, 56
  %v6709 = vpop.permute.xlu0 %6708
  %6710 = vrot.lane.b32.xlu0 %v4935, 56
  %v6711 = vpop.permute.xlu0 %6710
  %6712 = vrot.lane.b32.xlu0 %v4936, 56
  %v6713 = vpop.permute.xlu0 %6712
  %6714 = vrot.lane.b32.xlu0 %v4937, 56
  %v6715 = vpop.permute.xlu0 %6714
  %6716 = vrot.lane.b32.xlu0 %v4938, 56
  %v6717 = vpop.permute.xlu0 %6716
  %6718 = vrot.lane.b32.xlu0 %v4939, 56
  %v6719 = vpop.permute.xlu0 %6718
  %6720 = vrot.lane.b32.xlu0 %v4940, 56
  %v6721 = vpop.permute.xlu0 %6720
  %6722 = vrot.lane.b32.xlu0 %v4941, 56
  %v6723 = vpop.permute.xlu0 %6722
  %6724 = vrot.lane.b32.xlu0 %v4942, 56
  %v6725 = vpop.permute.xlu0 %6724
  %6726 = vrot.lane.b32.xlu0 %v4943, 56
  %v6727 = vpop.permute.xlu0 %6726
  %6728 = vrot.lane.b32.xlu0 %v4944, 56
  %v6729 = vpop.permute.xlu0 %6728
  %6730 = vrot.lane.b32.xlu0 %v4945, 56
  %v6731 = vpop.permute.xlu0 %6730
  %6732 = vrot.lane.b32.xlu0 %v4946, 56
  %v6733 = vpop.permute.xlu0 %6732
  %6734 = vrot.lane.b32.xlu0 %v4947, 56
  %v6735 = vpop.permute.xlu0 %6734
  %6736 = vrot.lane.b32.xlu0 %v4948, 56
  %v6737 = vpop.permute.xlu0 %6736
  %6738 = vrot.lane.b32.xlu0 %v4949, 56
  %v6739 = vpop.permute.xlu0 %6738
  %6740 = vrot.lane.b32.xlu0 %v4950, 56
  %v6741 = vpop.permute.xlu0 %6740
  %6742 = vrot.lane.b32.xlu0 %v4951, 56
  %v6743 = vpop.permute.xlu0 %6742
  %6872 = vrot.lane.b32.xlu0 %v4952, 64
  %v6873 = vpop.permute.xlu0 %6872
  %6874 = vrot.lane.b32.xlu0 %v4953, 64
  %v6875 = vpop.permute.xlu0 %6874
  %6876 = vrot.lane.b32.xlu0 %v4954, 64
  %v6877 = vpop.permute.xlu0 %6876
  %6878 = vrot.lane.b32.xlu0 %v4955, 64
  %v6879 = vpop.permute.xlu0 %6878
  %6880 = vrot.lane.b32.xlu0 %v4956, 64
  %v6881 = vpop.permute.xlu0 %6880
  %6882 = vrot.lane.b32.xlu0 %v4957, 64
  %v6883 = vpop.permute.xlu0 %6882
  %6884 = vrot.lane.b32.xlu0 %v4958, 64
  %v6885 = vpop.permute.xlu0 %6884
  %6886 = vrot.lane.b32.xlu0 %v4959, 64
  %v6887 = vpop.permute.xlu0 %6886
  %6888 = vrot.lane.b32.xlu0 %v4960, 64
  %v6889 = vpop.permute.xlu0 %6888
  %6890 = vrot.lane.b32.xlu0 %v4961, 64
  %v6891 = vpop.permute.xlu0 %6890
  %6892 = vrot.lane.b32.xlu0 %v4962, 64
  %v6893 = vpop.permute.xlu0 %6892
  %6894 = vrot.lane.b32.xlu0 %v4963, 64
  %v6895 = vpop.permute.xlu0 %6894
  %6896 = vrot.lane.b32.xlu0 %v4964, 64
  %v6897 = vpop.permute.xlu0 %6896
  %6898 = vrot.lane.b32.xlu0 %v4965, 64
  %v6899 = vpop.permute.xlu0 %6898
  %6900 = vrot.lane.b32.xlu0 %v4966, 64
  %v6901 = vpop.permute.xlu0 %6900
  %6902 = vrot.lane.b32.xlu0 %v4967, 64
  %v6903 = vpop.permute.xlu0 %6902
  %6904 = vrot.lane.b32.xlu0 %v4968, 64
  %v6905 = vpop.permute.xlu0 %6904
  %6906 = vrot.lane.b32.xlu0 %v4969, 64
  %v6907 = vpop.permute.xlu0 %6906
  %6908 = vrot.lane.b32.xlu0 %v4970, 64
  %v6909 = vpop.permute.xlu0 %6908
  %6910 = vrot.lane.b32.xlu0 %v4971, 64
  %v6911 = vpop.permute.xlu0 %6910
  %6912 = vrot.lane.b32.xlu0 %v4972, 64
  %v6913 = vpop.permute.xlu0 %6912
  %6914 = vrot.lane.b32.xlu0 %v4973, 64
  %v6915 = vpop.permute.xlu0 %6914
  %6916 = vrot.lane.b32.xlu0 %v4974, 64
  %v6917 = vpop.permute.xlu0 %6916
  %6918 = vrot.lane.b32.xlu0 %v4975, 64
  %v6919 = vpop.permute.xlu0 %6918
  %6920 = vrot.lane.b32.xlu0 %v4976, 64
  %v6921 = vpop.permute.xlu0 %6920
  %6922 = vrot.lane.b32.xlu0 %v4977, 64
  %v6923 = vpop.permute.xlu0 %6922
  %6924 = vrot.lane.b32.xlu0 %v4978, 64
  %v6925 = vpop.permute.xlu0 %6924
  %6926 = vrot.lane.b32.xlu0 %v4979, 64
  %v6927 = vpop.permute.xlu0 %6926
  %6928 = vrot.lane.b32.xlu0 %v4980, 64
  %v6929 = vpop.permute.xlu0 %6928
  %6930 = vrot.lane.b32.xlu0 %v4981, 64
  %v6931 = vpop.permute.xlu0 %6930
  %6932 = vrot.lane.b32.xlu0 %v4982, 64
  %v6933 = vpop.permute.xlu0 %6932
  %6934 = vrot.lane.b32.xlu0 %v4983, 64
  %v6935 = vpop.permute.xlu0 %6934
  %6936 = vrot.lane.b32.xlu0 %v4984, 64
  %v6937 = vpop.permute.xlu0 %6936
  %6938 = vrot.lane.b32.xlu0 %v4985, 64
  %v6939 = vpop.permute.xlu0 %6938
  %6940 = vrot.lane.b32.xlu0 %v4986, 64
  %v6941 = vpop.permute.xlu0 %6940
  %6942 = vrot.lane.b32.xlu0 %v4987, 64
  %v6943 = vpop.permute.xlu0 %6942
  %6944 = vrot.lane.b32.xlu0 %v4988, 64
  %v6945 = vpop.permute.xlu0 %6944
  %6946 = vrot.lane.b32.xlu0 %v4989, 64
  %v6947 = vpop.permute.xlu0 %6946
  %6948 = vrot.lane.b32.xlu0 %v4990, 64
  %v6949 = vpop.permute.xlu0 %6948
  %6950 = vrot.lane.b32.xlu0 %v4991, 64
  %v6951 = vpop.permute.xlu0 %6950
  %6952 = vrot.lane.b32.xlu0 %v4992, 64
  %v6953 = vpop.permute.xlu0 %6952
  %6954 = vrot.lane.b32.xlu0 %v4993, 64
  %v6955 = vpop.permute.xlu0 %6954
  %6956 = vrot.lane.b32.xlu0 %v4994, 64
  %v6957 = vpop.permute.xlu0 %6956
  %6958 = vrot.lane.b32.xlu0 %v4995, 64
  %v6959 = vpop.permute.xlu0 %6958
  %6960 = vrot.lane.b32.xlu0 %v4996, 64
  %v6961 = vpop.permute.xlu0 %6960
  %6962 = vrot.lane.b32.xlu0 %v4997, 64
  %v6963 = vpop.permute.xlu0 %6962
  %6964 = vrot.lane.b32.xlu0 %v4998, 64
  %v6965 = vpop.permute.xlu0 %6964
  %6966 = vrot.lane.b32.xlu0 %v4999, 64
  %v6967 = vpop.permute.xlu0 %6966
  %6968 = vrot.lane.b32.xlu0 %v5000, 64
  %v6969 = vpop.permute.xlu0 %6968
  %6970 = vrot.lane.b32.xlu0 %v5001, 64
  %v6971 = vpop.permute.xlu0 %6970
  %6972 = vrot.lane.b32.xlu0 %v5002, 64
  %v6973 = vpop.permute.xlu0 %6972
  %6974 = vrot.lane.b32.xlu0 %v5003, 64
  %v6975 = vpop.permute.xlu0 %6974
  %6976 = vrot.lane.b32.xlu0 %v5004, 64
  %v6977 = vpop.permute.xlu0 %6976
  %6978 = vrot.lane.b32.xlu0 %v5005, 64
  %v6979 = vpop.permute.xlu0 %6978
  %6980 = vrot.lane.b32.xlu0 %v5006, 64
  %v6981 = vpop.permute.xlu0 %6980
  %6982 = vrot.lane.b32.xlu0 %v5007, 64
  %v6983 = vpop.permute.xlu0 %6982
  %6984 = vrot.lane.b32.xlu0 %v5008, 64
  %v6985 = vpop.permute.xlu0 %6984
  %6986 = vrot.lane.b32.xlu0 %v5009, 64
  %v6987 = vpop.permute.xlu0 %6986
  %6988 = vrot.lane.b32.xlu0 %v5010, 64
  %v6989 = vpop.permute.xlu0 %6988
  %6990 = vrot.lane.b32.xlu0 %v5011, 64
  %v6991 = vpop.permute.xlu0 %6990
  %6992 = vrot.lane.b32.xlu0 %v5012, 64
  %v6993 = vpop.permute.xlu0 %6992
  %6994 = vrot.lane.b32.xlu0 %v5013, 64
  %v6995 = vpop.permute.xlu0 %6994
  %6996 = vrot.lane.b32.xlu0 %v5014, 64
  %v6997 = vpop.permute.xlu0 %6996
  %6998 = vrot.lane.b32.xlu0 %v5015, 64
  %v6999 = vpop.permute.xlu0 %6998
  %v7064 = vsel %vm27, %v4440, %v5081
  %v7065 = vsel %vm27, %v4441, %v5083
  %v7066 = vsel %vm27, %v4442, %v5085
  %v7067 = vsel %vm27, %v4443, %v5087
  %v7068 = vsel %vm27, %v4444, %v5089
  %v7069 = vsel %vm27, %v4445, %v5091
  %v7070 = vsel %vm27, %v4446, %v5093
  %v7071 = vsel %vm27, %v4447, %v5095
  %v7072 = vsel %vm27, %v4448, %v5097
  %v7073 = vsel %vm27, %v4449, %v5099
  %v7074 = vsel %vm27, %v4450, %v5101
  %v7075 = vsel %vm27, %v4451, %v5103
  %v7076 = vsel %vm27, %v4452, %v5105
  %v7077 = vsel %vm27, %v4453, %v5107
  %v7078 = vsel %vm27, %v4454, %v5109
  %v7079 = vsel %vm27, %v4455, %v5111
  %v7080 = vsel %vm27, %v4456, %v5113
  %v7081 = vsel %vm27, %v4457, %v5115
  %v7082 = vsel %vm27, %v4458, %v5117
  %v7083 = vsel %vm27, %v4459, %v5119
  %v7084 = vsel %vm27, %v4460, %v5121
  %v7085 = vsel %vm27, %v4461, %v5123
  %v7086 = vsel %vm27, %v4462, %v5125
  %v7087 = vsel %vm27, %v4463, %v5127
  %v7088 = vsel %vm27, %v4464, %v5129
  %v7089 = vsel %vm27, %v4465, %v5131
  %v7090 = vsel %vm27, %v4466, %v5133
  %v7091 = vsel %vm27, %v4467, %v5135
  %v7092 = vsel %vm27, %v4468, %v5137
  %v7093 = vsel %vm27, %v4469, %v5139
  %v7094 = vsel %vm27, %v4470, %v5141
  %v7095 = vsel %vm27, %v4471, %v5143
  %v7096 = vsel %vm27, %v4472, %v5145
  %v7097 = vsel %vm27, %v4473, %v5147
  %v7098 = vsel %vm27, %v4474, %v5149
  %v7099 = vsel %vm27, %v4475, %v5151
  %v7100 = vsel %vm27, %v4476, %v5153
  %v7101 = vsel %vm27, %v4477, %v5155
  %v7102 = vsel %vm27, %v4478, %v5157
  %v7103 = vsel %vm27, %v4479, %v5159
  %v7104 = vsel %vm27, %v4480, %v5161
  %v7105 = vsel %vm27, %v4481, %v5163
  %v7106 = vsel %vm27, %v4482, %v5165
  %v7107 = vsel %vm27, %v4483, %v5167
  %v7108 = vsel %vm27, %v4484, %v5169
  %v7109 = vsel %vm27, %v4485, %v5171
  %v7110 = vsel %vm27, %v4486, %v5173
  %v7111 = vsel %vm27, %v4487, %v5175
  %v7112 = vsel %vm27, %v4488, %v5177
  %v7113 = vsel %vm27, %v4489, %v5179
  %v7114 = vsel %vm27, %v4490, %v5181
  %v7115 = vsel %vm27, %v4491, %v5183
  %v7116 = vsel %vm27, %v4492, %v5185
  %v7117 = vsel %vm27, %v4493, %v5187
  %v7118 = vsel %vm27, %v4494, %v5189
  %v7119 = vsel %vm27, %v4495, %v5191
  %v7120 = vsel %vm27, %v4496, %v5193
  %v7121 = vsel %vm27, %v4497, %v5195
  %v7122 = vsel %vm27, %v4498, %v5197
  %v7123 = vsel %vm27, %v4499, %v5199
  %v7124 = vsel %vm27, %v4500, %v5201
  %v7125 = vsel %vm27, %v4501, %v5203
  %v7126 = vsel %vm27, %v4502, %v5205
  %v7127 = vsel %vm27, %v4503, %v5207
  %v7128 = vsel %vm3062, %v7064, %v5337
  %v7129 = vsel %vm3062, %v7065, %v5339
  %v7130 = vsel %vm3062, %v7066, %v5341
  %v7131 = vsel %vm3062, %v7067, %v5343
  %v7132 = vsel %vm3062, %v7068, %v5345
  %v7133 = vsel %vm3062, %v7069, %v5347
  %v7134 = vsel %vm3062, %v7070, %v5349
  %v7135 = vsel %vm3062, %v7071, %v5351
  %v7136 = vsel %vm3062, %v7072, %v5353
  %v7137 = vsel %vm3062, %v7073, %v5355
  %v7138 = vsel %vm3062, %v7074, %v5357
  %v7139 = vsel %vm3062, %v7075, %v5359
  %v7140 = vsel %vm3062, %v7076, %v5361
  %v7141 = vsel %vm3062, %v7077, %v5363
  %v7142 = vsel %vm3062, %v7078, %v5365
  %v7143 = vsel %vm3062, %v7079, %v5367
  %v7144 = vsel %vm3062, %v7080, %v5369
  %v7145 = vsel %vm3062, %v7081, %v5371
  %v7146 = vsel %vm3062, %v7082, %v5373
  %v7147 = vsel %vm3062, %v7083, %v5375
  %v7148 = vsel %vm3062, %v7084, %v5377
  %v7149 = vsel %vm3062, %v7085, %v5379
  %v7150 = vsel %vm3062, %v7086, %v5381
  %v7151 = vsel %vm3062, %v7087, %v5383
  %v7152 = vsel %vm3062, %v7088, %v5385
  %v7153 = vsel %vm3062, %v7089, %v5387
  %v7154 = vsel %vm3062, %v7090, %v5389
  %v7155 = vsel %vm3062, %v7091, %v5391
  %v7156 = vsel %vm3062, %v7092, %v5393
  %v7157 = vsel %vm3062, %v7093, %v5395
  %v7158 = vsel %vm3062, %v7094, %v5397
  %v7159 = vsel %vm3062, %v7095, %v5399
  %v7160 = vsel %vm3062, %v7096, %v5401
  %v7161 = vsel %vm3062, %v7097, %v5403
  %v7162 = vsel %vm3062, %v7098, %v5405
  %v7163 = vsel %vm3062, %v7099, %v5407
  %v7164 = vsel %vm3062, %v7100, %v5409
  %v7165 = vsel %vm3062, %v7101, %v5411
  %v7166 = vsel %vm3062, %v7102, %v5413
  %v7167 = vsel %vm3062, %v7103, %v5415
  %v7168 = vsel %vm3062, %v7104, %v5417
  %v7169 = vsel %vm3062, %v7105, %v5419
  %v7170 = vsel %vm3062, %v7106, %v5421
  %v7171 = vsel %vm3062, %v7107, %v5423
  %v7172 = vsel %vm3062, %v7108, %v5425
  %v7173 = vsel %vm3062, %v7109, %v5427
  %v7174 = vsel %vm3062, %v7110, %v5429
  %v7175 = vsel %vm3062, %v7111, %v5431
  %v7176 = vsel %vm3062, %v7112, %v5433
  %v7177 = vsel %vm3062, %v7113, %v5435
  %v7178 = vsel %vm3062, %v7114, %v5437
  %v7179 = vsel %vm3062, %v7115, %v5439
  %v7180 = vsel %vm3062, %v7116, %v5441
  %v7181 = vsel %vm3062, %v7117, %v5443
  %v7182 = vsel %vm3062, %v7118, %v5445
  %v7183 = vsel %vm3062, %v7119, %v5447
  %v7184 = vsel %vm3062, %v7120, %v5449
  %v7185 = vsel %vm3062, %v7121, %v5451
  %v7186 = vsel %vm3062, %v7122, %v5453
  %v7187 = vsel %vm3062, %v7123, %v5455
  %v7188 = vsel %vm3062, %v7124, %v5457
  %v7189 = vsel %vm3062, %v7125, %v5459
  %v7190 = vsel %vm3062, %v7126, %v5461
  %v7191 = vsel %vm3062, %v7127, %v5463
  %v7192 = vsel %vm3192, %v7128, %v5593
  %v7193 = vsel %vm3192, %v7129, %v5595
  %v7194 = vsel %vm3192, %v7130, %v5597
  %v7195 = vsel %vm3192, %v7131, %v5599
  %v7196 = vsel %vm3192, %v7132, %v5601
  %v7197 = vsel %vm3192, %v7133, %v5603
  %v7198 = vsel %vm3192, %v7134, %v5605
  %v7199 = vsel %vm3192, %v7135, %v5607
  %v7200 = vsel %vm3192, %v7136, %v5609
  %v7201 = vsel %vm3192, %v7137, %v5611
  %v7202 = vsel %vm3192, %v7138, %v5613
  %v7203 = vsel %vm3192, %v7139, %v5615
  %v7204 = vsel %vm3192, %v7140, %v5617
  %v7205 = vsel %vm3192, %v7141, %v5619
  %v7206 = vsel %vm3192, %v7142, %v5621
  %v7207 = vsel %vm3192, %v7143, %v5623
  %v7208 = vsel %vm3192, %v7144, %v5625
  %v7209 = vsel %vm3192, %v7145, %v5627
  %v7210 = vsel %vm3192, %v7146, %v5629
  %v7211 = vsel %vm3192, %v7147, %v5631
  %v7212 = vsel %vm3192, %v7148, %v5633
  %v7213 = vsel %vm3192, %v7149, %v5635
  %v7214 = vsel %vm3192, %v7150, %v5637
  %v7215 = vsel %vm3192, %v7151, %v5639
  %v7216 = vsel %vm3192, %v7152, %v5641
  %v7217 = vsel %vm3192, %v7153, %v5643
  %v7218 = vsel %vm3192, %v7154, %v5645
  %v7219 = vsel %vm3192, %v7155, %v5647
  %v7220 = vsel %vm3192, %v7156, %v5649
  %v7221 = vsel %vm3192, %v7157, %v5651
  %v7222 = vsel %vm3192, %v7158, %v5653
  %v7223 = vsel %vm3192, %v7159, %v5655
  %v7224 = vsel %vm3192, %v7160, %v5657
  %v7225 = vsel %vm3192, %v7161, %v5659
  %v7226 = vsel %vm3192, %v7162, %v5661
  %v7227 = vsel %vm3192, %v7163, %v5663
  %v7228 = vsel %vm3192, %v7164, %v5665
  %v7229 = vsel %vm3192, %v7165, %v5667
  %v7230 = vsel %vm3192, %v7166, %v5669
  %v7231 = vsel %vm3192, %v7167, %v5671
  %v7232 = vsel %vm3192, %v7168, %v5673
  %v7233 = vsel %vm3192, %v7169, %v5675
  %v7234 = vsel %vm3192, %v7170, %v5677
  %v7235 = vsel %vm3192, %v7171, %v5679
  %v7236 = vsel %vm3192, %v7172, %v5681
  %v7237 = vsel %vm3192, %v7173, %v5683
  %v7238 = vsel %vm3192, %v7174, %v5685
  %v7239 = vsel %vm3192, %v7175, %v5687
  %v7240 = vsel %vm3192, %v7176, %v5689
  %v7241 = vsel %vm3192, %v7177, %v5691
  %v7242 = vsel %vm3192, %v7178, %v5693
  %v7243 = vsel %vm3192, %v7179, %v5695
  %v7244 = vsel %vm3192, %v7180, %v5697
  %v7245 = vsel %vm3192, %v7181, %v5699
  %v7246 = vsel %vm3192, %v7182, %v5701
  %v7247 = vsel %vm3192, %v7183, %v5703
  %v7248 = vsel %vm3192, %v7184, %v5705
  %v7249 = vsel %vm3192, %v7185, %v5707
  %v7250 = vsel %vm3192, %v7186, %v5709
  %v7251 = vsel %vm3192, %v7187, %v5711
  %v7252 = vsel %vm3192, %v7188, %v5713
  %v7253 = vsel %vm3192, %v7189, %v5715
  %v7254 = vsel %vm3192, %v7190, %v5717
  %v7255 = vsel %vm3192, %v7191, %v5719
  %v7256 = vsel %vm3322, %v7192, %v5849
  %v7257 = vsel %vm3322, %v7193, %v5851
  %v7258 = vsel %vm3322, %v7194, %v5853
  %v7259 = vsel %vm3322, %v7195, %v5855
  %v7260 = vsel %vm3322, %v7196, %v5857
  %v7261 = vsel %vm3322, %v7197, %v5859
  %v7262 = vsel %vm3322, %v7198, %v5861
  %v7263 = vsel %vm3322, %v7199, %v5863
  %v7264 = vsel %vm3322, %v7200, %v5865
  %v7265 = vsel %vm3322, %v7201, %v5867
  %v7266 = vsel %vm3322, %v7202, %v5869
  %v7267 = vsel %vm3322, %v7203, %v5871
  %v7268 = vsel %vm3322, %v7204, %v5873
  %v7269 = vsel %vm3322, %v7205, %v5875
  %v7270 = vsel %vm3322, %v7206, %v5877
  %v7271 = vsel %vm3322, %v7207, %v5879
  %v7272 = vsel %vm3322, %v7208, %v5881
  %v7273 = vsel %vm3322, %v7209, %v5883
  %v7274 = vsel %vm3322, %v7210, %v5885
  %v7275 = vsel %vm3322, %v7211, %v5887
  %v7276 = vsel %vm3322, %v7212, %v5889
  %v7277 = vsel %vm3322, %v7213, %v5891
  %v7278 = vsel %vm3322, %v7214, %v5893
  %v7279 = vsel %vm3322, %v7215, %v5895
  %v7280 = vsel %vm3322, %v7216, %v5897
  %v7281 = vsel %vm3322, %v7217, %v5899
  %v7282 = vsel %vm3322, %v7218, %v5901
  %v7283 = vsel %vm3322, %v7219, %v5903
  %v7284 = vsel %vm3322, %v7220, %v5905
  %v7285 = vsel %vm3322, %v7221, %v5907
  %v7286 = vsel %vm3322, %v7222, %v5909
  %v7287 = vsel %vm3322, %v7223, %v5911
  %v7288 = vsel %vm3322, %v7224, %v5913
  %v7289 = vsel %vm3322, %v7225, %v5915
  %v7290 = vsel %vm3322, %v7226, %v5917
  %v7291 = vsel %vm3322, %v7227, %v5919
  %v7292 = vsel %vm3322, %v7228, %v5921
  %v7293 = vsel %vm3322, %v7229, %v5923
  %v7294 = vsel %vm3322, %v7230, %v5925
  %v7295 = vsel %vm3322, %v7231, %v5927
  %v7296 = vsel %vm3322, %v7232, %v5929
  %v7297 = vsel %vm3322, %v7233, %v5931
  %v7298 = vsel %vm3322, %v7234, %v5933
  %v7299 = vsel %vm3322, %v7235, %v5935
  %v7300 = vsel %vm3322, %v7236, %v5937
  %v7301 = vsel %vm3322, %v7237, %v5939
  %v7302 = vsel %vm3322, %v7238, %v5941
  %v7303 = vsel %vm3322, %v7239, %v5943
  %v7304 = vsel %vm3322, %v7240, %v5945
  %v7305 = vsel %vm3322, %v7241, %v5947
  %v7306 = vsel %vm3322, %v7242, %v5949
  %v7307 = vsel %vm3322, %v7243, %v5951
  %v7308 = vsel %vm3322, %v7244, %v5953
  %v7309 = vsel %vm3322, %v7245, %v5955
  %v7310 = vsel %vm3322, %v7246, %v5957
  %v7311 = vsel %vm3322, %v7247, %v5959
  %v7312 = vsel %vm3322, %v7248, %v5961
  %v7313 = vsel %vm3322, %v7249, %v5963
  %v7314 = vsel %vm3322, %v7250, %v5965
  %v7315 = vsel %vm3322, %v7251, %v5967
  %v7316 = vsel %vm3322, %v7252, %v5969
  %v7317 = vsel %vm3322, %v7253, %v5971
  %v7318 = vsel %vm3322, %v7254, %v5973
  %v7319 = vsel %vm3322, %v7255, %v5975
  %vm7320 = vcmask 326656
  %v7321 = vsel %vm7320, %v7256, %v6105
  %v7322 = vsel %vm7320, %v7257, %v6107
  %v7323 = vsel %vm7320, %v7258, %v6109
  %v7324 = vsel %vm7320, %v7259, %v6111
  %v7325 = vsel %vm7320, %v7260, %v6113
  %v7326 = vsel %vm7320, %v7261, %v6115
  %v7327 = vsel %vm7320, %v7262, %v6117
  %v7328 = vsel %vm7320, %v7263, %v6119
  %v7329 = vsel %vm7320, %v7264, %v6121
  %v7330 = vsel %vm7320, %v7265, %v6123
  %v7331 = vsel %vm7320, %v7266, %v6125
  %v7332 = vsel %vm7320, %v7267, %v6127
  %v7333 = vsel %vm7320, %v7268, %v6129
  %v7334 = vsel %vm7320, %v7269, %v6131
  %v7335 = vsel %vm7320, %v7270, %v6133
  %v7336 = vsel %vm7320, %v7271, %v6135
  %v7337 = vsel %vm7320, %v7272, %v6137
  %v7338 = vsel %vm7320, %v7273, %v6139
  %v7339 = vsel %vm7320, %v7274, %v6141
  %v7340 = vsel %vm7320, %v7275, %v6143
  %v7341 = vsel %vm7320, %v7276, %v6145
  %v7342 = vsel %vm7320, %v7277, %v6147
  %v7343 = vsel %vm7320, %v7278, %v6149
  %v7344 = vsel %vm7320, %v7279, %v6151
  %v7345 = vsel %vm7320, %v7280, %v6153
  %v7346 = vsel %vm7320, %v7281, %v6155
  %v7347 = vsel %vm7320, %v7282, %v6157
  %v7348 = vsel %vm7320, %v7283, %v6159
  %v7349 = vsel %vm7320, %v7284, %v6161
  %v7350 = vsel %vm7320, %v7285, %v6163
  %v7351 = vsel %vm7320, %v7286, %v6165
  %v7352 = vsel %vm7320, %v7287, %v6167
  %v7353 = vsel %vm7320, %v7288, %v6169
  %v7354 = vsel %vm7320, %v7289, %v6171
  %v7355 = vsel %vm7320, %v7290, %v6173
  %v7356 = vsel %vm7320, %v7291, %v6175
  %v7357 = vsel %vm7320, %v7292, %v6177
  %v7358 = vsel %vm7320, %v7293, %v6179
  %v7359 = vsel %vm7320, %v7294, %v6181
  %v7360 = vsel %vm7320, %v7295, %v6183
  %v7361 = vsel %vm7320, %v7296, %v6185
  %v7362 = vsel %vm7320, %v7297, %v6187
  %v7363 = vsel %vm7320, %v7298, %v6189
  %v7364 = vsel %vm7320, %v7299, %v6191
  %v7365 = vsel %vm7320, %v7300, %v6193
  %v7366 = vsel %vm7320, %v7301, %v6195
  %v7367 = vsel %vm7320, %v7302, %v6197
  %v7368 = vsel %vm7320, %v7303, %v6199
  %v7369 = vsel %vm7320, %v7304, %v6201
  %v7370 = vsel %vm7320, %v7305, %v6203
  %v7371 = vsel %vm7320, %v7306, %v6205
  %v7372 = vsel %vm7320, %v7307, %v6207
  %v7373 = vsel %vm7320, %v7308, %v6209
  %v7374 = vsel %vm7320, %v7309, %v6211
  %v7375 = vsel %vm7320, %v7310, %v6213
  %v7376 = vsel %vm7320, %v7311, %v6215
  %v7377 = vsel %vm7320, %v7312, %v6217
  %v7378 = vsel %vm7320, %v7313, %v6219
  %v7379 = vsel %vm7320, %v7314, %v6221
  %v7380 = vsel %vm7320, %v7315, %v6223
  %v7381 = vsel %vm7320, %v7316, %v6225
  %v7382 = vsel %vm7320, %v7317, %v6227
  %v7383 = vsel %vm7320, %v7318, %v6229
  %v7384 = vsel %vm7320, %v7319, %v6231
  %vm7385 = vcmask 392192
  %v7386 = vsel %vm7385, %v7321, %v6361
  %v7387 = vsel %vm7385, %v7322, %v6363
  %v7388 = vsel %vm7385, %v7323, %v6365
  %v7389 = vsel %vm7385, %v7324, %v6367
  %v7390 = vsel %vm7385, %v7325, %v6369
  %v7391 = vsel %vm7385, %v7326, %v6371
  %v7392 = vsel %vm7385, %v7327, %v6373
  %v7393 = vsel %vm7385, %v7328, %v6375
  %v7394 = vsel %vm7385, %v7329, %v6377
  %v7395 = vsel %vm7385, %v7330, %v6379
  %v7396 = vsel %vm7385, %v7331, %v6381
  %v7397 = vsel %vm7385, %v7332, %v6383
  %v7398 = vsel %vm7385, %v7333, %v6385
  %v7399 = vsel %vm7385, %v7334, %v6387
  %v7400 = vsel %vm7385, %v7335, %v6389
  %v7401 = vsel %vm7385, %v7336, %v6391
  %v7402 = vsel %vm7385, %v7337, %v6393
  %v7403 = vsel %vm7385, %v7338, %v6395
  %v7404 = vsel %vm7385, %v7339, %v6397
  %v7405 = vsel %vm7385, %v7340, %v6399
  %v7406 = vsel %vm7385, %v7341, %v6401
  %v7407 = vsel %vm7385, %v7342, %v6403
  %v7408 = vsel %vm7385, %v7343, %v6405
  %v7409 = vsel %vm7385, %v7344, %v6407
  %v7410 = vsel %vm7385, %v7345, %v6409
  %v7411 = vsel %vm7385, %v7346, %v6411
  %v7412 = vsel %vm7385, %v7347, %v6413
  %v7413 = vsel %vm7385, %v7348, %v6415
  %v7414 = vsel %vm7385, %v7349, %v6417
  %v7415 = vsel %vm7385, %v7350, %v6419
  %v7416 = vsel %vm7385, %v7351, %v6421
  %v7417 = vsel %vm7385, %v7352, %v6423
  %v7418 = vsel %vm7385, %v7353, %v6425
  %v7419 = vsel %vm7385, %v7354, %v6427
  %v7420 = vsel %vm7385, %v7355, %v6429
  %v7421 = vsel %vm7385, %v7356, %v6431
  %v7422 = vsel %vm7385, %v7357, %v6433
  %v7423 = vsel %vm7385, %v7358, %v6435
  %v7424 = vsel %vm7385, %v7359, %v6437
  %v7425 = vsel %vm7385, %v7360, %v6439
  %v7426 = vsel %vm7385, %v7361, %v6441
  %v7427 = vsel %vm7385, %v7362, %v6443
  %v7428 = vsel %vm7385, %v7363, %v6445
  %v7429 = vsel %vm7385, %v7364, %v6447
  %v7430 = vsel %vm7385, %v7365, %v6449
  %v7431 = vsel %vm7385, %v7366, %v6451
  %v7432 = vsel %vm7385, %v7367, %v6453
  %v7433 = vsel %vm7385, %v7368, %v6455
  %v7434 = vsel %vm7385, %v7369, %v6457
  %v7435 = vsel %vm7385, %v7370, %v6459
  %v7436 = vsel %vm7385, %v7371, %v6461
  %v7437 = vsel %vm7385, %v7372, %v6463
  %v7438 = vsel %vm7385, %v7373, %v6465
  %v7439 = vsel %vm7385, %v7374, %v6467
  %v7440 = vsel %vm7385, %v7375, %v6469
  %v7441 = vsel %vm7385, %v7376, %v6471
  %v7442 = vsel %vm7385, %v7377, %v6473
  %v7443 = vsel %vm7385, %v7378, %v6475
  %v7444 = vsel %vm7385, %v7379, %v6477
  %v7445 = vsel %vm7385, %v7380, %v6479
  %v7446 = vsel %vm7385, %v7381, %v6481
  %v7447 = vsel %vm7385, %v7382, %v6483
  %v7448 = vsel %vm7385, %v7383, %v6485
  %v7449 = vsel %vm7385, %v7384, %v6487
  %vm7450 = vcmask 457728
  %v7451 = vsel %vm7450, %v7386, %v6617
  %v7452 = vsel %vm7450, %v7387, %v6619
  %v7453 = vsel %vm7450, %v7388, %v6621
  %v7454 = vsel %vm7450, %v7389, %v6623
  %v7455 = vsel %vm7450, %v7390, %v6625
  %v7456 = vsel %vm7450, %v7391, %v6627
  %v7457 = vsel %vm7450, %v7392, %v6629
  %v7458 = vsel %vm7450, %v7393, %v6631
  %v7459 = vsel %vm7450, %v7394, %v6633
  %v7460 = vsel %vm7450, %v7395, %v6635
  %v7461 = vsel %vm7450, %v7396, %v6637
  %v7462 = vsel %vm7450, %v7397, %v6639
  %v7463 = vsel %vm7450, %v7398, %v6641
  %v7464 = vsel %vm7450, %v7399, %v6643
  %v7465 = vsel %vm7450, %v7400, %v6645
  %v7466 = vsel %vm7450, %v7401, %v6647
  %v7467 = vsel %vm7450, %v7402, %v6649
  %v7468 = vsel %vm7450, %v7403, %v6651
  %v7469 = vsel %vm7450, %v7404, %v6653
  %v7470 = vsel %vm7450, %v7405, %v6655
  %v7471 = vsel %vm7450, %v7406, %v6657
  %v7472 = vsel %vm7450, %v7407, %v6659
  %v7473 = vsel %vm7450, %v7408, %v6661
  %v7474 = vsel %vm7450, %v7409, %v6663
  %v7475 = vsel %vm7450, %v7410, %v6665
  %v7476 = vsel %vm7450, %v7411, %v6667
  %v7477 = vsel %vm7450, %v7412, %v6669
  %v7478 = vsel %vm7450, %v7413, %v6671
  %v7479 = vsel %vm7450, %v7414, %v6673
  %v7480 = vsel %vm7450, %v7415, %v6675
  %v7481 = vsel %vm7450, %v7416, %v6677
  %v7482 = vsel %vm7450, %v7417, %v6679
  %v7483 = vsel %vm7450, %v7418, %v6681
  %v7484 = vsel %vm7450, %v7419, %v6683
  %v7485 = vsel %vm7450, %v7420, %v6685
  %v7486 = vsel %vm7450, %v7421, %v6687
  %v7487 = vsel %vm7450, %v7422, %v6689
  %v7488 = vsel %vm7450, %v7423, %v6691
  %v7489 = vsel %vm7450, %v7424, %v6693
  %v7490 = vsel %vm7450, %v7425, %v6695
  %v7491 = vsel %vm7450, %v7426, %v6697
  %v7492 = vsel %vm7450, %v7427, %v6699
  %v7493 = vsel %vm7450, %v7428, %v6701
  %v7494 = vsel %vm7450, %v7429, %v6703
  %v7495 = vsel %vm7450, %v7430, %v6705
  %v7496 = vsel %vm7450, %v7431, %v6707
  %v7497 = vsel %vm7450, %v7432, %v6709
  %v7498 = vsel %vm7450, %v7433, %v6711
  %v7499 = vsel %vm7450, %v7434, %v6713
  %v7500 = vsel %vm7450, %v7435, %v6715
  %v7501 = vsel %vm7450, %v7436, %v6717
  %v7502 = vsel %vm7450, %v7437, %v6719
  %v7503 = vsel %vm7450, %v7438, %v6721
  %v7504 = vsel %vm7450, %v7439, %v6723
  %v7505 = vsel %vm7450, %v7440, %v6725
  %v7506 = vsel %vm7450, %v7441, %v6727
  %v7507 = vsel %vm7450, %v7442, %v6729
  %v7508 = vsel %vm7450, %v7443, %v6731
  %v7509 = vsel %vm7450, %v7444, %v6733
  %v7510 = vsel %vm7450, %v7445, %v6735
  %v7511 = vsel %vm7450, %v7446, %v6737
  %v7512 = vsel %vm7450, %v7447, %v6739
  %v7513 = vsel %vm7450, %v7448, %v6741
  %v7514 = vsel %vm7450, %v7449, %v6743
  %vm7515 = vcmask 523264
  %v7516 = vsel %vm7515, %v7451, %v6873
  %v7517 = vsel %vm7515, %v7452, %v6875
  %v7518 = vsel %vm7515, %v7453, %v6877
  %v7519 = vsel %vm7515, %v7454, %v6879
  %v7520 = vsel %vm7515, %v7455, %v6881
  %v7521 = vsel %vm7515, %v7456, %v6883
  %v7522 = vsel %vm7515, %v7457, %v6885
  %v7523 = vsel %vm7515, %v7458, %v6887
  %v7524 = vsel %vm7515, %v7459, %v6889
  %v7525 = vsel %vm7515, %v7460, %v6891
  %v7526 = vsel %vm7515, %v7461, %v6893
  %v7527 = vsel %vm7515, %v7462, %v6895
  %v7528 = vsel %vm7515, %v7463, %v6897
  %v7529 = vsel %vm7515, %v7464, %v6899
  %v7530 = vsel %vm7515, %v7465, %v6901
  %v7531 = vsel %vm7515, %v7466, %v6903
  %v7532 = vsel %vm7515, %v7467, %v6905
  %v7533 = vsel %vm7515, %v7468, %v6907
  %v7534 = vsel %vm7515, %v7469, %v6909
  %v7535 = vsel %vm7515, %v7470, %v6911
  %v7536 = vsel %vm7515, %v7471, %v6913
  %v7537 = vsel %vm7515, %v7472, %v6915
  %v7538 = vsel %vm7515, %v7473, %v6917
  %v7539 = vsel %vm7515, %v7474, %v6919
  %v7540 = vsel %vm7515, %v7475, %v6921
  %v7541 = vsel %vm7515, %v7476, %v6923
  %v7542 = vsel %vm7515, %v7477, %v6925
  %v7543 = vsel %vm7515, %v7478, %v6927
  %v7544 = vsel %vm7515, %v7479, %v6929
  %v7545 = vsel %vm7515, %v7480, %v6931
  %v7546 = vsel %vm7515, %v7481, %v6933
  %v7547 = vsel %vm7515, %v7482, %v6935
  %v7548 = vsel %vm7515, %v7483, %v6937
  %v7549 = vsel %vm7515, %v7484, %v6939
  %v7550 = vsel %vm7515, %v7485, %v6941
  %v7551 = vsel %vm7515, %v7486, %v6943
  %v7552 = vsel %vm7515, %v7487, %v6945
  %v7553 = vsel %vm7515, %v7488, %v6947
  %v7554 = vsel %vm7515, %v7489, %v6949
  %v7555 = vsel %vm7515, %v7490, %v6951
  %v7556 = vsel %vm7515, %v7491, %v6953
  %v7557 = vsel %vm7515, %v7492, %v6955
  %v7558 = vsel %vm7515, %v7493, %v6957
  %v7559 = vsel %vm7515, %v7494, %v6959
  %v7560 = vsel %vm7515, %v7495, %v6961
  %v7561 = vsel %vm7515, %v7496, %v6963
  %v7562 = vsel %vm7515, %v7497, %v6965
  %v7563 = vsel %vm7515, %v7498, %v6967
  %v7564 = vsel %vm7515, %v7499, %v6969
  %v7565 = vsel %vm7515, %v7500, %v6971
  %v7566 = vsel %vm7515, %v7501, %v6973
  %v7567 = vsel %vm7515, %v7502, %v6975
  %v7568 = vsel %vm7515, %v7503, %v6977
  %v7569 = vsel %vm7515, %v7504, %v6979
  %v7570 = vsel %vm7515, %v7505, %v6981
  %v7571 = vsel %vm7515, %v7506, %v6983
  %v7572 = vsel %vm7515, %v7507, %v6985
  %v7573 = vsel %vm7515, %v7508, %v6987
  %v7574 = vsel %vm7515, %v7509, %v6989
  %v7575 = vsel %vm7515, %v7510, %v6991
  %v7576 = vsel %vm7515, %v7511, %v6993
  %v7577 = vsel %vm7515, %v7512, %v6995
  %v7578 = vsel %vm7515, %v7513, %v6997
  %v7579 = vsel %vm7515, %v7514, %v6999
  %v7580 = vpack.c.bf16 %v7517, %v7516
  %v7581 = vpack.c.bf16 %v7519, %v7518
  %v7582 = vpack.c.bf16 %v7521, %v7520
  %v7583 = vpack.c.bf16 %v7523, %v7522
  %v7584 = vpack.c.bf16 %v7525, %v7524
  %v7585 = vpack.c.bf16 %v7527, %v7526
  %v7586 = vpack.c.bf16 %v7529, %v7528
  %v7587 = vpack.c.bf16 %v7531, %v7530
  %v7588 = vpack.c.bf16 %v7533, %v7532
  %v7589 = vpack.c.bf16 %v7535, %v7534
  %v7590 = vpack.c.bf16 %v7537, %v7536
  %v7591 = vpack.c.bf16 %v7539, %v7538
  %v7592 = vpack.c.bf16 %v7541, %v7540
  %v7593 = vpack.c.bf16 %v7543, %v7542
  %v7594 = vpack.c.bf16 %v7545, %v7544
  %v7595 = vpack.c.bf16 %v7547, %v7546
  %v7596 = vpack.c.bf16 %v7549, %v7548
  %v7597 = vpack.c.bf16 %v7551, %v7550
  %v7598 = vpack.c.bf16 %v7553, %v7552
  %v7599 = vpack.c.bf16 %v7555, %v7554
  %v7600 = vpack.c.bf16 %v7557, %v7556
  %v7601 = vpack.c.bf16 %v7559, %v7558
  %v7602 = vpack.c.bf16 %v7561, %v7560
  %v7603 = vpack.c.bf16 %v7563, %v7562
  %v7604 = vpack.c.bf16 %v7565, %v7564
  %v7605 = vpack.c.bf16 %v7567, %v7566
  %v7606 = vpack.c.bf16 %v7569, %v7568
  %v7607 = vpack.c.bf16 %v7571, %v7570
  %v7608 = vpack.c.bf16 %v7573, %v7572
  %v7609 = vpack.c.bf16 %v7575, %v7574
  %v7610 = vpack.c.bf16 %v7577, %v7576
  %v7611 = vpack.c.bf16 %v7579, %v7578
  %v7612 = vld [vmem:[%s4] sm:$0xf]
  %v7613 = vld [vmem:[%s4 + $0x4] sm:$0xf]
  %v7614 = vld [vmem:[%s4 + $0x8] sm:$0xf]
  %v7615 = vld [vmem:[%s4 + $0xc] sm:$0xf]
  %v7616 = vld [vmem:[%s4 + $0x10] sm:$0xf]
  %v7617 = vld [vmem:[%s4 + $0x14] sm:$0xf]
  %v7618 = vld [vmem:[%s4 + $0x18] sm:$0xf]
  %v7619 = vld [vmem:[%s4 + $0x1c] sm:$0xf]
  %v7620 = vld [vmem:[%s4 + $0x20] sm:$0xf]
  %v7630 = vunpack.c.l.b16 %v7612
  %v7631 = vunpack.c.l.b16 %v7613
  %v7632 = vunpack.c.l.b16 %v7614
  %v7633 = vunpack.c.l.b16 %v7615
  %v7634 = vunpack.c.l.b16 %v7616
  %v7635 = vunpack.c.l.b16 %v7617
  %v7636 = vunpack.c.l.b16 %v7618
  %v7637 = vunpack.c.l.b16 %v7619
  %v7638 = vunpack.c.l.b16 %v7620
  %v7639 = vpack.c.b16 %v7631, %v7630
  %v7640 = vpack.c.b16 %v7633, %v7632
  %v7641 = vpack.c.b16 %v7635, %v7634
  %v7642 = vpack.c.b16 %v7637, %v7636
  %v7643 = vpack.c.b16 %v7638, %v7638
  %vm7648 = vcmask 588800
  %v7650 = vsel %vm7648, %v7580, 0
  %v7653 = vsel %vm7648, %v7581, 0
  %v7656 = vsel %vm7648, %v7582, 0
  %v7659 = vsel %vm7648, %v7583, 0
  %v7662 = vsel %vm7648, %v7584, 0
  %v7665 = vsel %vm7648, %v7585, 0
  %v7668 = vsel %vm7648, %v7586, 0
  %v7671 = vsel %vm7648, %v7587, 0
  %v7674 = vsel %vm7648, %v7588, 0
  %v7677 = vsel %vm7648, %v7589, 0
  %v7680 = vsel %vm7648, %v7590, 0
  %v7683 = vsel %vm7648, %v7591, 0
  %v7686 = vsel %vm7648, %v7592, 0
  %v7689 = vsel %vm7648, %v7593, 0
  %v7692 = vsel %vm7648, %v7594, 0
  %v7695 = vsel %vm7648, %v7595, 0
  %v7698 = vsel %vm7648, %v7596, 0
  %v7701 = vsel %vm7648, %v7597, 0
  %v7704 = vsel %vm7648, %v7598, 0
  %v7707 = vsel %vm7648, %v7599, 0
  %v7710 = vsel %vm7648, %v7600, 0
  %v7713 = vsel %vm7648, %v7601, 0
  %v7716 = vsel %vm7648, %v7602, 0
  %v7719 = vsel %vm7648, %v7603, 0
  %v7722 = vsel %vm7648, %v7604, 0
  %v7725 = vsel %vm7648, %v7605, 0
  %v7728 = vsel %vm7648, %v7606, 0
  %v7731 = vsel %vm7648, %v7607, 0
  %v7734 = vsel %vm7648, %v7608, 0
  %v7737 = vsel %vm7648, %v7609, 0
  %v7740 = vsel %vm7648, %v7610, 0
  %v7743 = vsel %vm7648, %v7611, 0
  %vm7745 = vcmask 1043456
  %v7747 = vsel %vm7745, %v7643, 0
  %7749 = vmatprep.subr.bf16.mxu0 0
  %7750 = vmatpush1.bf16.msra.mxu0 0
  %7751 = vmatprep.subr.bf16.mxu0 0
  %7752 = vmatpush1.bf16.msra.mxu0 0
  %7753 = vmatprep.subr.bf16.mxu0 0
  %7754 = vmatpush1.bf16.msra.mxu0 0
  %7755 = vmatprep.subr.bf16.mxu0 0
  %7756 = vmatpush1.bf16.msra.mxu0 %v7747
  %7757 = vmatprep.subr.bf16.mxu0 0
  %7758 = vmatpush1.bf16.msra.mxu0 %v7642
  %7759 = vmatprep.subr.bf16.mxu0 0
  %7760 = vmatpush1.bf16.msra.mxu0 %v7641
  %7761 = vmatprep.subr.bf16.mxu0 0
  %7762 = vmatpush1.bf16.msra.mxu0 %v7640
  %7763 = vmatprep.subr.bf16.mxu0 0
  %7764 = vmatpush1.bf16.msra.mxu0 %v7639
  %7765 = vmatprep.subr.bf16.mxu0 0
  %7766 = vmatpush2.bf16.msra.mxu0 0
  %7767 = vmatprep.subr.bf16.mxu0 0
  %7768 = vmatpush2.bf16.msra.mxu0 0
  %7769 = vmatprep.subr.bf16.mxu0 0
  %7770 = vmatpush2.bf16.msra.mxu0 0
  %7771 = vmatprep.subr.bf16.mxu0 0
  %7772 = vmatpush2.bf16.msra.mxu0 0
  %7773 = vmatprep.subr.bf16.mxu0 0
  %7774 = vmatpush2.bf16.msra.mxu0 0
  %7775 = vmatprep.subr.bf16.mxu0 0
  %7776 = vmatpush2.bf16.msra.mxu0 0
  %7777 = vmatprep.subr.bf16.mxu0 0
  %7778 = vmatpush2.bf16.msra.mxu0 0
  %7779 = vmatprep.subr.bf16.mxu0 0
  %7780 = vmatpush2.bf16.msra.mxu0 0
  %7781 = vmatprep.mubr.bf16.mxu0 0
  %7782 = vmatmul.mubr.bf16.gmra.mxu0 %v7650
  %v7783 = vpop.f32.mrf.mxu0
  %v7784 = vadd.f32 0.0, %v7783
  %v7785 = vpop.f32.mrf.mxu0
  %v7786 = vpop.f32.mrf.mxu0
  %v7787 = vadd.f32 0.0, %v7786
  %v7788 = vpop.f32.mrf.mxu0
  %7789 = vmatprep.mubr.bf16.mxu0 0
  %7790 = vmatmul.mubr.bf16.gmra.mxu0 %v7653
  %v7791 = vpop.f32.mrf.mxu0
  %v7792 = vadd.f32 0.0, %v7791
  %v7793 = vpop.f32.mrf.mxu0
  %v7794 = vpop.f32.mrf.mxu0
  %v7795 = vadd.f32 0.0, %v7794
  %v7796 = vpop.f32.mrf.mxu0
  %7797 = vmatprep.mubr.bf16.mxu0 0
  %7798 = vmatmul.mubr.bf16.gmra.mxu0 %v7656
  %v7799 = vpop.f32.mrf.mxu0
  %v7800 = vadd.f32 0.0, %v7799
  %v7801 = vpop.f32.mrf.mxu0
  %v7802 = vpop.f32.mrf.mxu0
  %v7803 = vadd.f32 0.0, %v7802
  %v7804 = vpop.f32.mrf.mxu0
  %7805 = vmatprep.mubr.bf16.mxu0 0
  %7806 = vmatmul.mubr.bf16.gmra.mxu0 %v7659
  %v7807 = vpop.f32.mrf.mxu0
  %v7808 = vadd.f32 0.0, %v7807
  %v7809 = vpop.f32.mrf.mxu0
  %v7810 = vpop.f32.mrf.mxu0
  %v7811 = vadd.f32 0.0, %v7810
  %v7812 = vpop.f32.mrf.mxu0
  %7813 = vmatprep.mubr.bf16.mxu0 0
  %7814 = vmatmul.mubr.bf16.gmra.mxu0 %v7662
  %v7815 = vpop.f32.mrf.mxu0
  %v7816 = vadd.f32 0.0, %v7815
  %v7817 = vpop.f32.mrf.mxu0
  %v7818 = vpop.f32.mrf.mxu0
  %v7819 = vadd.f32 0.0, %v7818
  %v7820 = vpop.f32.mrf.mxu0
  %7821 = vmatprep.mubr.bf16.mxu0 0
  %7822 = vmatmul.mubr.bf16.gmra.mxu0 %v7665
  %v7823 = vpop.f32.mrf.mxu0
  %v7824 = vadd.f32 0.0, %v7823
  %v7825 = vpop.f32.mrf.mxu0
  %v7826 = vpop.f32.mrf.mxu0
  %v7827 = vadd.f32 0.0, %v7826
  %v7828 = vpop.f32.mrf.mxu0
  %7829 = vmatprep.mubr.bf16.mxu0 0
  %7830 = vmatmul.mubr.bf16.gmra.mxu0 %v7668
  %v7831 = vpop.f32.mrf.mxu0
  %v7832 = vadd.f32 0.0, %v7831
  %v7833 = vpop.f32.mrf.mxu0
  %v7834 = vpop.f32.mrf.mxu0
  %v7835 = vadd.f32 0.0, %v7834
  %v7836 = vpop.f32.mrf.mxu0
  %7837 = vmatprep.mubr.bf16.mxu0 0
  %7838 = vmatmul.mubr.bf16.gmra.mxu0 %v7671
  %v7839 = vpop.f32.mrf.mxu0
  %v7840 = vadd.f32 0.0, %v7839
  %v7841 = vpop.f32.mrf.mxu0
  %v7842 = vpop.f32.mrf.mxu0
  %v7843 = vadd.f32 0.0, %v7842
  %v7844 = vpop.f32.mrf.mxu0
  %7845 = vmatprep.mubr.bf16.mxu0 0
  %7846 = vmatmul.mubr.bf16.gmra.mxu0 %v7674
  %v7847 = vpop.f32.mrf.mxu0
  %v7848 = vadd.f32 0.0, %v7847
  %v7849 = vpop.f32.mrf.mxu0
  %v7850 = vpop.f32.mrf.mxu0
  %v7851 = vadd.f32 0.0, %v7850
  %v7852 = vpop.f32.mrf.mxu0
  %7853 = vmatprep.mubr.bf16.mxu0 0
  %7854 = vmatmul.mubr.bf16.gmra.mxu0 %v7677
  %v7855 = vpop.f32.mrf.mxu0
  %v7856 = vadd.f32 0.0, %v7855
  %v7857 = vpop.f32.mrf.mxu0
  %v7858 = vpop.f32.mrf.mxu0
  %v7859 = vadd.f32 0.0, %v7858
  %v7860 = vpop.f32.mrf.mxu0
  %7861 = vmatprep.mubr.bf16.mxu0 0
  %7862 = vmatmul.mubr.bf16.gmra.mxu0 %v7680
  %v7863 = vpop.f32.mrf.mxu0
  %v7864 = vadd.f32 0.0, %v7863
  %v7865 = vpop.f32.mrf.mxu0
  %v7866 = vpop.f32.mrf.mxu0
  %v7867 = vadd.f32 0.0, %v7866
  %v7868 = vpop.f32.mrf.mxu0
  %7869 = vmatprep.mubr.bf16.mxu0 0
  %7870 = vmatmul.mubr.bf16.gmra.mxu0 %v7683
  %v7871 = vpop.f32.mrf.mxu0
  %v7872 = vadd.f32 0.0, %v7871
  %v7873 = vpop.f32.mrf.mxu0
  %v7874 = vpop.f32.mrf.mxu0
  %v7875 = vadd.f32 0.0, %v7874
  %v7876 = vpop.f32.mrf.mxu0
  %7877 = vmatprep.mubr.bf16.mxu0 0
  %7878 = vmatmul.mubr.bf16.gmra.mxu0 %v7686
  %v7879 = vpop.f32.mrf.mxu0
  %v7880 = vadd.f32 0.0, %v7879
  %v7881 = vpop.f32.mrf.mxu0
  %v7882 = vpop.f32.mrf.mxu0
  %v7883 = vadd.f32 0.0, %v7882
  %v7884 = vpop.f32.mrf.mxu0
  %7885 = vmatprep.mubr.bf16.mxu0 0
  %7886 = vmatmul.mubr.bf16.gmra.mxu0 %v7689
  %v7887 = vpop.f32.mrf.mxu0
  %v7888 = vadd.f32 0.0, %v7887
  %v7889 = vpop.f32.mrf.mxu0
  %v7890 = vpop.f32.mrf.mxu0
  %v7891 = vadd.f32 0.0, %v7890
  %v7892 = vpop.f32.mrf.mxu0
  %7893 = vmatprep.mubr.bf16.mxu0 0
  %7894 = vmatmul.mubr.bf16.gmra.mxu0 %v7692
  %v7895 = vpop.f32.mrf.mxu0
  %v7896 = vadd.f32 0.0, %v7895
  %v7897 = vpop.f32.mrf.mxu0
  %v7898 = vpop.f32.mrf.mxu0
  %v7899 = vadd.f32 0.0, %v7898
  %v7900 = vpop.f32.mrf.mxu0
  %7901 = vmatprep.mubr.bf16.mxu0 0
  %7902 = vmatmul.mubr.bf16.gmra.mxu0 %v7695
  %v7903 = vpop.f32.mrf.mxu0
  %v7904 = vadd.f32 0.0, %v7903
  %v7905 = vpop.f32.mrf.mxu0
  %v7906 = vpop.f32.mrf.mxu0
  %v7907 = vadd.f32 0.0, %v7906
  %v7908 = vpop.f32.mrf.mxu0
  %7909 = vmatprep.mubr.bf16.mxu0 0
  %7910 = vmatmul.mubr.bf16.gmra.mxu0 %v7698
  %v7911 = vpop.f32.mrf.mxu0
  %v7912 = vadd.f32 0.0, %v7911
  %v7913 = vpop.f32.mrf.mxu0
  %v7914 = vpop.f32.mrf.mxu0
  %v7915 = vadd.f32 0.0, %v7914
  %v7916 = vpop.f32.mrf.mxu0
  %7917 = vmatprep.mubr.bf16.mxu0 0
  %7918 = vmatmul.mubr.bf16.gmra.mxu0 %v7701
  %v7919 = vpop.f32.mrf.mxu0
  %v7920 = vadd.f32 0.0, %v7919
  %v7921 = vpop.f32.mrf.mxu0
  %v7922 = vpop.f32.mrf.mxu0
  %v7923 = vadd.f32 0.0, %v7922
  %v7924 = vpop.f32.mrf.mxu0
  %7925 = vmatprep.mubr.bf16.mxu0 0
  %7926 = vmatmul.mubr.bf16.gmra.mxu0 %v7704
  %v7927 = vpop.f32.mrf.mxu0
  %v7928 = vadd.f32 0.0, %v7927
  %v7929 = vpop.f32.mrf.mxu0
  %v7930 = vpop.f32.mrf.mxu0
  %v7931 = vadd.f32 0.0, %v7930
  %v7932 = vpop.f32.mrf.mxu0
  %7933 = vmatprep.mubr.bf16.mxu0 0
  %7934 = vmatmul.mubr.bf16.gmra.mxu0 %v7707
  %v7935 = vpop.f32.mrf.mxu0
  %v7936 = vadd.f32 0.0, %v7935
  %v7937 = vpop.f32.mrf.mxu0
  %v7938 = vpop.f32.mrf.mxu0
  %v7939 = vadd.f32 0.0, %v7938
  %v7940 = vpop.f32.mrf.mxu0
  %7941 = vmatprep.mubr.bf16.mxu0 0
  %7942 = vmatmul.mubr.bf16.gmra.mxu0 %v7710
  %v7943 = vpop.f32.mrf.mxu0
  %v7944 = vadd.f32 0.0, %v7943
  %v7945 = vpop.f32.mrf.mxu0
  %v7946 = vpop.f32.mrf.mxu0
  %v7947 = vadd.f32 0.0, %v7946
  %v7948 = vpop.f32.mrf.mxu0
  %7949 = vmatprep.mubr.bf16.mxu0 0
  %7950 = vmatmul.mubr.bf16.gmra.mxu0 %v7713
  %v7951 = vpop.f32.mrf.mxu0
  %v7952 = vadd.f32 0.0, %v7951
  %v7953 = vpop.f32.mrf.mxu0
  %v7954 = vpop.f32.mrf.mxu0
  %v7955 = vadd.f32 0.0, %v7954
  %v7956 = vpop.f32.mrf.mxu0
  %7957 = vmatprep.mubr.bf16.mxu0 0
  %7958 = vmatmul.mubr.bf16.gmra.mxu0 %v7716
  %v7959 = vpop.f32.mrf.mxu0
  %v7960 = vadd.f32 0.0, %v7959
  %v7961 = vpop.f32.mrf.mxu0
  %v7962 = vpop.f32.mrf.mxu0
  %v7963 = vadd.f32 0.0, %v7962
  %v7964 = vpop.f32.mrf.mxu0
  %7965 = vmatprep.mubr.bf16.mxu0 0
  %7966 = vmatmul.mubr.bf16.gmra.mxu0 %v7719
  %v7967 = vpop.f32.mrf.mxu0
  %v7968 = vadd.f32 0.0, %v7967
  %v7969 = vpop.f32.mrf.mxu0
  %v7970 = vpop.f32.mrf.mxu0
  %v7971 = vadd.f32 0.0, %v7970
  %v7972 = vpop.f32.mrf.mxu0
  %7973 = vmatprep.mubr.bf16.mxu0 0
  %7974 = vmatmul.mubr.bf16.gmra.mxu0 %v7722
  %v7975 = vpop.f32.mrf.mxu0
  %v7976 = vadd.f32 0.0, %v7975
  %v7977 = vpop.f32.mrf.mxu0
  %v7978 = vpop.f32.mrf.mxu0
  %v7979 = vadd.f32 0.0, %v7978
  %v7980 = vpop.f32.mrf.mxu0
  %7981 = vmatprep.mubr.bf16.mxu0 0
  %7982 = vmatmul.mubr.bf16.gmra.mxu0 %v7725
  %v7983 = vpop.f32.mrf.mxu0
  %v7984 = vadd.f32 0.0, %v7983
  %v7985 = vpop.f32.mrf.mxu0
  %v7986 = vpop.f32.mrf.mxu0
  %v7987 = vadd.f32 0.0, %v7986
  %v7988 = vpop.f32.mrf.mxu0
  %7989 = vmatprep.mubr.bf16.mxu0 0
  %7990 = vmatmul.mubr.bf16.gmra.mxu0 %v7728
  %v7991 = vpop.f32.mrf.mxu0
  %v7992 = vadd.f32 0.0, %v7991
  %v7993 = vpop.f32.mrf.mxu0
  %v7994 = vpop.f32.mrf.mxu0
  %v7995 = vadd.f32 0.0, %v7994
  %v7996 = vpop.f32.mrf.mxu0
  %7997 = vmatprep.mubr.bf16.mxu0 0
  %7998 = vmatmul.mubr.bf16.gmra.mxu0 %v7731
  %v7999 = vpop.f32.mrf.mxu0
  %v8000 = vadd.f32 0.0, %v7999
  %v8001 = vpop.f32.mrf.mxu0
  %v8002 = vpop.f32.mrf.mxu0
  %v8003 = vadd.f32 0.0, %v8002
  %v8004 = vpop.f32.mrf.mxu0
  %8005 = vmatprep.mubr.bf16.mxu0 0
  %8006 = vmatmul.mubr.bf16.gmra.mxu0 %v7734
  %v8007 = vpop.f32.mrf.mxu0
  %v8008 = vadd.f32 0.0, %v8007
  %v8009 = vpop.f32.mrf.mxu0
  %v8010 = vpop.f32.mrf.mxu0
  %v8011 = vadd.f32 0.0, %v8010
  %v8012 = vpop.f32.mrf.mxu0
  %8013 = vmatprep.mubr.bf16.mxu0 0
  %8014 = vmatmul.mubr.bf16.gmra.mxu0 %v7737
  %v8015 = vpop.f32.mrf.mxu0
  %v8016 = vadd.f32 0.0, %v8015
  %v8017 = vpop.f32.mrf.mxu0
  %v8018 = vpop.f32.mrf.mxu0
  %v8019 = vadd.f32 0.0, %v8018
  %v8020 = vpop.f32.mrf.mxu0
  %8021 = vmatprep.mubr.bf16.mxu0 0
  %8022 = vmatmul.mubr.bf16.gmra.mxu0 %v7740
  %v8023 = vpop.f32.mrf.mxu0
  %v8024 = vadd.f32 0.0, %v8023
  %v8025 = vpop.f32.mrf.mxu0
  %v8026 = vpop.f32.mrf.mxu0
  %v8027 = vadd.f32 0.0, %v8026
  %v8028 = vpop.f32.mrf.mxu0
  %8029 = vmatprep.mubr.bf16.mxu0 0
  %8030 = vmatmul.mubr.bf16.gmra.mxu0 %v7743
  %v8031 = vpop.f32.mrf.mxu0
  %v8032 = vadd.f32 0.0, %v8031
  %v8033 = vpop.f32.mrf.mxu0
  %v8034 = vpop.f32.mrf.mxu0
  %v8035 = vadd.f32 0.0, %v8034
  %v8036 = vpop.f32.mrf.mxu0
  %8037 = vdwg.mxu0
  %v8038 = vld [vmem:[%s5] sm:$0x1]
  %v8039 = vld [vmem:[%s6] sm:$0x1]
  %v8040 = vsel %vm27, %v7784, 0.0
  %v8041 = vsel %vm27, %v7787, 0.0
  %v8042 = vadd.f32 %v8040, %v8041
  %v8043 = vsel %vm27, %v7792, 0.0
  %v8044 = vadd.f32 %v8042, %v8043
  %v8045 = vsel %vm27, %v7795, 0.0
  %v8046 = vadd.f32 %v8044, %v8045
  %v8047 = vsel %vm27, %v7800, 0.0
  %v8048 = vadd.f32 %v8046, %v8047
  %v8049 = vsel %vm27, %v7803, 0.0
  %v8050 = vadd.f32 %v8048, %v8049
  %v8051 = vsel %vm27, %v7808, 0.0
  %v8052 = vadd.f32 %v8050, %v8051
  %v8053 = vsel %vm27, %v7811, 0.0
  %v8054 = vadd.f32 %v8052, %v8053
  %v8055 = vsel %vm27, %v7816, 0.0
  %v8056 = vadd.f32 %v8054, %v8055
  %v8057 = vsel %vm27, %v7819, 0.0
  %v8058 = vadd.f32 %v8056, %v8057
  %v8059 = vsel %vm27, %v7824, 0.0
  %v8060 = vadd.f32 %v8058, %v8059
  %v8061 = vsel %vm27, %v7827, 0.0
  %v8062 = vadd.f32 %v8060, %v8061
  %v8063 = vsel %vm27, %v7832, 0.0
  %v8064 = vadd.f32 %v8062, %v8063
  %v8065 = vsel %vm27, %v7835, 0.0
  %v8066 = vadd.f32 %v8064, %v8065
  %v8067 = vsel %vm27, %v7840, 0.0
  %v8068 = vadd.f32 %v8066, %v8067
  %v8069 = vsel %vm27, %v7843, 0.0
  %v8070 = vadd.f32 %v8068, %v8069
  %v8071 = vsel %vm27, %v7848, 0.0
  %v8072 = vadd.f32 %v8070, %v8071
  %v8073 = vsel %vm27, %v7851, 0.0
  %v8074 = vadd.f32 %v8072, %v8073
  %v8075 = vsel %vm27, %v7856, 0.0
  %v8076 = vadd.f32 %v8074, %v8075
  %v8077 = vsel %vm27, %v7859, 0.0
  %v8078 = vadd.f32 %v8076, %v8077
  %v8079 = vsel %vm27, %v7864, 0.0
  %v8080 = vadd.f32 %v8078, %v8079
  %v8081 = vsel %vm27, %v7867, 0.0
  %v8082 = vadd.f32 %v8080, %v8081
  %v8083 = vsel %vm27, %v7872, 0.0
  %v8084 = vadd.f32 %v8082, %v8083
  %v8085 = vsel %vm27, %v7875, 0.0
  %v8086 = vadd.f32 %v8084, %v8085
  %v8087 = vsel %vm27, %v7880, 0.0
  %v8088 = vadd.f32 %v8086, %v8087
  %v8089 = vsel %vm27, %v7883, 0.0
  %v8090 = vadd.f32 %v8088, %v8089
  %v8091 = vsel %vm27, %v7888, 0.0
  %v8092 = vadd.f32 %v8090, %v8091
  %v8093 = vsel %vm27, %v7891, 0.0
  %v8094 = vadd.f32 %v8092, %v8093
  %v8095 = vsel %vm27, %v7896, 0.0
  %v8096 = vadd.f32 %v8094, %v8095
  %v8097 = vsel %vm27, %v7899, 0.0
  %v8098 = vadd.f32 %v8096, %v8097
  %v8099 = vsel %vm27, %v7904, 0.0
  %v8100 = vadd.f32 %v8098, %v8099
  %v8101 = vsel %vm27, %v7907, 0.0
  %v8102 = vadd.f32 %v8100, %v8101
  %v8103 = vsel %vm27, %v7912, 0.0
  %v8104 = vadd.f32 %v8102, %v8103
  %v8105 = vsel %vm27, %v7915, 0.0
  %v8106 = vadd.f32 %v8104, %v8105
  %v8107 = vsel %vm27, %v7920, 0.0
  %v8108 = vadd.f32 %v8106, %v8107
  %v8109 = vsel %vm27, %v7923, 0.0
  %v8110 = vadd.f32 %v8108, %v8109
  %v8111 = vsel %vm27, %v7928, 0.0
  %v8112 = vadd.f32 %v8110, %v8111
  %v8113 = vsel %vm27, %v7931, 0.0
  %v8114 = vadd.f32 %v8112, %v8113
  %v8115 = vsel %vm27, %v7936, 0.0
  %v8116 = vadd.f32 %v8114, %v8115
  %v8117 = vsel %vm27, %v7939, 0.0
  %v8118 = vadd.f32 %v8116, %v8117
  %v8119 = vsel %vm27, %v7944, 0.0
  %v8120 = vadd.f32 %v8118, %v8119
  %v8121 = vsel %vm27, %v7947, 0.0
  %v8122 = vadd.f32 %v8120, %v8121
  %v8123 = vsel %vm27, %v7952, 0.0
  %v8124 = vadd.f32 %v8122, %v8123
  %v8125 = vsel %vm27, %v7955, 0.0
  %v8126 = vadd.f32 %v8124, %v8125
  %v8127 = vsel %vm27, %v7960, 0.0
  %v8128 = vadd.f32 %v8126, %v8127
  %v8129 = vsel %vm27, %v7963, 0.0
  %v8130 = vadd.f32 %v8128, %v8129
  %v8131 = vsel %vm27, %v7968, 0.0
  %v8132 = vadd.f32 %v8130, %v8131
  %v8133 = vsel %vm27, %v7971, 0.0
  %v8134 = vadd.f32 %v8132, %v8133
  %v8135 = vsel %vm27, %v7976, 0.0
  %v8136 = vadd.f32 %v8134, %v8135
  %v8137 = vsel %vm27, %v7979, 0.0
  %v8138 = vadd.f32 %v8136, %v8137
  %v8139 = vsel %vm27, %v7984, 0.0
  %v8140 = vadd.f32 %v8138, %v8139
  %v8141 = vsel %vm27, %v7987, 0.0
  %v8142 = vadd.f32 %v8140, %v8141
  %v8143 = vsel %vm27, %v7992, 0.0
  %v8144 = vadd.f32 %v8142, %v8143
  %v8145 = vsel %vm27, %v7995, 0.0
  %v8146 = vadd.f32 %v8144, %v8145
  %v8147 = vsel %vm27, %v8000, 0.0
  %v8148 = vadd.f32 %v8146, %v8147
  %v8149 = vsel %vm27, %v8003, 0.0
  %v8150 = vadd.f32 %v8148, %v8149
  %v8151 = vsel %vm27, %v8008, 0.0
  %v8152 = vadd.f32 %v8150, %v8151
  %v8153 = vsel %vm27, %v8011, 0.0
  %v8154 = vadd.f32 %v8152, %v8153
  %v8155 = vsel %vm27, %v8016, 0.0
  %v8156 = vadd.f32 %v8154, %v8155
  %v8157 = vsel %vm27, %v8019, 0.0
  %v8158 = vadd.f32 %v8156, %v8157
  %v8159 = vsel %vm27, %v8024, 0.0
  %v8160 = vadd.f32 %v8158, %v8159
  %v8161 = vsel %vm27, %v8027, 0.0
  %v8162 = vadd.f32 %v8160, %v8161
  %v8163 = vsel %vm27, %v8032, 0.0
  %v8164 = vadd.f32 %v8162, %v8163
  %v8165 = vsel %vm27, %v8035, 0.0
  %v8166 = vadd.f32 %v8164, %v8165
  %v8167 = vrot.slane %v8166, 4
  %v8168 = vadd.f32 %v8166, %v8167
  %v8169 = vrot.slane %v8168, 2
  %v8170 = vadd.f32 %v8168, %v8169
  %v8171 = vrot.slane %v8170, 1
  %v8172 = vadd.f32 %v8170, %v8171
  %v8173 = vmul.f32 %v8172, %v3964
  %v8174 = vmul.f32 %v7784, %v7784
  %v8175 = vmul.f32 %v7787, %v7787
  %v8176 = vmul.f32 %v7792, %v7792
  %v8177 = vmul.f32 %v7795, %v7795
  %v8178 = vmul.f32 %v7800, %v7800
  %v8179 = vmul.f32 %v7803, %v7803
  %v8180 = vmul.f32 %v7808, %v7808
  %v8181 = vmul.f32 %v7811, %v7811
  %v8182 = vmul.f32 %v7816, %v7816
  %v8183 = vmul.f32 %v7819, %v7819
  %v8184 = vmul.f32 %v7824, %v7824
  %v8185 = vmul.f32 %v7827, %v7827
  %v8186 = vmul.f32 %v7832, %v7832
  %v8187 = vmul.f32 %v7835, %v7835
  %v8188 = vmul.f32 %v7840, %v7840
  %v8189 = vmul.f32 %v7843, %v7843
  %v8190 = vmul.f32 %v7848, %v7848
  %v8191 = vmul.f32 %v7851, %v7851
  %v8192 = vmul.f32 %v7856, %v7856
  %v8193 = vmul.f32 %v7859, %v7859
  %v8194 = vmul.f32 %v7864, %v7864
  %v8195 = vmul.f32 %v7867, %v7867
  %v8196 = vmul.f32 %v7872, %v7872
  %v8197 = vmul.f32 %v7875, %v7875
  %v8198 = vmul.f32 %v7880, %v7880
  %v8199 = vmul.f32 %v7883, %v7883
  %v8200 = vmul.f32 %v7888, %v7888
  %v8201 = vmul.f32 %v7891, %v7891
  %v8202 = vmul.f32 %v7896, %v7896
  %v8203 = vmul.f32 %v7899, %v7899
  %v8204 = vmul.f32 %v7904, %v7904
  %v8205 = vmul.f32 %v7907, %v7907
  %v8206 = vmul.f32 %v7912, %v7912
  %v8207 = vmul.f32 %v7915, %v7915
  %v8208 = vmul.f32 %v7920, %v7920
  %v8209 = vmul.f32 %v7923, %v7923
  %v8210 = vmul.f32 %v7928, %v7928
  %v8211 = vmul.f32 %v7931, %v7931
  %v8212 = vmul.f32 %v7936, %v7936
  %v8213 = vmul.f32 %v7939, %v7939
  %v8214 = vmul.f32 %v7944, %v7944
  %v8215 = vmul.f32 %v7947, %v7947
  %v8216 = vmul.f32 %v7952, %v7952
  %v8217 = vmul.f32 %v7955, %v7955
  %v8218 = vmul.f32 %v7960, %v7960
  %v8219 = vmul.f32 %v7963, %v7963
  %v8220 = vmul.f32 %v7968, %v7968
  %v8221 = vmul.f32 %v7971, %v7971
  %v8222 = vmul.f32 %v7976, %v7976
  %v8223 = vmul.f32 %v7979, %v7979
  %v8224 = vmul.f32 %v7984, %v7984
  %v8225 = vmul.f32 %v7987, %v7987
  %v8226 = vmul.f32 %v7992, %v7992
  %v8227 = vmul.f32 %v7995, %v7995
  %v8228 = vmul.f32 %v8000, %v8000
  %v8229 = vmul.f32 %v8003, %v8003
  %v8230 = vmul.f32 %v8008, %v8008
  %v8231 = vmul.f32 %v8011, %v8011
  %v8232 = vmul.f32 %v8016, %v8016
  %v8233 = vmul.f32 %v8019, %v8019
  %v8234 = vmul.f32 %v8024, %v8024
  %v8235 = vmul.f32 %v8027, %v8027
  %v8236 = vmul.f32 %v8032, %v8032
  %v8237 = vmul.f32 %v8035, %v8035
  %v8238 = vsel %vm27, %v8174, 0.0
  %v8239 = vsel %vm27, %v8175, 0.0
  %v8240 = vadd.f32 %v8238, %v8239
  %v8241 = vsel %vm27, %v8176, 0.0
  %v8242 = vadd.f32 %v8240, %v8241
  %v8243 = vsel %vm27, %v8177, 0.0
  %v8244 = vadd.f32 %v8242, %v8243
  %v8245 = vsel %vm27, %v8178, 0.0
  %v8246 = vadd.f32 %v8244, %v8245
  %v8247 = vsel %vm27, %v8179, 0.0
  %v8248 = vadd.f32 %v8246, %v8247
  %v8249 = vsel %vm27, %v8180, 0.0
  %v8250 = vadd.f32 %v8248, %v8249
  %v8251 = vsel %vm27, %v8181, 0.0
  %v8252 = vadd.f32 %v8250, %v8251
  %v8253 = vsel %vm27, %v8182, 0.0
  %v8254 = vadd.f32 %v8252, %v8253
  %v8255 = vsel %vm27, %v8183, 0.0
  %v8256 = vadd.f32 %v8254, %v8255
  %v8257 = vsel %vm27, %v8184, 0.0
  %v8258 = vadd.f32 %v8256, %v8257
  %v8259 = vsel %vm27, %v8185, 0.0
  %v8260 = vadd.f32 %v8258, %v8259
  %v8261 = vsel %vm27, %v8186, 0.0
  %v8262 = vadd.f32 %v8260, %v8261
  %v8263 = vsel %vm27, %v8187, 0.0
  %v8264 = vadd.f32 %v8262, %v8263
  %v8265 = vsel %vm27, %v8188, 0.0
  %v8266 = vadd.f32 %v8264, %v8265
  %v8267 = vsel %vm27, %v8189, 0.0
  %v8268 = vadd.f32 %v8266, %v8267
  %v8269 = vsel %vm27, %v8190, 0.0
  %v8270 = vadd.f32 %v8268, %v8269
  %v8271 = vsel %vm27, %v8191, 0.0
  %v8272 = vadd.f32 %v8270, %v8271
  %v8273 = vsel %vm27, %v8192, 0.0
  %v8274 = vadd.f32 %v8272, %v8273
  %v8275 = vsel %vm27, %v8193, 0.0
  %v8276 = vadd.f32 %v8274, %v8275
  %v8277 = vsel %vm27, %v8194, 0.0
  %v8278 = vadd.f32 %v8276, %v8277
  %v8279 = vsel %vm27, %v8195, 0.0
  %v8280 = vadd.f32 %v8278, %v8279
  %v8281 = vsel %vm27, %v8196, 0.0
  %v8282 = vadd.f32 %v8280, %v8281
  %v8283 = vsel %vm27, %v8197, 0.0
  %v8284 = vadd.f32 %v8282, %v8283
  %v8285 = vsel %vm27, %v8198, 0.0
  %v8286 = vadd.f32 %v8284, %v8285
  %v8287 = vsel %vm27, %v8199, 0.0
  %v8288 = vadd.f32 %v8286, %v8287
  %v8289 = vsel %vm27, %v8200, 0.0
  %v8290 = vadd.f32 %v8288, %v8289
  %v8291 = vsel %vm27, %v8201, 0.0
  %v8292 = vadd.f32 %v8290, %v8291
  %v8293 = vsel %vm27, %v8202, 0.0
  %v8294 = vadd.f32 %v8292, %v8293
  %v8295 = vsel %vm27, %v8203, 0.0
  %v8296 = vadd.f32 %v8294, %v8295
  %v8297 = vsel %vm27, %v8204, 0.0
  %v8298 = vadd.f32 %v8296, %v8297
  %v8299 = vsel %vm27, %v8205, 0.0
  %v8300 = vadd.f32 %v8298, %v8299
  %v8301 = vsel %vm27, %v8206, 0.0
  %v8302 = vadd.f32 %v8300, %v8301
  %v8303 = vsel %vm27, %v8207, 0.0
  %v8304 = vadd.f32 %v8302, %v8303
  %v8305 = vsel %vm27, %v8208, 0.0
  %v8306 = vadd.f32 %v8304, %v8305
  %v8307 = vsel %vm27, %v8209, 0.0
  %v8308 = vadd.f32 %v8306, %v8307
  %v8309 = vsel %vm27, %v8210, 0.0
  %v8310 = vadd.f32 %v8308, %v8309
  %v8311 = vsel %vm27, %v8211, 0.0
  %v8312 = vadd.f32 %v8310, %v8311
  %v8313 = vsel %vm27, %v8212, 0.0
  %v8314 = vadd.f32 %v8312, %v8313
  %v8315 = vsel %vm27, %v8213, 0.0
  %v8316 = vadd.f32 %v8314, %v8315
  %v8317 = vsel %vm27, %v8214, 0.0
  %v8318 = vadd.f32 %v8316, %v8317
  %v8319 = vsel %vm27, %v8215, 0.0
  %v8320 = vadd.f32 %v8318, %v8319
  %v8321 = vsel %vm27, %v8216, 0.0
  %v8322 = vadd.f32 %v8320, %v8321
  %v8323 = vsel %vm27, %v8217, 0.0
  %v8324 = vadd.f32 %v8322, %v8323
  %v8325 = vsel %vm27, %v8218, 0.0
  %v8326 = vadd.f32 %v8324, %v8325
  %v8327 = vsel %vm27, %v8219, 0.0
  %v8328 = vadd.f32 %v8326, %v8327
  %v8329 = vsel %vm27, %v8220, 0.0
  %v8330 = vadd.f32 %v8328, %v8329
  %v8331 = vsel %vm27, %v8221, 0.0
  %v8332 = vadd.f32 %v8330, %v8331
  %v8333 = vsel %vm27, %v8222, 0.0
  %v8334 = vadd.f32 %v8332, %v8333
  %v8335 = vsel %vm27, %v8223, 0.0
  %v8336 = vadd.f32 %v8334, %v8335
  %v8337 = vsel %vm27, %v8224, 0.0
  %v8338 = vadd.f32 %v8336, %v8337
  %v8339 = vsel %vm27, %v8225, 0.0
  %v8340 = vadd.f32 %v8338, %v8339
  %v8341 = vsel %vm27, %v8226, 0.0
  %v8342 = vadd.f32 %v8340, %v8341
  %v8343 = vsel %vm27, %v8227, 0.0
  %v8344 = vadd.f32 %v8342, %v8343
  %v8345 = vsel %vm27, %v8228, 0.0
  %v8346 = vadd.f32 %v8344, %v8345
  %v8347 = vsel %vm27, %v8229, 0.0
  %v8348 = vadd.f32 %v8346, %v8347
  %v8349 = vsel %vm27, %v8230, 0.0
  %v8350 = vadd.f32 %v8348, %v8349
  %v8351 = vsel %vm27, %v8231, 0.0
  %v8352 = vadd.f32 %v8350, %v8351
  %v8353 = vsel %vm27, %v8232, 0.0
  %v8354 = vadd.f32 %v8352, %v8353
  %v8355 = vsel %vm27, %v8233, 0.0
  %v8356 = vadd.f32 %v8354, %v8355
  %v8357 = vsel %vm27, %v8234, 0.0
  %v8358 = vadd.f32 %v8356, %v8357
  %v8359 = vsel %vm27, %v8235, 0.0
  %v8360 = vadd.f32 %v8358, %v8359
  %v8361 = vsel %vm27, %v8236, 0.0
  %v8362 = vadd.f32 %v8360, %v8361
  %v8363 = vsel %vm27, %v8237, 0.0
  %v8364 = vadd.f32 %v8362, %v8363
  %v8365 = vrot.slane %v8364, 4
  %v8366 = vadd.f32 %v8364, %v8365
  %v8367 = vrot.slane %v8366, 2
  %v8368 = vadd.f32 %v8366, %v8367
  %v8369 = vrot.slane %v8368, 1
  %v8370 = vadd.f32 %v8368, %v8369
  %v8371 = vmul.f32 %v8370, %v3964
  %v8372 = vmul.f32 %v8173, %v8173
  %v8373 = vsub.f32 %v8371, %v8372
  %v8374 = vmax.f32 %v8373, 0.0
  %v8375 = vadd.f32 %v8374, 1e-05
  %v8376 = vrsqrt.pop %v8375
  %v8377 = vmul.f32 %v8038, %v8376
  %v8378 = vmul.f32 %v8173, %v8377
  %v8379 = vsub.f32 %v8039, %v8378
  %v8381 = vlaneseq
  %v8382 = vshrl.u32 %v8381, 7
  %v8383 = vsub.s32 0, %v8382
  %v8384 = vrot.slane %v8377, %v8383
  %v8386 = vmul.f32 %v7784, %v8384
  %v8387 = vmul.f32 %v7787, %v8384
  %v8388 = vmul.f32 %v7792, %v8384
  %v8389 = vmul.f32 %v7795, %v8384
  %v8390 = vmul.f32 %v7800, %v8384
  %v8391 = vmul.f32 %v7803, %v8384
  %v8392 = vmul.f32 %v7808, %v8384
  %v8393 = vmul.f32 %v7811, %v8384
  %v8394 = vmul.f32 %v7816, %v8384
  %v8395 = vmul.f32 %v7819, %v8384
  %v8396 = vmul.f32 %v7824, %v8384
  %v8397 = vmul.f32 %v7827, %v8384
  %v8398 = vmul.f32 %v7832, %v8384
  %v8399 = vmul.f32 %v7835, %v8384
  %v8400 = vmul.f32 %v7840, %v8384
  %v8401 = vmul.f32 %v7843, %v8384
  %v8402 = vmul.f32 %v7848, %v8384
  %v8403 = vmul.f32 %v7851, %v8384
  %v8404 = vmul.f32 %v7856, %v8384
  %v8405 = vmul.f32 %v7859, %v8384
  %v8406 = vmul.f32 %v7864, %v8384
  %v8407 = vmul.f32 %v7867, %v8384
  %v8408 = vmul.f32 %v7872, %v8384
  %v8409 = vmul.f32 %v7875, %v8384
  %v8410 = vmul.f32 %v7880, %v8384
  %v8411 = vmul.f32 %v7883, %v8384
  %v8412 = vmul.f32 %v7888, %v8384
  %v8413 = vmul.f32 %v7891, %v8384
  %v8414 = vmul.f32 %v7896, %v8384
  %v8415 = vmul.f32 %v7899, %v8384
  %v8416 = vmul.f32 %v7904, %v8384
  %v8417 = vmul.f32 %v7907, %v8384
  %v8418 = vmul.f32 %v7912, %v8384
  %v8419 = vmul.f32 %v7915, %v8384
  %v8420 = vmul.f32 %v7920, %v8384
  %v8421 = vmul.f32 %v7923, %v8384
  %v8422 = vmul.f32 %v7928, %v8384
  %v8423 = vmul.f32 %v7931, %v8384
  %v8424 = vmul.f32 %v7936, %v8384
  %v8425 = vmul.f32 %v7939, %v8384
  %v8426 = vmul.f32 %v7944, %v8384
  %v8427 = vmul.f32 %v7947, %v8384
  %v8428 = vmul.f32 %v7952, %v8384
  %v8429 = vmul.f32 %v7955, %v8384
  %v8430 = vmul.f32 %v7960, %v8384
  %v8431 = vmul.f32 %v7963, %v8384
  %v8432 = vmul.f32 %v7968, %v8384
  %v8433 = vmul.f32 %v7971, %v8384
  %v8434 = vmul.f32 %v7976, %v8384
  %v8435 = vmul.f32 %v7979, %v8384
  %v8436 = vmul.f32 %v7984, %v8384
  %v8437 = vmul.f32 %v7987, %v8384
  %v8438 = vmul.f32 %v7992, %v8384
  %v8439 = vmul.f32 %v7995, %v8384
  %v8440 = vmul.f32 %v8000, %v8384
  %v8441 = vmul.f32 %v8003, %v8384
  %v8442 = vmul.f32 %v8008, %v8384
  %v8443 = vmul.f32 %v8011, %v8384
  %v8444 = vmul.f32 %v8016, %v8384
  %v8445 = vmul.f32 %v8019, %v8384
  %v8446 = vmul.f32 %v8024, %v8384
  %v8447 = vmul.f32 %v8027, %v8384
  %v8448 = vmul.f32 %v8032, %v8384
  %v8449 = vmul.f32 %v8035, %v8384
  %v8451 = vlaneseq
  %v8452 = vshrl.u32 %v8451, 7
  %v8453 = vsub.s32 0, %v8452
  %v8454 = vrot.slane %v8379, %v8453
  %v8456 = vadd.f32 %v8386, %v8454
  %v8457 = vadd.f32 %v8387, %v8454
  %v8458 = vadd.f32 %v8388, %v8454
  %v8459 = vadd.f32 %v8389, %v8454
  %v8460 = vadd.f32 %v8390, %v8454
  %v8461 = vadd.f32 %v8391, %v8454
  %v8462 = vadd.f32 %v8392, %v8454
  %v8463 = vadd.f32 %v8393, %v8454
  %v8464 = vadd.f32 %v8394, %v8454
  %v8465 = vadd.f32 %v8395, %v8454
  %v8466 = vadd.f32 %v8396, %v8454
  %v8467 = vadd.f32 %v8397, %v8454
  %v8468 = vadd.f32 %v8398, %v8454
  %v8469 = vadd.f32 %v8399, %v8454
  %v8470 = vadd.f32 %v8400, %v8454
  %v8471 = vadd.f32 %v8401, %v8454
  %v8472 = vadd.f32 %v8402, %v8454
  %v8473 = vadd.f32 %v8403, %v8454
  %v8474 = vadd.f32 %v8404, %v8454
  %v8475 = vadd.f32 %v8405, %v8454
  %v8476 = vadd.f32 %v8406, %v8454
  %v8477 = vadd.f32 %v8407, %v8454
  %v8478 = vadd.f32 %v8408, %v8454
  %v8479 = vadd.f32 %v8409, %v8454
  %v8480 = vadd.f32 %v8410, %v8454
  %v8481 = vadd.f32 %v8411, %v8454
  %v8482 = vadd.f32 %v8412, %v8454
  %v8483 = vadd.f32 %v8413, %v8454
  %v8484 = vadd.f32 %v8414, %v8454
  %v8485 = vadd.f32 %v8415, %v8454
  %v8486 = vadd.f32 %v8416, %v8454
  %v8487 = vadd.f32 %v8417, %v8454
  %v8488 = vadd.f32 %v8418, %v8454
  %v8489 = vadd.f32 %v8419, %v8454
  %v8490 = vadd.f32 %v8420, %v8454
  %v8491 = vadd.f32 %v8421, %v8454
  %v8492 = vadd.f32 %v8422, %v8454
  %v8493 = vadd.f32 %v8423, %v8454
  %v8494 = vadd.f32 %v8424, %v8454
  %v8495 = vadd.f32 %v8425, %v8454
  %v8496 = vadd.f32 %v8426, %v8454
  %v8497 = vadd.f32 %v8427, %v8454
  %v8498 = vadd.f32 %v8428, %v8454
  %v8499 = vadd.f32 %v8429, %v8454
  %v8500 = vadd.f32 %v8430, %v8454
  %v8501 = vadd.f32 %v8431, %v8454
  %v8502 = vadd.f32 %v8432, %v8454
  %v8503 = vadd.f32 %v8433, %v8454
  %v8504 = vadd.f32 %v8434, %v8454
  %v8505 = vadd.f32 %v8435, %v8454
  %v8506 = vadd.f32 %v8436, %v8454
  %v8507 = vadd.f32 %v8437, %v8454
  %v8508 = vadd.f32 %v8438, %v8454
  %v8509 = vadd.f32 %v8439, %v8454
  %v8510 = vadd.f32 %v8440, %v8454
  %v8511 = vadd.f32 %v8441, %v8454
  %v8512 = vadd.f32 %v8442, %v8454
  %v8513 = vadd.f32 %v8443, %v8454
  %v8514 = vadd.f32 %v8444, %v8454
  %v8515 = vadd.f32 %v8445, %v8454
  %v8516 = vadd.f32 %v8446, %v8454
  %v8517 = vadd.f32 %v8447, %v8454
  %v8518 = vadd.f32 %v8448, %v8454
  %v8519 = vadd.f32 %v8449, %v8454
  %v8520 = vmax.f32 %v8456, 0.0
  %v8521 = vmax.f32 %v8457, 0.0
  %v8522 = vmax.f32 %v8458, 0.0
  %v8523 = vmax.f32 %v8459, 0.0
  %v8524 = vmax.f32 %v8460, 0.0
  %v8525 = vmax.f32 %v8461, 0.0
  %v8526 = vmax.f32 %v8462, 0.0
  %v8527 = vmax.f32 %v8463, 0.0
  %v8528 = vmax.f32 %v8464, 0.0
  %v8529 = vmax.f32 %v8465, 0.0
  %v8530 = vmax.f32 %v8466, 0.0
  %v8531 = vmax.f32 %v8467, 0.0
  %v8532 = vmax.f32 %v8468, 0.0
  %v8533 = vmax.f32 %v8469, 0.0
  %v8534 = vmax.f32 %v8470, 0.0
  %v8535 = vmax.f32 %v8471, 0.0
  %v8536 = vmax.f32 %v8472, 0.0
  %v8537 = vmax.f32 %v8473, 0.0
  %v8538 = vmax.f32 %v8474, 0.0
  %v8539 = vmax.f32 %v8475, 0.0
  %v8540 = vmax.f32 %v8476, 0.0
  %v8541 = vmax.f32 %v8477, 0.0
  %v8542 = vmax.f32 %v8478, 0.0
  %v8543 = vmax.f32 %v8479, 0.0
  %v8544 = vmax.f32 %v8480, 0.0
  %v8545 = vmax.f32 %v8481, 0.0
  %v8546 = vmax.f32 %v8482, 0.0
  %v8547 = vmax.f32 %v8483, 0.0
  %v8548 = vmax.f32 %v8484, 0.0
  %v8549 = vmax.f32 %v8485, 0.0
  %v8550 = vmax.f32 %v8486, 0.0
  %v8551 = vmax.f32 %v8487, 0.0
  %v8552 = vmax.f32 %v8488, 0.0
  %v8553 = vmax.f32 %v8489, 0.0
  %v8554 = vmax.f32 %v8490, 0.0
  %v8555 = vmax.f32 %v8491, 0.0
  %v8556 = vmax.f32 %v8492, 0.0
  %v8557 = vmax.f32 %v8493, 0.0
  %v8558 = vmax.f32 %v8494, 0.0
  %v8559 = vmax.f32 %v8495, 0.0
  %v8560 = vmax.f32 %v8496, 0.0
  %v8561 = vmax.f32 %v8497, 0.0
  %v8562 = vmax.f32 %v8498, 0.0
  %v8563 = vmax.f32 %v8499, 0.0
  %v8564 = vmax.f32 %v8500, 0.0
  %v8565 = vmax.f32 %v8501, 0.0
  %v8566 = vmax.f32 %v8502, 0.0
  %v8567 = vmax.f32 %v8503, 0.0
  %v8568 = vmax.f32 %v8504, 0.0
  %v8569 = vmax.f32 %v8505, 0.0
  %v8570 = vmax.f32 %v8506, 0.0
  %v8571 = vmax.f32 %v8507, 0.0
  %v8572 = vmax.f32 %v8508, 0.0
  %v8573 = vmax.f32 %v8509, 0.0
  %v8574 = vmax.f32 %v8510, 0.0
  %v8575 = vmax.f32 %v8511, 0.0
  %v8576 = vmax.f32 %v8512, 0.0
  %v8577 = vmax.f32 %v8513, 0.0
  %v8578 = vmax.f32 %v8514, 0.0
  %v8579 = vmax.f32 %v8515, 0.0
  %v8580 = vmax.f32 %v8516, 0.0
  %v8581 = vmax.f32 %v8517, 0.0
  %v8582 = vmax.f32 %v8518, 0.0
  %v8583 = vmax.f32 %v8519, 0.0
  %8584 = vst.msk [vmem:[%s7] sm:$0xff] %vm27, %v8520
  %8585 = vst.msk [vmem:[%s7 + $0x8] sm:$0xff] %vm27, %v8521
  %8586 = vst.msk [vmem:[%s7 + $0x10] sm:$0xff] %vm27, %v8522
  %8587 = vst.msk [vmem:[%s7 + $0x18] sm:$0xff] %vm27, %v8523
  %8588 = vst.msk [vmem:[%s7 + $0x20] sm:$0xff] %vm27, %v8524
  %8589 = vst.msk [vmem:[%s7 + $0x28] sm:$0xff] %vm27, %v8525
  %8590 = vst.msk [vmem:[%s7 + $0x30] sm:$0xff] %vm27, %v8526
  %8591 = vst.msk [vmem:[%s7 + $0x38] sm:$0xff] %vm27, %v8527
  %8592 = vst.msk [vmem:[%s7 + $0x40] sm:$0xff] %vm27, %v8528
  %8593 = vst.msk [vmem:[%s7 + $0x48] sm:$0xff] %vm27, %v8529
  %8594 = vst.msk [vmem:[%s7 + $0x50] sm:$0xff] %vm27, %v8530
  %8595 = vst.msk [vmem:[%s7 + $0x58] sm:$0xff] %vm27, %v8531
  %8596 = vst.msk [vmem:[%s7 + $0x60] sm:$0xff] %vm27, %v8532
  %8597 = vst.msk [vmem:[%s7 + $0x68] sm:$0xff] %vm27, %v8533
  %8598 = vst.msk [vmem:[%s7 + $0x70] sm:$0xff] %vm27, %v8534
  %8599 = vst.msk [vmem:[%s7 + $0x78] sm:$0xff] %vm27, %v8535
  %8600 = vst.msk [vmem:[%s7 + $0x80] sm:$0xff] %vm27, %v8536
  %8601 = vst.msk [vmem:[%s7 + $0x88] sm:$0xff] %vm27, %v8537
  %8602 = vst.msk [vmem:[%s7 + $0x90] sm:$0xff] %vm27, %v8538
  %8603 = vst.msk [vmem:[%s7 + $0x98] sm:$0xff] %vm27, %v8539
  %8604 = vst.msk [vmem:[%s7 + $0xa0] sm:$0xff] %vm27, %v8540
  %8605 = vst.msk [vmem:[%s7 + $0xa8] sm:$0xff] %vm27, %v8541
  %8606 = vst.msk [vmem:[%s7 + $0xb0] sm:$0xff] %vm27, %v8542
  %8607 = vst.msk [vmem:[%s7 + $0xb8] sm:$0xff] %vm27, %v8543
  %8608 = vst.msk [vmem:[%s7 + $0xc0] sm:$0xff] %vm27, %v8544
  %8609 = vst.msk [vmem:[%s7 + $0xc8] sm:$0xff] %vm27, %v8545
  %8610 = vst.msk [vmem:[%s7 + $0xd0] sm:$0xff] %vm27, %v8546
  %8611 = vst.msk [vmem:[%s7 + $0xd8] sm:$0xff] %vm27, %v8547
  %8612 = vst.msk [vmem:[%s7 + $0xe0] sm:$0xff] %vm27, %v8548
  %8613 = vst.msk [vmem:[%s7 + $0xe8] sm:$0xff] %vm27, %v8549
  %8614 = vst.msk [vmem:[%s7 + $0xf0] sm:$0xff] %vm27, %v8550
  %8615 = vst.msk [vmem:[%s7 + $0xf8] sm:$0xff] %vm27, %v8551
  %8616 = vst.msk [vmem:[%s7 + $0x100] sm:$0xff] %vm27, %v8552
  %8617 = vst.msk [vmem:[%s7 + $0x108] sm:$0xff] %vm27, %v8553
  %8618 = vst.msk [vmem:[%s7 + $0x110] sm:$0xff] %vm27, %v8554
  %8619 = vst.msk [vmem:[%s7 + $0x118] sm:$0xff] %vm27, %v8555
  %8620 = vst.msk [vmem:[%s7 + $0x120] sm:$0xff] %vm27, %v8556
  %8621 = vst.msk [vmem:[%s7 + $0x128] sm:$0xff] %vm27, %v8557
  %8622 = vst.msk [vmem:[%s7 + $0x130] sm:$0xff] %vm27, %v8558
  %8623 = vst.msk [vmem:[%s7 + $0x138] sm:$0xff] %vm27, %v8559
  %8624 = vst.msk [vmem:[%s7 + $0x140] sm:$0xff] %vm27, %v8560
  %8625 = vst.msk [vmem:[%s7 + $0x148] sm:$0xff] %vm27, %v8561
  %8626 = vst.msk [vmem:[%s7 + $0x150] sm:$0xff] %vm27, %v8562
  %8627 = vst.msk [vmem:[%s7 + $0x158] sm:$0xff] %vm27, %v8563
  %8628 = vst.msk [vmem:[%s7 + $0x160] sm:$0xff] %vm27, %v8564
  %8629 = vst.msk [vmem:[%s7 + $0x168] sm:$0xff] %vm27, %v8565
  %8630 = vst.msk [vmem:[%s7 + $0x170] sm:$0xff] %vm27, %v8566
  %8631 = vst.msk [vmem:[%s7 + $0x178] sm:$0xff] %vm27, %v8567
  %8632 = vst.msk [vmem:[%s7 + $0x180] sm:$0xff] %vm27, %v8568
  %8633 = vst.msk [vmem:[%s7 + $0x188] sm:$0xff] %vm27, %v8569
  %8634 = vst.msk [vmem:[%s7 + $0x190] sm:$0xff] %vm27, %v8570
  %8635 = vst.msk [vmem:[%s7 + $0x198] sm:$0xff] %vm27, %v8571
  %8636 = vst.msk [vmem:[%s7 + $0x1a0] sm:$0xff] %vm27, %v8572
  %8637 = vst.msk [vmem:[%s7 + $0x1a8] sm:$0xff] %vm27, %v8573
  %8638 = vst.msk [vmem:[%s7 + $0x1b0] sm:$0xff] %vm27, %v8574
  %8639 = vst.msk [vmem:[%s7 + $0x1b8] sm:$0xff] %vm27, %v8575
  %8640 = vst.msk [vmem:[%s7 + $0x1c0] sm:$0xff] %vm27, %v8576
  %8641 = vst.msk [vmem:[%s7 + $0x1c8] sm:$0xff] %vm27, %v8577
  %8642 = vst.msk [vmem:[%s7 + $0x1d0] sm:$0xff] %vm27, %v8578
  %8643 = vst.msk [vmem:[%s7 + $0x1d8] sm:$0xff] %vm27, %v8579
  %8644 = vst.msk [vmem:[%s7 + $0x1e0] sm:$0xff] %vm27, %v8580
  %8645 = vst.msk [vmem:[%s7 + $0x1e8] sm:$0xff] %vm27, %v8581
  %8646 = vst.msk [vmem:[%s7 + $0x1f0] sm:$0xff] %vm27, %v8582
  %8647 = vst.msk [vmem:[%s7 + $0x1f8] sm:$0xff] %vm27, %v8583
  // Predicated region
  $region30: #{tpu_custom_call.1} parent=0 // pred_check
    _
  $region31: #{tpu_custom_call.1} parent=0 // pred_check_branch
    %8649 = sbr.rel (0) target = $region33
  $region32: #{tpu_custom_call.1} parent=0 // pred_region
    _
  $region33: #{tpu_custom_call.1} parent=0 // pred_fallthru
    _
  // Predicated region
  $region34: #{tpu_custom_call.1} parent=0 // pred_check
    _
  $region35: #{tpu_custom_call.1} parent=0 // pred_check_branch
    %8651 = sbr.rel (0) target = $region37
  $region36: #{tpu_custom_call.1} parent=0 // pred_region
    _
  $region37: #{tpu_custom_call.1} parent=0 // pred_fallthru
    _

</llo_original>
